<compile_context>
chip_gen: v5e
topology: v5e:2x2
jax: 0.10.0
libtpu: 0.0.40
codegen_flags: <defaults>
</compile_context>

<pallas_src>
import functools

import jax
import jax.numpy as jnp
from jax.experimental import pallas as pl
from jax.experimental.pallas import tpu as pltpu

EPS = 1e-5
LANES = 128
SUBLANES = 8
LPAD = 8          # left spatial pad of the intermediate buffer (sublane aligned)


def _round_up(x, m):
    return (x + m - 1) // m * m


def _conv3x3_taps(src_ref, w_ref, *, left, H, W, conv_dtype):
    """sum_k window_k(src) @ w[k], accumulated in f32.

    src_ref : (N, H+2, >= left+W+2, Cp) padded activation (zeros in the halo)
    w_ref   : (9, Cp, Cp) per-tap weights, tap k = kh*3 + kw
    left    : column index in src_ref of the halo column left of pixel 0
    """
    N = src_ref.shape[0]
    Cp = src_ref.shape[-1]
    NHW = N * H * W
    acc = None
    for kh in range(3):
        for kw in range(3):
            win = src_ref[:, kh:kh + H, left + kw:left + kw + W, :]
            win = win.reshape(NHW, Cp).astype(conv_dtype)
            part = jnp.dot(win, w_ref[kh * 3 + kw],
                           preferred_element_type=jnp.float32)
            acc = part if acc is None else acc + part
    return acc


def _bn_train(y, gamma, beta):
    """Training-mode BatchNorm (biased variance) over axis 0, all in f32."""
    mean = jnp.mean(y, axis=0, keepdims=True)
    var = jnp.mean((y - mean) ** 2, axis=0, keepdims=True)
    return (y - mean) * jax.lax.rsqrt(var + EPS) * gamma + beta


def residual_kernel(xpad_ref, xflat_ref,
                    w1_ref, g1_ref, be1_ref,
                    w2_ref, g2_ref, be2_ref,
                    w3_ref, b3_ref,
                    out_ref, ypad_ref,
                    *, H, W):
    N, _, _, Cp = xpad_ref.shape
    conv_dtype = xpad_ref.dtype

    # ---- conv1: 9 accumulating per-tap MXU matmuls (no im2col scratch).
    # Conv bias omitted: exactly cancelled by the BN mean subtraction.
    y = _conv3x3_taps(xpad_ref, w1_ref, left=0, H=H, W=W,
                      conv_dtype=conv_dtype)

    # ---- bn1 (training-mode batch stats, f32) + ReLU ----
    y = jnp.maximum(_bn_train(y, g1_ref[...], be1_ref[...]), 0.0)

    # ---- padded intermediate (f32 scratch): every store sublane-aligned ----
    Wp = ypad_ref.shape[2]
    zdt = ypad_ref.dtype
    ypad_ref[:, 0:1, :, :] = jnp.zeros((N, 1, Wp, Cp), zdt)
    ypad_ref[:, H + 1:H + 2, :, :] = jnp.zeros((N, 1, Wp, Cp), zdt)
    ypad_ref[:, 1:H + 1, 0:LPAD, :] = jnp.zeros((N, H, LPAD, Cp), zdt)
    ypad_ref[:, 1:H + 1, LPAD + W:Wp, :] = jnp.zeros(
        (N, H, Wp - LPAD - W, Cp), zdt)
    ypad_ref[:, 1:H + 1, LPAD:LPAD + W, :] = y.reshape(N, H, W, Cp)

    # ---- conv2: 9 accumulating per-tap MXU matmuls ----
    y2 = _conv3x3_taps(ypad_ref, w2_ref, left=LPAD - 1, H=H, W=W,
                       conv_dtype=conv_dtype)

    # ---- bn2 (training-mode batch stats, f32) ----
    y2 = _bn_train(y2, g2_ref[...], be2_ref[...])

    # ---- 1x1-conv shortcut (use_1x1conv=True, stride=1) ----
    skip = jnp.dot(xflat_ref[...], w3_ref[...],
                   preferred_element_type=jnp.float32) + b3_ref[...]

    # ---- residual add + final ReLU: lane/sublane-dense (NHW, Cp) store ----
    out_ref[...] = jnp.maximum(y2 + skip, 0.0)


def _prep_conv3x3(w_oihw, cp, dtype):
    """(Cout, Cin, 3, 3) OIHW -> (9, cp, cp): tap-major, rows=Cin_pad, cols=Cout_pad."""
    co, ci = w_oihw.shape[0], w_oihw.shape[1]
    w = jnp.transpose(w_oihw, (2, 3, 1, 0))                  # (3, 3, Cin, Cout)
    w = jnp.pad(w, ((0, 0), (0, 0), (0, cp - ci), (0, cp - co)))
    return w.reshape(9, cp, cp).astype(dtype)


def _prep_vec(v, cp):
    # BN / bias vectors stay f32 (all BN / residual math is f32 in-kernel).
    return jnp.pad(v.reshape(1, -1),
                   ((0, 0), (0, cp - v.shape[-1]))).astype(jnp.float32)


@functools.partial(jax.jit, static_argnames=("conv_dtype",))
def residual_forward(x_nchw, w1, b1, g1, be1, w2, b2, g2, be2, w3, b3,
                     conv_dtype=jnp.bfloat16):
    """Forward of the Residual block (use_1x1conv=True, stride=1).

    x_nchw: (N, Cin, H, W) f32 (PyTorch layout).  Returns (N, Cout, H, W) f32.
    b1/b2 are accepted for interface parity but not passed to the kernel: a
    conv bias preceding training-mode BatchNorm is cancelled by the mean
    subtraction.
    """
    del b1, b2
    N, Cin, H, W = x_nchw.shape
    Cout = w1.shape[0]
    cp = _round_up(max(Cin, Cout), LANES)       # lane-dense channel padding
    NHW = N * H * W

    x = jnp.transpose(x_nchw, (0, 2, 3, 1))     # -> NHWC
    xc = jnp.pad(x, ((0, 0), (0, 0), (0, 0), (0, cp - Cin)))
    x_flat = xc.reshape(NHW, cp).astype(conv_dtype)

    # Spatial halo pad done by XLA; right-pad W to a sublane multiple so the
    # kernel's VMEM copy of the padded input is dense.
    wp_x = _round_up(W + 2, SUBLANES)
    x_pad = jnp.pad(xc, ((0, 0), (1, 1), (1, wp_x - (W + 1)),
                         (0, 0))).astype(conv_dtype)

    # Sublane-dense width of the padded-intermediate scratch.
    wp_y = _round_up(LPAD + W + 1, SUBLANES)

    w1k = _prep_conv3x3(w1, cp, conv_dtype)
    w2k = _prep_conv3x3(w2, cp, conv_dtype)
    w3k = jnp.pad(jnp.transpose(w3[:, :, 0, 0], (1, 0)),
                  ((0, cp - Cin), (0, cp - Cout))).astype(conv_dtype)

    args = (x_pad, x_flat,
            w1k, _prep_vec(g1, cp), _prep_vec(be1, cp),
            w2k, _prep_vec(g2, cp), _prep_vec(be2, cp),
            w3k, _prep_vec(b3, cp))

    vmem = pl.BlockSpec(memory_space=pltpu.MemorySpace.VMEM)
    out = pl.pallas_call(
        functools.partial(residual_kernel, H=H, W=W),
        out_shape=jax.ShapeDtypeStruct((NHW, cp), jnp.float32),
        in_specs=[vmem] * len(args),
        out_specs=vmem,
        scratch_shapes=[
            # Padded intermediate activation (f32; sublane/lane dense).
            pltpu.VMEM((N, H + 2, wp_y, cp), jnp.float32),
        ],
        compiler_params=pltpu.CompilerParams(
            # Footprint is a few MiB at these shapes; 32 MiB is safely under
            # v7x's 64 MiB physical VMEM as well as v5e/v6e limits.
            vmem_limit_bytes=32 * 1024 * 1024),
    )(*args)

    # Undo the lane-dense output layout: (NHW, cp) -> (N, Cout, H, W).
    out = out.reshape(N, H, W, cp)[:, :, :, :Cout]
    return jnp.transpose(out, (0, 3, 1, 2))


# ------------------------- pure-JAX reference -------------------------
def _conv3x3_ref(x, w_oihw, b):
    w_hwio = jnp.transpose(w_oihw, (2, 3, 1, 0))
    y = jax.lax.conv_general_dilated(
        x, w_hwio, window_strides=(1, 1), padding=((1, 1), (1, 1)),
        dimension_numbers=("NHWC", "HWIO", "NHWC"))
    return y + b.reshape(1, 1, 1, -1)


def _bn_ref(y, g, b):
    mean = jnp.mean(y, axis=(0, 1, 2), keepdims=True)
    var = jnp.mean((y - mean) ** 2, axis=(0, 1, 2), keepdims=True)
    return (y - mean) * jax.lax.rsqrt(var + EPS) * g.reshape(1, 1, 1, -1) \
        + b.reshape(1, 1, 1, -1)


def residual_ref(x_nchw, w1, b1, g1, be1, w2, b2, g2, be2, w3, b3):
    x = jnp.transpose(x_nchw, (0, 2, 3, 1))
    y = jax.nn.relu(_bn_ref(_conv3x3_ref(x, w1, b1), g1, be1))
    y = _bn_ref(_conv3x3_ref(y, w2, b2), g2, be2)
    skip = jnp.einsum("nhwc,oc->nhwo", x, w3[:, :, 0, 0]) \
        + b3.reshape(1, 1, 1, -1)
    return jnp.transpose(jax.nn.relu(y + skip), (0, 3, 1, 2))


# ------------------------------ main -----------------------------------
if __name__ == "__main__":
    N, Cin, Cout, H, W = 2, 4, 8, 16, 16
    key = jax.random.PRNGKey(0)
    ks = jax.random.split(key, 12)

    x = jax.random.normal(ks[0], (N, Cin, H, W), jnp.float32)

    # PyTorch-layout (OIHW) parameters, deterministically initialized.
    w1 = jax.random.normal(ks[1], (Cout, Cin, 3, 3), jnp.float32) * 0.2
    b1 = jax.random.normal(ks[2], (Cout,), jnp.float32) * 0.1
    w2 = jax.random.normal(ks[3], (Cout, Cout, 3, 3), jnp.float32) * 0.2
    b2 = jax.random.normal(ks[4], (Cout,), jnp.float32) * 0.1
    w3 = jax.random.normal(ks[5], (Cout, Cin, 1, 1), jnp.float32) * 0.2
    b3 = jax.random.normal(ks[6], (Cout,), jnp.float32) * 0.1
    g1 = 1.0 + jax.random.normal(ks[7], (Cout,), jnp.float32) * 0.1
    be1 = jax.random.normal(ks[8], (Cout,), jnp.float32) * 0.1
    g2 = 1.0 + jax.random.normal(ks[9], (Cout,), jnp.float32) * 0.1
    be2 = jax.random.normal(ks[10], (Cout,), jnp.float32) * 0.1

    params = (w1, b1, g1, be1, w2, b2, g2, be2, w3, b3)
    ref = residual_ref(x, *params)

    # f32 conv operands: tight check against the pure-JAX reference.
    out_f32 = jax.block_until_ready(
        residual_forward(x, *params, conv_dtype=jnp.float32))
    assert out_f32.shape == (N, Cout, H, W)
    assert jnp.allclose(out_f32, ref, atol=1e-3, rtol=1e-3), (
        float(jnp.max(jnp.abs(out_f32 - ref))))

    # bf16 conv operands (default; v6e/v7x MXU rate): small drift expected,
    # accumulation / BN / residual math stay in f32.
    out_bf16 = jax.block_until_ready(residual_forward(x, *params))
    assert out_bf16.shape == (N, Cout, H, W)
    assert jnp.allclose(out_bf16, ref, atol=1e-1, rtol=1e-1), (
        float(jnp.max(jnp.abs(out_bf16 - ref))))

    print("KERNEL_OK")
</pallas_src>

<mosaic_0001>
module attributes {stable_mosaic.version = 11 : i64} {
  func.func @residual_kernel(%arg0: memref<2x18x24x128xf32, #tpu.memory_space<vmem>>, %arg1: memref<512x128xf32, #tpu.memory_space<vmem>>, %arg2: memref<9x128x128xf32, #tpu.memory_space<vmem>>, %arg3: memref<1x128xf32, #tpu.memory_space<vmem>>, %arg4: memref<1x128xf32, #tpu.memory_space<vmem>>, %arg5: memref<9x128x128xf32, #tpu.memory_space<vmem>>, %arg6: memref<1x128xf32, #tpu.memory_space<vmem>>, %arg7: memref<1x128xf32, #tpu.memory_space<vmem>>, %arg8: memref<128x128xf32, #tpu.memory_space<vmem>>, %arg9: memref<1x128xf32, #tpu.memory_space<vmem>>, %arg10: memref<512x128xf32, #tpu.memory_space<vmem>>, %arg11: memref<2x18x32x128xf32, #tpu.memory_space<vmem>>) attributes {dimension_semantics = [], scalar_prefetch = 0 : i64, scratch_operands = 1 : i64, tpu.core_type = #tpu.core_type<tc>} {
    %c0 = arith.constant 0 : index
    %c0_0 = arith.constant 0 : index
    %c0_1 = arith.constant 0 : index
    %c0_2 = arith.constant 0 : index
    %0 = vector.load %arg0[%c0, %c0_0, %c0_1, %c0_2] : memref<2x18x24x128xf32, #tpu.memory_space<vmem>>, vector<2x16x16x128xf32>
    %1 = vector.shape_cast %0 : vector<2x16x16x128xf32> to vector<512x128xf32>
    %c0_3 = arith.constant 0 : index
    %c0_4 = arith.constant 0 : index
    %c0_5 = arith.constant 0 : index
    %2 = vector.load %arg2[%c0_3, %c0_4, %c0_5] : memref<9x128x128xf32, #tpu.memory_space<vmem>>, vector<1x128x128xf32>
    %3 = vector.shape_cast %2 : vector<1x128x128xf32> to vector<128x128xf32>
    %cst = arith.constant dense<0.000000e+00> : vector<512x128xf32>
    %4 = tpu.matmul %1, %3, %cst {dimension_numbers = #tpu.dot_dimension_numbers<[1], [0], [0], [1], [0, 0, 1, 1], [], []>} : vector<512x128xf32>, vector<128x128xf32>, vector<512x128xf32> -> vector<512x128xf32>
    %c0_6 = arith.constant 0 : index
    %c0_7 = arith.constant 0 : index
    %c1 = arith.constant 1 : index
    %c0_8 = arith.constant 0 : index
    %5 = vector.load %arg0[%c0_6, %c0_7, %c1, %c0_8] : memref<2x18x24x128xf32, #tpu.memory_space<vmem>>, vector<2x16x16x128xf32>
    %6 = vector.shape_cast %5 : vector<2x16x16x128xf32> to vector<512x128xf32>
    %c1_9 = arith.constant 1 : index
    %c0_10 = arith.constant 0 : index
    %c0_11 = arith.constant 0 : index
    %7 = vector.load %arg2[%c1_9, %c0_10, %c0_11] : memref<9x128x128xf32, #tpu.memory_space<vmem>>, vector<1x128x128xf32>
    %8 = vector.shape_cast %7 : vector<1x128x128xf32> to vector<128x128xf32>
    %cst_12 = arith.constant dense<0.000000e+00> : vector<512x128xf32>
    %9 = tpu.matmul %6, %8, %cst_12 {dimension_numbers = #tpu.dot_dimension_numbers<[1], [0], [0], [1], [0, 0, 1, 1], [], []>} : vector<512x128xf32>, vector<128x128xf32>, vector<512x128xf32> -> vector<512x128xf32>
    %10 = arith.addf %4, %9 : vector<512x128xf32>
    %c0_13 = arith.constant 0 : index
    %c0_14 = arith.constant 0 : index
    %c2 = arith.constant 2 : index
    %c0_15 = arith.constant 0 : index
    %11 = vector.load %arg0[%c0_13, %c0_14, %c2, %c0_15] : memref<2x18x24x128xf32, #tpu.memory_space<vmem>>, vector<2x16x16x128xf32>
    %12 = vector.shape_cast %11 : vector<2x16x16x128xf32> to vector<512x128xf32>
    %c2_16 = arith.constant 2 : index
    %c0_17 = arith.constant 0 : index
    %c0_18 = arith.constant 0 : index
    %13 = vector.load %arg2[%c2_16, %c0_17, %c0_18] : memref<9x128x128xf32, #tpu.memory_space<vmem>>, vector<1x128x128xf32>
    %14 = vector.shape_cast %13 : vector<1x128x128xf32> to vector<128x128xf32>
    %cst_19 = arith.constant dense<0.000000e+00> : vector<512x128xf32>
    %15 = tpu.matmul %12, %14, %cst_19 {dimension_numbers = #tpu.dot_dimension_numbers<[1], [0], [0], [1], [0, 0, 1, 1], [], []>} : vector<512x128xf32>, vector<128x128xf32>, vector<512x128xf32> -> vector<512x128xf32>
    %16 = arith.addf %10, %15 : vector<512x128xf32>
    %c0_20 = arith.constant 0 : index
    %c1_21 = arith.constant 1 : index
    %c0_22 = arith.constant 0 : index
    %c0_23 = arith.constant 0 : index
    %17 = vector.load %arg0[%c0_20, %c1_21, %c0_22, %c0_23] : memref<2x18x24x128xf32, #tpu.memory_space<vmem>>, vector<2x16x16x128xf32>
    %18 = vector.shape_cast %17 : vector<2x16x16x128xf32> to vector<512x128xf32>
    %c3 = arith.constant 3 : index
    %c0_24 = arith.constant 0 : index
    %c0_25 = arith.constant 0 : index
    %19 = vector.load %arg2[%c3, %c0_24, %c0_25] : memref<9x128x128xf32, #tpu.memory_space<vmem>>, vector<1x128x128xf32>
    %20 = vector.shape_cast %19 : vector<1x128x128xf32> to vector<128x128xf32>
    %cst_26 = arith.constant dense<0.000000e+00> : vector<512x128xf32>
    %21 = tpu.matmul %18, %20, %cst_26 {dimension_numbers = #tpu.dot_dimension_numbers<[1], [0], [0], [1], [0, 0, 1, 1], [], []>} : vector<512x128xf32>, vector<128x128xf32>, vector<512x128xf32> -> vector<512x128xf32>
    %22 = arith.addf %16, %21 : vector<512x128xf32>
    %c0_27 = arith.constant 0 : index
    %c1_28 = arith.constant 1 : index
    %c1_29 = arith.constant 1 : index
    %c0_30 = arith.constant 0 : index
    %23 = vector.load %arg0[%c0_27, %c1_28, %c1_29, %c0_30] : memref<2x18x24x128xf32, #tpu.memory_space<vmem>>, vector<2x16x16x128xf32>
    %24 = vector.shape_cast %23 : vector<2x16x16x128xf32> to vector<512x128xf32>
    %c4 = arith.constant 4 : index
    %c0_31 = arith.constant 0 : index
    %c0_32 = arith.constant 0 : index
    %25 = vector.load %arg2[%c4, %c0_31, %c0_32] : memref<9x128x128xf32, #tpu.memory_space<vmem>>, vector<1x128x128xf32>
    %26 = vector.shape_cast %25 : vector<1x128x128xf32> to vector<128x128xf32>
    %cst_33 = arith.constant dense<0.000000e+00> : vector<512x128xf32>
    %27 = tpu.matmul %24, %26, %cst_33 {dimension_numbers = #tpu.dot_dimension_numbers<[1], [0], [0], [1], [0, 0, 1, 1], [], []>} : vector<512x128xf32>, vector<128x128xf32>, vector<512x128xf32> -> vector<512x128xf32>
    %28 = arith.addf %22, %27 : vector<512x128xf32>
    %c0_34 = arith.constant 0 : index
    %c1_35 = arith.constant 1 : index
    %c2_36 = arith.constant 2 : index
    %c0_37 = arith.constant 0 : index
    %29 = vector.load %arg0[%c0_34, %c1_35, %c2_36, %c0_37] : memref<2x18x24x128xf32, #tpu.memory_space<vmem>>, vector<2x16x16x128xf32>
    %30 = vector.shape_cast %29 : vector<2x16x16x128xf32> to vector<512x128xf32>
    %c5 = arith.constant 5 : index
    %c0_38 = arith.constant 0 : index
    %c0_39 = arith.constant 0 : index
    %31 = vector.load %arg2[%c5, %c0_38, %c0_39] : memref<9x128x128xf32, #tpu.memory_space<vmem>>, vector<1x128x128xf32>
    %32 = vector.shape_cast %31 : vector<1x128x128xf32> to vector<128x128xf32>
    %cst_40 = arith.constant dense<0.000000e+00> : vector<512x128xf32>
    %33 = tpu.matmul %30, %32, %cst_40 {dimension_numbers = #tpu.dot_dimension_numbers<[1], [0], [0], [1], [0, 0, 1, 1], [], []>} : vector<512x128xf32>, vector<128x128xf32>, vector<512x128xf32> -> vector<512x128xf32>
    %34 = arith.addf %28, %33 : vector<512x128xf32>
    %c0_41 = arith.constant 0 : index
    %c2_42 = arith.constant 2 : index
    %c0_43 = arith.constant 0 : index
    %c0_44 = arith.constant 0 : index
    %35 = vector.load %arg0[%c0_41, %c2_42, %c0_43, %c0_44] : memref<2x18x24x128xf32, #tpu.memory_space<vmem>>, vector<2x16x16x128xf32>
    %36 = vector.shape_cast %35 : vector<2x16x16x128xf32> to vector<512x128xf32>
    %c6 = arith.constant 6 : index
    %c0_45 = arith.constant 0 : index
    %c0_46 = arith.constant 0 : index
    %37 = vector.load %arg2[%c6, %c0_45, %c0_46] : memref<9x128x128xf32, #tpu.memory_space<vmem>>, vector<1x128x128xf32>
    %38 = vector.shape_cast %37 : vector<1x128x128xf32> to vector<128x128xf32>
    %cst_47 = arith.constant dense<0.000000e+00> : vector<512x128xf32>
    %39 = tpu.matmul %36, %38, %cst_47 {dimension_numbers = #tpu.dot_dimension_numbers<[1], [0], [0], [1], [0, 0, 1, 1], [], []>} : vector<512x128xf32>, vector<128x128xf32>, vector<512x128xf32> -> vector<512x128xf32>
    %40 = arith.addf %34, %39 : vector<512x128xf32>
    %c0_48 = arith.constant 0 : index
    %c2_49 = arith.constant 2 : index
    %c1_50 = arith.constant 1 : index
    %c0_51 = arith.constant 0 : index
    %41 = vector.load %arg0[%c0_48, %c2_49, %c1_50, %c0_51] : memref<2x18x24x128xf32, #tpu.memory_space<vmem>>, vector<2x16x16x128xf32>
    %42 = vector.shape_cast %41 : vector<2x16x16x128xf32> to vector<512x128xf32>
    %c7 = arith.constant 7 : index
    %c0_52 = arith.constant 0 : index
    %c0_53 = arith.constant 0 : index
    %43 = vector.load %arg2[%c7, %c0_52, %c0_53] : memref<9x128x128xf32, #tpu.memory_space<vmem>>, vector<1x128x128xf32>
    %44 = vector.shape_cast %43 : vector<1x128x128xf32> to vector<128x128xf32>
    %cst_54 = arith.constant dense<0.000000e+00> : vector<512x128xf32>
    %45 = tpu.matmul %42, %44, %cst_54 {dimension_numbers = #tpu.dot_dimension_numbers<[1], [0], [0], [1], [0, 0, 1, 1], [], []>} : vector<512x128xf32>, vector<128x128xf32>, vector<512x128xf32> -> vector<512x128xf32>
    %46 = arith.addf %40, %45 : vector<512x128xf32>
    %c0_55 = arith.constant 0 : index
    %c2_56 = arith.constant 2 : index
    %c2_57 = arith.constant 2 : index
    %c0_58 = arith.constant 0 : index
    %47 = vector.load %arg0[%c0_55, %c2_56, %c2_57, %c0_58] : memref<2x18x24x128xf32, #tpu.memory_space<vmem>>, vector<2x16x16x128xf32>
    %48 = vector.shape_cast %47 : vector<2x16x16x128xf32> to vector<512x128xf32>
    %c8 = arith.constant 8 : index
    %c0_59 = arith.constant 0 : index
    %c0_60 = arith.constant 0 : index
    %49 = vector.load %arg2[%c8, %c0_59, %c0_60] : memref<9x128x128xf32, #tpu.memory_space<vmem>>, vector<1x128x128xf32>
    %50 = vector.shape_cast %49 : vector<1x128x128xf32> to vector<128x128xf32>
    %cst_61 = arith.constant dense<0.000000e+00> : vector<512x128xf32>
    %51 = tpu.matmul %48, %50, %cst_61 {dimension_numbers = #tpu.dot_dimension_numbers<[1], [0], [0], [1], [0, 0, 1, 1], [], []>} : vector<512x128xf32>, vector<128x128xf32>, vector<512x128xf32> -> vector<512x128xf32>
    %52 = arith.addf %46, %51 : vector<512x128xf32>
    %c0_62 = arith.constant 0 : index
    %c0_63 = arith.constant 0 : index
    %53 = vector.load %arg3[%c0_62, %c0_63] : memref<1x128xf32, #tpu.memory_space<vmem>>, vector<1x128xf32>
    %c0_64 = arith.constant 0 : index
    %c0_65 = arith.constant 0 : index
    %54 = vector.load %arg4[%c0_64, %c0_65] : memref<1x128xf32, #tpu.memory_space<vmem>>, vector<1x128xf32>
    %cst_66 = arith.constant dense<0.000000e+00> : vector<128xf32>
    %55 = vector.multi_reduction <add>, %52, %cst_66 [0] : vector<512x128xf32> to vector<128xf32>
    %56 = vector.shape_cast %55 : vector<128xf32> to vector<1x128xf32>
    %cst_67 = arith.constant 5.120000e+02 : f32
    %57 = vector.broadcast %cst_67 : f32 to vector<1x128xf32>
    %58 = arith.divf %56, %57 : vector<1x128xf32>
    %59 = vector.broadcast %58 : vector<1x128xf32> to vector<512x128xf32>
    %60 = arith.subf %52, %59 : vector<512x128xf32>
    %61 = arith.mulf %60, %60 : vector<512x128xf32>
    %cst_68 = arith.constant dense<0.000000e+00> : vector<128xf32>
    %62 = vector.multi_reduction <add>, %61, %cst_68 [0] : vector<512x128xf32> to vector<128xf32>
    %63 = vector.shape_cast %62 : vector<128xf32> to vector<1x128xf32>
    %cst_69 = arith.constant 5.120000e+02 : f32
    %64 = vector.broadcast %cst_69 : f32 to vector<1x128xf32>
    %65 = arith.divf %63, %64 : vector<1x128xf32>
    %66 = vector.broadcast %58 : vector<1x128xf32> to vector<512x128xf32>
    %67 = arith.subf %52, %66 : vector<512x128xf32>
    %cst_70 = arith.constant 9.99999974E-6 : f32
    %68 = vector.broadcast %cst_70 : f32 to vector<1x128xf32>
    %69 = arith.addf %65, %68 : vector<1x128xf32>
    %70 = math.rsqrt %69 : vector<1x128xf32>
    %71 = vector.broadcast %70 : vector<1x128xf32> to vector<512x128xf32>
    %72 = arith.mulf %67, %71 : vector<512x128xf32>
    %73 = vector.broadcast %53 : vector<1x128xf32> to vector<512x128xf32>
    %74 = arith.mulf %72, %73 : vector<512x128xf32>
    %75 = vector.broadcast %54 : vector<1x128xf32> to vector<512x128xf32>
    %76 = arith.addf %74, %75 : vector<512x128xf32>
    %cst_71 = arith.constant 0.000000e+00 : f32
    %77 = vector.broadcast %cst_71 : f32 to vector<512x128xf32>
    %78 = arith.maximumf %76, %77 : vector<512x128xf32>
    %cst_72 = arith.constant 0.000000e+00 : f32
    %79 = vector.broadcast %cst_72 : f32 to vector<2x1x32x128xf32>
    %c0_73 = arith.constant 0 : index
    %c0_74 = arith.constant 0 : index
    %c0_75 = arith.constant 0 : index
    %c0_76 = arith.constant 0 : index
    %80 = vector.load %arg11[%c0_73, %c0_74, %c0_75, %c0_76] : memref<2x18x32x128xf32, #tpu.memory_space<vmem>>, vector<2x1x32x128xf32>
    tpu.vector_store %arg11[%c0_73, %c0_74, %c0_75, %c0_76], %79 {strides = array<i32>} : memref<2x18x32x128xf32, #tpu.memory_space<vmem>>, vector<2x1x32x128xf32>,
    %cst_77 = arith.constant 0.000000e+00 : f32
    %81 = vector.broadcast %cst_77 : f32 to vector<2x1x32x128xf32>
    %c0_78 = arith.constant 0 : index
    %c17 = arith.constant 17 : index
    %c0_79 = arith.constant 0 : index
    %c0_80 = arith.constant 0 : index
    %82 = vector.load %arg11[%c0_78, %c17, %c0_79, %c0_80] : memref<2x18x32x128xf32, #tpu.memory_space<vmem>>, vector<2x1x32x128xf32>
    tpu.vector_store %arg11[%c0_78, %c17, %c0_79, %c0_80], %81 {strides = array<i32>} : memref<2x18x32x128xf32, #tpu.memory_space<vmem>>, vector<2x1x32x128xf32>,
    %cst_81 = arith.constant 0.000000e+00 : f32
    %83 = vector.broadcast %cst_81 : f32 to vector<2x16x8x128xf32>
    %c0_82 = arith.constant 0 : index
    %c1_83 = arith.constant 1 : index
    %c0_84 = arith.constant 0 : index
    %c0_85 = arith.constant 0 : index
    %84 = vector.load %arg11[%c0_82, %c1_83, %c0_84, %c0_85] : memref<2x18x32x128xf32, #tpu.memory_space<vmem>>, vector<2x16x8x128xf32>
    tpu.vector_store %arg11[%c0_82, %c1_83, %c0_84, %c0_85], %83 {strides = array<i32>} : memref<2x18x32x128xf32, #tpu.memory_space<vmem>>, vector<2x16x8x128xf32>,
    %cst_86 = arith.constant 0.000000e+00 : f32
    %85 = vector.broadcast %cst_86 : f32 to vector<2x16x8x128xf32>
    %c0_87 = arith.constant 0 : index
    %c1_88 = arith.constant 1 : index
    %c24 = arith.constant 24 : index
    %c0_89 = arith.constant 0 : index
    %86 = vector.load %arg11[%c0_87, %c1_88, %c24, %c0_89] : memref<2x18x32x128xf32, #tpu.memory_space<vmem>>, vector<2x16x8x128xf32>
    tpu.vector_store %arg11[%c0_87, %c1_88, %c24, %c0_89], %85 {strides = array<i32>} : memref<2x18x32x128xf32, #tpu.memory_space<vmem>>, vector<2x16x8x128xf32>,
    %87 = vector.shape_cast %78 : vector<512x128xf32> to vector<2x16x16x128xf32>
    %c0_90 = arith.constant 0 : index
    %c1_91 = arith.constant 1 : index
    %c8_92 = arith.constant 8 : index
    %c0_93 = arith.constant 0 : index
    %88 = vector.load %arg11[%c0_90, %c1_91, %c8_92, %c0_93] : memref<2x18x32x128xf32, #tpu.memory_space<vmem>>, vector<2x16x16x128xf32>
    tpu.vector_store %arg11[%c0_90, %c1_91, %c8_92, %c0_93], %87 {strides = array<i32>} : memref<2x18x32x128xf32, #tpu.memory_space<vmem>>, vector<2x16x16x128xf32>,
    %c0_94 = arith.constant 0 : index
    %c0_95 = arith.constant 0 : index
    %c7_96 = arith.constant 7 : index
    %c0_97 = arith.constant 0 : index
    %89 = vector.load %arg11[%c0_94, %c0_95, %c7_96, %c0_97] : memref<2x18x32x128xf32, #tpu.memory_space<vmem>>, vector<2x16x16x128xf32>
    %90 = vector.shape_cast %89 : vector<2x16x16x128xf32> to vector<512x128xf32>
    %c0_98 = arith.constant 0 : index
    %c0_99 = arith.constant 0 : index
    %c0_100 = arith.constant 0 : index
    %91 = vector.load %arg5[%c0_98, %c0_99, %c0_100] : memref<9x128x128xf32, #tpu.memory_space<vmem>>, vector<1x128x128xf32>
    %92 = vector.shape_cast %91 : vector<1x128x128xf32> to vector<128x128xf32>
    %cst_101 = arith.constant dense<0.000000e+00> : vector<512x128xf32>
    %93 = tpu.matmul %90, %92, %cst_101 {dimension_numbers = #tpu.dot_dimension_numbers<[1], [0], [0], [1], [0, 0, 1, 1], [], []>} : vector<512x128xf32>, vector<128x128xf32>, vector<512x128xf32> -> vector<512x128xf32>
    %c0_102 = arith.constant 0 : index
    %c0_103 = arith.constant 0 : index
    %c8_104 = arith.constant 8 : index
    %c0_105 = arith.constant 0 : index
    %94 = vector.load %arg11[%c0_102, %c0_103, %c8_104, %c0_105] : memref<2x18x32x128xf32, #tpu.memory_space<vmem>>, vector<2x16x16x128xf32>
    %95 = vector.shape_cast %94 : vector<2x16x16x128xf32> to vector<512x128xf32>
    %c1_106 = arith.constant 1 : index
    %c0_107 = arith.constant 0 : index
    %c0_108 = arith.constant 0 : index
    %96 = vector.load %arg5[%c1_106, %c0_107, %c0_108] : memref<9x128x128xf32, #tpu.memory_space<vmem>>, vector<1x128x128xf32>
    %97 = vector.shape_cast %96 : vector<1x128x128xf32> to vector<128x128xf32>
    %cst_109 = arith.constant dense<0.000000e+00> : vector<512x128xf32>
    %98 = tpu.matmul %95, %97, %cst_109 {dimension_numbers = #tpu.dot_dimension_numbers<[1], [0], [0], [1], [0, 0, 1, 1], [], []>} : vector<512x128xf32>, vector<128x128xf32>, vector<512x128xf32> -> vector<512x128xf32>
    %99 = arith.addf %93, %98 : vector<512x128xf32>
    %c0_110 = arith.constant 0 : index
    %c0_111 = arith.constant 0 : index
    %c9 = arith.constant 9 : index
    %c0_112 = arith.constant 0 : index
    %100 = vector.load %arg11[%c0_110, %c0_111, %c9, %c0_112] : memref<2x18x32x128xf32, #tpu.memory_space<vmem>>, vector<2x16x16x128xf32>
    %101 = vector.shape_cast %100 : vector<2x16x16x128xf32> to vector<512x128xf32>
    %c2_113 = arith.constant 2 : index
    %c0_114 = arith.constant 0 : index
    %c0_115 = arith.constant 0 : index
    %102 = vector.load %arg5[%c2_113, %c0_114, %c0_115] : memref<9x128x128xf32, #tpu.memory_space<vmem>>, vector<1x128x128xf32>
    %103 = vector.shape_cast %102 : vector<1x128x128xf32> to vector<128x128xf32>
    %cst_116 = arith.constant dense<0.000000e+00> : vector<512x128xf32>
    %104 = tpu.matmul %101, %103, %cst_116 {dimension_numbers = #tpu.dot_dimension_numbers<[1], [0], [0], [1], [0, 0, 1, 1], [], []>} : vector<512x128xf32>, vector<128x128xf32>, vector<512x128xf32> -> vector<512x128xf32>
    %105 = arith.addf %99, %104 : vector<512x128xf32>
    %c0_117 = arith.constant 0 : index
    %c1_118 = arith.constant 1 : index
    %c7_119 = arith.constant 7 : index
    %c0_120 = arith.constant 0 : index
    %106 = vector.load %arg11[%c0_117, %c1_118, %c7_119, %c0_120] : memref<2x18x32x128xf32, #tpu.memory_space<vmem>>, vector<2x16x16x128xf32>
    %107 = vector.shape_cast %106 : vector<2x16x16x128xf32> to vector<512x128xf32>
    %c3_121 = arith.constant 3 : index
    %c0_122 = arith.constant 0 : index
    %c0_123 = arith.constant 0 : index
    %108 = vector.load %arg5[%c3_121, %c0_122, %c0_123] : memref<9x128x128xf32, #tpu.memory_space<vmem>>, vector<1x128x128xf32>
    %109 = vector.shape_cast %108 : vector<1x128x128xf32> to vector<128x128xf32>
    %cst_124 = arith.constant dense<0.000000e+00> : vector<512x128xf32>
    %110 = tpu.matmul %107, %109, %cst_124 {dimension_numbers = #tpu.dot_dimension_numbers<[1], [0], [0], [1], [0, 0, 1, 1], [], []>} : vector<512x128xf32>, vector<128x128xf32>, vector<512x128xf32> -> vector<512x128xf32>
    %111 = arith.addf %105, %110 : vector<512x128xf32>
    %c0_125 = arith.constant 0 : index
    %c1_126 = arith.constant 1 : index
    %c8_127 = arith.constant 8 : index
    %c0_128 = arith.constant 0 : index
    %112 = vector.load %arg11[%c0_125, %c1_126, %c8_127, %c0_128] : memref<2x18x32x128xf32, #tpu.memory_space<vmem>>, vector<2x16x16x128xf32>
    %113 = vector.shape_cast %112 : vector<2x16x16x128xf32> to vector<512x128xf32>
    %c4_129 = arith.constant 4 : index
    %c0_130 = arith.constant 0 : index
    %c0_131 = arith.constant 0 : index
    %114 = vector.load %arg5[%c4_129, %c0_130, %c0_131] : memref<9x128x128xf32, #tpu.memory_space<vmem>>, vector<1x128x128xf32>
    %115 = vector.shape_cast %114 : vector<1x128x128xf32> to vector<128x128xf32>
    %cst_132 = arith.constant dense<0.000000e+00> : vector<512x128xf32>
    %116 = tpu.matmul %113, %115, %cst_132 {dimension_numbers = #tpu.dot_dimension_numbers<[1], [0], [0], [1], [0, 0, 1, 1], [], []>} : vector<512x128xf32>, vector<128x128xf32>, vector<512x128xf32> -> vector<512x128xf32>
    %117 = arith.addf %111, %116 : vector<512x128xf32>
    %c0_133 = arith.constant 0 : index
    %c1_134 = arith.constant 1 : index
    %c9_135 = arith.constant 9 : index
    %c0_136 = arith.constant 0 : index
    %118 = vector.load %arg11[%c0_133, %c1_134, %c9_135, %c0_136] : memref<2x18x32x128xf32, #tpu.memory_space<vmem>>, vector<2x16x16x128xf32>
    %119 = vector.shape_cast %118 : vector<2x16x16x128xf32> to vector<512x128xf32>
    %c5_137 = arith.constant 5 : index
    %c0_138 = arith.constant 0 : index
    %c0_139 = arith.constant 0 : index
    %120 = vector.load %arg5[%c5_137, %c0_138, %c0_139] : memref<9x128x128xf32, #tpu.memory_space<vmem>>, vector<1x128x128xf32>
    %121 = vector.shape_cast %120 : vector<1x128x128xf32> to vector<128x128xf32>
    %cst_140 = arith.constant dense<0.000000e+00> : vector<512x128xf32>
    %122 = tpu.matmul %119, %121, %cst_140 {dimension_numbers = #tpu.dot_dimension_numbers<[1], [0], [0], [1], [0, 0, 1, 1], [], []>} : vector<512x128xf32>, vector<128x128xf32>, vector<512x128xf32> -> vector<512x128xf32>
    %123 = arith.addf %117, %122 : vector<512x128xf32>
    %c0_141 = arith.constant 0 : index
    %c2_142 = arith.constant 2 : index
    %c7_143 = arith.constant 7 : index
    %c0_144 = arith.constant 0 : index
    %124 = vector.load %arg11[%c0_141, %c2_142, %c7_143, %c0_144] : memref<2x18x32x128xf32, #tpu.memory_space<vmem>>, vector<2x16x16x128xf32>
    %125 = vector.shape_cast %124 : vector<2x16x16x128xf32> to vector<512x128xf32>
    %c6_145 = arith.constant 6 : index
    %c0_146 = arith.constant 0 : index
    %c0_147 = arith.constant 0 : index
    %126 = vector.load %arg5[%c6_145, %c0_146, %c0_147] : memref<9x128x128xf32, #tpu.memory_space<vmem>>, vector<1x128x128xf32>
    %127 = vector.shape_cast %126 : vector<1x128x128xf32> to vector<128x128xf32>
    %cst_148 = arith.constant dense<0.000000e+00> : vector<512x128xf32>
    %128 = tpu.matmul %125, %127, %cst_148 {dimension_numbers = #tpu.dot_dimension_numbers<[1], [0], [0], [1], [0, 0, 1, 1], [], []>} : vector<512x128xf32>, vector<128x128xf32>, vector<512x128xf32> -> vector<512x128xf32>
    %129 = arith.addf %123, %128 : vector<512x128xf32>
    %c0_149 = arith.constant 0 : index
    %c2_150 = arith.constant 2 : index
    %c8_151 = arith.constant 8 : index
    %c0_152 = arith.constant 0 : index
    %130 = vector.load %arg11[%c0_149, %c2_150, %c8_151, %c0_152] : memref<2x18x32x128xf32, #tpu.memory_space<vmem>>, vector<2x16x16x128xf32>
    %131 = vector.shape_cast %130 : vector<2x16x16x128xf32> to vector<512x128xf32>
    %c7_153 = arith.constant 7 : index
    %c0_154 = arith.constant 0 : index
    %c0_155 = arith.constant 0 : index
    %132 = vector.load %arg5[%c7_153, %c0_154, %c0_155] : memref<9x128x128xf32, #tpu.memory_space<vmem>>, vector<1x128x128xf32>
    %133 = vector.shape_cast %132 : vector<1x128x128xf32> to vector<128x128xf32>
    %cst_156 = arith.constant dense<0.000000e+00> : vector<512x128xf32>
    %134 = tpu.matmul %131, %133, %cst_156 {dimension_numbers = #tpu.dot_dimension_numbers<[1], [0], [0], [1], [0, 0, 1, 1], [], []>} : vector<512x128xf32>, vector<128x128xf32>, vector<512x128xf32> -> vector<512x128xf32>
    %135 = arith.addf %129, %134 : vector<512x128xf32>
    %c0_157 = arith.constant 0 : index
    %c2_158 = arith.constant 2 : index
    %c9_159 = arith.constant 9 : index
    %c0_160 = arith.constant 0 : index
    %136 = vector.load %arg11[%c0_157, %c2_158, %c9_159, %c0_160] : memref<2x18x32x128xf32, #tpu.memory_space<vmem>>, vector<2x16x16x128xf32>
    %137 = vector.shape_cast %136 : vector<2x16x16x128xf32> to vector<512x128xf32>
    %c8_161 = arith.constant 8 : index
    %c0_162 = arith.constant 0 : index
    %c0_163 = arith.constant 0 : index
    %138 = vector.load %arg5[%c8_161, %c0_162, %c0_163] : memref<9x128x128xf32, #tpu.memory_space<vmem>>, vector<1x128x128xf32>
    %139 = vector.shape_cast %138 : vector<1x128x128xf32> to vector<128x128xf32>
    %cst_164 = arith.constant dense<0.000000e+00> : vector<512x128xf32>
    %140 = tpu.matmul %137, %139, %cst_164 {dimension_numbers = #tpu.dot_dimension_numbers<[1], [0], [0], [1], [0, 0, 1, 1], [], []>} : vector<512x128xf32>, vector<128x128xf32>, vector<512x128xf32> -> vector<512x128xf32>
    %141 = arith.addf %135, %140 : vector<512x128xf32>
    %c0_165 = arith.constant 0 : index
    %c0_166 = arith.constant 0 : index
    %142 = vector.load %arg6[%c0_165, %c0_166] : memref<1x128xf32, #tpu.memory_space<vmem>>, vector<1x128xf32>
    %c0_167 = arith.constant 0 : index
    %c0_168 = arith.constant 0 : index
    %143 = vector.load %arg7[%c0_167, %c0_168] : memref<1x128xf32, #tpu.memory_space<vmem>>, vector<1x128xf32>
    %cst_169 = arith.constant dense<0.000000e+00> : vector<128xf32>
    %144 = vector.multi_reduction <add>, %141, %cst_169 [0] : vector<512x128xf32> to vector<128xf32>
    %145 = vector.shape_cast %144 : vector<128xf32> to vector<1x128xf32>
    %cst_170 = arith.constant 5.120000e+02 : f32
    %146 = vector.broadcast %cst_170 : f32 to vector<1x128xf32>
    %147 = arith.divf %145, %146 : vector<1x128xf32>
    %148 = vector.broadcast %147 : vector<1x128xf32> to vector<512x128xf32>
    %149 = arith.subf %141, %148 : vector<512x128xf32>
    %150 = arith.mulf %149, %149 : vector<512x128xf32>
    %cst_171 = arith.constant dense<0.000000e+00> : vector<128xf32>
    %151 = vector.multi_reduction <add>, %150, %cst_171 [0] : vector<512x128xf32> to vector<128xf32>
    %152 = vector.shape_cast %151 : vector<128xf32> to vector<1x128xf32>
    %cst_172 = arith.constant 5.120000e+02 : f32
    %153 = vector.broadcast %cst_172 : f32 to vector<1x128xf32>
    %154 = arith.divf %152, %153 : vector<1x128xf32>
    %155 = vector.broadcast %147 : vector<1x128xf32> to vector<512x128xf32>
    %156 = arith.subf %141, %155 : vector<512x128xf32>
    %cst_173 = arith.constant 9.99999974E-6 : f32
    %157 = vector.broadcast %cst_173 : f32 to vector<1x128xf32>
    %158 = arith.addf %154, %157 : vector<1x128xf32>
    %159 = math.rsqrt %158 : vector<1x128xf32>
    %160 = vector.broadcast %159 : vector<1x128xf32> to vector<512x128xf32>
    %161 = arith.mulf %156, %160 : vector<512x128xf32>
    %162 = vector.broadcast %142 : vector<1x128xf32> to vector<512x128xf32>
    %163 = arith.mulf %161, %162 : vector<512x128xf32>
    %164 = vector.broadcast %143 : vector<1x128xf32> to vector<512x128xf32>
    %165 = arith.addf %163, %164 : vector<512x128xf32>
    %c0_174 = arith.constant 0 : index
    %c0_175 = arith.constant 0 : index
    %166 = vector.load %arg1[%c0_174, %c0_175] : memref<512x128xf32, #tpu.memory_space<vmem>>, vector<512x128xf32>
    %c0_176 = arith.constant 0 : index
    %c0_177 = arith.constant 0 : index
    %167 = vector.load %arg8[%c0_176, %c0_177] : memref<128x128xf32, #tpu.memory_space<vmem>>, vector<128x128xf32>
    %cst_178 = arith.constant dense<0.000000e+00> : vector<512x128xf32>
    %168 = tpu.matmul %166, %167, %cst_178 {dimension_numbers = #tpu.dot_dimension_numbers<[1], [0], [0], [1], [0, 0, 1, 1], [], []>} : vector<512x128xf32>, vector<128x128xf32>, vector<512x128xf32> -> vector<512x128xf32>
    %c0_179 = arith.constant 0 : index
    %c0_180 = arith.constant 0 : index
    %169 = vector.load %arg9[%c0_179, %c0_180] : memref<1x128xf32, #tpu.memory_space<vmem>>, vector<1x128xf32>
    %170 = vector.broadcast %169 : vector<1x128xf32> to vector<512x128xf32>
    %171 = arith.addf %168, %170 : vector<512x128xf32>
    %172 = arith.addf %165, %171 : vector<512x128xf32>
    %cst_181 = arith.constant 0.000000e+00 : f32
    %173 = vector.broadcast %cst_181 : f32 to vector<512x128xf32>
    %174 = arith.maximumf %172, %173 : vector<512x128xf32>
    %c0_182 = arith.constant 0 : index
    %c0_183 = arith.constant 0 : index
    %175 = vector.load %arg10[%c0_182, %c0_183] : memref<512x128xf32, #tpu.memory_space<vmem>>, vector<512x128xf32>
    tpu.vector_store %arg10[%c0_182, %c0_183], %174 {strides = array<i32>} : memref<512x128xf32, #tpu.memory_space<vmem>>, vector<512x128xf32>,
    return
  }
}

</mosaic_0001>

<llo_original>
// kernel: residual_forward.1
$region0: #{residual_forward.1}
  #allocation0 [shape = 'u32[]', space=smem, size = 0x4, offset = 0x4, fixed_abs, tag = 'smem constant byte address 0x4 - core index']
  #allocation1 [shape = 'u32[72,128]{1,0:T(1,128)}', space=vmem, size = 0x9000, scoped, tag = 'internal scratch']
  #allocation2 [shape = 'f32[2,18,32,128]{3,2,1,0:T(8,128)}', space=vmem, size = 0x90000, scoped, tag = 'scratch operand']
  %s0 = inlined_call_operand.vmem [shape: f32[2,18,24,128], index: 0, kind: input, shape index: {}]
  %s1 = inlined_call_operand.vmem [shape: f32[512,128], index: 1, kind: input, shape index: {}]
  %s2 = inlined_call_operand.vmem [shape: f32[9,128,128], index: 2, kind: input, shape index: {}]
  %s3 = inlined_call_operand.vmem [shape: f32[1,128], index: 3, kind: input, shape index: {}]
  %s4 = inlined_call_operand.vmem [shape: f32[1,128], index: 4, kind: input, shape index: {}]
  %s5 = inlined_call_operand.vmem [shape: f32[9,128,128], index: 5, kind: input, shape index: {}]
  %s6 = inlined_call_operand.vmem [shape: f32[1,128], index: 6, kind: input, shape index: {}]
  %s7 = inlined_call_operand.vmem [shape: f32[1,128], index: 7, kind: input, shape index: {}]
  %s8 = inlined_call_operand.vmem [shape: f32[128,128], index: 8, kind: input, shape index: {}]
  %s9 = inlined_call_operand.vmem [shape: f32[1,128], index: 9, kind: input, shape index: {}]
  %s10 = inlined_call_operand.vmem [shape: f32[512,128], index: 10, kind: output, shape index: {}]
  %s11 = sld [smem:[#allocation0]]
  $region50: #{residual_forward.1} parent=0
    _
  %s13 = ssub.s32 1, %s11
  %s14 = scalar_select 0, %s13, %s11
  // Predicated region
  $region2: #{residual_forward.1} parent=0 // pred_check
    _
  $region3: #{residual_forward.1} parent=0 // pred_check_branch
    %16 = sbr.rel (0) target = $region5
  $region4: #{residual_forward.1} parent=0 // pred_region
    _
  $region5: #{residual_forward.1} parent=0 // pred_fallthru
    _
  // Predicated region
  $region6: #{residual_forward.1} parent=0 // pred_check
    _
  $region7: #{residual_forward.1} parent=0 // pred_check_branch
    %18 = sbr.rel (0) target = $region9
  $region8: #{residual_forward.1} parent=0 // pred_region
    _
  $region9: #{residual_forward.1} parent=0 // pred_fallthru
    _
  // Predicated region
  $region10: #{residual_forward.1} parent=0 // pred_check
    _
  $region11: #{residual_forward.1} parent=0 // pred_check_branch
    %20 = sbr.rel (0) target = $region13
  $region12: #{residual_forward.1} parent=0 // pred_region
    _
  $region13: #{residual_forward.1} parent=0 // pred_fallthru
    _
  // Predicated region
  $region14: #{residual_forward.1} parent=0 // pred_check
    _
  $region15: #{residual_forward.1} parent=0 // pred_check_branch
    %22 = sbr.rel (0) target = $region17
  $region16: #{residual_forward.1} parent=0 // pred_region
    _
  $region17: #{residual_forward.1} parent=0 // pred_fallthru
    _
  // Predicated region
  $region18: #{residual_forward.1} parent=0 // pred_check
    _
  $region19: #{residual_forward.1} parent=0 // pred_check_branch
    %24 = sbr.rel (0) target = $region21
  $region20: #{residual_forward.1} parent=0 // pred_region
    _
  $region21: #{residual_forward.1} parent=0 // pred_fallthru
    _
  // Predicated region
  $region22: #{residual_forward.1} parent=0 // pred_check
    _
  $region23: #{residual_forward.1} parent=0 // pred_check_branch
    %26 = sbr.rel (0) target = $region25
  $region24: #{residual_forward.1} parent=0 // pred_region
    _
  $region25: #{residual_forward.1} parent=0 // pred_fallthru
    _
  // Predicated region
  $region26: #{residual_forward.1} parent=0 // pred_check
    _
  $region27: #{residual_forward.1} parent=0 // pred_check_branch
    %28 = sbr.rel (0) target = $region29
  $region28: #{residual_forward.1} parent=0 // pred_region
    _
  $region29: #{residual_forward.1} parent=0 // pred_fallthru
    _
  // Predicated region
  $region30: #{residual_forward.1} parent=0 // pred_check
    _
  $region31: #{residual_forward.1} parent=0 // pred_check_branch
    %30 = sbr.rel (0) target = $region33
  $region32: #{residual_forward.1} parent=0 // pred_region
    _
  $region33: #{residual_forward.1} parent=0 // pred_fallthru
    _
  // Predicated region
  $region34: #{residual_forward.1} parent=0 // pred_check
    _
  $region35: #{residual_forward.1} parent=0 // pred_check_branch
    %32 = sbr.rel (0) target = $region37
  $region36: #{residual_forward.1} parent=0 // pred_region
    _
  $region37: #{residual_forward.1} parent=0 // pred_fallthru
    _
  // Predicated region
  $region38: #{residual_forward.1} parent=0 // pred_check
    _
  $region39: #{residual_forward.1} parent=0 // pred_check_branch
    %34 = sbr.rel (0) target = $region41
  $region40: #{residual_forward.1} parent=0 // pred_region
    _
  $region41: #{residual_forward.1} parent=0 // pred_fallthru
    _
  %v35 = vld [vmem:[%s0] sm:$0xff]
  %v36 = vld [vmem:[%s0 + $0x8] sm:$0xff]
  %v37 = vld [vmem:[%s0 + $0x18] sm:$0xff]
  %v38 = vld [vmem:[%s0 + $0x20] sm:$0xff]
  %v39 = vld [vmem:[%s0 + $0x30] sm:$0xff]
  %v40 = vld [vmem:[%s0 + $0x38] sm:$0xff]
  %v41 = vld [vmem:[%s0 + $0x48] sm:$0xff]
  %v42 = vld [vmem:[%s0 + $0x50] sm:$0xff]
  %v43 = vld [vmem:[%s0 + $0x60] sm:$0xff]
  %v44 = vld [vmem:[%s0 + $0x68] sm:$0xff]
  %v45 = vld [vmem:[%s0 + $0x78] sm:$0xff]
  %v46 = vld [vmem:[%s0 + $0x80] sm:$0xff]
  %v47 = vld [vmem:[%s0 + $0x90] sm:$0xff]
  %v48 = vld [vmem:[%s0 + $0x98] sm:$0xff]
  %v49 = vld [vmem:[%s0 + $0xa8] sm:$0xff]
  %v50 = vld [vmem:[%s0 + $0xb0] sm:$0xff]
  %v51 = vld [vmem:[%s0 + $0xc0] sm:$0xff]
  %v52 = vld [vmem:[%s0 + $0xc8] sm:$0xff]
  %v53 = vld [vmem:[%s0 + $0xd8] sm:$0xff]
  %v54 = vld [vmem:[%s0 + $0xe0] sm:$0xff]
  %v55 = vld [vmem:[%s0 + $0xf0] sm:$0xff]
  %v56 = vld [vmem:[%s0 + $0xf8] sm:$0xff]
  %v57 = vld [vmem:[%s0 + $0x108] sm:$0xff]
  %v58 = vld [vmem:[%s0 + $0x110] sm:$0xff]
  %v59 = vld [vmem:[%s0 + $0x120] sm:$0xff]
  %v60 = vld [vmem:[%s0 + $0x128] sm:$0xff]
  %v61 = vld [vmem:[%s0 + $0x138] sm:$0xff]
  %v62 = vld [vmem:[%s0 + $0x140] sm:$0xff]
  %v63 = vld [vmem:[%s0 + $0x150] sm:$0xff]
  %v64 = vld [vmem:[%s0 + $0x158] sm:$0xff]
  %v65 = vld [vmem:[%s0 + $0x168] sm:$0xff]
  %v66 = vld [vmem:[%s0 + $0x170] sm:$0xff]
  %v67 = vld [vmem:[%s0 + $0x1b0] sm:$0xff]
  %v68 = vld [vmem:[%s0 + $0x1b8] sm:$0xff]
  %v69 = vld [vmem:[%s0 + $0x1c8] sm:$0xff]
  %v70 = vld [vmem:[%s0 + $0x1d0] sm:$0xff]
  %v71 = vld [vmem:[%s0 + $0x1e0] sm:$0xff]
  %v72 = vld [vmem:[%s0 + $0x1e8] sm:$0xff]
  %v73 = vld [vmem:[%s0 + $0x1f8] sm:$0xff]
  %v74 = vld [vmem:[%s0 + $0x200] sm:$0xff]
  %v75 = vld [vmem:[%s0 + $0x210] sm:$0xff]
  %v76 = vld [vmem:[%s0 + $0x218] sm:$0xff]
  %v77 = vld [vmem:[%s0 + $0x228] sm:$0xff]
  %v78 = vld [vmem:[%s0 + $0x230] sm:$0xff]
  %v79 = vld [vmem:[%s0 + $0x240] sm:$0xff]
  %v80 = vld [vmem:[%s0 + $0x248] sm:$0xff]
  %v81 = vld [vmem:[%s0 + $0x258] sm:$0xff]
  %v82 = vld [vmem:[%s0 + $0x260] sm:$0xff]
  %v83 = vld [vmem:[%s0 + $0x270] sm:$0xff]
  %v84 = vld [vmem:[%s0 + $0x278] sm:$0xff]
  %v85 = vld [vmem:[%s0 + $0x288] sm:$0xff]
  %v86 = vld [vmem:[%s0 + $0x290] sm:$0xff]
  %v87 = vld [vmem:[%s0 + $0x2a0] sm:$0xff]
  %v88 = vld [vmem:[%s0 + $0x2a8] sm:$0xff]
  %v89 = vld [vmem:[%s0 + $0x2b8] sm:$0xff]
  %v90 = vld [vmem:[%s0 + $0x2c0] sm:$0xff]
  %v91 = vld [vmem:[%s0 + $0x2d0] sm:$0xff]
  %v92 = vld [vmem:[%s0 + $0x2d8] sm:$0xff]
  %v93 = vld [vmem:[%s0 + $0x2e8] sm:$0xff]
  %v94 = vld [vmem:[%s0 + $0x2f0] sm:$0xff]
  %v95 = vld [vmem:[%s0 + $0x300] sm:$0xff]
  %v96 = vld [vmem:[%s0 + $0x308] sm:$0xff]
  %v97 = vld [vmem:[%s0 + $0x318] sm:$0xff]
  %v98 = vld [vmem:[%s0 + $0x320] sm:$0xff]
  %v99 = vld [vmem:[%s2] sm:$0xff]
  %v100 = vld [vmem:[%s2 + $0x8] sm:$0xff]
  %v101 = vld [vmem:[%s2 + $0x10] sm:$0xff]
  %v102 = vld [vmem:[%s2 + $0x18] sm:$0xff]
  %v103 = vld [vmem:[%s2 + $0x20] sm:$0xff]
  %v104 = vld [vmem:[%s2 + $0x28] sm:$0xff]
  %v105 = vld [vmem:[%s2 + $0x30] sm:$0xff]
  %v106 = vld [vmem:[%s2 + $0x38] sm:$0xff]
  %v107 = vld [vmem:[%s2 + $0x40] sm:$0xff]
  %v108 = vld [vmem:[%s2 + $0x48] sm:$0xff]
  %v109 = vld [vmem:[%s2 + $0x50] sm:$0xff]
  %v110 = vld [vmem:[%s2 + $0x58] sm:$0xff]
  %v111 = vld [vmem:[%s2 + $0x60] sm:$0xff]
  %v112 = vld [vmem:[%s2 + $0x68] sm:$0xff]
  %v113 = vld [vmem:[%s2 + $0x70] sm:$0xff]
  %v114 = vld [vmem:[%s2 + $0x78] sm:$0xff]
  %v115 = vld [vmem:[%s0 + $0x1] sm:$0xff]
  %v116 = vld [vmem:[%s0 + $0x9] sm:$0xff]
  %v117 = vld [vmem:[%s0 + $0x19] sm:$0xff]
  %v118 = vld [vmem:[%s0 + $0x21] sm:$0xff]
  %v119 = vld [vmem:[%s0 + $0x31] sm:$0xff]
  %v120 = vld [vmem:[%s0 + $0x39] sm:$0xff]
  %v121 = vld [vmem:[%s0 + $0x49] sm:$0xff]
  %v122 = vld [vmem:[%s0 + $0x51] sm:$0xff]
  %v123 = vld [vmem:[%s0 + $0x61] sm:$0xff]
  %v124 = vld [vmem:[%s0 + $0x69] sm:$0xff]
  %v125 = vld [vmem:[%s0 + $0x79] sm:$0xff]
  %v126 = vld [vmem:[%s0 + $0x81] sm:$0xff]
  %v127 = vld [vmem:[%s0 + $0x91] sm:$0xff]
  %v128 = vld [vmem:[%s0 + $0x99] sm:$0xff]
  %v129 = vld [vmem:[%s0 + $0xa9] sm:$0xff]
  %v130 = vld [vmem:[%s0 + $0xb1] sm:$0xff]
  %v131 = vld [vmem:[%s0 + $0xc1] sm:$0xff]
  %v132 = vld [vmem:[%s0 + $0xc9] sm:$0xff]
  %v133 = vld [vmem:[%s0 + $0xd9] sm:$0xff]
  %v134 = vld [vmem:[%s0 + $0xe1] sm:$0xff]
  %v135 = vld [vmem:[%s0 + $0xf1] sm:$0xff]
  %v136 = vld [vmem:[%s0 + $0xf9] sm:$0xff]
  %v137 = vld [vmem:[%s0 + $0x109] sm:$0xff]
  %v138 = vld [vmem:[%s0 + $0x111] sm:$0xff]
  %v139 = vld [vmem:[%s0 + $0x121] sm:$0xff]
  %v140 = vld [vmem:[%s0 + $0x129] sm:$0xff]
  %v141 = vld [vmem:[%s0 + $0x139] sm:$0xff]
  %v142 = vld [vmem:[%s0 + $0x141] sm:$0xff]
  %v143 = vld [vmem:[%s0 + $0x151] sm:$0xff]
  %v144 = vld [vmem:[%s0 + $0x159] sm:$0xff]
  %v145 = vld [vmem:[%s0 + $0x169] sm:$0xff]
  %v146 = vld [vmem:[%s0 + $0x171] sm:$0xff]
  %v147 = vld [vmem:[%s0 + $0x1b1] sm:$0xff]
  %v148 = vld [vmem:[%s0 + $0x1b9] sm:$0xff]
  %v149 = vld [vmem:[%s0 + $0x1c9] sm:$0xff]
  %v150 = vld [vmem:[%s0 + $0x1d1] sm:$0xff]
  %v151 = vld [vmem:[%s0 + $0x1e1] sm:$0xff]
  %v152 = vld [vmem:[%s0 + $0x1e9] sm:$0xff]
  %v153 = vld [vmem:[%s0 + $0x1f9] sm:$0xff]
  %v154 = vld [vmem:[%s0 + $0x201] sm:$0xff]
  %v155 = vld [vmem:[%s0 + $0x211] sm:$0xff]
  %v156 = vld [vmem:[%s0 + $0x219] sm:$0xff]
  %v157 = vld [vmem:[%s0 + $0x229] sm:$0xff]
  %v158 = vld [vmem:[%s0 + $0x231] sm:$0xff]
  %v159 = vld [vmem:[%s0 + $0x241] sm:$0xff]
  %v160 = vld [vmem:[%s0 + $0x249] sm:$0xff]
  %v161 = vld [vmem:[%s0 + $0x259] sm:$0xff]
  %v162 = vld [vmem:[%s0 + $0x261] sm:$0xff]
  %v163 = vld [vmem:[%s0 + $0x271] sm:$0xff]
  %v164 = vld [vmem:[%s0 + $0x279] sm:$0xff]
  %v165 = vld [vmem:[%s0 + $0x289] sm:$0xff]
  %v166 = vld [vmem:[%s0 + $0x291] sm:$0xff]
  %v167 = vld [vmem:[%s0 + $0x2a1] sm:$0xff]
  %v168 = vld [vmem:[%s0 + $0x2a9] sm:$0xff]
  %v169 = vld [vmem:[%s0 + $0x2b9] sm:$0xff]
  %v170 = vld [vmem:[%s0 + $0x2c1] sm:$0xff]
  %v171 = vld [vmem:[%s0 + $0x2d1] sm:$0xff]
  %v172 = vld [vmem:[%s0 + $0x2d9] sm:$0xff]
  %v173 = vld [vmem:[%s0 + $0x2e9] sm:$0xff]
  %v174 = vld [vmem:[%s0 + $0x2f1] sm:$0xff]
  %v175 = vld [vmem:[%s0 + $0x301] sm:$0xff]
  %v176 = vld [vmem:[%s0 + $0x309] sm:$0xff]
  %v177 = vld [vmem:[%s0 + $0x319] sm:$0xff]
  %v178 = vld [vmem:[%s0 + $0x321] sm:$0xff]
  %s179 = scalar_lea.vmem %s2, 128
  %v180 = vld [vmem:[%s179] sm:$0xff]
  %v181 = vld [vmem:[%s179 + $0x8] sm:$0xff]
  %v182 = vld [vmem:[%s179 + $0x10] sm:$0xff]
  %v183 = vld [vmem:[%s179 + $0x18] sm:$0xff]
  %v184 = vld [vmem:[%s179 + $0x20] sm:$0xff]
  %v185 = vld [vmem:[%s179 + $0x28] sm:$0xff]
  %v186 = vld [vmem:[%s179 + $0x30] sm:$0xff]
  %v187 = vld [vmem:[%s179 + $0x38] sm:$0xff]
  %v188 = vld [vmem:[%s179 + $0x40] sm:$0xff]
  %v189 = vld [vmem:[%s179 + $0x48] sm:$0xff]
  %v190 = vld [vmem:[%s179 + $0x50] sm:$0xff]
  %v191 = vld [vmem:[%s179 + $0x58] sm:$0xff]
  %v192 = vld [vmem:[%s179 + $0x60] sm:$0xff]
  %v193 = vld [vmem:[%s179 + $0x68] sm:$0xff]
  %v194 = vld [vmem:[%s179 + $0x70] sm:$0xff]
  %v195 = vld [vmem:[%s179 + $0x78] sm:$0xff]
  %196 = vmatpush.msra.mxu0 %v195
  %197 = vmatpush.msra.mxu0 %v194
  %198 = vmatpush.msra.mxu0 %v193
  %199 = vmatpush.msra.mxu0 %v192
  %200 = vmatpush.msra.mxu0 %v191
  %201 = vmatpush.msra.mxu0 %v190
  %202 = vmatpush.msra.mxu0 %v189
  %203 = vmatpush.msra.mxu0 %v188
  %204 = vmatpush.msra.mxu0 %v187
  %205 = vmatpush.msra.mxu0 %v186
  %206 = vmatpush.msra.mxu0 %v185
  %207 = vmatpush.msra.mxu0 %v184
  %208 = vmatpush.msra.mxu0 %v183
  %209 = vmatpush.msra.mxu0 %v182
  %210 = vmatpush.msra.mxu0 %v181
  %211 = vmatpush.msra.mxu0 %v180
  %212 = vmatmul.f32.gmra.mxu0 %v115
  %v213 = vpop.f32.mrf.mxu0
  %v214 = vadd.f32 0.0, %v213
  %215 = vmatmul.f32.gmra.mxu0 %v116
  %v216 = vpop.f32.mrf.mxu0
  %v217 = vadd.f32 0.0, %v216
  %218 = vmatmul.f32.gmra.mxu0 %v117
  %v219 = vpop.f32.mrf.mxu0
  %v220 = vadd.f32 0.0, %v219
  %221 = vmatmul.f32.gmra.mxu0 %v118
  %v222 = vpop.f32.mrf.mxu0
  %v223 = vadd.f32 0.0, %v222
  %224 = vmatmul.f32.gmra.mxu0 %v119
  %v225 = vpop.f32.mrf.mxu0
  %v226 = vadd.f32 0.0, %v225
  %227 = vmatmul.f32.gmra.mxu0 %v120
  %v228 = vpop.f32.mrf.mxu0
  %v229 = vadd.f32 0.0, %v228
  %230 = vmatmul.f32.gmra.mxu0 %v121
  %v231 = vpop.f32.mrf.mxu0
  %v232 = vadd.f32 0.0, %v231
  %233 = vmatmul.f32.gmra.mxu0 %v122
  %v234 = vpop.f32.mrf.mxu0
  %v235 = vadd.f32 0.0, %v234
  %236 = vmatmul.f32.gmra.mxu0 %v123
  %v237 = vpop.f32.mrf.mxu0
  %v238 = vadd.f32 0.0, %v237
  %239 = vmatmul.f32.gmra.mxu0 %v124
  %v240 = vpop.f32.mrf.mxu0
  %v241 = vadd.f32 0.0, %v240
  %242 = vmatmul.f32.gmra.mxu0 %v125
  %v243 = vpop.f32.mrf.mxu0
  %v244 = vadd.f32 0.0, %v243
  %245 = vmatmul.f32.gmra.mxu0 %v126
  %v246 = vpop.f32.mrf.mxu0
  %v247 = vadd.f32 0.0, %v246
  %248 = vmatmul.f32.gmra.mxu0 %v127
  %v249 = vpop.f32.mrf.mxu0
  %v250 = vadd.f32 0.0, %v249
  %251 = vmatmul.f32.gmra.mxu0 %v128
  %v252 = vpop.f32.mrf.mxu0
  %v253 = vadd.f32 0.0, %v252
  %254 = vmatmul.f32.gmra.mxu0 %v129
  %v255 = vpop.f32.mrf.mxu0
  %v256 = vadd.f32 0.0, %v255
  %257 = vmatmul.f32.gmra.mxu0 %v130
  %v258 = vpop.f32.mrf.mxu0
  %v259 = vadd.f32 0.0, %v258
  %260 = vmatmul.f32.gmra.mxu0 %v131
  %v261 = vpop.f32.mrf.mxu0
  %v262 = vadd.f32 0.0, %v261
  %263 = vmatmul.f32.gmra.mxu0 %v132
  %v264 = vpop.f32.mrf.mxu0
  %v265 = vadd.f32 0.0, %v264
  %266 = vmatmul.f32.gmra.mxu0 %v133
  %v267 = vpop.f32.mrf.mxu0
  %v268 = vadd.f32 0.0, %v267
  %269 = vmatmul.f32.gmra.mxu0 %v134
  %v270 = vpop.f32.mrf.mxu0
  %v271 = vadd.f32 0.0, %v270
  %272 = vmatmul.f32.gmra.mxu0 %v135
  %v273 = vpop.f32.mrf.mxu0
  %v274 = vadd.f32 0.0, %v273
  %275 = vmatmul.f32.gmra.mxu0 %v136
  %v276 = vpop.f32.mrf.mxu0
  %v277 = vadd.f32 0.0, %v276
  %278 = vmatmul.f32.gmra.mxu0 %v137
  %v279 = vpop.f32.mrf.mxu0
  %v280 = vadd.f32 0.0, %v279
  %281 = vmatmul.f32.gmra.mxu0 %v138
  %v282 = vpop.f32.mrf.mxu0
  %v283 = vadd.f32 0.0, %v282
  %284 = vmatmul.f32.gmra.mxu0 %v139
  %v285 = vpop.f32.mrf.mxu0
  %v286 = vadd.f32 0.0, %v285
  %287 = vmatmul.f32.gmra.mxu0 %v140
  %v288 = vpop.f32.mrf.mxu0
  %v289 = vadd.f32 0.0, %v288
  %290 = vmatmul.f32.gmra.mxu0 %v141
  %v291 = vpop.f32.mrf.mxu0
  %v292 = vadd.f32 0.0, %v291
  %293 = vmatmul.f32.gmra.mxu0 %v142
  %v294 = vpop.f32.mrf.mxu0
  %v295 = vadd.f32 0.0, %v294
  %296 = vmatmul.f32.gmra.mxu0 %v143
  %v297 = vpop.f32.mrf.mxu0
  %v298 = vadd.f32 0.0, %v297
  %299 = vmatmul.f32.gmra.mxu0 %v144
  %v300 = vpop.f32.mrf.mxu0
  %v301 = vadd.f32 0.0, %v300
  %302 = vmatmul.f32.gmra.mxu0 %v145
  %v303 = vpop.f32.mrf.mxu0
  %v304 = vadd.f32 0.0, %v303
  %305 = vmatmul.f32.gmra.mxu0 %v146
  %v306 = vpop.f32.mrf.mxu0
  %v307 = vadd.f32 0.0, %v306
  %308 = vmatmul.f32.gmra.mxu0 %v147
  %v309 = vpop.f32.mrf.mxu0
  %v310 = vadd.f32 0.0, %v309
  %311 = vmatmul.f32.gmra.mxu0 %v148
  %v312 = vpop.f32.mrf.mxu0
  %v313 = vadd.f32 0.0, %v312
  %314 = vmatmul.f32.gmra.mxu0 %v149
  %v315 = vpop.f32.mrf.mxu0
  %v316 = vadd.f32 0.0, %v315
  %317 = vmatmul.f32.gmra.mxu0 %v150
  %v318 = vpop.f32.mrf.mxu0
  %v319 = vadd.f32 0.0, %v318
  %320 = vmatmul.f32.gmra.mxu0 %v151
  %v321 = vpop.f32.mrf.mxu0
  %v322 = vadd.f32 0.0, %v321
  %323 = vmatmul.f32.gmra.mxu0 %v152
  %v324 = vpop.f32.mrf.mxu0
  %v325 = vadd.f32 0.0, %v324
  %326 = vmatmul.f32.gmra.mxu0 %v153
  %v327 = vpop.f32.mrf.mxu0
  %v328 = vadd.f32 0.0, %v327
  %329 = vmatmul.f32.gmra.mxu0 %v154
  %v330 = vpop.f32.mrf.mxu0
  %v331 = vadd.f32 0.0, %v330
  %332 = vmatmul.f32.gmra.mxu0 %v155
  %v333 = vpop.f32.mrf.mxu0
  %v334 = vadd.f32 0.0, %v333
  %335 = vmatmul.f32.gmra.mxu0 %v156
  %v336 = vpop.f32.mrf.mxu0
  %v337 = vadd.f32 0.0, %v336
  %338 = vmatmul.f32.gmra.mxu0 %v157
  %v339 = vpop.f32.mrf.mxu0
  %v340 = vadd.f32 0.0, %v339
  %341 = vmatmul.f32.gmra.mxu0 %v158
  %v342 = vpop.f32.mrf.mxu0
  %v343 = vadd.f32 0.0, %v342
  %344 = vmatmul.f32.gmra.mxu0 %v159
  %v345 = vpop.f32.mrf.mxu0
  %v346 = vadd.f32 0.0, %v345
  %347 = vmatmul.f32.gmra.mxu0 %v160
  %v348 = vpop.f32.mrf.mxu0
  %v349 = vadd.f32 0.0, %v348
  %350 = vmatmul.f32.gmra.mxu0 %v161
  %v351 = vpop.f32.mrf.mxu0
  %v352 = vadd.f32 0.0, %v351
  %353 = vmatmul.f32.gmra.mxu0 %v162
  %v354 = vpop.f32.mrf.mxu0
  %v355 = vadd.f32 0.0, %v354
  %356 = vmatmul.f32.gmra.mxu0 %v163
  %v357 = vpop.f32.mrf.mxu0
  %v358 = vadd.f32 0.0, %v357
  %359 = vmatmul.f32.gmra.mxu0 %v164
  %v360 = vpop.f32.mrf.mxu0
  %v361 = vadd.f32 0.0, %v360
  %362 = vmatmul.f32.gmra.mxu0 %v165
  %v363 = vpop.f32.mrf.mxu0
  %v364 = vadd.f32 0.0, %v363
  %365 = vmatmul.f32.gmra.mxu0 %v166
  %v366 = vpop.f32.mrf.mxu0
  %v367 = vadd.f32 0.0, %v366
  %368 = vmatmul.f32.gmra.mxu0 %v167
  %v369 = vpop.f32.mrf.mxu0
  %v370 = vadd.f32 0.0, %v369
  %371 = vmatmul.f32.gmra.mxu0 %v168
  %v372 = vpop.f32.mrf.mxu0
  %v373 = vadd.f32 0.0, %v372
  %374 = vmatmul.f32.gmra.mxu0 %v169
  %v375 = vpop.f32.mrf.mxu0
  %v376 = vadd.f32 0.0, %v375
  %377 = vmatmul.f32.gmra.mxu0 %v170
  %v378 = vpop.f32.mrf.mxu0
  %v379 = vadd.f32 0.0, %v378
  %380 = vmatmul.f32.gmra.mxu0 %v171
  %v381 = vpop.f32.mrf.mxu0
  %v382 = vadd.f32 0.0, %v381
  %383 = vmatmul.f32.gmra.mxu0 %v172
  %v384 = vpop.f32.mrf.mxu0
  %v385 = vadd.f32 0.0, %v384
  %386 = vmatmul.f32.gmra.mxu0 %v173
  %v387 = vpop.f32.mrf.mxu0
  %v388 = vadd.f32 0.0, %v387
  %389 = vmatmul.f32.gmra.mxu0 %v174
  %v390 = vpop.f32.mrf.mxu0
  %v391 = vadd.f32 0.0, %v390
  %392 = vmatmul.f32.gmra.mxu0 %v175
  %v393 = vpop.f32.mrf.mxu0
  %v394 = vadd.f32 0.0, %v393
  %395 = vmatmul.f32.gmra.mxu0 %v176
  %v396 = vpop.f32.mrf.mxu0
  %v397 = vadd.f32 0.0, %v396
  %398 = vmatmul.f32.gmra.mxu0 %v177
  %v399 = vpop.f32.mrf.mxu0
  %v400 = vadd.f32 0.0, %v399
  %401 = vmatmul.f32.gmra.mxu0 %v178
  %v402 = vpop.f32.mrf.mxu0
  %v403 = vadd.f32 0.0, %v402
  %404 = vdwg.mxu0
  %405 = vmatpush.msra.mxu0 %v114
  %406 = vmatpush.msra.mxu0 %v113
  %407 = vmatpush.msra.mxu0 %v112
  %408 = vmatpush.msra.mxu0 %v111
  %409 = vmatpush.msra.mxu0 %v110
  %410 = vmatpush.msra.mxu0 %v109
  %411 = vmatpush.msra.mxu0 %v108
  %412 = vmatpush.msra.mxu0 %v107
  %413 = vmatpush.msra.mxu0 %v106
  %414 = vmatpush.msra.mxu0 %v105
  %415 = vmatpush.msra.mxu0 %v104
  %416 = vmatpush.msra.mxu0 %v103
  %417 = vmatpush.msra.mxu0 %v102
  %418 = vmatpush.msra.mxu0 %v101
  %419 = vmatpush.msra.mxu0 %v100
  %420 = vmatpush.msra.mxu0 %v99
  %421 = vmatmul.f32.gmra.mxu0 %v35
  %v422 = vpop.f32.mrf.mxu0
  %v423 = vadd.f32 %v214, %v422
  %424 = vmatmul.f32.gmra.mxu0 %v36
  %v425 = vpop.f32.mrf.mxu0
  %v426 = vadd.f32 %v217, %v425
  %427 = vmatmul.f32.gmra.mxu0 %v37
  %v428 = vpop.f32.mrf.mxu0
  %v429 = vadd.f32 %v220, %v428
  %430 = vmatmul.f32.gmra.mxu0 %v38
  %v431 = vpop.f32.mrf.mxu0
  %v432 = vadd.f32 %v223, %v431
  %433 = vmatmul.f32.gmra.mxu0 %v39
  %v434 = vpop.f32.mrf.mxu0
  %v435 = vadd.f32 %v226, %v434
  %436 = vmatmul.f32.gmra.mxu0 %v40
  %v437 = vpop.f32.mrf.mxu0
  %v438 = vadd.f32 %v229, %v437
  %439 = vmatmul.f32.gmra.mxu0 %v41
  %v440 = vpop.f32.mrf.mxu0
  %v441 = vadd.f32 %v232, %v440
  %442 = vmatmul.f32.gmra.mxu0 %v42
  %v443 = vpop.f32.mrf.mxu0
  %v444 = vadd.f32 %v235, %v443
  %445 = vmatmul.f32.gmra.mxu0 %v43
  %v446 = vpop.f32.mrf.mxu0
  %v447 = vadd.f32 %v238, %v446
  %448 = vmatmul.f32.gmra.mxu0 %v44
  %v449 = vpop.f32.mrf.mxu0
  %v450 = vadd.f32 %v241, %v449
  %451 = vmatmul.f32.gmra.mxu0 %v45
  %v452 = vpop.f32.mrf.mxu0
  %v453 = vadd.f32 %v244, %v452
  %454 = vmatmul.f32.gmra.mxu0 %v46
  %v455 = vpop.f32.mrf.mxu0
  %v456 = vadd.f32 %v247, %v455
  %457 = vmatmul.f32.gmra.mxu0 %v47
  %v458 = vpop.f32.mrf.mxu0
  %v459 = vadd.f32 %v250, %v458
  %460 = vmatmul.f32.gmra.mxu0 %v48
  %v461 = vpop.f32.mrf.mxu0
  %v462 = vadd.f32 %v253, %v461
  %463 = vmatmul.f32.gmra.mxu0 %v49
  %v464 = vpop.f32.mrf.mxu0
  %v465 = vadd.f32 %v256, %v464
  %466 = vmatmul.f32.gmra.mxu0 %v50
  %v467 = vpop.f32.mrf.mxu0
  %v468 = vadd.f32 %v259, %v467
  %469 = vmatmul.f32.gmra.mxu0 %v51
  %v470 = vpop.f32.mrf.mxu0
  %v471 = vadd.f32 %v262, %v470
  %472 = vmatmul.f32.gmra.mxu0 %v52
  %v473 = vpop.f32.mrf.mxu0
  %v474 = vadd.f32 %v265, %v473
  %475 = vmatmul.f32.gmra.mxu0 %v53
  %v476 = vpop.f32.mrf.mxu0
  %v477 = vadd.f32 %v268, %v476
  %478 = vmatmul.f32.gmra.mxu0 %v54
  %v479 = vpop.f32.mrf.mxu0
  %v480 = vadd.f32 %v271, %v479
  %481 = vmatmul.f32.gmra.mxu0 %v55
  %v482 = vpop.f32.mrf.mxu0
  %v483 = vadd.f32 %v274, %v482
  %484 = vmatmul.f32.gmra.mxu0 %v56
  %v485 = vpop.f32.mrf.mxu0
  %v486 = vadd.f32 %v277, %v485
  %487 = vmatmul.f32.gmra.mxu0 %v57
  %v488 = vpop.f32.mrf.mxu0
  %v489 = vadd.f32 %v280, %v488
  %490 = vmatmul.f32.gmra.mxu0 %v58
  %v491 = vpop.f32.mrf.mxu0
  %v492 = vadd.f32 %v283, %v491
  %493 = vmatmul.f32.gmra.mxu0 %v59
  %v494 = vpop.f32.mrf.mxu0
  %v495 = vadd.f32 %v286, %v494
  %496 = vmatmul.f32.gmra.mxu0 %v60
  %v497 = vpop.f32.mrf.mxu0
  %v498 = vadd.f32 %v289, %v497
  %499 = vmatmul.f32.gmra.mxu0 %v61
  %v500 = vpop.f32.mrf.mxu0
  %v501 = vadd.f32 %v292, %v500
  %502 = vmatmul.f32.gmra.mxu0 %v62
  %v503 = vpop.f32.mrf.mxu0
  %v504 = vadd.f32 %v295, %v503
  %505 = vmatmul.f32.gmra.mxu0 %v63
  %v506 = vpop.f32.mrf.mxu0
  %v507 = vadd.f32 %v298, %v506
  %508 = vmatmul.f32.gmra.mxu0 %v64
  %v509 = vpop.f32.mrf.mxu0
  %v510 = vadd.f32 %v301, %v509
  %511 = vmatmul.f32.gmra.mxu0 %v65
  %v512 = vpop.f32.mrf.mxu0
  %v513 = vadd.f32 %v304, %v512
  %514 = vmatmul.f32.gmra.mxu0 %v66
  %v515 = vpop.f32.mrf.mxu0
  %v516 = vadd.f32 %v307, %v515
  %517 = vmatmul.f32.gmra.mxu0 %v67
  %v518 = vpop.f32.mrf.mxu0
  %v519 = vadd.f32 %v310, %v518
  %520 = vmatmul.f32.gmra.mxu0 %v68
  %v521 = vpop.f32.mrf.mxu0
  %v522 = vadd.f32 %v313, %v521
  %523 = vmatmul.f32.gmra.mxu0 %v69
  %v524 = vpop.f32.mrf.mxu0
  %v525 = vadd.f32 %v316, %v524
  %526 = vmatmul.f32.gmra.mxu0 %v70
  %v527 = vpop.f32.mrf.mxu0
  %v528 = vadd.f32 %v319, %v527
  %529 = vmatmul.f32.gmra.mxu0 %v71
  %v530 = vpop.f32.mrf.mxu0
  %v531 = vadd.f32 %v322, %v530
  %532 = vmatmul.f32.gmra.mxu0 %v72
  %v533 = vpop.f32.mrf.mxu0
  %v534 = vadd.f32 %v325, %v533
  %535 = vmatmul.f32.gmra.mxu0 %v73
  %v536 = vpop.f32.mrf.mxu0
  %v537 = vadd.f32 %v328, %v536
  %538 = vmatmul.f32.gmra.mxu0 %v74
  %v539 = vpop.f32.mrf.mxu0
  %v540 = vadd.f32 %v331, %v539
  %541 = vmatmul.f32.gmra.mxu0 %v75
  %v542 = vpop.f32.mrf.mxu0
  %v543 = vadd.f32 %v334, %v542
  %544 = vmatmul.f32.gmra.mxu0 %v76
  %v545 = vpop.f32.mrf.mxu0
  %v546 = vadd.f32 %v337, %v545
  %547 = vmatmul.f32.gmra.mxu0 %v77
  %v548 = vpop.f32.mrf.mxu0
  %v549 = vadd.f32 %v340, %v548
  %550 = vmatmul.f32.gmra.mxu0 %v78
  %v551 = vpop.f32.mrf.mxu0
  %v552 = vadd.f32 %v343, %v551
  %553 = vmatmul.f32.gmra.mxu0 %v79
  %v554 = vpop.f32.mrf.mxu0
  %v555 = vadd.f32 %v346, %v554
  %556 = vmatmul.f32.gmra.mxu0 %v80
  %v557 = vpop.f32.mrf.mxu0
  %v558 = vadd.f32 %v349, %v557
  %559 = vmatmul.f32.gmra.mxu0 %v81
  %v560 = vpop.f32.mrf.mxu0
  %v561 = vadd.f32 %v352, %v560
  %562 = vmatmul.f32.gmra.mxu0 %v82
  %v563 = vpop.f32.mrf.mxu0
  %v564 = vadd.f32 %v355, %v563
  %565 = vmatmul.f32.gmra.mxu0 %v83
  %v566 = vpop.f32.mrf.mxu0
  %v567 = vadd.f32 %v358, %v566
  %568 = vmatmul.f32.gmra.mxu0 %v84
  %v569 = vpop.f32.mrf.mxu0
  %v570 = vadd.f32 %v361, %v569
  %571 = vmatmul.f32.gmra.mxu0 %v85
  %v572 = vpop.f32.mrf.mxu0
  %v573 = vadd.f32 %v364, %v572
  %574 = vmatmul.f32.gmra.mxu0 %v86
  %v575 = vpop.f32.mrf.mxu0
  %v576 = vadd.f32 %v367, %v575
  %577 = vmatmul.f32.gmra.mxu0 %v87
  %v578 = vpop.f32.mrf.mxu0
  %v579 = vadd.f32 %v370, %v578
  %580 = vmatmul.f32.gmra.mxu0 %v88
  %v581 = vpop.f32.mrf.mxu0
  %v582 = vadd.f32 %v373, %v581
  %583 = vmatmul.f32.gmra.mxu0 %v89
  %v584 = vpop.f32.mrf.mxu0
  %v585 = vadd.f32 %v376, %v584
  %586 = vmatmul.f32.gmra.mxu0 %v90
  %v587 = vpop.f32.mrf.mxu0
  %v588 = vadd.f32 %v379, %v587
  %589 = vmatmul.f32.gmra.mxu0 %v91
  %v590 = vpop.f32.mrf.mxu0
  %v591 = vadd.f32 %v382, %v590
  %592 = vmatmul.f32.gmra.mxu0 %v92
  %v593 = vpop.f32.mrf.mxu0
  %v594 = vadd.f32 %v385, %v593
  %595 = vmatmul.f32.gmra.mxu0 %v93
  %v596 = vpop.f32.mrf.mxu0
  %v597 = vadd.f32 %v388, %v596
  %598 = vmatmul.f32.gmra.mxu0 %v94
  %v599 = vpop.f32.mrf.mxu0
  %v600 = vadd.f32 %v391, %v599
  %601 = vmatmul.f32.gmra.mxu0 %v95
  %v602 = vpop.f32.mrf.mxu0
  %v603 = vadd.f32 %v394, %v602
  %604 = vmatmul.f32.gmra.mxu0 %v96
  %v605 = vpop.f32.mrf.mxu0
  %v606 = vadd.f32 %v397, %v605
  %607 = vmatmul.f32.gmra.mxu0 %v97
  %v608 = vpop.f32.mrf.mxu0
  %v609 = vadd.f32 %v400, %v608
  %610 = vmatmul.f32.gmra.mxu0 %v98
  %v611 = vpop.f32.mrf.mxu0
  %v612 = vadd.f32 %v403, %v611
  %613 = vdwg.mxu0
  %v614 = vld [vmem:[%s0 + $0x2] sm:$0xff]
  %v615 = vld [vmem:[%s0 + $0xa] sm:$0xff]
  %v616 = vld [vmem:[%s0 + $0x1a] sm:$0xff]
  %v617 = vld [vmem:[%s0 + $0x22] sm:$0xff]
  %v618 = vld [vmem:[%s0 + $0x32] sm:$0xff]
  %v619 = vld [vmem:[%s0 + $0x3a] sm:$0xff]
  %v620 = vld [vmem:[%s0 + $0x4a] sm:$0xff]
  %v621 = vld [vmem:[%s0 + $0x52] sm:$0xff]
  %v622 = vld [vmem:[%s0 + $0x62] sm:$0xff]
  %v623 = vld [vmem:[%s0 + $0x6a] sm:$0xff]
  %v624 = vld [vmem:[%s0 + $0x7a] sm:$0xff]
  %v625 = vld [vmem:[%s0 + $0x82] sm:$0xff]
  %v626 = vld [vmem:[%s0 + $0x92] sm:$0xff]
  %v627 = vld [vmem:[%s0 + $0x9a] sm:$0xff]
  %v628 = vld [vmem:[%s0 + $0xaa] sm:$0xff]
  %v629 = vld [vmem:[%s0 + $0xb2] sm:$0xff]
  %v630 = vld [vmem:[%s0 + $0xc2] sm:$0xff]
  %v631 = vld [vmem:[%s0 + $0xca] sm:$0xff]
  %v632 = vld [vmem:[%s0 + $0xda] sm:$0xff]
  %v633 = vld [vmem:[%s0 + $0xe2] sm:$0xff]
  %v634 = vld [vmem:[%s0 + $0xf2] sm:$0xff]
  %v635 = vld [vmem:[%s0 + $0xfa] sm:$0xff]
  %v636 = vld [vmem:[%s0 + $0x10a] sm:$0xff]
  %v637 = vld [vmem:[%s0 + $0x112] sm:$0xff]
  %v638 = vld [vmem:[%s0 + $0x122] sm:$0xff]
  %v639 = vld [vmem:[%s0 + $0x12a] sm:$0xff]
  %v640 = vld [vmem:[%s0 + $0x13a] sm:$0xff]
  %v641 = vld [vmem:[%s0 + $0x142] sm:$0xff]
  %v642 = vld [vmem:[%s0 + $0x152] sm:$0xff]
  %v643 = vld [vmem:[%s0 + $0x15a] sm:$0xff]
  %v644 = vld [vmem:[%s0 + $0x16a] sm:$0xff]
  %v645 = vld [vmem:[%s0 + $0x172] sm:$0xff]
  %v646 = vld [vmem:[%s0 + $0x1b2] sm:$0xff]
  %v647 = vld [vmem:[%s0 + $0x1ba] sm:$0xff]
  %v648 = vld [vmem:[%s0 + $0x1ca] sm:$0xff]
  %v649 = vld [vmem:[%s0 + $0x1d2] sm:$0xff]
  %v650 = vld [vmem:[%s0 + $0x1e2] sm:$0xff]
  %v651 = vld [vmem:[%s0 + $0x1ea] sm:$0xff]
  %v652 = vld [vmem:[%s0 + $0x1fa] sm:$0xff]
  %v653 = vld [vmem:[%s0 + $0x202] sm:$0xff]
  %v654 = vld [vmem:[%s0 + $0x212] sm:$0xff]
  %v655 = vld [vmem:[%s0 + $0x21a] sm:$0xff]
  %v656 = vld [vmem:[%s0 + $0x22a] sm:$0xff]
  %v657 = vld [vmem:[%s0 + $0x232] sm:$0xff]
  %v658 = vld [vmem:[%s0 + $0x242] sm:$0xff]
  %v659 = vld [vmem:[%s0 + $0x24a] sm:$0xff]
  %v660 = vld [vmem:[%s0 + $0x25a] sm:$0xff]
  %v661 = vld [vmem:[%s0 + $0x262] sm:$0xff]
  %v662 = vld [vmem:[%s0 + $0x272] sm:$0xff]
  %v663 = vld [vmem:[%s0 + $0x27a] sm:$0xff]
  %v664 = vld [vmem:[%s0 + $0x28a] sm:$0xff]
  %v665 = vld [vmem:[%s0 + $0x292] sm:$0xff]
  %v666 = vld [vmem:[%s0 + $0x2a2] sm:$0xff]
  %v667 = vld [vmem:[%s0 + $0x2aa] sm:$0xff]
  %v668 = vld [vmem:[%s0 + $0x2ba] sm:$0xff]
  %v669 = vld [vmem:[%s0 + $0x2c2] sm:$0xff]
  %v670 = vld [vmem:[%s0 + $0x2d2] sm:$0xff]
  %v671 = vld [vmem:[%s0 + $0x2da] sm:$0xff]
  %v672 = vld [vmem:[%s0 + $0x2ea] sm:$0xff]
  %v673 = vld [vmem:[%s0 + $0x2f2] sm:$0xff]
  %v674 = vld [vmem:[%s0 + $0x302] sm:$0xff]
  %v675 = vld [vmem:[%s0 + $0x30a] sm:$0xff]
  %v676 = vld [vmem:[%s0 + $0x31a] sm:$0xff]
  %v677 = vld [vmem:[%s0 + $0x322] sm:$0xff]
  %s678 = scalar_lea.vmem %s2, 256
  %v679 = vld [vmem:[%s678] sm:$0xff]
  %v680 = vld [vmem:[%s678 + $0x8] sm:$0xff]
  %v681 = vld [vmem:[%s678 + $0x10] sm:$0xff]
  %v682 = vld [vmem:[%s678 + $0x18] sm:$0xff]
  %v683 = vld [vmem:[%s678 + $0x20] sm:$0xff]
  %v684 = vld [vmem:[%s678 + $0x28] sm:$0xff]
  %v685 = vld [vmem:[%s678 + $0x30] sm:$0xff]
  %v686 = vld [vmem:[%s678 + $0x38] sm:$0xff]
  %v687 = vld [vmem:[%s678 + $0x40] sm:$0xff]
  %v688 = vld [vmem:[%s678 + $0x48] sm:$0xff]
  %v689 = vld [vmem:[%s678 + $0x50] sm:$0xff]
  %v690 = vld [vmem:[%s678 + $0x58] sm:$0xff]
  %v691 = vld [vmem:[%s678 + $0x60] sm:$0xff]
  %v692 = vld [vmem:[%s678 + $0x68] sm:$0xff]
  %v693 = vld [vmem:[%s678 + $0x70] sm:$0xff]
  %v694 = vld [vmem:[%s678 + $0x78] sm:$0xff]
  %695 = vmatpush.msra.mxu0 %v694
  %696 = vmatpush.msra.mxu0 %v693
  %697 = vmatpush.msra.mxu0 %v692
  %698 = vmatpush.msra.mxu0 %v691
  %699 = vmatpush.msra.mxu0 %v690
  %700 = vmatpush.msra.mxu0 %v689
  %701 = vmatpush.msra.mxu0 %v688
  %702 = vmatpush.msra.mxu0 %v687
  %703 = vmatpush.msra.mxu0 %v686
  %704 = vmatpush.msra.mxu0 %v685
  %705 = vmatpush.msra.mxu0 %v684
  %706 = vmatpush.msra.mxu0 %v683
  %707 = vmatpush.msra.mxu0 %v682
  %708 = vmatpush.msra.mxu0 %v681
  %709 = vmatpush.msra.mxu0 %v680
  %710 = vmatpush.msra.mxu0 %v679
  %711 = vmatmul.f32.gmra.mxu0 %v614
  %v712 = vpop.f32.mrf.mxu0
  %v713 = vadd.f32 0.0, %v712
  %714 = vmatmul.f32.gmra.mxu0 %v615
  %v715 = vpop.f32.mrf.mxu0
  %v716 = vadd.f32 0.0, %v715
  %717 = vmatmul.f32.gmra.mxu0 %v616
  %v718 = vpop.f32.mrf.mxu0
  %v719 = vadd.f32 0.0, %v718
  %720 = vmatmul.f32.gmra.mxu0 %v617
  %v721 = vpop.f32.mrf.mxu0
  %v722 = vadd.f32 0.0, %v721
  %723 = vmatmul.f32.gmra.mxu0 %v618
  %v724 = vpop.f32.mrf.mxu0
  %v725 = vadd.f32 0.0, %v724
  %726 = vmatmul.f32.gmra.mxu0 %v619
  %v727 = vpop.f32.mrf.mxu0
  %v728 = vadd.f32 0.0, %v727
  %729 = vmatmul.f32.gmra.mxu0 %v620
  %v730 = vpop.f32.mrf.mxu0
  %v731 = vadd.f32 0.0, %v730
  %732 = vmatmul.f32.gmra.mxu0 %v621
  %v733 = vpop.f32.mrf.mxu0
  %v734 = vadd.f32 0.0, %v733
  %735 = vmatmul.f32.gmra.mxu0 %v622
  %v736 = vpop.f32.mrf.mxu0
  %v737 = vadd.f32 0.0, %v736
  %738 = vmatmul.f32.gmra.mxu0 %v623
  %v739 = vpop.f32.mrf.mxu0
  %v740 = vadd.f32 0.0, %v739
  %741 = vmatmul.f32.gmra.mxu0 %v624
  %v742 = vpop.f32.mrf.mxu0
  %v743 = vadd.f32 0.0, %v742
  %744 = vmatmul.f32.gmra.mxu0 %v625
  %v745 = vpop.f32.mrf.mxu0
  %v746 = vadd.f32 0.0, %v745
  %747 = vmatmul.f32.gmra.mxu0 %v626
  %v748 = vpop.f32.mrf.mxu0
  %v749 = vadd.f32 0.0, %v748
  %750 = vmatmul.f32.gmra.mxu0 %v627
  %v751 = vpop.f32.mrf.mxu0
  %v752 = vadd.f32 0.0, %v751
  %753 = vmatmul.f32.gmra.mxu0 %v628
  %v754 = vpop.f32.mrf.mxu0
  %v755 = vadd.f32 0.0, %v754
  %756 = vmatmul.f32.gmra.mxu0 %v629
  %v757 = vpop.f32.mrf.mxu0
  %v758 = vadd.f32 0.0, %v757
  %759 = vmatmul.f32.gmra.mxu0 %v630
  %v760 = vpop.f32.mrf.mxu0
  %v761 = vadd.f32 0.0, %v760
  %762 = vmatmul.f32.gmra.mxu0 %v631
  %v763 = vpop.f32.mrf.mxu0
  %v764 = vadd.f32 0.0, %v763
  %765 = vmatmul.f32.gmra.mxu0 %v632
  %v766 = vpop.f32.mrf.mxu0
  %v767 = vadd.f32 0.0, %v766
  %768 = vmatmul.f32.gmra.mxu0 %v633
  %v769 = vpop.f32.mrf.mxu0
  %v770 = vadd.f32 0.0, %v769
  %771 = vmatmul.f32.gmra.mxu0 %v634
  %v772 = vpop.f32.mrf.mxu0
  %v773 = vadd.f32 0.0, %v772
  %774 = vmatmul.f32.gmra.mxu0 %v635
  %v775 = vpop.f32.mrf.mxu0
  %v776 = vadd.f32 0.0, %v775
  %777 = vmatmul.f32.gmra.mxu0 %v636
  %v778 = vpop.f32.mrf.mxu0
  %v779 = vadd.f32 0.0, %v778
  %780 = vmatmul.f32.gmra.mxu0 %v637
  %v781 = vpop.f32.mrf.mxu0
  %v782 = vadd.f32 0.0, %v781
  %783 = vmatmul.f32.gmra.mxu0 %v638
  %v784 = vpop.f32.mrf.mxu0
  %v785 = vadd.f32 0.0, %v784
  %786 = vmatmul.f32.gmra.mxu0 %v639
  %v787 = vpop.f32.mrf.mxu0
  %v788 = vadd.f32 0.0, %v787
  %789 = vmatmul.f32.gmra.mxu0 %v640
  %v790 = vpop.f32.mrf.mxu0
  %v791 = vadd.f32 0.0, %v790
  %792 = vmatmul.f32.gmra.mxu0 %v641
  %v793 = vpop.f32.mrf.mxu0
  %v794 = vadd.f32 0.0, %v793
  %795 = vmatmul.f32.gmra.mxu0 %v642
  %v796 = vpop.f32.mrf.mxu0
  %v797 = vadd.f32 0.0, %v796
  %798 = vmatmul.f32.gmra.mxu0 %v643
  %v799 = vpop.f32.mrf.mxu0
  %v800 = vadd.f32 0.0, %v799
  %801 = vmatmul.f32.gmra.mxu0 %v644
  %v802 = vpop.f32.mrf.mxu0
  %v803 = vadd.f32 0.0, %v802
  %804 = vmatmul.f32.gmra.mxu0 %v645
  %v805 = vpop.f32.mrf.mxu0
  %v806 = vadd.f32 0.0, %v805
  %807 = vmatmul.f32.gmra.mxu0 %v646
  %v808 = vpop.f32.mrf.mxu0
  %v809 = vadd.f32 0.0, %v808
  %810 = vmatmul.f32.gmra.mxu0 %v647
  %v811 = vpop.f32.mrf.mxu0
  %v812 = vadd.f32 0.0, %v811
  %813 = vmatmul.f32.gmra.mxu0 %v648
  %v814 = vpop.f32.mrf.mxu0
  %v815 = vadd.f32 0.0, %v814
  %816 = vmatmul.f32.gmra.mxu0 %v649
  %v817 = vpop.f32.mrf.mxu0
  %v818 = vadd.f32 0.0, %v817
  %819 = vmatmul.f32.gmra.mxu0 %v650
  %v820 = vpop.f32.mrf.mxu0
  %v821 = vadd.f32 0.0, %v820
  %822 = vmatmul.f32.gmra.mxu0 %v651
  %v823 = vpop.f32.mrf.mxu0
  %v824 = vadd.f32 0.0, %v823
  %825 = vmatmul.f32.gmra.mxu0 %v652
  %v826 = vpop.f32.mrf.mxu0
  %v827 = vadd.f32 0.0, %v826
  %828 = vmatmul.f32.gmra.mxu0 %v653
  %v829 = vpop.f32.mrf.mxu0
  %v830 = vadd.f32 0.0, %v829
  %831 = vmatmul.f32.gmra.mxu0 %v654
  %v832 = vpop.f32.mrf.mxu0
  %v833 = vadd.f32 0.0, %v832
  %834 = vmatmul.f32.gmra.mxu0 %v655
  %v835 = vpop.f32.mrf.mxu0
  %v836 = vadd.f32 0.0, %v835
  %837 = vmatmul.f32.gmra.mxu0 %v656
  %v838 = vpop.f32.mrf.mxu0
  %v839 = vadd.f32 0.0, %v838
  %840 = vmatmul.f32.gmra.mxu0 %v657
  %v841 = vpop.f32.mrf.mxu0
  %v842 = vadd.f32 0.0, %v841
  %843 = vmatmul.f32.gmra.mxu0 %v658
  %v844 = vpop.f32.mrf.mxu0
  %v845 = vadd.f32 0.0, %v844
  %846 = vmatmul.f32.gmra.mxu0 %v659
  %v847 = vpop.f32.mrf.mxu0
  %v848 = vadd.f32 0.0, %v847
  %849 = vmatmul.f32.gmra.mxu0 %v660
  %v850 = vpop.f32.mrf.mxu0
  %v851 = vadd.f32 0.0, %v850
  %852 = vmatmul.f32.gmra.mxu0 %v661
  %v853 = vpop.f32.mrf.mxu0
  %v854 = vadd.f32 0.0, %v853
  %855 = vmatmul.f32.gmra.mxu0 %v662
  %v856 = vpop.f32.mrf.mxu0
  %v857 = vadd.f32 0.0, %v856
  %858 = vmatmul.f32.gmra.mxu0 %v663
  %v859 = vpop.f32.mrf.mxu0
  %v860 = vadd.f32 0.0, %v859
  %861 = vmatmul.f32.gmra.mxu0 %v664
  %v862 = vpop.f32.mrf.mxu0
  %v863 = vadd.f32 0.0, %v862
  %864 = vmatmul.f32.gmra.mxu0 %v665
  %v865 = vpop.f32.mrf.mxu0
  %v866 = vadd.f32 0.0, %v865
  %867 = vmatmul.f32.gmra.mxu0 %v666
  %v868 = vpop.f32.mrf.mxu0
  %v869 = vadd.f32 0.0, %v868
  %870 = vmatmul.f32.gmra.mxu0 %v667
  %v871 = vpop.f32.mrf.mxu0
  %v872 = vadd.f32 0.0, %v871
  %873 = vmatmul.f32.gmra.mxu0 %v668
  %v874 = vpop.f32.mrf.mxu0
  %v875 = vadd.f32 0.0, %v874
  %876 = vmatmul.f32.gmra.mxu0 %v669
  %v877 = vpop.f32.mrf.mxu0
  %v878 = vadd.f32 0.0, %v877
  %879 = vmatmul.f32.gmra.mxu0 %v670
  %v880 = vpop.f32.mrf.mxu0
  %v881 = vadd.f32 0.0, %v880
  %882 = vmatmul.f32.gmra.mxu0 %v671
  %v883 = vpop.f32.mrf.mxu0
  %v884 = vadd.f32 0.0, %v883
  %885 = vmatmul.f32.gmra.mxu0 %v672
  %v886 = vpop.f32.mrf.mxu0
  %v887 = vadd.f32 0.0, %v886
  %888 = vmatmul.f32.gmra.mxu0 %v673
  %v889 = vpop.f32.mrf.mxu0
  %v890 = vadd.f32 0.0, %v889
  %891 = vmatmul.f32.gmra.mxu0 %v674
  %v892 = vpop.f32.mrf.mxu0
  %v893 = vadd.f32 0.0, %v892
  %894 = vmatmul.f32.gmra.mxu0 %v675
  %v895 = vpop.f32.mrf.mxu0
  %v896 = vadd.f32 0.0, %v895
  %897 = vmatmul.f32.gmra.mxu0 %v676
  %v898 = vpop.f32.mrf.mxu0
  %v899 = vadd.f32 0.0, %v898
  %900 = vmatmul.f32.gmra.mxu0 %v677
  %v901 = vpop.f32.mrf.mxu0
  %v902 = vadd.f32 0.0, %v901
  %903 = vdwg.mxu0
  %v904 = vadd.f32 %v423, %v713
  %v905 = vadd.f32 %v426, %v716
  %v906 = vadd.f32 %v429, %v719
  %v907 = vadd.f32 %v432, %v722
  %v908 = vadd.f32 %v435, %v725
  %v909 = vadd.f32 %v438, %v728
  %v910 = vadd.f32 %v441, %v731
  %v911 = vadd.f32 %v444, %v734
  %v912 = vadd.f32 %v447, %v737
  %v913 = vadd.f32 %v450, %v740
  %v914 = vadd.f32 %v453, %v743
  %v915 = vadd.f32 %v456, %v746
  %v916 = vadd.f32 %v459, %v749
  %v917 = vadd.f32 %v462, %v752
  %v918 = vadd.f32 %v465, %v755
  %v919 = vadd.f32 %v468, %v758
  %v920 = vadd.f32 %v471, %v761
  %v921 = vadd.f32 %v474, %v764
  %v922 = vadd.f32 %v477, %v767
  %v923 = vadd.f32 %v480, %v770
  %v924 = vadd.f32 %v483, %v773
  %v925 = vadd.f32 %v486, %v776
  %v926 = vadd.f32 %v489, %v779
  %v927 = vadd.f32 %v492, %v782
  %v928 = vadd.f32 %v495, %v785
  %v929 = vadd.f32 %v498, %v788
  %v930 = vadd.f32 %v501, %v791
  %v931 = vadd.f32 %v504, %v794
  %v932 = vadd.f32 %v507, %v797
  %v933 = vadd.f32 %v510, %v800
  %v934 = vadd.f32 %v513, %v803
  %v935 = vadd.f32 %v516, %v806
  %v936 = vadd.f32 %v519, %v809
  %v937 = vadd.f32 %v522, %v812
  %v938 = vadd.f32 %v525, %v815
  %v939 = vadd.f32 %v528, %v818
  %v940 = vadd.f32 %v531, %v821
  %v941 = vadd.f32 %v534, %v824
  %v942 = vadd.f32 %v537, %v827
  %v943 = vadd.f32 %v540, %v830
  %v944 = vadd.f32 %v543, %v833
  %v945 = vadd.f32 %v546, %v836
  %v946 = vadd.f32 %v549, %v839
  %v947 = vadd.f32 %v552, %v842
  %v948 = vadd.f32 %v555, %v845
  %v949 = vadd.f32 %v558, %v848
  %v950 = vadd.f32 %v561, %v851
  %v951 = vadd.f32 %v564, %v854
  %v952 = vadd.f32 %v567, %v857
  %v953 = vadd.f32 %v570, %v860
  %v954 = vadd.f32 %v573, %v863
  %v955 = vadd.f32 %v576, %v866
  %v956 = vadd.f32 %v579, %v869
  %v957 = vadd.f32 %v582, %v872
  %v958 = vadd.f32 %v585, %v875
  %v959 = vadd.f32 %v588, %v878
  %v960 = vadd.f32 %v591, %v881
  %v961 = vadd.f32 %v594, %v884
  %v962 = vadd.f32 %v597, %v887
  %v963 = vadd.f32 %v600, %v890
  %v964 = vadd.f32 %v603, %v893
  %v965 = vadd.f32 %v606, %v896
  %v966 = vadd.f32 %v609, %v899
  %v967 = vadd.f32 %v612, %v902
  %s968 = scalar_lea.vmem %s0, 24
  %v969 = vld [vmem:[%s968] sm:$0xff]
  %v970 = vld [vmem:[%s968 + $0x8] sm:$0xff]
  %v971 = vld [vmem:[%s968 + $0x18] sm:$0xff]
  %v972 = vld [vmem:[%s968 + $0x20] sm:$0xff]
  %v973 = vld [vmem:[%s968 + $0x30] sm:$0xff]
  %v974 = vld [vmem:[%s968 + $0x38] sm:$0xff]
  %v975 = vld [vmem:[%s968 + $0x48] sm:$0xff]
  %v976 = vld [vmem:[%s968 + $0x50] sm:$0xff]
  %v977 = vld [vmem:[%s968 + $0x60] sm:$0xff]
  %v978 = vld [vmem:[%s968 + $0x68] sm:$0xff]
  %v979 = vld [vmem:[%s968 + $0x78] sm:$0xff]
  %v980 = vld [vmem:[%s968 + $0x80] sm:$0xff]
  %v981 = vld [vmem:[%s968 + $0x90] sm:$0xff]
  %v982 = vld [vmem:[%s968 + $0x98] sm:$0xff]
  %v983 = vld [vmem:[%s968 + $0xa8] sm:$0xff]
  %v984 = vld [vmem:[%s968 + $0xb0] sm:$0xff]
  %v985 = vld [vmem:[%s968 + $0xc0] sm:$0xff]
  %v986 = vld [vmem:[%s968 + $0xc8] sm:$0xff]
  %v987 = vld [vmem:[%s968 + $0xd8] sm:$0xff]
  %v988 = vld [vmem:[%s968 + $0xe0] sm:$0xff]
  %v989 = vld [vmem:[%s968 + $0xf0] sm:$0xff]
  %v990 = vld [vmem:[%s968 + $0xf8] sm:$0xff]
  %v991 = vld [vmem:[%s968 + $0x108] sm:$0xff]
  %v992 = vld [vmem:[%s968 + $0x110] sm:$0xff]
  %v993 = vld [vmem:[%s968 + $0x120] sm:$0xff]
  %v994 = vld [vmem:[%s968 + $0x128] sm:$0xff]
  %v995 = vld [vmem:[%s968 + $0x138] sm:$0xff]
  %v996 = vld [vmem:[%s968 + $0x140] sm:$0xff]
  %v997 = vld [vmem:[%s968 + $0x150] sm:$0xff]
  %v998 = vld [vmem:[%s968 + $0x158] sm:$0xff]
  %v999 = vld [vmem:[%s968 + $0x168] sm:$0xff]
  %v1000 = vld [vmem:[%s968 + $0x170] sm:$0xff]
  %v1001 = vld [vmem:[%s968 + $0x1b0] sm:$0xff]
  %v1002 = vld [vmem:[%s968 + $0x1b8] sm:$0xff]
  %v1003 = vld [vmem:[%s968 + $0x1c8] sm:$0xff]
  %v1004 = vld [vmem:[%s968 + $0x1d0] sm:$0xff]
  %v1005 = vld [vmem:[%s968 + $0x1e0] sm:$0xff]
  %v1006 = vld [vmem:[%s968 + $0x1e8] sm:$0xff]
  %v1007 = vld [vmem:[%s968 + $0x1f8] sm:$0xff]
  %v1008 = vld [vmem:[%s968 + $0x200] sm:$0xff]
  %v1009 = vld [vmem:[%s968 + $0x210] sm:$0xff]
  %v1010 = vld [vmem:[%s968 + $0x218] sm:$0xff]
  %v1011 = vld [vmem:[%s968 + $0x228] sm:$0xff]
  %v1012 = vld [vmem:[%s968 + $0x230] sm:$0xff]
  %v1013 = vld [vmem:[%s968 + $0x240] sm:$0xff]
  %v1014 = vld [vmem:[%s968 + $0x248] sm:$0xff]
  %v1015 = vld [vmem:[%s968 + $0x258] sm:$0xff]
  %v1016 = vld [vmem:[%s968 + $0x260] sm:$0xff]
  %v1017 = vld [vmem:[%s968 + $0x270] sm:$0xff]
  %v1018 = vld [vmem:[%s968 + $0x278] sm:$0xff]
  %v1019 = vld [vmem:[%s968 + $0x288] sm:$0xff]
  %v1020 = vld [vmem:[%s968 + $0x290] sm:$0xff]
  %v1021 = vld [vmem:[%s968 + $0x2a0] sm:$0xff]
  %v1022 = vld [vmem:[%s968 + $0x2a8] sm:$0xff]
  %v1023 = vld [vmem:[%s968 + $0x2b8] sm:$0xff]
  %v1024 = vld [vmem:[%s968 + $0x2c0] sm:$0xff]
  %v1025 = vld [vmem:[%s968 + $0x2d0] sm:$0xff]
  %v1026 = vld [vmem:[%s968 + $0x2d8] sm:$0xff]
  %v1027 = vld [vmem:[%s968 + $0x2e8] sm:$0xff]
  %v1028 = vld [vmem:[%s968 + $0x2f0] sm:$0xff]
  %v1029 = vld [vmem:[%s968 + $0x300] sm:$0xff]
  %v1030 = vld [vmem:[%s968 + $0x308] sm:$0xff]
  %v1031 = vld [vmem:[%s968 + $0x318] sm:$0xff]
  %v1032 = vld [vmem:[%s968 + $0x320] sm:$0xff]
  %s1033 = scalar_lea.vmem %s2, 384
  %v1034 = vld [vmem:[%s1033] sm:$0xff]
  %v1035 = vld [vmem:[%s1033 + $0x8] sm:$0xff]
  %v1036 = vld [vmem:[%s1033 + $0x10] sm:$0xff]
  %v1037 = vld [vmem:[%s1033 + $0x18] sm:$0xff]
  %v1038 = vld [vmem:[%s1033 + $0x20] sm:$0xff]
  %v1039 = vld [vmem:[%s1033 + $0x28] sm:$0xff]
  %v1040 = vld [vmem:[%s1033 + $0x30] sm:$0xff]
  %v1041 = vld [vmem:[%s1033 + $0x38] sm:$0xff]
  %v1042 = vld [vmem:[%s1033 + $0x40] sm:$0xff]
  %v1043 = vld [vmem:[%s1033 + $0x48] sm:$0xff]
  %v1044 = vld [vmem:[%s1033 + $0x50] sm:$0xff]
  %v1045 = vld [vmem:[%s1033 + $0x58] sm:$0xff]
  %v1046 = vld [vmem:[%s1033 + $0x60] sm:$0xff]
  %v1047 = vld [vmem:[%s1033 + $0x68] sm:$0xff]
  %v1048 = vld [vmem:[%s1033 + $0x70] sm:$0xff]
  %v1049 = vld [vmem:[%s1033 + $0x78] sm:$0xff]
  %1050 = vmatpush.msra.mxu0 %v1049
  %1051 = vmatpush.msra.mxu0 %v1048
  %1052 = vmatpush.msra.mxu0 %v1047
  %1053 = vmatpush.msra.mxu0 %v1046
  %1054 = vmatpush.msra.mxu0 %v1045
  %1055 = vmatpush.msra.mxu0 %v1044
  %1056 = vmatpush.msra.mxu0 %v1043
  %1057 = vmatpush.msra.mxu0 %v1042
  %1058 = vmatpush.msra.mxu0 %v1041
  %1059 = vmatpush.msra.mxu0 %v1040
  %1060 = vmatpush.msra.mxu0 %v1039
  %1061 = vmatpush.msra.mxu0 %v1038
  %1062 = vmatpush.msra.mxu0 %v1037
  %1063 = vmatpush.msra.mxu0 %v1036
  %1064 = vmatpush.msra.mxu0 %v1035
  %1065 = vmatpush.msra.mxu0 %v1034
  %1066 = vmatmul.f32.gmra.mxu0 %v969
  %v1067 = vpop.f32.mrf.mxu0
  %v1068 = vadd.f32 0.0, %v1067
  %1069 = vmatmul.f32.gmra.mxu0 %v970
  %v1070 = vpop.f32.mrf.mxu0
  %v1071 = vadd.f32 0.0, %v1070
  %1072 = vmatmul.f32.gmra.mxu0 %v971
  %v1073 = vpop.f32.mrf.mxu0
  %v1074 = vadd.f32 0.0, %v1073
  %1075 = vmatmul.f32.gmra.mxu0 %v972
  %v1076 = vpop.f32.mrf.mxu0
  %v1077 = vadd.f32 0.0, %v1076
  %1078 = vmatmul.f32.gmra.mxu0 %v973
  %v1079 = vpop.f32.mrf.mxu0
  %v1080 = vadd.f32 0.0, %v1079
  %1081 = vmatmul.f32.gmra.mxu0 %v974
  %v1082 = vpop.f32.mrf.mxu0
  %v1083 = vadd.f32 0.0, %v1082
  %1084 = vmatmul.f32.gmra.mxu0 %v975
  %v1085 = vpop.f32.mrf.mxu0
  %v1086 = vadd.f32 0.0, %v1085
  %1087 = vmatmul.f32.gmra.mxu0 %v976
  %v1088 = vpop.f32.mrf.mxu0
  %v1089 = vadd.f32 0.0, %v1088
  %1090 = vmatmul.f32.gmra.mxu0 %v977
  %v1091 = vpop.f32.mrf.mxu0
  %v1092 = vadd.f32 0.0, %v1091
  %1093 = vmatmul.f32.gmra.mxu0 %v978
  %v1094 = vpop.f32.mrf.mxu0
  %v1095 = vadd.f32 0.0, %v1094
  %1096 = vmatmul.f32.gmra.mxu0 %v979
  %v1097 = vpop.f32.mrf.mxu0
  %v1098 = vadd.f32 0.0, %v1097
  %1099 = vmatmul.f32.gmra.mxu0 %v980
  %v1100 = vpop.f32.mrf.mxu0
  %v1101 = vadd.f32 0.0, %v1100
  %1102 = vmatmul.f32.gmra.mxu0 %v981
  %v1103 = vpop.f32.mrf.mxu0
  %v1104 = vadd.f32 0.0, %v1103
  %1105 = vmatmul.f32.gmra.mxu0 %v982
  %v1106 = vpop.f32.mrf.mxu0
  %v1107 = vadd.f32 0.0, %v1106
  %1108 = vmatmul.f32.gmra.mxu0 %v983
  %v1109 = vpop.f32.mrf.mxu0
  %v1110 = vadd.f32 0.0, %v1109
  %1111 = vmatmul.f32.gmra.mxu0 %v984
  %v1112 = vpop.f32.mrf.mxu0
  %v1113 = vadd.f32 0.0, %v1112
  %1114 = vmatmul.f32.gmra.mxu0 %v985
  %v1115 = vpop.f32.mrf.mxu0
  %v1116 = vadd.f32 0.0, %v1115
  %1117 = vmatmul.f32.gmra.mxu0 %v986
  %v1118 = vpop.f32.mrf.mxu0
  %v1119 = vadd.f32 0.0, %v1118
  %1120 = vmatmul.f32.gmra.mxu0 %v987
  %v1121 = vpop.f32.mrf.mxu0
  %v1122 = vadd.f32 0.0, %v1121
  %1123 = vmatmul.f32.gmra.mxu0 %v988
  %v1124 = vpop.f32.mrf.mxu0
  %v1125 = vadd.f32 0.0, %v1124
  %1126 = vmatmul.f32.gmra.mxu0 %v989
  %v1127 = vpop.f32.mrf.mxu0
  %v1128 = vadd.f32 0.0, %v1127
  %1129 = vmatmul.f32.gmra.mxu0 %v990
  %v1130 = vpop.f32.mrf.mxu0
  %v1131 = vadd.f32 0.0, %v1130
  %1132 = vmatmul.f32.gmra.mxu0 %v991
  %v1133 = vpop.f32.mrf.mxu0
  %v1134 = vadd.f32 0.0, %v1133
  %1135 = vmatmul.f32.gmra.mxu0 %v992
  %v1136 = vpop.f32.mrf.mxu0
  %v1137 = vadd.f32 0.0, %v1136
  %1138 = vmatmul.f32.gmra.mxu0 %v993
  %v1139 = vpop.f32.mrf.mxu0
  %v1140 = vadd.f32 0.0, %v1139
  %1141 = vmatmul.f32.gmra.mxu0 %v994
  %v1142 = vpop.f32.mrf.mxu0
  %v1143 = vadd.f32 0.0, %v1142
  %1144 = vmatmul.f32.gmra.mxu0 %v995
  %v1145 = vpop.f32.mrf.mxu0
  %v1146 = vadd.f32 0.0, %v1145
  %1147 = vmatmul.f32.gmra.mxu0 %v996
  %v1148 = vpop.f32.mrf.mxu0
  %v1149 = vadd.f32 0.0, %v1148
  %1150 = vmatmul.f32.gmra.mxu0 %v997
  %v1151 = vpop.f32.mrf.mxu0
  %v1152 = vadd.f32 0.0, %v1151
  %1153 = vmatmul.f32.gmra.mxu0 %v998
  %v1154 = vpop.f32.mrf.mxu0
  %v1155 = vadd.f32 0.0, %v1154
  %1156 = vmatmul.f32.gmra.mxu0 %v999
  %v1157 = vpop.f32.mrf.mxu0
  %v1158 = vadd.f32 0.0, %v1157
  %1159 = vmatmul.f32.gmra.mxu0 %v1000
  %v1160 = vpop.f32.mrf.mxu0
  %v1161 = vadd.f32 0.0, %v1160
  %1162 = vmatmul.f32.gmra.mxu0 %v1001
  %v1163 = vpop.f32.mrf.mxu0
  %v1164 = vadd.f32 0.0, %v1163
  %1165 = vmatmul.f32.gmra.mxu0 %v1002
  %v1166 = vpop.f32.mrf.mxu0
  %v1167 = vadd.f32 0.0, %v1166
  %1168 = vmatmul.f32.gmra.mxu0 %v1003
  %v1169 = vpop.f32.mrf.mxu0
  %v1170 = vadd.f32 0.0, %v1169
  %1171 = vmatmul.f32.gmra.mxu0 %v1004
  %v1172 = vpop.f32.mrf.mxu0
  %v1173 = vadd.f32 0.0, %v1172
  %1174 = vmatmul.f32.gmra.mxu0 %v1005
  %v1175 = vpop.f32.mrf.mxu0
  %v1176 = vadd.f32 0.0, %v1175
  %1177 = vmatmul.f32.gmra.mxu0 %v1006
  %v1178 = vpop.f32.mrf.mxu0
  %v1179 = vadd.f32 0.0, %v1178
  %1180 = vmatmul.f32.gmra.mxu0 %v1007
  %v1181 = vpop.f32.mrf.mxu0
  %v1182 = vadd.f32 0.0, %v1181
  %1183 = vmatmul.f32.gmra.mxu0 %v1008
  %v1184 = vpop.f32.mrf.mxu0
  %v1185 = vadd.f32 0.0, %v1184
  %1186 = vmatmul.f32.gmra.mxu0 %v1009
  %v1187 = vpop.f32.mrf.mxu0
  %v1188 = vadd.f32 0.0, %v1187
  %1189 = vmatmul.f32.gmra.mxu0 %v1010
  %v1190 = vpop.f32.mrf.mxu0
  %v1191 = vadd.f32 0.0, %v1190
  %1192 = vmatmul.f32.gmra.mxu0 %v1011
  %v1193 = vpop.f32.mrf.mxu0
  %v1194 = vadd.f32 0.0, %v1193
  %1195 = vmatmul.f32.gmra.mxu0 %v1012
  %v1196 = vpop.f32.mrf.mxu0
  %v1197 = vadd.f32 0.0, %v1196
  %1198 = vmatmul.f32.gmra.mxu0 %v1013
  %v1199 = vpop.f32.mrf.mxu0
  %v1200 = vadd.f32 0.0, %v1199
  %1201 = vmatmul.f32.gmra.mxu0 %v1014
  %v1202 = vpop.f32.mrf.mxu0
  %v1203 = vadd.f32 0.0, %v1202
  %1204 = vmatmul.f32.gmra.mxu0 %v1015
  %v1205 = vpop.f32.mrf.mxu0
  %v1206 = vadd.f32 0.0, %v1205
  %1207 = vmatmul.f32.gmra.mxu0 %v1016
  %v1208 = vpop.f32.mrf.mxu0
  %v1209 = vadd.f32 0.0, %v1208
  %1210 = vmatmul.f32.gmra.mxu0 %v1017
  %v1211 = vpop.f32.mrf.mxu0
  %v1212 = vadd.f32 0.0, %v1211
  %1213 = vmatmul.f32.gmra.mxu0 %v1018
  %v1214 = vpop.f32.mrf.mxu0
  %v1215 = vadd.f32 0.0, %v1214
  %1216 = vmatmul.f32.gmra.mxu0 %v1019
  %v1217 = vpop.f32.mrf.mxu0
  %v1218 = vadd.f32 0.0, %v1217
  %1219 = vmatmul.f32.gmra.mxu0 %v1020
  %v1220 = vpop.f32.mrf.mxu0
  %v1221 = vadd.f32 0.0, %v1220
  %1222 = vmatmul.f32.gmra.mxu0 %v1021
  %v1223 = vpop.f32.mrf.mxu0
  %v1224 = vadd.f32 0.0, %v1223
  %1225 = vmatmul.f32.gmra.mxu0 %v1022
  %v1226 = vpop.f32.mrf.mxu0
  %v1227 = vadd.f32 0.0, %v1226
  %1228 = vmatmul.f32.gmra.mxu0 %v1023
  %v1229 = vpop.f32.mrf.mxu0
  %v1230 = vadd.f32 0.0, %v1229
  %1231 = vmatmul.f32.gmra.mxu0 %v1024
  %v1232 = vpop.f32.mrf.mxu0
  %v1233 = vadd.f32 0.0, %v1232
  %1234 = vmatmul.f32.gmra.mxu0 %v1025
  %v1235 = vpop.f32.mrf.mxu0
  %v1236 = vadd.f32 0.0, %v1235
  %1237 = vmatmul.f32.gmra.mxu0 %v1026
  %v1238 = vpop.f32.mrf.mxu0
  %v1239 = vadd.f32 0.0, %v1238
  %1240 = vmatmul.f32.gmra.mxu0 %v1027
  %v1241 = vpop.f32.mrf.mxu0
  %v1242 = vadd.f32 0.0, %v1241
  %1243 = vmatmul.f32.gmra.mxu0 %v1028
  %v1244 = vpop.f32.mrf.mxu0
  %v1245 = vadd.f32 0.0, %v1244
  %1246 = vmatmul.f32.gmra.mxu0 %v1029
  %v1247 = vpop.f32.mrf.mxu0
  %v1248 = vadd.f32 0.0, %v1247
  %1249 = vmatmul.f32.gmra.mxu0 %v1030
  %v1250 = vpop.f32.mrf.mxu0
  %v1251 = vadd.f32 0.0, %v1250
  %1252 = vmatmul.f32.gmra.mxu0 %v1031
  %v1253 = vpop.f32.mrf.mxu0
  %v1254 = vadd.f32 0.0, %v1253
  %1255 = vmatmul.f32.gmra.mxu0 %v1032
  %v1256 = vpop.f32.mrf.mxu0
  %v1257 = vadd.f32 0.0, %v1256
  %1258 = vdwg.mxu0
  %v1259 = vadd.f32 %v904, %v1068
  %v1260 = vadd.f32 %v905, %v1071
  %v1261 = vadd.f32 %v906, %v1074
  %v1262 = vadd.f32 %v907, %v1077
  %v1263 = vadd.f32 %v908, %v1080
  %v1264 = vadd.f32 %v909, %v1083
  %v1265 = vadd.f32 %v910, %v1086
  %v1266 = vadd.f32 %v911, %v1089
  %v1267 = vadd.f32 %v912, %v1092
  %v1268 = vadd.f32 %v913, %v1095
  %v1269 = vadd.f32 %v914, %v1098
  %v1270 = vadd.f32 %v915, %v1101
  %v1271 = vadd.f32 %v916, %v1104
  %v1272 = vadd.f32 %v917, %v1107
  %v1273 = vadd.f32 %v918, %v1110
  %v1274 = vadd.f32 %v919, %v1113
  %v1275 = vadd.f32 %v920, %v1116
  %v1276 = vadd.f32 %v921, %v1119
  %v1277 = vadd.f32 %v922, %v1122
  %v1278 = vadd.f32 %v923, %v1125
  %v1279 = vadd.f32 %v924, %v1128
  %v1280 = vadd.f32 %v925, %v1131
  %v1281 = vadd.f32 %v926, %v1134
  %v1282 = vadd.f32 %v927, %v1137
  %v1283 = vadd.f32 %v928, %v1140
  %v1284 = vadd.f32 %v929, %v1143
  %v1285 = vadd.f32 %v930, %v1146
  %v1286 = vadd.f32 %v931, %v1149
  %v1287 = vadd.f32 %v932, %v1152
  %v1288 = vadd.f32 %v933, %v1155
  %v1289 = vadd.f32 %v934, %v1158
  %v1290 = vadd.f32 %v935, %v1161
  %v1291 = vadd.f32 %v936, %v1164
  %v1292 = vadd.f32 %v937, %v1167
  %v1293 = vadd.f32 %v938, %v1170
  %v1294 = vadd.f32 %v939, %v1173
  %v1295 = vadd.f32 %v940, %v1176
  %v1296 = vadd.f32 %v941, %v1179
  %v1297 = vadd.f32 %v942, %v1182
  %v1298 = vadd.f32 %v943, %v1185
  %v1299 = vadd.f32 %v944, %v1188
  %v1300 = vadd.f32 %v945, %v1191
  %v1301 = vadd.f32 %v946, %v1194
  %v1302 = vadd.f32 %v947, %v1197
  %v1303 = vadd.f32 %v948, %v1200
  %v1304 = vadd.f32 %v949, %v1203
  %v1305 = vadd.f32 %v950, %v1206
  %v1306 = vadd.f32 %v951, %v1209
  %v1307 = vadd.f32 %v952, %v1212
  %v1308 = vadd.f32 %v953, %v1215
  %v1309 = vadd.f32 %v954, %v1218
  %v1310 = vadd.f32 %v955, %v1221
  %v1311 = vadd.f32 %v956, %v1224
  %v1312 = vadd.f32 %v957, %v1227
  %v1313 = vadd.f32 %v958, %v1230
  %v1314 = vadd.f32 %v959, %v1233
  %v1315 = vadd.f32 %v960, %v1236
  %v1316 = vadd.f32 %v961, %v1239
  %v1317 = vadd.f32 %v962, %v1242
  %v1318 = vadd.f32 %v963, %v1245
  %v1319 = vadd.f32 %v964, %v1248
  %v1320 = vadd.f32 %v965, %v1251
  %v1321 = vadd.f32 %v966, %v1254
  %v1322 = vadd.f32 %v967, %v1257
  %v1323 = vld [vmem:[%s968 + $0x1] sm:$0xff]
  %v1324 = vld [vmem:[%s968 + $0x9] sm:$0xff]
  %v1325 = vld [vmem:[%s968 + $0x19] sm:$0xff]
  %v1326 = vld [vmem:[%s968 + $0x21] sm:$0xff]
  %v1327 = vld [vmem:[%s968 + $0x31] sm:$0xff]
  %v1328 = vld [vmem:[%s968 + $0x39] sm:$0xff]
  %v1329 = vld [vmem:[%s968 + $0x49] sm:$0xff]
  %v1330 = vld [vmem:[%s968 + $0x51] sm:$0xff]
  %v1331 = vld [vmem:[%s968 + $0x61] sm:$0xff]
  %v1332 = vld [vmem:[%s968 + $0x69] sm:$0xff]
  %v1333 = vld [vmem:[%s968 + $0x79] sm:$0xff]
  %v1334 = vld [vmem:[%s968 + $0x81] sm:$0xff]
  %v1335 = vld [vmem:[%s968 + $0x91] sm:$0xff]
  %v1336 = vld [vmem:[%s968 + $0x99] sm:$0xff]
  %v1337 = vld [vmem:[%s968 + $0xa9] sm:$0xff]
  %v1338 = vld [vmem:[%s968 + $0xb1] sm:$0xff]
  %v1339 = vld [vmem:[%s968 + $0xc1] sm:$0xff]
  %v1340 = vld [vmem:[%s968 + $0xc9] sm:$0xff]
  %v1341 = vld [vmem:[%s968 + $0xd9] sm:$0xff]
  %v1342 = vld [vmem:[%s968 + $0xe1] sm:$0xff]
  %v1343 = vld [vmem:[%s968 + $0xf1] sm:$0xff]
  %v1344 = vld [vmem:[%s968 + $0xf9] sm:$0xff]
  %v1345 = vld [vmem:[%s968 + $0x109] sm:$0xff]
  %v1346 = vld [vmem:[%s968 + $0x111] sm:$0xff]
  %v1347 = vld [vmem:[%s968 + $0x121] sm:$0xff]
  %v1348 = vld [vmem:[%s968 + $0x129] sm:$0xff]
  %v1349 = vld [vmem:[%s968 + $0x139] sm:$0xff]
  %v1350 = vld [vmem:[%s968 + $0x141] sm:$0xff]
  %v1351 = vld [vmem:[%s968 + $0x151] sm:$0xff]
  %v1352 = vld [vmem:[%s968 + $0x159] sm:$0xff]
  %v1353 = vld [vmem:[%s968 + $0x169] sm:$0xff]
  %v1354 = vld [vmem:[%s968 + $0x171] sm:$0xff]
  %v1355 = vld [vmem:[%s968 + $0x1b1] sm:$0xff]
  %v1356 = vld [vmem:[%s968 + $0x1b9] sm:$0xff]
  %v1357 = vld [vmem:[%s968 + $0x1c9] sm:$0xff]
  %v1358 = vld [vmem:[%s968 + $0x1d1] sm:$0xff]
  %v1359 = vld [vmem:[%s968 + $0x1e1] sm:$0xff]
  %v1360 = vld [vmem:[%s968 + $0x1e9] sm:$0xff]
  %v1361 = vld [vmem:[%s968 + $0x1f9] sm:$0xff]
  %v1362 = vld [vmem:[%s968 + $0x201] sm:$0xff]
  %v1363 = vld [vmem:[%s968 + $0x211] sm:$0xff]
  %v1364 = vld [vmem:[%s968 + $0x219] sm:$0xff]
  %v1365 = vld [vmem:[%s968 + $0x229] sm:$0xff]
  %v1366 = vld [vmem:[%s968 + $0x231] sm:$0xff]
  %v1367 = vld [vmem:[%s968 + $0x241] sm:$0xff]
  %v1368 = vld [vmem:[%s968 + $0x249] sm:$0xff]
  %v1369 = vld [vmem:[%s968 + $0x259] sm:$0xff]
  %v1370 = vld [vmem:[%s968 + $0x261] sm:$0xff]
  %v1371 = vld [vmem:[%s968 + $0x271] sm:$0xff]
  %v1372 = vld [vmem:[%s968 + $0x279] sm:$0xff]
  %v1373 = vld [vmem:[%s968 + $0x289] sm:$0xff]
  %v1374 = vld [vmem:[%s968 + $0x291] sm:$0xff]
  %v1375 = vld [vmem:[%s968 + $0x2a1] sm:$0xff]
  %v1376 = vld [vmem:[%s968 + $0x2a9] sm:$0xff]
  %v1377 = vld [vmem:[%s968 + $0x2b9] sm:$0xff]
  %v1378 = vld [vmem:[%s968 + $0x2c1] sm:$0xff]
  %v1379 = vld [vmem:[%s968 + $0x2d1] sm:$0xff]
  %v1380 = vld [vmem:[%s968 + $0x2d9] sm:$0xff]
  %v1381 = vld [vmem:[%s968 + $0x2e9] sm:$0xff]
  %v1382 = vld [vmem:[%s968 + $0x2f1] sm:$0xff]
  %v1383 = vld [vmem:[%s968 + $0x301] sm:$0xff]
  %v1384 = vld [vmem:[%s968 + $0x309] sm:$0xff]
  %v1385 = vld [vmem:[%s968 + $0x319] sm:$0xff]
  %v1386 = vld [vmem:[%s968 + $0x321] sm:$0xff]
  %s1387 = scalar_lea.vmem %s2, 512
  %v1388 = vld [vmem:[%s1387] sm:$0xff]
  %v1389 = vld [vmem:[%s1387 + $0x8] sm:$0xff]
  %v1390 = vld [vmem:[%s1387 + $0x10] sm:$0xff]
  %v1391 = vld [vmem:[%s1387 + $0x18] sm:$0xff]
  %v1392 = vld [vmem:[%s1387 + $0x20] sm:$0xff]
  %v1393 = vld [vmem:[%s1387 + $0x28] sm:$0xff]
  %v1394 = vld [vmem:[%s1387 + $0x30] sm:$0xff]
  %v1395 = vld [vmem:[%s1387 + $0x38] sm:$0xff]
  %v1396 = vld [vmem:[%s1387 + $0x40] sm:$0xff]
  %v1397 = vld [vmem:[%s1387 + $0x48] sm:$0xff]
  %v1398 = vld [vmem:[%s1387 + $0x50] sm:$0xff]
  %v1399 = vld [vmem:[%s1387 + $0x58] sm:$0xff]
  %v1400 = vld [vmem:[%s1387 + $0x60] sm:$0xff]
  %v1401 = vld [vmem:[%s1387 + $0x68] sm:$0xff]
  %v1402 = vld [vmem:[%s1387 + $0x70] sm:$0xff]
  %v1403 = vld [vmem:[%s1387 + $0x78] sm:$0xff]
  %1404 = vmatpush.msra.mxu0 %v1403
  %1405 = vmatpush.msra.mxu0 %v1402
  %1406 = vmatpush.msra.mxu0 %v1401
  %1407 = vmatpush.msra.mxu0 %v1400
  %1408 = vmatpush.msra.mxu0 %v1399
  %1409 = vmatpush.msra.mxu0 %v1398
  %1410 = vmatpush.msra.mxu0 %v1397
  %1411 = vmatpush.msra.mxu0 %v1396
  %1412 = vmatpush.msra.mxu0 %v1395
  %1413 = vmatpush.msra.mxu0 %v1394
  %1414 = vmatpush.msra.mxu0 %v1393
  %1415 = vmatpush.msra.mxu0 %v1392
  %1416 = vmatpush.msra.mxu0 %v1391
  %1417 = vmatpush.msra.mxu0 %v1390
  %1418 = vmatpush.msra.mxu0 %v1389
  %1419 = vmatpush.msra.mxu0 %v1388
  %1420 = vmatmul.f32.gmra.mxu0 %v1323
  %v1421 = vpop.f32.mrf.mxu0
  %v1422 = vadd.f32 0.0, %v1421
  %1423 = vmatmul.f32.gmra.mxu0 %v1324
  %v1424 = vpop.f32.mrf.mxu0
  %v1425 = vadd.f32 0.0, %v1424
  %1426 = vmatmul.f32.gmra.mxu0 %v1325
  %v1427 = vpop.f32.mrf.mxu0
  %v1428 = vadd.f32 0.0, %v1427
  %1429 = vmatmul.f32.gmra.mxu0 %v1326
  %v1430 = vpop.f32.mrf.mxu0
  %v1431 = vadd.f32 0.0, %v1430
  %1432 = vmatmul.f32.gmra.mxu0 %v1327
  %v1433 = vpop.f32.mrf.mxu0
  %v1434 = vadd.f32 0.0, %v1433
  %1435 = vmatmul.f32.gmra.mxu0 %v1328
  %v1436 = vpop.f32.mrf.mxu0
  %v1437 = vadd.f32 0.0, %v1436
  %1438 = vmatmul.f32.gmra.mxu0 %v1329
  %v1439 = vpop.f32.mrf.mxu0
  %v1440 = vadd.f32 0.0, %v1439
  %1441 = vmatmul.f32.gmra.mxu0 %v1330
  %v1442 = vpop.f32.mrf.mxu0
  %v1443 = vadd.f32 0.0, %v1442
  %1444 = vmatmul.f32.gmra.mxu0 %v1331
  %v1445 = vpop.f32.mrf.mxu0
  %v1446 = vadd.f32 0.0, %v1445
  %1447 = vmatmul.f32.gmra.mxu0 %v1332
  %v1448 = vpop.f32.mrf.mxu0
  %v1449 = vadd.f32 0.0, %v1448
  %1450 = vmatmul.f32.gmra.mxu0 %v1333
  %v1451 = vpop.f32.mrf.mxu0
  %v1452 = vadd.f32 0.0, %v1451
  %1453 = vmatmul.f32.gmra.mxu0 %v1334
  %v1454 = vpop.f32.mrf.mxu0
  %v1455 = vadd.f32 0.0, %v1454
  %1456 = vmatmul.f32.gmra.mxu0 %v1335
  %v1457 = vpop.f32.mrf.mxu0
  %v1458 = vadd.f32 0.0, %v1457
  %1459 = vmatmul.f32.gmra.mxu0 %v1336
  %v1460 = vpop.f32.mrf.mxu0
  %v1461 = vadd.f32 0.0, %v1460
  %1462 = vmatmul.f32.gmra.mxu0 %v1337
  %v1463 = vpop.f32.mrf.mxu0
  %v1464 = vadd.f32 0.0, %v1463
  %1465 = vmatmul.f32.gmra.mxu0 %v1338
  %v1466 = vpop.f32.mrf.mxu0
  %v1467 = vadd.f32 0.0, %v1466
  %1468 = vmatmul.f32.gmra.mxu0 %v1339
  %v1469 = vpop.f32.mrf.mxu0
  %v1470 = vadd.f32 0.0, %v1469
  %1471 = vmatmul.f32.gmra.mxu0 %v1340
  %v1472 = vpop.f32.mrf.mxu0
  %v1473 = vadd.f32 0.0, %v1472
  %1474 = vmatmul.f32.gmra.mxu0 %v1341
  %v1475 = vpop.f32.mrf.mxu0
  %v1476 = vadd.f32 0.0, %v1475
  %1477 = vmatmul.f32.gmra.mxu0 %v1342
  %v1478 = vpop.f32.mrf.mxu0
  %v1479 = vadd.f32 0.0, %v1478
  %1480 = vmatmul.f32.gmra.mxu0 %v1343
  %v1481 = vpop.f32.mrf.mxu0
  %v1482 = vadd.f32 0.0, %v1481
  %1483 = vmatmul.f32.gmra.mxu0 %v1344
  %v1484 = vpop.f32.mrf.mxu0
  %v1485 = vadd.f32 0.0, %v1484
  %1486 = vmatmul.f32.gmra.mxu0 %v1345
  %v1487 = vpop.f32.mrf.mxu0
  %v1488 = vadd.f32 0.0, %v1487
  %1489 = vmatmul.f32.gmra.mxu0 %v1346
  %v1490 = vpop.f32.mrf.mxu0
  %v1491 = vadd.f32 0.0, %v1490
  %1492 = vmatmul.f32.gmra.mxu0 %v1347
  %v1493 = vpop.f32.mrf.mxu0
  %v1494 = vadd.f32 0.0, %v1493
  %1495 = vmatmul.f32.gmra.mxu0 %v1348
  %v1496 = vpop.f32.mrf.mxu0
  %v1497 = vadd.f32 0.0, %v1496
  %1498 = vmatmul.f32.gmra.mxu0 %v1349
  %v1499 = vpop.f32.mrf.mxu0
  %v1500 = vadd.f32 0.0, %v1499
  %1501 = vmatmul.f32.gmra.mxu0 %v1350
  %v1502 = vpop.f32.mrf.mxu0
  %v1503 = vadd.f32 0.0, %v1502
  %1504 = vmatmul.f32.gmra.mxu0 %v1351
  %v1505 = vpop.f32.mrf.mxu0
  %v1506 = vadd.f32 0.0, %v1505
  %1507 = vmatmul.f32.gmra.mxu0 %v1352
  %v1508 = vpop.f32.mrf.mxu0
  %v1509 = vadd.f32 0.0, %v1508
  %1510 = vmatmul.f32.gmra.mxu0 %v1353
  %v1511 = vpop.f32.mrf.mxu0
  %v1512 = vadd.f32 0.0, %v1511
  %1513 = vmatmul.f32.gmra.mxu0 %v1354
  %v1514 = vpop.f32.mrf.mxu0
  %v1515 = vadd.f32 0.0, %v1514
  %1516 = vmatmul.f32.gmra.mxu0 %v1355
  %v1517 = vpop.f32.mrf.mxu0
  %v1518 = vadd.f32 0.0, %v1517
  %1519 = vmatmul.f32.gmra.mxu0 %v1356
  %v1520 = vpop.f32.mrf.mxu0
  %v1521 = vadd.f32 0.0, %v1520
  %1522 = vmatmul.f32.gmra.mxu0 %v1357
  %v1523 = vpop.f32.mrf.mxu0
  %v1524 = vadd.f32 0.0, %v1523
  %1525 = vmatmul.f32.gmra.mxu0 %v1358
  %v1526 = vpop.f32.mrf.mxu0
  %v1527 = vadd.f32 0.0, %v1526
  %1528 = vmatmul.f32.gmra.mxu0 %v1359
  %v1529 = vpop.f32.mrf.mxu0
  %v1530 = vadd.f32 0.0, %v1529
  %1531 = vmatmul.f32.gmra.mxu0 %v1360
  %v1532 = vpop.f32.mrf.mxu0
  %v1533 = vadd.f32 0.0, %v1532
  %1534 = vmatmul.f32.gmra.mxu0 %v1361
  %v1535 = vpop.f32.mrf.mxu0
  %v1536 = vadd.f32 0.0, %v1535
  %1537 = vmatmul.f32.gmra.mxu0 %v1362
  %v1538 = vpop.f32.mrf.mxu0
  %v1539 = vadd.f32 0.0, %v1538
  %1540 = vmatmul.f32.gmra.mxu0 %v1363
  %v1541 = vpop.f32.mrf.mxu0
  %v1542 = vadd.f32 0.0, %v1541
  %1543 = vmatmul.f32.gmra.mxu0 %v1364
  %v1544 = vpop.f32.mrf.mxu0
  %v1545 = vadd.f32 0.0, %v1544
  %1546 = vmatmul.f32.gmra.mxu0 %v1365
  %v1547 = vpop.f32.mrf.mxu0
  %v1548 = vadd.f32 0.0, %v1547
  %1549 = vmatmul.f32.gmra.mxu0 %v1366
  %v1550 = vpop.f32.mrf.mxu0
  %v1551 = vadd.f32 0.0, %v1550
  %1552 = vmatmul.f32.gmra.mxu0 %v1367
  %v1553 = vpop.f32.mrf.mxu0
  %v1554 = vadd.f32 0.0, %v1553
  %1555 = vmatmul.f32.gmra.mxu0 %v1368
  %v1556 = vpop.f32.mrf.mxu0
  %v1557 = vadd.f32 0.0, %v1556
  %1558 = vmatmul.f32.gmra.mxu0 %v1369
  %v1559 = vpop.f32.mrf.mxu0
  %v1560 = vadd.f32 0.0, %v1559
  %1561 = vmatmul.f32.gmra.mxu0 %v1370
  %v1562 = vpop.f32.mrf.mxu0
  %v1563 = vadd.f32 0.0, %v1562
  %1564 = vmatmul.f32.gmra.mxu0 %v1371
  %v1565 = vpop.f32.mrf.mxu0
  %v1566 = vadd.f32 0.0, %v1565
  %1567 = vmatmul.f32.gmra.mxu0 %v1372
  %v1568 = vpop.f32.mrf.mxu0
  %v1569 = vadd.f32 0.0, %v1568
  %1570 = vmatmul.f32.gmra.mxu0 %v1373
  %v1571 = vpop.f32.mrf.mxu0
  %v1572 = vadd.f32 0.0, %v1571
  %1573 = vmatmul.f32.gmra.mxu0 %v1374
  %v1574 = vpop.f32.mrf.mxu0
  %v1575 = vadd.f32 0.0, %v1574
  %1576 = vmatmul.f32.gmra.mxu0 %v1375
  %v1577 = vpop.f32.mrf.mxu0
  %v1578 = vadd.f32 0.0, %v1577
  %1579 = vmatmul.f32.gmra.mxu0 %v1376
  %v1580 = vpop.f32.mrf.mxu0
  %v1581 = vadd.f32 0.0, %v1580
  %1582 = vmatmul.f32.gmra.mxu0 %v1377
  %v1583 = vpop.f32.mrf.mxu0
  %v1584 = vadd.f32 0.0, %v1583
  %1585 = vmatmul.f32.gmra.mxu0 %v1378
  %v1586 = vpop.f32.mrf.mxu0
  %v1587 = vadd.f32 0.0, %v1586
  %1588 = vmatmul.f32.gmra.mxu0 %v1379
  %v1589 = vpop.f32.mrf.mxu0
  %v1590 = vadd.f32 0.0, %v1589
  %1591 = vmatmul.f32.gmra.mxu0 %v1380
  %v1592 = vpop.f32.mrf.mxu0
  %v1593 = vadd.f32 0.0, %v1592
  %1594 = vmatmul.f32.gmra.mxu0 %v1381
  %v1595 = vpop.f32.mrf.mxu0
  %v1596 = vadd.f32 0.0, %v1595
  %1597 = vmatmul.f32.gmra.mxu0 %v1382
  %v1598 = vpop.f32.mrf.mxu0
  %v1599 = vadd.f32 0.0, %v1598
  %1600 = vmatmul.f32.gmra.mxu0 %v1383
  %v1601 = vpop.f32.mrf.mxu0
  %v1602 = vadd.f32 0.0, %v1601
  %1603 = vmatmul.f32.gmra.mxu0 %v1384
  %v1604 = vpop.f32.mrf.mxu0
  %v1605 = vadd.f32 0.0, %v1604
  %1606 = vmatmul.f32.gmra.mxu0 %v1385
  %v1607 = vpop.f32.mrf.mxu0
  %v1608 = vadd.f32 0.0, %v1607
  %1609 = vmatmul.f32.gmra.mxu0 %v1386
  %v1610 = vpop.f32.mrf.mxu0
  %v1611 = vadd.f32 0.0, %v1610
  %1612 = vdwg.mxu0
  %v1613 = vadd.f32 %v1259, %v1422
  %v1614 = vadd.f32 %v1260, %v1425
  %v1615 = vadd.f32 %v1261, %v1428
  %v1616 = vadd.f32 %v1262, %v1431
  %v1617 = vadd.f32 %v1263, %v1434
  %v1618 = vadd.f32 %v1264, %v1437
  %v1619 = vadd.f32 %v1265, %v1440
  %v1620 = vadd.f32 %v1266, %v1443
  %v1621 = vadd.f32 %v1267, %v1446
  %v1622 = vadd.f32 %v1268, %v1449
  %v1623 = vadd.f32 %v1269, %v1452
  %v1624 = vadd.f32 %v1270, %v1455
  %v1625 = vadd.f32 %v1271, %v1458
  %v1626 = vadd.f32 %v1272, %v1461
  %v1627 = vadd.f32 %v1273, %v1464
  %v1628 = vadd.f32 %v1274, %v1467
  %v1629 = vadd.f32 %v1275, %v1470
  %v1630 = vadd.f32 %v1276, %v1473
  %v1631 = vadd.f32 %v1277, %v1476
  %v1632 = vadd.f32 %v1278, %v1479
  %v1633 = vadd.f32 %v1279, %v1482
  %v1634 = vadd.f32 %v1280, %v1485
  %v1635 = vadd.f32 %v1281, %v1488
  %v1636 = vadd.f32 %v1282, %v1491
  %v1637 = vadd.f32 %v1283, %v1494
  %v1638 = vadd.f32 %v1284, %v1497
  %v1639 = vadd.f32 %v1285, %v1500
  %v1640 = vadd.f32 %v1286, %v1503
  %v1641 = vadd.f32 %v1287, %v1506
  %v1642 = vadd.f32 %v1288, %v1509
  %v1643 = vadd.f32 %v1289, %v1512
  %v1644 = vadd.f32 %v1290, %v1515
  %v1645 = vadd.f32 %v1291, %v1518
  %v1646 = vadd.f32 %v1292, %v1521
  %v1647 = vadd.f32 %v1293, %v1524
  %v1648 = vadd.f32 %v1294, %v1527
  %v1649 = vadd.f32 %v1295, %v1530
  %v1650 = vadd.f32 %v1296, %v1533
  %v1651 = vadd.f32 %v1297, %v1536
  %v1652 = vadd.f32 %v1298, %v1539
  %v1653 = vadd.f32 %v1299, %v1542
  %v1654 = vadd.f32 %v1300, %v1545
  %v1655 = vadd.f32 %v1301, %v1548
  %v1656 = vadd.f32 %v1302, %v1551
  %v1657 = vadd.f32 %v1303, %v1554
  %v1658 = vadd.f32 %v1304, %v1557
  %v1659 = vadd.f32 %v1305, %v1560
  %v1660 = vadd.f32 %v1306, %v1563
  %v1661 = vadd.f32 %v1307, %v1566
  %v1662 = vadd.f32 %v1308, %v1569
  %v1663 = vadd.f32 %v1309, %v1572
  %v1664 = vadd.f32 %v1310, %v1575
  %v1665 = vadd.f32 %v1311, %v1578
  %v1666 = vadd.f32 %v1312, %v1581
  %v1667 = vadd.f32 %v1313, %v1584
  %v1668 = vadd.f32 %v1314, %v1587
  %v1669 = vadd.f32 %v1315, %v1590
  %v1670 = vadd.f32 %v1316, %v1593
  %v1671 = vadd.f32 %v1317, %v1596
  %v1672 = vadd.f32 %v1318, %v1599
  %v1673 = vadd.f32 %v1319, %v1602
  %v1674 = vadd.f32 %v1320, %v1605
  %v1675 = vadd.f32 %v1321, %v1608
  %v1676 = vadd.f32 %v1322, %v1611
  %v1677 = vld [vmem:[%s968 + $0x2] sm:$0xff]
  %v1678 = vld [vmem:[%s968 + $0xa] sm:$0xff]
  %v1679 = vld [vmem:[%s968 + $0x1a] sm:$0xff]
  %v1680 = vld [vmem:[%s968 + $0x22] sm:$0xff]
  %v1681 = vld [vmem:[%s968 + $0x32] sm:$0xff]
  %v1682 = vld [vmem:[%s968 + $0x3a] sm:$0xff]
  %v1683 = vld [vmem:[%s968 + $0x4a] sm:$0xff]
  %v1684 = vld [vmem:[%s968 + $0x52] sm:$0xff]
  %v1685 = vld [vmem:[%s968 + $0x62] sm:$0xff]
  %v1686 = vld [vmem:[%s968 + $0x6a] sm:$0xff]
  %v1687 = vld [vmem:[%s968 + $0x7a] sm:$0xff]
  %v1688 = vld [vmem:[%s968 + $0x82] sm:$0xff]
  %v1689 = vld [vmem:[%s968 + $0x92] sm:$0xff]
  %v1690 = vld [vmem:[%s968 + $0x9a] sm:$0xff]
  %v1691 = vld [vmem:[%s968 + $0xaa] sm:$0xff]
  %v1692 = vld [vmem:[%s968 + $0xb2] sm:$0xff]
  %v1693 = vld [vmem:[%s968 + $0xc2] sm:$0xff]
  %v1694 = vld [vmem:[%s968 + $0xca] sm:$0xff]
  %v1695 = vld [vmem:[%s968 + $0xda] sm:$0xff]
  %v1696 = vld [vmem:[%s968 + $0xe2] sm:$0xff]
  %v1697 = vld [vmem:[%s968 + $0xf2] sm:$0xff]
  %v1698 = vld [vmem:[%s968 + $0xfa] sm:$0xff]
  %v1699 = vld [vmem:[%s968 + $0x10a] sm:$0xff]
  %v1700 = vld [vmem:[%s968 + $0x112] sm:$0xff]
  %v1701 = vld [vmem:[%s968 + $0x122] sm:$0xff]
  %v1702 = vld [vmem:[%s968 + $0x12a] sm:$0xff]
  %v1703 = vld [vmem:[%s968 + $0x13a] sm:$0xff]
  %v1704 = vld [vmem:[%s968 + $0x142] sm:$0xff]
  %v1705 = vld [vmem:[%s968 + $0x152] sm:$0xff]
  %v1706 = vld [vmem:[%s968 + $0x15a] sm:$0xff]
  %v1707 = vld [vmem:[%s968 + $0x16a] sm:$0xff]
  %v1708 = vld [vmem:[%s968 + $0x172] sm:$0xff]
  %v1709 = vld [vmem:[%s968 + $0x1b2] sm:$0xff]
  %v1710 = vld [vmem:[%s968 + $0x1ba] sm:$0xff]
  %v1711 = vld [vmem:[%s968 + $0x1ca] sm:$0xff]
  %v1712 = vld [vmem:[%s968 + $0x1d2] sm:$0xff]
  %v1713 = vld [vmem:[%s968 + $0x1e2] sm:$0xff]
  %v1714 = vld [vmem:[%s968 + $0x1ea] sm:$0xff]
  %v1715 = vld [vmem:[%s968 + $0x1fa] sm:$0xff]
  %v1716 = vld [vmem:[%s968 + $0x202] sm:$0xff]
  %v1717 = vld [vmem:[%s968 + $0x212] sm:$0xff]
  %v1718 = vld [vmem:[%s968 + $0x21a] sm:$0xff]
  %v1719 = vld [vmem:[%s968 + $0x22a] sm:$0xff]
  %v1720 = vld [vmem:[%s968 + $0x232] sm:$0xff]
  %v1721 = vld [vmem:[%s968 + $0x242] sm:$0xff]
  %v1722 = vld [vmem:[%s968 + $0x24a] sm:$0xff]
  %v1723 = vld [vmem:[%s968 + $0x25a] sm:$0xff]
  %v1724 = vld [vmem:[%s968 + $0x262] sm:$0xff]
  %v1725 = vld [vmem:[%s968 + $0x272] sm:$0xff]
  %v1726 = vld [vmem:[%s968 + $0x27a] sm:$0xff]
  %v1727 = vld [vmem:[%s968 + $0x28a] sm:$0xff]
  %v1728 = vld [vmem:[%s968 + $0x292] sm:$0xff]
  %v1729 = vld [vmem:[%s968 + $0x2a2] sm:$0xff]
  %v1730 = vld [vmem:[%s968 + $0x2aa] sm:$0xff]
  %v1731 = vld [vmem:[%s968 + $0x2ba] sm:$0xff]
  %v1732 = vld [vmem:[%s968 + $0x2c2] sm:$0xff]
  %v1733 = vld [vmem:[%s968 + $0x2d2] sm:$0xff]
  %v1734 = vld [vmem:[%s968 + $0x2da] sm:$0xff]
  %v1735 = vld [vmem:[%s968 + $0x2ea] sm:$0xff]
  %v1736 = vld [vmem:[%s968 + $0x2f2] sm:$0xff]
  %v1737 = vld [vmem:[%s968 + $0x302] sm:$0xff]
  %v1738 = vld [vmem:[%s968 + $0x30a] sm:$0xff]
  %v1739 = vld [vmem:[%s968 + $0x31a] sm:$0xff]
  %v1740 = vld [vmem:[%s968 + $0x322] sm:$0xff]
  %s1741 = scalar_lea.vmem %s2, 640
  %v1742 = vld [vmem:[%s1741] sm:$0xff]
  %v1743 = vld [vmem:[%s1741 + $0x8] sm:$0xff]
  %v1744 = vld [vmem:[%s1741 + $0x10] sm:$0xff]
  %v1745 = vld [vmem:[%s1741 + $0x18] sm:$0xff]
  %v1746 = vld [vmem:[%s1741 + $0x20] sm:$0xff]
  %v1747 = vld [vmem:[%s1741 + $0x28] sm:$0xff]
  %v1748 = vld [vmem:[%s1741 + $0x30] sm:$0xff]
  %v1749 = vld [vmem:[%s1741 + $0x38] sm:$0xff]
  %v1750 = vld [vmem:[%s1741 + $0x40] sm:$0xff]
  %v1751 = vld [vmem:[%s1741 + $0x48] sm:$0xff]
  %v1752 = vld [vmem:[%s1741 + $0x50] sm:$0xff]
  %v1753 = vld [vmem:[%s1741 + $0x58] sm:$0xff]
  %v1754 = vld [vmem:[%s1741 + $0x60] sm:$0xff]
  %v1755 = vld [vmem:[%s1741 + $0x68] sm:$0xff]
  %v1756 = vld [vmem:[%s1741 + $0x70] sm:$0xff]
  %v1757 = vld [vmem:[%s1741 + $0x78] sm:$0xff]
  %1758 = vmatpush.msra.mxu0 %v1757
  %1759 = vmatpush.msra.mxu0 %v1756
  %1760 = vmatpush.msra.mxu0 %v1755
  %1761 = vmatpush.msra.mxu0 %v1754
  %1762 = vmatpush.msra.mxu0 %v1753
  %1763 = vmatpush.msra.mxu0 %v1752
  %1764 = vmatpush.msra.mxu0 %v1751
  %1765 = vmatpush.msra.mxu0 %v1750
  %1766 = vmatpush.msra.mxu0 %v1749
  %1767 = vmatpush.msra.mxu0 %v1748
  %1768 = vmatpush.msra.mxu0 %v1747
  %1769 = vmatpush.msra.mxu0 %v1746
  %1770 = vmatpush.msra.mxu0 %v1745
  %1771 = vmatpush.msra.mxu0 %v1744
  %1772 = vmatpush.msra.mxu0 %v1743
  %1773 = vmatpush.msra.mxu0 %v1742
  %1774 = vmatmul.f32.gmra.mxu0 %v1677
  %v1775 = vpop.f32.mrf.mxu0
  %v1776 = vadd.f32 0.0, %v1775
  %1777 = vmatmul.f32.gmra.mxu0 %v1678
  %v1778 = vpop.f32.mrf.mxu0
  %v1779 = vadd.f32 0.0, %v1778
  %1780 = vmatmul.f32.gmra.mxu0 %v1679
  %v1781 = vpop.f32.mrf.mxu0
  %v1782 = vadd.f32 0.0, %v1781
  %1783 = vmatmul.f32.gmra.mxu0 %v1680
  %v1784 = vpop.f32.mrf.mxu0
  %v1785 = vadd.f32 0.0, %v1784
  %1786 = vmatmul.f32.gmra.mxu0 %v1681
  %v1787 = vpop.f32.mrf.mxu0
  %v1788 = vadd.f32 0.0, %v1787
  %1789 = vmatmul.f32.gmra.mxu0 %v1682
  %v1790 = vpop.f32.mrf.mxu0
  %v1791 = vadd.f32 0.0, %v1790
  %1792 = vmatmul.f32.gmra.mxu0 %v1683
  %v1793 = vpop.f32.mrf.mxu0
  %v1794 = vadd.f32 0.0, %v1793
  %1795 = vmatmul.f32.gmra.mxu0 %v1684
  %v1796 = vpop.f32.mrf.mxu0
  %v1797 = vadd.f32 0.0, %v1796
  %1798 = vmatmul.f32.gmra.mxu0 %v1685
  %v1799 = vpop.f32.mrf.mxu0
  %v1800 = vadd.f32 0.0, %v1799
  %1801 = vmatmul.f32.gmra.mxu0 %v1686
  %v1802 = vpop.f32.mrf.mxu0
  %v1803 = vadd.f32 0.0, %v1802
  %1804 = vmatmul.f32.gmra.mxu0 %v1687
  %v1805 = vpop.f32.mrf.mxu0
  %v1806 = vadd.f32 0.0, %v1805
  %1807 = vmatmul.f32.gmra.mxu0 %v1688
  %v1808 = vpop.f32.mrf.mxu0
  %v1809 = vadd.f32 0.0, %v1808
  %1810 = vmatmul.f32.gmra.mxu0 %v1689
  %v1811 = vpop.f32.mrf.mxu0
  %v1812 = vadd.f32 0.0, %v1811
  %1813 = vmatmul.f32.gmra.mxu0 %v1690
  %v1814 = vpop.f32.mrf.mxu0
  %v1815 = vadd.f32 0.0, %v1814
  %1816 = vmatmul.f32.gmra.mxu0 %v1691
  %v1817 = vpop.f32.mrf.mxu0
  %v1818 = vadd.f32 0.0, %v1817
  %1819 = vmatmul.f32.gmra.mxu0 %v1692
  %v1820 = vpop.f32.mrf.mxu0
  %v1821 = vadd.f32 0.0, %v1820
  %1822 = vmatmul.f32.gmra.mxu0 %v1693
  %v1823 = vpop.f32.mrf.mxu0
  %v1824 = vadd.f32 0.0, %v1823
  %1825 = vmatmul.f32.gmra.mxu0 %v1694
  %v1826 = vpop.f32.mrf.mxu0
  %v1827 = vadd.f32 0.0, %v1826
  %1828 = vmatmul.f32.gmra.mxu0 %v1695
  %v1829 = vpop.f32.mrf.mxu0
  %v1830 = vadd.f32 0.0, %v1829
  %1831 = vmatmul.f32.gmra.mxu0 %v1696
  %v1832 = vpop.f32.mrf.mxu0
  %v1833 = vadd.f32 0.0, %v1832
  %1834 = vmatmul.f32.gmra.mxu0 %v1697
  %v1835 = vpop.f32.mrf.mxu0
  %v1836 = vadd.f32 0.0, %v1835
  %1837 = vmatmul.f32.gmra.mxu0 %v1698
  %v1838 = vpop.f32.mrf.mxu0
  %v1839 = vadd.f32 0.0, %v1838
  %1840 = vmatmul.f32.gmra.mxu0 %v1699
  %v1841 = vpop.f32.mrf.mxu0
  %v1842 = vadd.f32 0.0, %v1841
  %1843 = vmatmul.f32.gmra.mxu0 %v1700
  %v1844 = vpop.f32.mrf.mxu0
  %v1845 = vadd.f32 0.0, %v1844
  %1846 = vmatmul.f32.gmra.mxu0 %v1701
  %v1847 = vpop.f32.mrf.mxu0
  %v1848 = vadd.f32 0.0, %v1847
  %1849 = vmatmul.f32.gmra.mxu0 %v1702
  %v1850 = vpop.f32.mrf.mxu0
  %v1851 = vadd.f32 0.0, %v1850
  %1852 = vmatmul.f32.gmra.mxu0 %v1703
  %v1853 = vpop.f32.mrf.mxu0
  %v1854 = vadd.f32 0.0, %v1853
  %1855 = vmatmul.f32.gmra.mxu0 %v1704
  %v1856 = vpop.f32.mrf.mxu0
  %v1857 = vadd.f32 0.0, %v1856
  %1858 = vmatmul.f32.gmra.mxu0 %v1705
  %v1859 = vpop.f32.mrf.mxu0
  %v1860 = vadd.f32 0.0, %v1859
  %1861 = vmatmul.f32.gmra.mxu0 %v1706
  %v1862 = vpop.f32.mrf.mxu0
  %v1863 = vadd.f32 0.0, %v1862
  %1864 = vmatmul.f32.gmra.mxu0 %v1707
  %v1865 = vpop.f32.mrf.mxu0
  %v1866 = vadd.f32 0.0, %v1865
  %1867 = vmatmul.f32.gmra.mxu0 %v1708
  %v1868 = vpop.f32.mrf.mxu0
  %v1869 = vadd.f32 0.0, %v1868
  %1870 = vmatmul.f32.gmra.mxu0 %v1709
  %v1871 = vpop.f32.mrf.mxu0
  %v1872 = vadd.f32 0.0, %v1871
  %1873 = vmatmul.f32.gmra.mxu0 %v1710
  %v1874 = vpop.f32.mrf.mxu0
  %v1875 = vadd.f32 0.0, %v1874
  %1876 = vmatmul.f32.gmra.mxu0 %v1711
  %v1877 = vpop.f32.mrf.mxu0
  %v1878 = vadd.f32 0.0, %v1877
  %1879 = vmatmul.f32.gmra.mxu0 %v1712
  %v1880 = vpop.f32.mrf.mxu0
  %v1881 = vadd.f32 0.0, %v1880
  %1882 = vmatmul.f32.gmra.mxu0 %v1713
  %v1883 = vpop.f32.mrf.mxu0
  %v1884 = vadd.f32 0.0, %v1883
  %1885 = vmatmul.f32.gmra.mxu0 %v1714
  %v1886 = vpop.f32.mrf.mxu0
  %v1887 = vadd.f32 0.0, %v1886
  %1888 = vmatmul.f32.gmra.mxu0 %v1715
  %v1889 = vpop.f32.mrf.mxu0
  %v1890 = vadd.f32 0.0, %v1889
  %1891 = vmatmul.f32.gmra.mxu0 %v1716
  %v1892 = vpop.f32.mrf.mxu0
  %v1893 = vadd.f32 0.0, %v1892
  %1894 = vmatmul.f32.gmra.mxu0 %v1717
  %v1895 = vpop.f32.mrf.mxu0
  %v1896 = vadd.f32 0.0, %v1895
  %1897 = vmatmul.f32.gmra.mxu0 %v1718
  %v1898 = vpop.f32.mrf.mxu0
  %v1899 = vadd.f32 0.0, %v1898
  %1900 = vmatmul.f32.gmra.mxu0 %v1719
  %v1901 = vpop.f32.mrf.mxu0
  %v1902 = vadd.f32 0.0, %v1901
  %1903 = vmatmul.f32.gmra.mxu0 %v1720
  %v1904 = vpop.f32.mrf.mxu0
  %v1905 = vadd.f32 0.0, %v1904
  %1906 = vmatmul.f32.gmra.mxu0 %v1721
  %v1907 = vpop.f32.mrf.mxu0
  %v1908 = vadd.f32 0.0, %v1907
  %1909 = vmatmul.f32.gmra.mxu0 %v1722
  %v1910 = vpop.f32.mrf.mxu0
  %v1911 = vadd.f32 0.0, %v1910
  %1912 = vmatmul.f32.gmra.mxu0 %v1723
  %v1913 = vpop.f32.mrf.mxu0
  %v1914 = vadd.f32 0.0, %v1913
  %1915 = vmatmul.f32.gmra.mxu0 %v1724
  %v1916 = vpop.f32.mrf.mxu0
  %v1917 = vadd.f32 0.0, %v1916
  %1918 = vmatmul.f32.gmra.mxu0 %v1725
  %v1919 = vpop.f32.mrf.mxu0
  %v1920 = vadd.f32 0.0, %v1919
  %1921 = vmatmul.f32.gmra.mxu0 %v1726
  %v1922 = vpop.f32.mrf.mxu0
  %v1923 = vadd.f32 0.0, %v1922
  %1924 = vmatmul.f32.gmra.mxu0 %v1727
  %v1925 = vpop.f32.mrf.mxu0
  %v1926 = vadd.f32 0.0, %v1925
  %1927 = vmatmul.f32.gmra.mxu0 %v1728
  %v1928 = vpop.f32.mrf.mxu0
  %v1929 = vadd.f32 0.0, %v1928
  %1930 = vmatmul.f32.gmra.mxu0 %v1729
  %v1931 = vpop.f32.mrf.mxu0
  %v1932 = vadd.f32 0.0, %v1931
  %1933 = vmatmul.f32.gmra.mxu0 %v1730
  %v1934 = vpop.f32.mrf.mxu0
  %v1935 = vadd.f32 0.0, %v1934
  %1936 = vmatmul.f32.gmra.mxu0 %v1731
  %v1937 = vpop.f32.mrf.mxu0
  %v1938 = vadd.f32 0.0, %v1937
  %1939 = vmatmul.f32.gmra.mxu0 %v1732
  %v1940 = vpop.f32.mrf.mxu0
  %v1941 = vadd.f32 0.0, %v1940
  %1942 = vmatmul.f32.gmra.mxu0 %v1733
  %v1943 = vpop.f32.mrf.mxu0
  %v1944 = vadd.f32 0.0, %v1943
  %1945 = vmatmul.f32.gmra.mxu0 %v1734
  %v1946 = vpop.f32.mrf.mxu0
  %v1947 = vadd.f32 0.0, %v1946
  %1948 = vmatmul.f32.gmra.mxu0 %v1735
  %v1949 = vpop.f32.mrf.mxu0
  %v1950 = vadd.f32 0.0, %v1949
  %1951 = vmatmul.f32.gmra.mxu0 %v1736
  %v1952 = vpop.f32.mrf.mxu0
  %v1953 = vadd.f32 0.0, %v1952
  %1954 = vmatmul.f32.gmra.mxu0 %v1737
  %v1955 = vpop.f32.mrf.mxu0
  %v1956 = vadd.f32 0.0, %v1955
  %1957 = vmatmul.f32.gmra.mxu0 %v1738
  %v1958 = vpop.f32.mrf.mxu0
  %v1959 = vadd.f32 0.0, %v1958
  %1960 = vmatmul.f32.gmra.mxu0 %v1739
  %v1961 = vpop.f32.mrf.mxu0
  %v1962 = vadd.f32 0.0, %v1961
  %1963 = vmatmul.f32.gmra.mxu0 %v1740
  %v1964 = vpop.f32.mrf.mxu0
  %v1965 = vadd.f32 0.0, %v1964
  %1966 = vdwg.mxu0
  %v1967 = vadd.f32 %v1613, %v1776
  %v1968 = vadd.f32 %v1614, %v1779
  %v1969 = vadd.f32 %v1615, %v1782
  %v1970 = vadd.f32 %v1616, %v1785
  %v1971 = vadd.f32 %v1617, %v1788
  %v1972 = vadd.f32 %v1618, %v1791
  %v1973 = vadd.f32 %v1619, %v1794
  %v1974 = vadd.f32 %v1620, %v1797
  %v1975 = vadd.f32 %v1621, %v1800
  %v1976 = vadd.f32 %v1622, %v1803
  %v1977 = vadd.f32 %v1623, %v1806
  %v1978 = vadd.f32 %v1624, %v1809
  %v1979 = vadd.f32 %v1625, %v1812
  %v1980 = vadd.f32 %v1626, %v1815
  %v1981 = vadd.f32 %v1627, %v1818
  %v1982 = vadd.f32 %v1628, %v1821
  %v1983 = vadd.f32 %v1629, %v1824
  %v1984 = vadd.f32 %v1630, %v1827
  %v1985 = vadd.f32 %v1631, %v1830
  %v1986 = vadd.f32 %v1632, %v1833
  %v1987 = vadd.f32 %v1633, %v1836
  %v1988 = vadd.f32 %v1634, %v1839
  %v1989 = vadd.f32 %v1635, %v1842
  %v1990 = vadd.f32 %v1636, %v1845
  %v1991 = vadd.f32 %v1637, %v1848
  %v1992 = vadd.f32 %v1638, %v1851
  %v1993 = vadd.f32 %v1639, %v1854
  %v1994 = vadd.f32 %v1640, %v1857
  %v1995 = vadd.f32 %v1641, %v1860
  %v1996 = vadd.f32 %v1642, %v1863
  %v1997 = vadd.f32 %v1643, %v1866
  %v1998 = vadd.f32 %v1644, %v1869
  %v1999 = vadd.f32 %v1645, %v1872
  %v2000 = vadd.f32 %v1646, %v1875
  %v2001 = vadd.f32 %v1647, %v1878
  %v2002 = vadd.f32 %v1648, %v1881
  %v2003 = vadd.f32 %v1649, %v1884
  %v2004 = vadd.f32 %v1650, %v1887
  %v2005 = vadd.f32 %v1651, %v1890
  %v2006 = vadd.f32 %v1652, %v1893
  %v2007 = vadd.f32 %v1653, %v1896
  %v2008 = vadd.f32 %v1654, %v1899
  %v2009 = vadd.f32 %v1655, %v1902
  %v2010 = vadd.f32 %v1656, %v1905
  %v2011 = vadd.f32 %v1657, %v1908
  %v2012 = vadd.f32 %v1658, %v1911
  %v2013 = vadd.f32 %v1659, %v1914
  %v2014 = vadd.f32 %v1660, %v1917
  %v2015 = vadd.f32 %v1661, %v1920
  %v2016 = vadd.f32 %v1662, %v1923
  %v2017 = vadd.f32 %v1663, %v1926
  %v2018 = vadd.f32 %v1664, %v1929
  %v2019 = vadd.f32 %v1665, %v1932
  %v2020 = vadd.f32 %v1666, %v1935
  %v2021 = vadd.f32 %v1667, %v1938
  %v2022 = vadd.f32 %v1668, %v1941
  %v2023 = vadd.f32 %v1669, %v1944
  %v2024 = vadd.f32 %v1670, %v1947
  %v2025 = vadd.f32 %v1671, %v1950
  %v2026 = vadd.f32 %v1672, %v1953
  %v2027 = vadd.f32 %v1673, %v1956
  %v2028 = vadd.f32 %v1674, %v1959
  %v2029 = vadd.f32 %v1675, %v1962
  %v2030 = vadd.f32 %v1676, %v1965
  %s2031 = scalar_lea.vmem %s0, 48
  %v2032 = vld [vmem:[%s2031] sm:$0xff]
  %v2033 = vld [vmem:[%s2031 + $0x8] sm:$0xff]
  %v2034 = vld [vmem:[%s2031 + $0x18] sm:$0xff]
  %v2035 = vld [vmem:[%s2031 + $0x20] sm:$0xff]
  %v2036 = vld [vmem:[%s2031 + $0x30] sm:$0xff]
  %v2037 = vld [vmem:[%s2031 + $0x38] sm:$0xff]
  %v2038 = vld [vmem:[%s2031 + $0x48] sm:$0xff]
  %v2039 = vld [vmem:[%s2031 + $0x50] sm:$0xff]
  %v2040 = vld [vmem:[%s2031 + $0x60] sm:$0xff]
  %v2041 = vld [vmem:[%s2031 + $0x68] sm:$0xff]
  %v2042 = vld [vmem:[%s2031 + $0x78] sm:$0xff]
  %v2043 = vld [vmem:[%s2031 + $0x80] sm:$0xff]
  %v2044 = vld [vmem:[%s2031 + $0x90] sm:$0xff]
  %v2045 = vld [vmem:[%s2031 + $0x98] sm:$0xff]
  %v2046 = vld [vmem:[%s2031 + $0xa8] sm:$0xff]
  %v2047 = vld [vmem:[%s2031 + $0xb0] sm:$0xff]
  %v2048 = vld [vmem:[%s2031 + $0xc0] sm:$0xff]
  %v2049 = vld [vmem:[%s2031 + $0xc8] sm:$0xff]
  %v2050 = vld [vmem:[%s2031 + $0xd8] sm:$0xff]
  %v2051 = vld [vmem:[%s2031 + $0xe0] sm:$0xff]
  %v2052 = vld [vmem:[%s2031 + $0xf0] sm:$0xff]
  %v2053 = vld [vmem:[%s2031 + $0xf8] sm:$0xff]
  %v2054 = vld [vmem:[%s2031 + $0x108] sm:$0xff]
  %v2055 = vld [vmem:[%s2031 + $0x110] sm:$0xff]
  %v2056 = vld [vmem:[%s2031 + $0x120] sm:$0xff]
  %v2057 = vld [vmem:[%s2031 + $0x128] sm:$0xff]
  %v2058 = vld [vmem:[%s2031 + $0x138] sm:$0xff]
  %v2059 = vld [vmem:[%s2031 + $0x140] sm:$0xff]
  %v2060 = vld [vmem:[%s2031 + $0x150] sm:$0xff]
  %v2061 = vld [vmem:[%s2031 + $0x158] sm:$0xff]
  %v2062 = vld [vmem:[%s2031 + $0x168] sm:$0xff]
  %v2063 = vld [vmem:[%s2031 + $0x170] sm:$0xff]
  %v2064 = vld [vmem:[%s2031 + $0x1b0] sm:$0xff]
  %v2065 = vld [vmem:[%s2031 + $0x1b8] sm:$0xff]
  %v2066 = vld [vmem:[%s2031 + $0x1c8] sm:$0xff]
  %v2067 = vld [vmem:[%s2031 + $0x1d0] sm:$0xff]
  %v2068 = vld [vmem:[%s2031 + $0x1e0] sm:$0xff]
  %v2069 = vld [vmem:[%s2031 + $0x1e8] sm:$0xff]
  %v2070 = vld [vmem:[%s2031 + $0x1f8] sm:$0xff]
  %v2071 = vld [vmem:[%s2031 + $0x200] sm:$0xff]
  %v2072 = vld [vmem:[%s2031 + $0x210] sm:$0xff]
  %v2073 = vld [vmem:[%s2031 + $0x218] sm:$0xff]
  %v2074 = vld [vmem:[%s2031 + $0x228] sm:$0xff]
  %v2075 = vld [vmem:[%s2031 + $0x230] sm:$0xff]
  %v2076 = vld [vmem:[%s2031 + $0x240] sm:$0xff]
  %v2077 = vld [vmem:[%s2031 + $0x248] sm:$0xff]
  %v2078 = vld [vmem:[%s2031 + $0x258] sm:$0xff]
  %v2079 = vld [vmem:[%s2031 + $0x260] sm:$0xff]
  %v2080 = vld [vmem:[%s2031 + $0x270] sm:$0xff]
  %v2081 = vld [vmem:[%s2031 + $0x278] sm:$0xff]
  %v2082 = vld [vmem:[%s2031 + $0x288] sm:$0xff]
  %v2083 = vld [vmem:[%s2031 + $0x290] sm:$0xff]
  %v2084 = vld [vmem:[%s2031 + $0x2a0] sm:$0xff]
  %v2085 = vld [vmem:[%s2031 + $0x2a8] sm:$0xff]
  %v2086 = vld [vmem:[%s2031 + $0x2b8] sm:$0xff]
  %v2087 = vld [vmem:[%s2031 + $0x2c0] sm:$0xff]
  %v2088 = vld [vmem:[%s2031 + $0x2d0] sm:$0xff]
  %v2089 = vld [vmem:[%s2031 + $0x2d8] sm:$0xff]
  %v2090 = vld [vmem:[%s2031 + $0x2e8] sm:$0xff]
  %v2091 = vld [vmem:[%s2031 + $0x2f0] sm:$0xff]
  %v2092 = vld [vmem:[%s2031 + $0x300] sm:$0xff]
  %v2093 = vld [vmem:[%s2031 + $0x308] sm:$0xff]
  %v2094 = vld [vmem:[%s2031 + $0x318] sm:$0xff]
  %v2095 = vld [vmem:[%s2031 + $0x320] sm:$0xff]
  %s2096 = scalar_lea.vmem %s2, 768
  %v2097 = vld [vmem:[%s2096] sm:$0xff]
  %v2098 = vld [vmem:[%s2096 + $0x8] sm:$0xff]
  %v2099 = vld [vmem:[%s2096 + $0x10] sm:$0xff]
  %v2100 = vld [vmem:[%s2096 + $0x18] sm:$0xff]
  %v2101 = vld [vmem:[%s2096 + $0x20] sm:$0xff]
  %v2102 = vld [vmem:[%s2096 + $0x28] sm:$0xff]
  %v2103 = vld [vmem:[%s2096 + $0x30] sm:$0xff]
  %v2104 = vld [vmem:[%s2096 + $0x38] sm:$0xff]
  %v2105 = vld [vmem:[%s2096 + $0x40] sm:$0xff]
  %v2106 = vld [vmem:[%s2096 + $0x48] sm:$0xff]
  %v2107 = vld [vmem:[%s2096 + $0x50] sm:$0xff]
  %v2108 = vld [vmem:[%s2096 + $0x58] sm:$0xff]
  %v2109 = vld [vmem:[%s2096 + $0x60] sm:$0xff]
  %v2110 = vld [vmem:[%s2096 + $0x68] sm:$0xff]
  %v2111 = vld [vmem:[%s2096 + $0x70] sm:$0xff]
  %v2112 = vld [vmem:[%s2096 + $0x78] sm:$0xff]
  %2113 = vmatpush.msra.mxu0 %v2112
  %2114 = vmatpush.msra.mxu0 %v2111
  %2115 = vmatpush.msra.mxu0 %v2110
  %2116 = vmatpush.msra.mxu0 %v2109
  %2117 = vmatpush.msra.mxu0 %v2108
  %2118 = vmatpush.msra.mxu0 %v2107
  %2119 = vmatpush.msra.mxu0 %v2106
  %2120 = vmatpush.msra.mxu0 %v2105
  %2121 = vmatpush.msra.mxu0 %v2104
  %2122 = vmatpush.msra.mxu0 %v2103
  %2123 = vmatpush.msra.mxu0 %v2102
  %2124 = vmatpush.msra.mxu0 %v2101
  %2125 = vmatpush.msra.mxu0 %v2100
  %2126 = vmatpush.msra.mxu0 %v2099
  %2127 = vmatpush.msra.mxu0 %v2098
  %2128 = vmatpush.msra.mxu0 %v2097
  %2129 = vmatmul.f32.gmra.mxu0 %v2032
  %v2130 = vpop.f32.mrf.mxu0
  %v2131 = vadd.f32 0.0, %v2130
  %2132 = vmatmul.f32.gmra.mxu0 %v2033
  %v2133 = vpop.f32.mrf.mxu0
  %v2134 = vadd.f32 0.0, %v2133
  %2135 = vmatmul.f32.gmra.mxu0 %v2034
  %v2136 = vpop.f32.mrf.mxu0
  %v2137 = vadd.f32 0.0, %v2136
  %2138 = vmatmul.f32.gmra.mxu0 %v2035
  %v2139 = vpop.f32.mrf.mxu0
  %v2140 = vadd.f32 0.0, %v2139
  %2141 = vmatmul.f32.gmra.mxu0 %v2036
  %v2142 = vpop.f32.mrf.mxu0
  %v2143 = vadd.f32 0.0, %v2142
  %2144 = vmatmul.f32.gmra.mxu0 %v2037
  %v2145 = vpop.f32.mrf.mxu0
  %v2146 = vadd.f32 0.0, %v2145
  %2147 = vmatmul.f32.gmra.mxu0 %v2038
  %v2148 = vpop.f32.mrf.mxu0
  %v2149 = vadd.f32 0.0, %v2148
  %2150 = vmatmul.f32.gmra.mxu0 %v2039
  %v2151 = vpop.f32.mrf.mxu0
  %v2152 = vadd.f32 0.0, %v2151
  %2153 = vmatmul.f32.gmra.mxu0 %v2040
  %v2154 = vpop.f32.mrf.mxu0
  %v2155 = vadd.f32 0.0, %v2154
  %2156 = vmatmul.f32.gmra.mxu0 %v2041
  %v2157 = vpop.f32.mrf.mxu0
  %v2158 = vadd.f32 0.0, %v2157
  %2159 = vmatmul.f32.gmra.mxu0 %v2042
  %v2160 = vpop.f32.mrf.mxu0
  %v2161 = vadd.f32 0.0, %v2160
  %2162 = vmatmul.f32.gmra.mxu0 %v2043
  %v2163 = vpop.f32.mrf.mxu0
  %v2164 = vadd.f32 0.0, %v2163
  %2165 = vmatmul.f32.gmra.mxu0 %v2044
  %v2166 = vpop.f32.mrf.mxu0
  %v2167 = vadd.f32 0.0, %v2166
  %2168 = vmatmul.f32.gmra.mxu0 %v2045
  %v2169 = vpop.f32.mrf.mxu0
  %v2170 = vadd.f32 0.0, %v2169
  %2171 = vmatmul.f32.gmra.mxu0 %v2046
  %v2172 = vpop.f32.mrf.mxu0
  %v2173 = vadd.f32 0.0, %v2172
  %2174 = vmatmul.f32.gmra.mxu0 %v2047
  %v2175 = vpop.f32.mrf.mxu0
  %v2176 = vadd.f32 0.0, %v2175
  %2177 = vmatmul.f32.gmra.mxu0 %v2048
  %v2178 = vpop.f32.mrf.mxu0
  %v2179 = vadd.f32 0.0, %v2178
  %2180 = vmatmul.f32.gmra.mxu0 %v2049
  %v2181 = vpop.f32.mrf.mxu0
  %v2182 = vadd.f32 0.0, %v2181
  %2183 = vmatmul.f32.gmra.mxu0 %v2050
  %v2184 = vpop.f32.mrf.mxu0
  %v2185 = vadd.f32 0.0, %v2184
  %2186 = vmatmul.f32.gmra.mxu0 %v2051
  %v2187 = vpop.f32.mrf.mxu0
  %v2188 = vadd.f32 0.0, %v2187
  %2189 = vmatmul.f32.gmra.mxu0 %v2052
  %v2190 = vpop.f32.mrf.mxu0
  %v2191 = vadd.f32 0.0, %v2190
  %2192 = vmatmul.f32.gmra.mxu0 %v2053
  %v2193 = vpop.f32.mrf.mxu0
  %v2194 = vadd.f32 0.0, %v2193
  %2195 = vmatmul.f32.gmra.mxu0 %v2054
  %v2196 = vpop.f32.mrf.mxu0
  %v2197 = vadd.f32 0.0, %v2196
  %2198 = vmatmul.f32.gmra.mxu0 %v2055
  %v2199 = vpop.f32.mrf.mxu0
  %v2200 = vadd.f32 0.0, %v2199
  %2201 = vmatmul.f32.gmra.mxu0 %v2056
  %v2202 = vpop.f32.mrf.mxu0
  %v2203 = vadd.f32 0.0, %v2202
  %2204 = vmatmul.f32.gmra.mxu0 %v2057
  %v2205 = vpop.f32.mrf.mxu0
  %v2206 = vadd.f32 0.0, %v2205
  %2207 = vmatmul.f32.gmra.mxu0 %v2058
  %v2208 = vpop.f32.mrf.mxu0
  %v2209 = vadd.f32 0.0, %v2208
  %2210 = vmatmul.f32.gmra.mxu0 %v2059
  %v2211 = vpop.f32.mrf.mxu0
  %v2212 = vadd.f32 0.0, %v2211
  %2213 = vmatmul.f32.gmra.mxu0 %v2060
  %v2214 = vpop.f32.mrf.mxu0
  %v2215 = vadd.f32 0.0, %v2214
  %2216 = vmatmul.f32.gmra.mxu0 %v2061
  %v2217 = vpop.f32.mrf.mxu0
  %v2218 = vadd.f32 0.0, %v2217
  %2219 = vmatmul.f32.gmra.mxu0 %v2062
  %v2220 = vpop.f32.mrf.mxu0
  %v2221 = vadd.f32 0.0, %v2220
  %2222 = vmatmul.f32.gmra.mxu0 %v2063
  %v2223 = vpop.f32.mrf.mxu0
  %v2224 = vadd.f32 0.0, %v2223
  %2225 = vmatmul.f32.gmra.mxu0 %v2064
  %v2226 = vpop.f32.mrf.mxu0
  %v2227 = vadd.f32 0.0, %v2226
  %2228 = vmatmul.f32.gmra.mxu0 %v2065
  %v2229 = vpop.f32.mrf.mxu0
  %v2230 = vadd.f32 0.0, %v2229
  %2231 = vmatmul.f32.gmra.mxu0 %v2066
  %v2232 = vpop.f32.mrf.mxu0
  %v2233 = vadd.f32 0.0, %v2232
  %2234 = vmatmul.f32.gmra.mxu0 %v2067
  %v2235 = vpop.f32.mrf.mxu0
  %v2236 = vadd.f32 0.0, %v2235
  %2237 = vmatmul.f32.gmra.mxu0 %v2068
  %v2238 = vpop.f32.mrf.mxu0
  %v2239 = vadd.f32 0.0, %v2238
  %2240 = vmatmul.f32.gmra.mxu0 %v2069
  %v2241 = vpop.f32.mrf.mxu0
  %v2242 = vadd.f32 0.0, %v2241
  %2243 = vmatmul.f32.gmra.mxu0 %v2070
  %v2244 = vpop.f32.mrf.mxu0
  %v2245 = vadd.f32 0.0, %v2244
  %2246 = vmatmul.f32.gmra.mxu0 %v2071
  %v2247 = vpop.f32.mrf.mxu0
  %v2248 = vadd.f32 0.0, %v2247
  %2249 = vmatmul.f32.gmra.mxu0 %v2072
  %v2250 = vpop.f32.mrf.mxu0
  %v2251 = vadd.f32 0.0, %v2250
  %2252 = vmatmul.f32.gmra.mxu0 %v2073
  %v2253 = vpop.f32.mrf.mxu0
  %v2254 = vadd.f32 0.0, %v2253
  %2255 = vmatmul.f32.gmra.mxu0 %v2074
  %v2256 = vpop.f32.mrf.mxu0
  %v2257 = vadd.f32 0.0, %v2256
  %2258 = vmatmul.f32.gmra.mxu0 %v2075
  %v2259 = vpop.f32.mrf.mxu0
  %v2260 = vadd.f32 0.0, %v2259
  %2261 = vmatmul.f32.gmra.mxu0 %v2076
  %v2262 = vpop.f32.mrf.mxu0
  %v2263 = vadd.f32 0.0, %v2262
  %2264 = vmatmul.f32.gmra.mxu0 %v2077
  %v2265 = vpop.f32.mrf.mxu0
  %v2266 = vadd.f32 0.0, %v2265
  %2267 = vmatmul.f32.gmra.mxu0 %v2078
  %v2268 = vpop.f32.mrf.mxu0
  %v2269 = vadd.f32 0.0, %v2268
  %2270 = vmatmul.f32.gmra.mxu0 %v2079
  %v2271 = vpop.f32.mrf.mxu0
  %v2272 = vadd.f32 0.0, %v2271
  %2273 = vmatmul.f32.gmra.mxu0 %v2080
  %v2274 = vpop.f32.mrf.mxu0
  %v2275 = vadd.f32 0.0, %v2274
  %2276 = vmatmul.f32.gmra.mxu0 %v2081
  %v2277 = vpop.f32.mrf.mxu0
  %v2278 = vadd.f32 0.0, %v2277
  %2279 = vmatmul.f32.gmra.mxu0 %v2082
  %v2280 = vpop.f32.mrf.mxu0
  %v2281 = vadd.f32 0.0, %v2280
  %2282 = vmatmul.f32.gmra.mxu0 %v2083
  %v2283 = vpop.f32.mrf.mxu0
  %v2284 = vadd.f32 0.0, %v2283
  %2285 = vmatmul.f32.gmra.mxu0 %v2084
  %v2286 = vpop.f32.mrf.mxu0
  %v2287 = vadd.f32 0.0, %v2286
  %2288 = vmatmul.f32.gmra.mxu0 %v2085
  %v2289 = vpop.f32.mrf.mxu0
  %v2290 = vadd.f32 0.0, %v2289
  %2291 = vmatmul.f32.gmra.mxu0 %v2086
  %v2292 = vpop.f32.mrf.mxu0
  %v2293 = vadd.f32 0.0, %v2292
  %2294 = vmatmul.f32.gmra.mxu0 %v2087
  %v2295 = vpop.f32.mrf.mxu0
  %v2296 = vadd.f32 0.0, %v2295
  %2297 = vmatmul.f32.gmra.mxu0 %v2088
  %v2298 = vpop.f32.mrf.mxu0
  %v2299 = vadd.f32 0.0, %v2298
  %2300 = vmatmul.f32.gmra.mxu0 %v2089
  %v2301 = vpop.f32.mrf.mxu0
  %v2302 = vadd.f32 0.0, %v2301
  %2303 = vmatmul.f32.gmra.mxu0 %v2090
  %v2304 = vpop.f32.mrf.mxu0
  %v2305 = vadd.f32 0.0, %v2304
  %2306 = vmatmul.f32.gmra.mxu0 %v2091
  %v2307 = vpop.f32.mrf.mxu0
  %v2308 = vadd.f32 0.0, %v2307
  %2309 = vmatmul.f32.gmra.mxu0 %v2092
  %v2310 = vpop.f32.mrf.mxu0
  %v2311 = vadd.f32 0.0, %v2310
  %2312 = vmatmul.f32.gmra.mxu0 %v2093
  %v2313 = vpop.f32.mrf.mxu0
  %v2314 = vadd.f32 0.0, %v2313
  %2315 = vmatmul.f32.gmra.mxu0 %v2094
  %v2316 = vpop.f32.mrf.mxu0
  %v2317 = vadd.f32 0.0, %v2316
  %2318 = vmatmul.f32.gmra.mxu0 %v2095
  %v2319 = vpop.f32.mrf.mxu0
  %v2320 = vadd.f32 0.0, %v2319
  %2321 = vdwg.mxu0
  %v2322 = vadd.f32 %v1967, %v2131
  %v2323 = vadd.f32 %v1968, %v2134
  %v2324 = vadd.f32 %v1969, %v2137
  %v2325 = vadd.f32 %v1970, %v2140
  %v2326 = vadd.f32 %v1971, %v2143
  %v2327 = vadd.f32 %v1972, %v2146
  %v2328 = vadd.f32 %v1973, %v2149
  %v2329 = vadd.f32 %v1974, %v2152
  %v2330 = vadd.f32 %v1975, %v2155
  %v2331 = vadd.f32 %v1976, %v2158
  %v2332 = vadd.f32 %v1977, %v2161
  %v2333 = vadd.f32 %v1978, %v2164
  %v2334 = vadd.f32 %v1979, %v2167
  %v2335 = vadd.f32 %v1980, %v2170
  %v2336 = vadd.f32 %v1981, %v2173
  %v2337 = vadd.f32 %v1982, %v2176
  %v2338 = vadd.f32 %v1983, %v2179
  %v2339 = vadd.f32 %v1984, %v2182
  %v2340 = vadd.f32 %v1985, %v2185
  %v2341 = vadd.f32 %v1986, %v2188
  %v2342 = vadd.f32 %v1987, %v2191
  %v2343 = vadd.f32 %v1988, %v2194
  %v2344 = vadd.f32 %v1989, %v2197
  %v2345 = vadd.f32 %v1990, %v2200
  %v2346 = vadd.f32 %v1991, %v2203
  %v2347 = vadd.f32 %v1992, %v2206
  %v2348 = vadd.f32 %v1993, %v2209
  %v2349 = vadd.f32 %v1994, %v2212
  %v2350 = vadd.f32 %v1995, %v2215
  %v2351 = vadd.f32 %v1996, %v2218
  %v2352 = vadd.f32 %v1997, %v2221
  %v2353 = vadd.f32 %v1998, %v2224
  %v2354 = vadd.f32 %v1999, %v2227
  %v2355 = vadd.f32 %v2000, %v2230
  %v2356 = vadd.f32 %v2001, %v2233
  %v2357 = vadd.f32 %v2002, %v2236
  %v2358 = vadd.f32 %v2003, %v2239
  %v2359 = vadd.f32 %v2004, %v2242
  %v2360 = vadd.f32 %v2005, %v2245
  %v2361 = vadd.f32 %v2006, %v2248
  %v2362 = vadd.f32 %v2007, %v2251
  %v2363 = vadd.f32 %v2008, %v2254
  %v2364 = vadd.f32 %v2009, %v2257
  %v2365 = vadd.f32 %v2010, %v2260
  %v2366 = vadd.f32 %v2011, %v2263
  %v2367 = vadd.f32 %v2012, %v2266
  %v2368 = vadd.f32 %v2013, %v2269
  %v2369 = vadd.f32 %v2014, %v2272
  %v2370 = vadd.f32 %v2015, %v2275
  %v2371 = vadd.f32 %v2016, %v2278
  %v2372 = vadd.f32 %v2017, %v2281
  %v2373 = vadd.f32 %v2018, %v2284
  %v2374 = vadd.f32 %v2019, %v2287
  %v2375 = vadd.f32 %v2020, %v2290
  %v2376 = vadd.f32 %v2021, %v2293
  %v2377 = vadd.f32 %v2022, %v2296
  %v2378 = vadd.f32 %v2023, %v2299
  %v2379 = vadd.f32 %v2024, %v2302
  %v2380 = vadd.f32 %v2025, %v2305
  %v2381 = vadd.f32 %v2026, %v2308
  %v2382 = vadd.f32 %v2027, %v2311
  %v2383 = vadd.f32 %v2028, %v2314
  %v2384 = vadd.f32 %v2029, %v2317
  %v2385 = vadd.f32 %v2030, %v2320
  %v2386 = vld [vmem:[%s2031 + $0x1] sm:$0xff]
  %v2387 = vld [vmem:[%s2031 + $0x9] sm:$0xff]
  %v2388 = vld [vmem:[%s2031 + $0x19] sm:$0xff]
  %v2389 = vld [vmem:[%s2031 + $0x21] sm:$0xff]
  %v2390 = vld [vmem:[%s2031 + $0x31] sm:$0xff]
  %v2391 = vld [vmem:[%s2031 + $0x39] sm:$0xff]
  %v2392 = vld [vmem:[%s2031 + $0x49] sm:$0xff]
  %v2393 = vld [vmem:[%s2031 + $0x51] sm:$0xff]
  %v2394 = vld [vmem:[%s2031 + $0x61] sm:$0xff]
  %v2395 = vld [vmem:[%s2031 + $0x69] sm:$0xff]
  %v2396 = vld [vmem:[%s2031 + $0x79] sm:$0xff]
  %v2397 = vld [vmem:[%s2031 + $0x81] sm:$0xff]
  %v2398 = vld [vmem:[%s2031 + $0x91] sm:$0xff]
  %v2399 = vld [vmem:[%s2031 + $0x99] sm:$0xff]
  %v2400 = vld [vmem:[%s2031 + $0xa9] sm:$0xff]
  %v2401 = vld [vmem:[%s2031 + $0xb1] sm:$0xff]
  %v2402 = vld [vmem:[%s2031 + $0xc1] sm:$0xff]
  %v2403 = vld [vmem:[%s2031 + $0xc9] sm:$0xff]
  %v2404 = vld [vmem:[%s2031 + $0xd9] sm:$0xff]
  %v2405 = vld [vmem:[%s2031 + $0xe1] sm:$0xff]
  %v2406 = vld [vmem:[%s2031 + $0xf1] sm:$0xff]
  %v2407 = vld [vmem:[%s2031 + $0xf9] sm:$0xff]
  %v2408 = vld [vmem:[%s2031 + $0x109] sm:$0xff]
  %v2409 = vld [vmem:[%s2031 + $0x111] sm:$0xff]
  %v2410 = vld [vmem:[%s2031 + $0x121] sm:$0xff]
  %v2411 = vld [vmem:[%s2031 + $0x129] sm:$0xff]
  %v2412 = vld [vmem:[%s2031 + $0x139] sm:$0xff]
  %v2413 = vld [vmem:[%s2031 + $0x141] sm:$0xff]
  %v2414 = vld [vmem:[%s2031 + $0x151] sm:$0xff]
  %v2415 = vld [vmem:[%s2031 + $0x159] sm:$0xff]
  %v2416 = vld [vmem:[%s2031 + $0x169] sm:$0xff]
  %v2417 = vld [vmem:[%s2031 + $0x171] sm:$0xff]
  %v2418 = vld [vmem:[%s2031 + $0x1b1] sm:$0xff]
  %v2419 = vld [vmem:[%s2031 + $0x1b9] sm:$0xff]
  %v2420 = vld [vmem:[%s2031 + $0x1c9] sm:$0xff]
  %v2421 = vld [vmem:[%s2031 + $0x1d1] sm:$0xff]
  %v2422 = vld [vmem:[%s2031 + $0x1e1] sm:$0xff]
  %v2423 = vld [vmem:[%s2031 + $0x1e9] sm:$0xff]
  %v2424 = vld [vmem:[%s2031 + $0x1f9] sm:$0xff]
  %v2425 = vld [vmem:[%s2031 + $0x201] sm:$0xff]
  %v2426 = vld [vmem:[%s2031 + $0x211] sm:$0xff]
  %v2427 = vld [vmem:[%s2031 + $0x219] sm:$0xff]
  %v2428 = vld [vmem:[%s2031 + $0x229] sm:$0xff]
  %v2429 = vld [vmem:[%s2031 + $0x231] sm:$0xff]
  %v2430 = vld [vmem:[%s2031 + $0x241] sm:$0xff]
  %v2431 = vld [vmem:[%s2031 + $0x249] sm:$0xff]
  %v2432 = vld [vmem:[%s2031 + $0x259] sm:$0xff]
  %v2433 = vld [vmem:[%s2031 + $0x261] sm:$0xff]
  %v2434 = vld [vmem:[%s2031 + $0x271] sm:$0xff]
  %v2435 = vld [vmem:[%s2031 + $0x279] sm:$0xff]
  %v2436 = vld [vmem:[%s2031 + $0x289] sm:$0xff]
  %v2437 = vld [vmem:[%s2031 + $0x291] sm:$0xff]
  %v2438 = vld [vmem:[%s2031 + $0x2a1] sm:$0xff]
  %v2439 = vld [vmem:[%s2031 + $0x2a9] sm:$0xff]
  %v2440 = vld [vmem:[%s2031 + $0x2b9] sm:$0xff]
  %v2441 = vld [vmem:[%s2031 + $0x2c1] sm:$0xff]
  %v2442 = vld [vmem:[%s2031 + $0x2d1] sm:$0xff]
  %v2443 = vld [vmem:[%s2031 + $0x2d9] sm:$0xff]
  %v2444 = vld [vmem:[%s2031 + $0x2e9] sm:$0xff]
  %v2445 = vld [vmem:[%s2031 + $0x2f1] sm:$0xff]
  %v2446 = vld [vmem:[%s2031 + $0x301] sm:$0xff]
  %v2447 = vld [vmem:[%s2031 + $0x309] sm:$0xff]
  %v2448 = vld [vmem:[%s2031 + $0x319] sm:$0xff]
  %v2449 = vld [vmem:[%s2031 + $0x321] sm:$0xff]
  %s2450 = scalar_lea.vmem %s2, 896
  %v2451 = vld [vmem:[%s2450] sm:$0xff]
  %v2452 = vld [vmem:[%s2450 + $0x8] sm:$0xff]
  %v2453 = vld [vmem:[%s2450 + $0x10] sm:$0xff]
  %v2454 = vld [vmem:[%s2450 + $0x18] sm:$0xff]
  %v2455 = vld [vmem:[%s2450 + $0x20] sm:$0xff]
  %v2456 = vld [vmem:[%s2450 + $0x28] sm:$0xff]
  %v2457 = vld [vmem:[%s2450 + $0x30] sm:$0xff]
  %v2458 = vld [vmem:[%s2450 + $0x38] sm:$0xff]
  %v2459 = vld [vmem:[%s2450 + $0x40] sm:$0xff]
  %v2460 = vld [vmem:[%s2450 + $0x48] sm:$0xff]
  %v2461 = vld [vmem:[%s2450 + $0x50] sm:$0xff]
  %v2462 = vld [vmem:[%s2450 + $0x58] sm:$0xff]
  %v2463 = vld [vmem:[%s2450 + $0x60] sm:$0xff]
  %v2464 = vld [vmem:[%s2450 + $0x68] sm:$0xff]
  %v2465 = vld [vmem:[%s2450 + $0x70] sm:$0xff]
  %v2466 = vld [vmem:[%s2450 + $0x78] sm:$0xff]
  %2467 = vmatpush.msra.mxu0 %v2466
  %2468 = vmatpush.msra.mxu0 %v2465
  %2469 = vmatpush.msra.mxu0 %v2464
  %2470 = vmatpush.msra.mxu0 %v2463
  %2471 = vmatpush.msra.mxu0 %v2462
  %2472 = vmatpush.msra.mxu0 %v2461
  %2473 = vmatpush.msra.mxu0 %v2460
  %2474 = vmatpush.msra.mxu0 %v2459
  %2475 = vmatpush.msra.mxu0 %v2458
  %2476 = vmatpush.msra.mxu0 %v2457
  %2477 = vmatpush.msra.mxu0 %v2456
  %2478 = vmatpush.msra.mxu0 %v2455
  %2479 = vmatpush.msra.mxu0 %v2454
  %2480 = vmatpush.msra.mxu0 %v2453
  %2481 = vmatpush.msra.mxu0 %v2452
  %2482 = vmatpush.msra.mxu0 %v2451
  %2483 = vmatmul.f32.gmra.mxu0 %v2386
  %v2484 = vpop.f32.mrf.mxu0
  %v2485 = vadd.f32 0.0, %v2484
  %2486 = vmatmul.f32.gmra.mxu0 %v2387
  %v2487 = vpop.f32.mrf.mxu0
  %v2488 = vadd.f32 0.0, %v2487
  %2489 = vmatmul.f32.gmra.mxu0 %v2388
  %v2490 = vpop.f32.mrf.mxu0
  %v2491 = vadd.f32 0.0, %v2490
  %2492 = vmatmul.f32.gmra.mxu0 %v2389
  %v2493 = vpop.f32.mrf.mxu0
  %v2494 = vadd.f32 0.0, %v2493
  %2495 = vmatmul.f32.gmra.mxu0 %v2390
  %v2496 = vpop.f32.mrf.mxu0
  %v2497 = vadd.f32 0.0, %v2496
  %2498 = vmatmul.f32.gmra.mxu0 %v2391
  %v2499 = vpop.f32.mrf.mxu0
  %v2500 = vadd.f32 0.0, %v2499
  %2501 = vmatmul.f32.gmra.mxu0 %v2392
  %v2502 = vpop.f32.mrf.mxu0
  %v2503 = vadd.f32 0.0, %v2502
  %2504 = vmatmul.f32.gmra.mxu0 %v2393
  %v2505 = vpop.f32.mrf.mxu0
  %v2506 = vadd.f32 0.0, %v2505
  %2507 = vmatmul.f32.gmra.mxu0 %v2394
  %v2508 = vpop.f32.mrf.mxu0
  %v2509 = vadd.f32 0.0, %v2508
  %2510 = vmatmul.f32.gmra.mxu0 %v2395
  %v2511 = vpop.f32.mrf.mxu0
  %v2512 = vadd.f32 0.0, %v2511
  %2513 = vmatmul.f32.gmra.mxu0 %v2396
  %v2514 = vpop.f32.mrf.mxu0
  %v2515 = vadd.f32 0.0, %v2514
  %2516 = vmatmul.f32.gmra.mxu0 %v2397
  %v2517 = vpop.f32.mrf.mxu0
  %v2518 = vadd.f32 0.0, %v2517
  %2519 = vmatmul.f32.gmra.mxu0 %v2398
  %v2520 = vpop.f32.mrf.mxu0
  %v2521 = vadd.f32 0.0, %v2520
  %2522 = vmatmul.f32.gmra.mxu0 %v2399
  %v2523 = vpop.f32.mrf.mxu0
  %v2524 = vadd.f32 0.0, %v2523
  %2525 = vmatmul.f32.gmra.mxu0 %v2400
  %v2526 = vpop.f32.mrf.mxu0
  %v2527 = vadd.f32 0.0, %v2526
  %2528 = vmatmul.f32.gmra.mxu0 %v2401
  %v2529 = vpop.f32.mrf.mxu0
  %v2530 = vadd.f32 0.0, %v2529
  %2531 = vmatmul.f32.gmra.mxu0 %v2402
  %v2532 = vpop.f32.mrf.mxu0
  %v2533 = vadd.f32 0.0, %v2532
  %2534 = vmatmul.f32.gmra.mxu0 %v2403
  %v2535 = vpop.f32.mrf.mxu0
  %v2536 = vadd.f32 0.0, %v2535
  %2537 = vmatmul.f32.gmra.mxu0 %v2404
  %v2538 = vpop.f32.mrf.mxu0
  %v2539 = vadd.f32 0.0, %v2538
  %2540 = vmatmul.f32.gmra.mxu0 %v2405
  %v2541 = vpop.f32.mrf.mxu0
  %v2542 = vadd.f32 0.0, %v2541
  %2543 = vmatmul.f32.gmra.mxu0 %v2406
  %v2544 = vpop.f32.mrf.mxu0
  %v2545 = vadd.f32 0.0, %v2544
  %2546 = vmatmul.f32.gmra.mxu0 %v2407
  %v2547 = vpop.f32.mrf.mxu0
  %v2548 = vadd.f32 0.0, %v2547
  %2549 = vmatmul.f32.gmra.mxu0 %v2408
  %v2550 = vpop.f32.mrf.mxu0
  %v2551 = vadd.f32 0.0, %v2550
  %2552 = vmatmul.f32.gmra.mxu0 %v2409
  %v2553 = vpop.f32.mrf.mxu0
  %v2554 = vadd.f32 0.0, %v2553
  %2555 = vmatmul.f32.gmra.mxu0 %v2410
  %v2556 = vpop.f32.mrf.mxu0
  %v2557 = vadd.f32 0.0, %v2556
  %2558 = vmatmul.f32.gmra.mxu0 %v2411
  %v2559 = vpop.f32.mrf.mxu0
  %v2560 = vadd.f32 0.0, %v2559
  %2561 = vmatmul.f32.gmra.mxu0 %v2412
  %v2562 = vpop.f32.mrf.mxu0
  %v2563 = vadd.f32 0.0, %v2562
  %2564 = vmatmul.f32.gmra.mxu0 %v2413
  %v2565 = vpop.f32.mrf.mxu0
  %v2566 = vadd.f32 0.0, %v2565
  %2567 = vmatmul.f32.gmra.mxu0 %v2414
  %v2568 = vpop.f32.mrf.mxu0
  %v2569 = vadd.f32 0.0, %v2568
  %2570 = vmatmul.f32.gmra.mxu0 %v2415
  %v2571 = vpop.f32.mrf.mxu0
  %v2572 = vadd.f32 0.0, %v2571
  %2573 = vmatmul.f32.gmra.mxu0 %v2416
  %v2574 = vpop.f32.mrf.mxu0
  %v2575 = vadd.f32 0.0, %v2574
  %2576 = vmatmul.f32.gmra.mxu0 %v2417
  %v2577 = vpop.f32.mrf.mxu0
  %v2578 = vadd.f32 0.0, %v2577
  %2579 = vmatmul.f32.gmra.mxu0 %v2418
  %v2580 = vpop.f32.mrf.mxu0
  %v2581 = vadd.f32 0.0, %v2580
  %2582 = vmatmul.f32.gmra.mxu0 %v2419
  %v2583 = vpop.f32.mrf.mxu0
  %v2584 = vadd.f32 0.0, %v2583
  %2585 = vmatmul.f32.gmra.mxu0 %v2420
  %v2586 = vpop.f32.mrf.mxu0
  %v2587 = vadd.f32 0.0, %v2586
  %2588 = vmatmul.f32.gmra.mxu0 %v2421
  %v2589 = vpop.f32.mrf.mxu0
  %v2590 = vadd.f32 0.0, %v2589
  %2591 = vmatmul.f32.gmra.mxu0 %v2422
  %v2592 = vpop.f32.mrf.mxu0
  %v2593 = vadd.f32 0.0, %v2592
  %2594 = vmatmul.f32.gmra.mxu0 %v2423
  %v2595 = vpop.f32.mrf.mxu0
  %v2596 = vadd.f32 0.0, %v2595
  %2597 = vmatmul.f32.gmra.mxu0 %v2424
  %v2598 = vpop.f32.mrf.mxu0
  %v2599 = vadd.f32 0.0, %v2598
  %2600 = vmatmul.f32.gmra.mxu0 %v2425
  %v2601 = vpop.f32.mrf.mxu0
  %v2602 = vadd.f32 0.0, %v2601
  %2603 = vmatmul.f32.gmra.mxu0 %v2426
  %v2604 = vpop.f32.mrf.mxu0
  %v2605 = vadd.f32 0.0, %v2604
  %2606 = vmatmul.f32.gmra.mxu0 %v2427
  %v2607 = vpop.f32.mrf.mxu0
  %v2608 = vadd.f32 0.0, %v2607
  %2609 = vmatmul.f32.gmra.mxu0 %v2428
  %v2610 = vpop.f32.mrf.mxu0
  %v2611 = vadd.f32 0.0, %v2610
  %2612 = vmatmul.f32.gmra.mxu0 %v2429
  %v2613 = vpop.f32.mrf.mxu0
  %v2614 = vadd.f32 0.0, %v2613
  %2615 = vmatmul.f32.gmra.mxu0 %v2430
  %v2616 = vpop.f32.mrf.mxu0
  %v2617 = vadd.f32 0.0, %v2616
  %2618 = vmatmul.f32.gmra.mxu0 %v2431
  %v2619 = vpop.f32.mrf.mxu0
  %v2620 = vadd.f32 0.0, %v2619
  %2621 = vmatmul.f32.gmra.mxu0 %v2432
  %v2622 = vpop.f32.mrf.mxu0
  %v2623 = vadd.f32 0.0, %v2622
  %2624 = vmatmul.f32.gmra.mxu0 %v2433
  %v2625 = vpop.f32.mrf.mxu0
  %v2626 = vadd.f32 0.0, %v2625
  %2627 = vmatmul.f32.gmra.mxu0 %v2434
  %v2628 = vpop.f32.mrf.mxu0
  %v2629 = vadd.f32 0.0, %v2628
  %2630 = vmatmul.f32.gmra.mxu0 %v2435
  %v2631 = vpop.f32.mrf.mxu0
  %v2632 = vadd.f32 0.0, %v2631
  %2633 = vmatmul.f32.gmra.mxu0 %v2436
  %v2634 = vpop.f32.mrf.mxu0
  %v2635 = vadd.f32 0.0, %v2634
  %2636 = vmatmul.f32.gmra.mxu0 %v2437
  %v2637 = vpop.f32.mrf.mxu0
  %v2638 = vadd.f32 0.0, %v2637
  %2639 = vmatmul.f32.gmra.mxu0 %v2438
  %v2640 = vpop.f32.mrf.mxu0
  %v2641 = vadd.f32 0.0, %v2640
  %2642 = vmatmul.f32.gmra.mxu0 %v2439
  %v2643 = vpop.f32.mrf.mxu0
  %v2644 = vadd.f32 0.0, %v2643
  %2645 = vmatmul.f32.gmra.mxu0 %v2440
  %v2646 = vpop.f32.mrf.mxu0
  %v2647 = vadd.f32 0.0, %v2646
  %2648 = vmatmul.f32.gmra.mxu0 %v2441
  %v2649 = vpop.f32.mrf.mxu0
  %v2650 = vadd.f32 0.0, %v2649
  %2651 = vmatmul.f32.gmra.mxu0 %v2442
  %v2652 = vpop.f32.mrf.mxu0
  %v2653 = vadd.f32 0.0, %v2652
  %2654 = vmatmul.f32.gmra.mxu0 %v2443
  %v2655 = vpop.f32.mrf.mxu0
  %v2656 = vadd.f32 0.0, %v2655
  %2657 = vmatmul.f32.gmra.mxu0 %v2444
  %v2658 = vpop.f32.mrf.mxu0
  %v2659 = vadd.f32 0.0, %v2658
  %2660 = vmatmul.f32.gmra.mxu0 %v2445
  %v2661 = vpop.f32.mrf.mxu0
  %v2662 = vadd.f32 0.0, %v2661
  %2663 = vmatmul.f32.gmra.mxu0 %v2446
  %v2664 = vpop.f32.mrf.mxu0
  %v2665 = vadd.f32 0.0, %v2664
  %2666 = vmatmul.f32.gmra.mxu0 %v2447
  %v2667 = vpop.f32.mrf.mxu0
  %v2668 = vadd.f32 0.0, %v2667
  %2669 = vmatmul.f32.gmra.mxu0 %v2448
  %v2670 = vpop.f32.mrf.mxu0
  %v2671 = vadd.f32 0.0, %v2670
  %2672 = vmatmul.f32.gmra.mxu0 %v2449
  %v2673 = vpop.f32.mrf.mxu0
  %v2674 = vadd.f32 0.0, %v2673
  %2675 = vdwg.mxu0
  %v2676 = vadd.f32 %v2322, %v2485
  %v2677 = vadd.f32 %v2323, %v2488
  %v2678 = vadd.f32 %v2324, %v2491
  %v2679 = vadd.f32 %v2325, %v2494
  %v2680 = vadd.f32 %v2326, %v2497
  %v2681 = vadd.f32 %v2327, %v2500
  %v2682 = vadd.f32 %v2328, %v2503
  %v2683 = vadd.f32 %v2329, %v2506
  %v2684 = vadd.f32 %v2330, %v2509
  %v2685 = vadd.f32 %v2331, %v2512
  %v2686 = vadd.f32 %v2332, %v2515
  %v2687 = vadd.f32 %v2333, %v2518
  %v2688 = vadd.f32 %v2334, %v2521
  %v2689 = vadd.f32 %v2335, %v2524
  %v2690 = vadd.f32 %v2336, %v2527
  %v2691 = vadd.f32 %v2337, %v2530
  %v2692 = vadd.f32 %v2338, %v2533
  %v2693 = vadd.f32 %v2339, %v2536
  %v2694 = vadd.f32 %v2340, %v2539
  %v2695 = vadd.f32 %v2341, %v2542
  %v2696 = vadd.f32 %v2342, %v2545
  %v2697 = vadd.f32 %v2343, %v2548
  %v2698 = vadd.f32 %v2344, %v2551
  %v2699 = vadd.f32 %v2345, %v2554
  %v2700 = vadd.f32 %v2346, %v2557
  %v2701 = vadd.f32 %v2347, %v2560
  %v2702 = vadd.f32 %v2348, %v2563
  %v2703 = vadd.f32 %v2349, %v2566
  %v2704 = vadd.f32 %v2350, %v2569
  %v2705 = vadd.f32 %v2351, %v2572
  %v2706 = vadd.f32 %v2352, %v2575
  %v2707 = vadd.f32 %v2353, %v2578
  %v2708 = vadd.f32 %v2354, %v2581
  %v2709 = vadd.f32 %v2355, %v2584
  %v2710 = vadd.f32 %v2356, %v2587
  %v2711 = vadd.f32 %v2357, %v2590
  %v2712 = vadd.f32 %v2358, %v2593
  %v2713 = vadd.f32 %v2359, %v2596
  %v2714 = vadd.f32 %v2360, %v2599
  %v2715 = vadd.f32 %v2361, %v2602
  %v2716 = vadd.f32 %v2362, %v2605
  %v2717 = vadd.f32 %v2363, %v2608
  %v2718 = vadd.f32 %v2364, %v2611
  %v2719 = vadd.f32 %v2365, %v2614
  %v2720 = vadd.f32 %v2366, %v2617
  %v2721 = vadd.f32 %v2367, %v2620
  %v2722 = vadd.f32 %v2368, %v2623
  %v2723 = vadd.f32 %v2369, %v2626
  %v2724 = vadd.f32 %v2370, %v2629
  %v2725 = vadd.f32 %v2371, %v2632
  %v2726 = vadd.f32 %v2372, %v2635
  %v2727 = vadd.f32 %v2373, %v2638
  %v2728 = vadd.f32 %v2374, %v2641
  %v2729 = vadd.f32 %v2375, %v2644
  %v2730 = vadd.f32 %v2376, %v2647
  %v2731 = vadd.f32 %v2377, %v2650
  %v2732 = vadd.f32 %v2378, %v2653
  %v2733 = vadd.f32 %v2379, %v2656
  %v2734 = vadd.f32 %v2380, %v2659
  %v2735 = vadd.f32 %v2381, %v2662
  %v2736 = vadd.f32 %v2382, %v2665
  %v2737 = vadd.f32 %v2383, %v2668
  %v2738 = vadd.f32 %v2384, %v2671
  %v2739 = vadd.f32 %v2385, %v2674
  %v2740 = vld [vmem:[%s2031 + $0x2] sm:$0xff]
  %v2741 = vld [vmem:[%s2031 + $0xa] sm:$0xff]
  %v2742 = vld [vmem:[%s2031 + $0x1a] sm:$0xff]
  %v2743 = vld [vmem:[%s2031 + $0x22] sm:$0xff]
  %v2744 = vld [vmem:[%s2031 + $0x32] sm:$0xff]
  %v2745 = vld [vmem:[%s2031 + $0x3a] sm:$0xff]
  %v2746 = vld [vmem:[%s2031 + $0x4a] sm:$0xff]
  %v2747 = vld [vmem:[%s2031 + $0x52] sm:$0xff]
  %v2748 = vld [vmem:[%s2031 + $0x62] sm:$0xff]
  %v2749 = vld [vmem:[%s2031 + $0x6a] sm:$0xff]
  %v2750 = vld [vmem:[%s2031 + $0x7a] sm:$0xff]
  %v2751 = vld [vmem:[%s2031 + $0x82] sm:$0xff]
  %v2752 = vld [vmem:[%s2031 + $0x92] sm:$0xff]
  %v2753 = vld [vmem:[%s2031 + $0x9a] sm:$0xff]
  %v2754 = vld [vmem:[%s2031 + $0xaa] sm:$0xff]
  %v2755 = vld [vmem:[%s2031 + $0xb2] sm:$0xff]
  %v2756 = vld [vmem:[%s2031 + $0xc2] sm:$0xff]
  %v2757 = vld [vmem:[%s2031 + $0xca] sm:$0xff]
  %v2758 = vld [vmem:[%s2031 + $0xda] sm:$0xff]
  %v2759 = vld [vmem:[%s2031 + $0xe2] sm:$0xff]
  %v2760 = vld [vmem:[%s2031 + $0xf2] sm:$0xff]
  %v2761 = vld [vmem:[%s2031 + $0xfa] sm:$0xff]
  %v2762 = vld [vmem:[%s2031 + $0x10a] sm:$0xff]
  %v2763 = vld [vmem:[%s2031 + $0x112] sm:$0xff]
  %v2764 = vld [vmem:[%s2031 + $0x122] sm:$0xff]
  %v2765 = vld [vmem:[%s2031 + $0x12a] sm:$0xff]
  %v2766 = vld [vmem:[%s2031 + $0x13a] sm:$0xff]
  %v2767 = vld [vmem:[%s2031 + $0x142] sm:$0xff]
  %v2768 = vld [vmem:[%s2031 + $0x152] sm:$0xff]
  %v2769 = vld [vmem:[%s2031 + $0x15a] sm:$0xff]
  %v2770 = vld [vmem:[%s2031 + $0x16a] sm:$0xff]
  %v2771 = vld [vmem:[%s2031 + $0x172] sm:$0xff]
  %v2772 = vld [vmem:[%s2031 + $0x1b2] sm:$0xff]
  %v2773 = vld [vmem:[%s2031 + $0x1ba] sm:$0xff]
  %v2774 = vld [vmem:[%s2031 + $0x1ca] sm:$0xff]
  %v2775 = vld [vmem:[%s2031 + $0x1d2] sm:$0xff]
  %v2776 = vld [vmem:[%s2031 + $0x1e2] sm:$0xff]
  %v2777 = vld [vmem:[%s2031 + $0x1ea] sm:$0xff]
  %v2778 = vld [vmem:[%s2031 + $0x1fa] sm:$0xff]
  %v2779 = vld [vmem:[%s2031 + $0x202] sm:$0xff]
  %v2780 = vld [vmem:[%s2031 + $0x212] sm:$0xff]
  %v2781 = vld [vmem:[%s2031 + $0x21a] sm:$0xff]
  %v2782 = vld [vmem:[%s2031 + $0x22a] sm:$0xff]
  %v2783 = vld [vmem:[%s2031 + $0x232] sm:$0xff]
  %v2784 = vld [vmem:[%s2031 + $0x242] sm:$0xff]
  %v2785 = vld [vmem:[%s2031 + $0x24a] sm:$0xff]
  %v2786 = vld [vmem:[%s2031 + $0x25a] sm:$0xff]
  %v2787 = vld [vmem:[%s2031 + $0x262] sm:$0xff]
  %v2788 = vld [vmem:[%s2031 + $0x272] sm:$0xff]
  %v2789 = vld [vmem:[%s2031 + $0x27a] sm:$0xff]
  %v2790 = vld [vmem:[%s2031 + $0x28a] sm:$0xff]
  %v2791 = vld [vmem:[%s2031 + $0x292] sm:$0xff]
  %v2792 = vld [vmem:[%s2031 + $0x2a2] sm:$0xff]
  %v2793 = vld [vmem:[%s2031 + $0x2aa] sm:$0xff]
  %v2794 = vld [vmem:[%s2031 + $0x2ba] sm:$0xff]
  %v2795 = vld [vmem:[%s2031 + $0x2c2] sm:$0xff]
  %v2796 = vld [vmem:[%s2031 + $0x2d2] sm:$0xff]
  %v2797 = vld [vmem:[%s2031 + $0x2da] sm:$0xff]
  %v2798 = vld [vmem:[%s2031 + $0x2ea] sm:$0xff]
  %v2799 = vld [vmem:[%s2031 + $0x2f2] sm:$0xff]
  %v2800 = vld [vmem:[%s2031 + $0x302] sm:$0xff]
  %v2801 = vld [vmem:[%s2031 + $0x30a] sm:$0xff]
  %v2802 = vld [vmem:[%s2031 + $0x31a] sm:$0xff]
  %v2803 = vld [vmem:[%s2031 + $0x322] sm:$0xff]
  %s2804 = scalar_lea.vmem %s2, 1024
  %v2805 = vld [vmem:[%s2804] sm:$0xff]
  %v2806 = vld [vmem:[%s2804 + $0x8] sm:$0xff]
  %v2807 = vld [vmem:[%s2804 + $0x10] sm:$0xff]
  %v2808 = vld [vmem:[%s2804 + $0x18] sm:$0xff]
  %v2809 = vld [vmem:[%s2804 + $0x20] sm:$0xff]
  %v2810 = vld [vmem:[%s2804 + $0x28] sm:$0xff]
  %v2811 = vld [vmem:[%s2804 + $0x30] sm:$0xff]
  %v2812 = vld [vmem:[%s2804 + $0x38] sm:$0xff]
  %v2813 = vld [vmem:[%s2804 + $0x40] sm:$0xff]
  %v2814 = vld [vmem:[%s2804 + $0x48] sm:$0xff]
  %v2815 = vld [vmem:[%s2804 + $0x50] sm:$0xff]
  %v2816 = vld [vmem:[%s2804 + $0x58] sm:$0xff]
  %v2817 = vld [vmem:[%s2804 + $0x60] sm:$0xff]
  %v2818 = vld [vmem:[%s2804 + $0x68] sm:$0xff]
  %v2819 = vld [vmem:[%s2804 + $0x70] sm:$0xff]
  %v2820 = vld [vmem:[%s2804 + $0x78] sm:$0xff]
  %2821 = vmatpush.msra.mxu0 %v2820
  %2822 = vmatpush.msra.mxu0 %v2819
  %2823 = vmatpush.msra.mxu0 %v2818
  %2824 = vmatpush.msra.mxu0 %v2817
  %2825 = vmatpush.msra.mxu0 %v2816
  %2826 = vmatpush.msra.mxu0 %v2815
  %2827 = vmatpush.msra.mxu0 %v2814
  %2828 = vmatpush.msra.mxu0 %v2813
  %2829 = vmatpush.msra.mxu0 %v2812
  %2830 = vmatpush.msra.mxu0 %v2811
  %2831 = vmatpush.msra.mxu0 %v2810
  %2832 = vmatpush.msra.mxu0 %v2809
  %2833 = vmatpush.msra.mxu0 %v2808
  %2834 = vmatpush.msra.mxu0 %v2807
  %2835 = vmatpush.msra.mxu0 %v2806
  %2836 = vmatpush.msra.mxu0 %v2805
  %2837 = vmatmul.f32.gmra.mxu0 %v2740
  %v2838 = vpop.f32.mrf.mxu0
  %v2839 = vadd.f32 0.0, %v2838
  %2840 = vmatmul.f32.gmra.mxu0 %v2741
  %v2841 = vpop.f32.mrf.mxu0
  %v2842 = vadd.f32 0.0, %v2841
  %2843 = vmatmul.f32.gmra.mxu0 %v2742
  %v2844 = vpop.f32.mrf.mxu0
  %v2845 = vadd.f32 0.0, %v2844
  %2846 = vmatmul.f32.gmra.mxu0 %v2743
  %v2847 = vpop.f32.mrf.mxu0
  %v2848 = vadd.f32 0.0, %v2847
  %2849 = vmatmul.f32.gmra.mxu0 %v2744
  %v2850 = vpop.f32.mrf.mxu0
  %v2851 = vadd.f32 0.0, %v2850
  %2852 = vmatmul.f32.gmra.mxu0 %v2745
  %v2853 = vpop.f32.mrf.mxu0
  %v2854 = vadd.f32 0.0, %v2853
  %2855 = vmatmul.f32.gmra.mxu0 %v2746
  %v2856 = vpop.f32.mrf.mxu0
  %v2857 = vadd.f32 0.0, %v2856
  %2858 = vmatmul.f32.gmra.mxu0 %v2747
  %v2859 = vpop.f32.mrf.mxu0
  %v2860 = vadd.f32 0.0, %v2859
  %2861 = vmatmul.f32.gmra.mxu0 %v2748
  %v2862 = vpop.f32.mrf.mxu0
  %v2863 = vadd.f32 0.0, %v2862
  %2864 = vmatmul.f32.gmra.mxu0 %v2749
  %v2865 = vpop.f32.mrf.mxu0
  %v2866 = vadd.f32 0.0, %v2865
  %2867 = vmatmul.f32.gmra.mxu0 %v2750
  %v2868 = vpop.f32.mrf.mxu0
  %v2869 = vadd.f32 0.0, %v2868
  %2870 = vmatmul.f32.gmra.mxu0 %v2751
  %v2871 = vpop.f32.mrf.mxu0
  %v2872 = vadd.f32 0.0, %v2871
  %2873 = vmatmul.f32.gmra.mxu0 %v2752
  %v2874 = vpop.f32.mrf.mxu0
  %v2875 = vadd.f32 0.0, %v2874
  %2876 = vmatmul.f32.gmra.mxu0 %v2753
  %v2877 = vpop.f32.mrf.mxu0
  %v2878 = vadd.f32 0.0, %v2877
  %2879 = vmatmul.f32.gmra.mxu0 %v2754
  %v2880 = vpop.f32.mrf.mxu0
  %v2881 = vadd.f32 0.0, %v2880
  %2882 = vmatmul.f32.gmra.mxu0 %v2755
  %v2883 = vpop.f32.mrf.mxu0
  %v2884 = vadd.f32 0.0, %v2883
  %2885 = vmatmul.f32.gmra.mxu0 %v2756
  %v2886 = vpop.f32.mrf.mxu0
  %v2887 = vadd.f32 0.0, %v2886
  %2888 = vmatmul.f32.gmra.mxu0 %v2757
  %v2889 = vpop.f32.mrf.mxu0
  %v2890 = vadd.f32 0.0, %v2889
  %2891 = vmatmul.f32.gmra.mxu0 %v2758
  %v2892 = vpop.f32.mrf.mxu0
  %v2893 = vadd.f32 0.0, %v2892
  %2894 = vmatmul.f32.gmra.mxu0 %v2759
  %v2895 = vpop.f32.mrf.mxu0
  %v2896 = vadd.f32 0.0, %v2895
  %2897 = vmatmul.f32.gmra.mxu0 %v2760
  %v2898 = vpop.f32.mrf.mxu0
  %v2899 = vadd.f32 0.0, %v2898
  %2900 = vmatmul.f32.gmra.mxu0 %v2761
  %v2901 = vpop.f32.mrf.mxu0
  %v2902 = vadd.f32 0.0, %v2901
  %2903 = vmatmul.f32.gmra.mxu0 %v2762
  %v2904 = vpop.f32.mrf.mxu0
  %v2905 = vadd.f32 0.0, %v2904
  %2906 = vmatmul.f32.gmra.mxu0 %v2763
  %v2907 = vpop.f32.mrf.mxu0
  %v2908 = vadd.f32 0.0, %v2907
  %2909 = vmatmul.f32.gmra.mxu0 %v2764
  %v2910 = vpop.f32.mrf.mxu0
  %v2911 = vadd.f32 0.0, %v2910
  %2912 = vmatmul.f32.gmra.mxu0 %v2765
  %v2913 = vpop.f32.mrf.mxu0
  %v2914 = vadd.f32 0.0, %v2913
  %2915 = vmatmul.f32.gmra.mxu0 %v2766
  %v2916 = vpop.f32.mrf.mxu0
  %v2917 = vadd.f32 0.0, %v2916
  %2918 = vmatmul.f32.gmra.mxu0 %v2767
  %v2919 = vpop.f32.mrf.mxu0
  %v2920 = vadd.f32 0.0, %v2919
  %2921 = vmatmul.f32.gmra.mxu0 %v2768
  %v2922 = vpop.f32.mrf.mxu0
  %v2923 = vadd.f32 0.0, %v2922
  %2924 = vmatmul.f32.gmra.mxu0 %v2769
  %v2925 = vpop.f32.mrf.mxu0
  %v2926 = vadd.f32 0.0, %v2925
  %2927 = vmatmul.f32.gmra.mxu0 %v2770
  %v2928 = vpop.f32.mrf.mxu0
  %v2929 = vadd.f32 0.0, %v2928
  %2930 = vmatmul.f32.gmra.mxu0 %v2771
  %v2931 = vpop.f32.mrf.mxu0
  %v2932 = vadd.f32 0.0, %v2931
  %2933 = vmatmul.f32.gmra.mxu0 %v2772
  %v2934 = vpop.f32.mrf.mxu0
  %v2935 = vadd.f32 0.0, %v2934
  %2936 = vmatmul.f32.gmra.mxu0 %v2773
  %v2937 = vpop.f32.mrf.mxu0
  %v2938 = vadd.f32 0.0, %v2937
  %2939 = vmatmul.f32.gmra.mxu0 %v2774
  %v2940 = vpop.f32.mrf.mxu0
  %v2941 = vadd.f32 0.0, %v2940
  %2942 = vmatmul.f32.gmra.mxu0 %v2775
  %v2943 = vpop.f32.mrf.mxu0
  %v2944 = vadd.f32 0.0, %v2943
  %2945 = vmatmul.f32.gmra.mxu0 %v2776
  %v2946 = vpop.f32.mrf.mxu0
  %v2947 = vadd.f32 0.0, %v2946
  %2948 = vmatmul.f32.gmra.mxu0 %v2777
  %v2949 = vpop.f32.mrf.mxu0
  %v2950 = vadd.f32 0.0, %v2949
  %2951 = vmatmul.f32.gmra.mxu0 %v2778
  %v2952 = vpop.f32.mrf.mxu0
  %v2953 = vadd.f32 0.0, %v2952
  %2954 = vmatmul.f32.gmra.mxu0 %v2779
  %v2955 = vpop.f32.mrf.mxu0
  %v2956 = vadd.f32 0.0, %v2955
  %2957 = vmatmul.f32.gmra.mxu0 %v2780
  %v2958 = vpop.f32.mrf.mxu0
  %v2959 = vadd.f32 0.0, %v2958
  %2960 = vmatmul.f32.gmra.mxu0 %v2781
  %v2961 = vpop.f32.mrf.mxu0
  %v2962 = vadd.f32 0.0, %v2961
  %2963 = vmatmul.f32.gmra.mxu0 %v2782
  %v2964 = vpop.f32.mrf.mxu0
  %v2965 = vadd.f32 0.0, %v2964
  %2966 = vmatmul.f32.gmra.mxu0 %v2783
  %v2967 = vpop.f32.mrf.mxu0
  %v2968 = vadd.f32 0.0, %v2967
  %2969 = vmatmul.f32.gmra.mxu0 %v2784
  %v2970 = vpop.f32.mrf.mxu0
  %v2971 = vadd.f32 0.0, %v2970
  %2972 = vmatmul.f32.gmra.mxu0 %v2785
  %v2973 = vpop.f32.mrf.mxu0
  %v2974 = vadd.f32 0.0, %v2973
  %2975 = vmatmul.f32.gmra.mxu0 %v2786
  %v2976 = vpop.f32.mrf.mxu0
  %v2977 = vadd.f32 0.0, %v2976
  %2978 = vmatmul.f32.gmra.mxu0 %v2787
  %v2979 = vpop.f32.mrf.mxu0
  %v2980 = vadd.f32 0.0, %v2979
  %2981 = vmatmul.f32.gmra.mxu0 %v2788
  %v2982 = vpop.f32.mrf.mxu0
  %v2983 = vadd.f32 0.0, %v2982
  %2984 = vmatmul.f32.gmra.mxu0 %v2789
  %v2985 = vpop.f32.mrf.mxu0
  %v2986 = vadd.f32 0.0, %v2985
  %2987 = vmatmul.f32.gmra.mxu0 %v2790
  %v2988 = vpop.f32.mrf.mxu0
  %v2989 = vadd.f32 0.0, %v2988
  %2990 = vmatmul.f32.gmra.mxu0 %v2791
  %v2991 = vpop.f32.mrf.mxu0
  %v2992 = vadd.f32 0.0, %v2991
  %2993 = vmatmul.f32.gmra.mxu0 %v2792
  %v2994 = vpop.f32.mrf.mxu0
  %v2995 = vadd.f32 0.0, %v2994
  %2996 = vmatmul.f32.gmra.mxu0 %v2793
  %v2997 = vpop.f32.mrf.mxu0
  %v2998 = vadd.f32 0.0, %v2997
  %2999 = vmatmul.f32.gmra.mxu0 %v2794
  %v3000 = vpop.f32.mrf.mxu0
  %v3001 = vadd.f32 0.0, %v3000
  %3002 = vmatmul.f32.gmra.mxu0 %v2795
  %v3003 = vpop.f32.mrf.mxu0
  %v3004 = vadd.f32 0.0, %v3003
  %3005 = vmatmul.f32.gmra.mxu0 %v2796
  %v3006 = vpop.f32.mrf.mxu0
  %v3007 = vadd.f32 0.0, %v3006
  %3008 = vmatmul.f32.gmra.mxu0 %v2797
  %v3009 = vpop.f32.mrf.mxu0
  %v3010 = vadd.f32 0.0, %v3009
  %3011 = vmatmul.f32.gmra.mxu0 %v2798
  %v3012 = vpop.f32.mrf.mxu0
  %v3013 = vadd.f32 0.0, %v3012
  %3014 = vmatmul.f32.gmra.mxu0 %v2799
  %v3015 = vpop.f32.mrf.mxu0
  %v3016 = vadd.f32 0.0, %v3015
  %3017 = vmatmul.f32.gmra.mxu0 %v2800
  %v3018 = vpop.f32.mrf.mxu0
  %v3019 = vadd.f32 0.0, %v3018
  %3020 = vmatmul.f32.gmra.mxu0 %v2801
  %v3021 = vpop.f32.mrf.mxu0
  %v3022 = vadd.f32 0.0, %v3021
  %3023 = vmatmul.f32.gmra.mxu0 %v2802
  %v3024 = vpop.f32.mrf.mxu0
  %v3025 = vadd.f32 0.0, %v3024
  %3026 = vmatmul.f32.gmra.mxu0 %v2803
  %v3027 = vpop.f32.mrf.mxu0
  %v3028 = vadd.f32 0.0, %v3027
  %3029 = vdwg.mxu0
  %v3030 = vadd.f32 %v2676, %v2839
  %v3031 = vadd.f32 %v2677, %v2842
  %v3032 = vadd.f32 %v2678, %v2845
  %v3033 = vadd.f32 %v2679, %v2848
  %v3034 = vadd.f32 %v2680, %v2851
  %v3035 = vadd.f32 %v2681, %v2854
  %v3036 = vadd.f32 %v2682, %v2857
  %v3037 = vadd.f32 %v2683, %v2860
  %v3038 = vadd.f32 %v2684, %v2863
  %v3039 = vadd.f32 %v2685, %v2866
  %v3040 = vadd.f32 %v2686, %v2869
  %v3041 = vadd.f32 %v2687, %v2872
  %v3042 = vadd.f32 %v2688, %v2875
  %v3043 = vadd.f32 %v2689, %v2878
  %v3044 = vadd.f32 %v2690, %v2881
  %v3045 = vadd.f32 %v2691, %v2884
  %v3046 = vadd.f32 %v2692, %v2887
  %v3047 = vadd.f32 %v2693, %v2890
  %v3048 = vadd.f32 %v2694, %v2893
  %v3049 = vadd.f32 %v2695, %v2896
  %v3050 = vadd.f32 %v2696, %v2899
  %v3051 = vadd.f32 %v2697, %v2902
  %v3052 = vadd.f32 %v2698, %v2905
  %v3053 = vadd.f32 %v2699, %v2908
  %v3054 = vadd.f32 %v2700, %v2911
  %v3055 = vadd.f32 %v2701, %v2914
  %v3056 = vadd.f32 %v2702, %v2917
  %v3057 = vadd.f32 %v2703, %v2920
  %v3058 = vadd.f32 %v2704, %v2923
  %v3059 = vadd.f32 %v2705, %v2926
  %v3060 = vadd.f32 %v2706, %v2929
  %v3061 = vadd.f32 %v2707, %v2932
  %v3062 = vadd.f32 %v2708, %v2935
  %v3063 = vadd.f32 %v2709, %v2938
  %v3064 = vadd.f32 %v2710, %v2941
  %v3065 = vadd.f32 %v2711, %v2944
  %v3066 = vadd.f32 %v2712, %v2947
  %v3067 = vadd.f32 %v2713, %v2950
  %v3068 = vadd.f32 %v2714, %v2953
  %v3069 = vadd.f32 %v2715, %v2956
  %v3070 = vadd.f32 %v2716, %v2959
  %v3071 = vadd.f32 %v2717, %v2962
  %v3072 = vadd.f32 %v2718, %v2965
  %v3073 = vadd.f32 %v2719, %v2968
  %v3074 = vadd.f32 %v2720, %v2971
  %v3075 = vadd.f32 %v2721, %v2974
  %v3076 = vadd.f32 %v2722, %v2977
  %v3077 = vadd.f32 %v2723, %v2980
  %v3078 = vadd.f32 %v2724, %v2983
  %v3079 = vadd.f32 %v2725, %v2986
  %v3080 = vadd.f32 %v2726, %v2989
  %v3081 = vadd.f32 %v2727, %v2992
  %v3082 = vadd.f32 %v2728, %v2995
  %v3083 = vadd.f32 %v2729, %v2998
  %v3084 = vadd.f32 %v2730, %v3001
  %v3085 = vadd.f32 %v2731, %v3004
  %v3086 = vadd.f32 %v2732, %v3007
  %v3087 = vadd.f32 %v2733, %v3010
  %v3088 = vadd.f32 %v2734, %v3013
  %v3089 = vadd.f32 %v2735, %v3016
  %v3090 = vadd.f32 %v2736, %v3019
  %v3091 = vadd.f32 %v2737, %v3022
  %v3092 = vadd.f32 %v2738, %v3025
  %v3093 = vadd.f32 %v2739, %v3028
  %v3094 = vld [vmem:[%s3] sm:$0x1]
  %v3095 = vld [vmem:[%s4] sm:$0x1]
  %v3096 = vadd.f32 %v3030, %v3031
  %v3097 = vadd.f32 %v3096, %v3032
  %v3098 = vadd.f32 %v3097, %v3033
  %v3099 = vadd.f32 %v3098, %v3034
  %v3100 = vadd.f32 %v3099, %v3035
  %v3101 = vadd.f32 %v3100, %v3036
  %v3102 = vadd.f32 %v3101, %v3037
  %v3103 = vadd.f32 %v3102, %v3038
  %v3104 = vadd.f32 %v3103, %v3039
  %v3105 = vadd.f32 %v3104, %v3040
  %v3106 = vadd.f32 %v3105, %v3041
  %v3107 = vadd.f32 %v3106, %v3042
  %v3108 = vadd.f32 %v3107, %v3043
  %v3109 = vadd.f32 %v3108, %v3044
  %v3110 = vadd.f32 %v3109, %v3045
  %v3111 = vadd.f32 %v3110, %v3046
  %v3112 = vadd.f32 %v3111, %v3047
  %v3113 = vadd.f32 %v3112, %v3048
  %v3114 = vadd.f32 %v3113, %v3049
  %v3115 = vadd.f32 %v3114, %v3050
  %v3116 = vadd.f32 %v3115, %v3051
  %v3117 = vadd.f32 %v3116, %v3052
  %v3118 = vadd.f32 %v3117, %v3053
  %v3119 = vadd.f32 %v3118, %v3054
  %v3120 = vadd.f32 %v3119, %v3055
  %v3121 = vadd.f32 %v3120, %v3056
  %v3122 = vadd.f32 %v3121, %v3057
  %v3123 = vadd.f32 %v3122, %v3058
  %v3124 = vadd.f32 %v3123, %v3059
  %v3125 = vadd.f32 %v3124, %v3060
  %v3126 = vadd.f32 %v3125, %v3061
  %v3127 = vadd.f32 %v3126, %v3062
  %v3128 = vadd.f32 %v3127, %v3063
  %v3129 = vadd.f32 %v3128, %v3064
  %v3130 = vadd.f32 %v3129, %v3065
  %v3131 = vadd.f32 %v3130, %v3066
  %v3132 = vadd.f32 %v3131, %v3067
  %v3133 = vadd.f32 %v3132, %v3068
  %v3134 = vadd.f32 %v3133, %v3069
  %v3135 = vadd.f32 %v3134, %v3070
  %v3136 = vadd.f32 %v3135, %v3071
  %v3137 = vadd.f32 %v3136, %v3072
  %v3138 = vadd.f32 %v3137, %v3073
  %v3139 = vadd.f32 %v3138, %v3074
  %v3140 = vadd.f32 %v3139, %v3075
  %v3141 = vadd.f32 %v3140, %v3076
  %v3142 = vadd.f32 %v3141, %v3077
  %v3143 = vadd.f32 %v3142, %v3078
  %v3144 = vadd.f32 %v3143, %v3079
  %v3145 = vadd.f32 %v3144, %v3080
  %v3146 = vadd.f32 %v3145, %v3081
  %v3147 = vadd.f32 %v3146, %v3082
  %v3148 = vadd.f32 %v3147, %v3083
  %v3149 = vadd.f32 %v3148, %v3084
  %v3150 = vadd.f32 %v3149, %v3085
  %v3151 = vadd.f32 %v3150, %v3086
  %v3152 = vadd.f32 %v3151, %v3087
  %v3153 = vadd.f32 %v3152, %v3088
  %v3154 = vadd.f32 %v3153, %v3089
  %v3155 = vadd.f32 %v3154, %v3090
  %v3156 = vadd.f32 %v3155, %v3091
  %v3157 = vadd.f32 %v3156, %v3092
  %v3158 = vadd.f32 %v3157, %v3093
  %v3159 = vrot.slane %v3158, 4
  %v3160 = vadd.f32 %v3158, %v3159
  %v3161 = vrot.slane %v3160, 2
  %v3162 = vadd.f32 %v3160, %v3161
  %v3163 = vrot.slane %v3162, 1
  %v3164 = vadd.f32 %v3162, %v3163
  %v3165 = vrcp.pop 512.0
  %v3166 = vmul.f32 512.0, %v3165
  %v3167 = vsub.f32 1.0, %v3166
  %v3168 = vmul.f32 %v3165, %v3167
  %v3169 = vadd.f32 %v3165, %v3168
  %vm3170 = vweird.f32 %v3165
  %v3171 = vsel %vm3170, %v3165, %v3169
  %v3172 = vmul.f32 %v3164, %v3171
  %v3173 = vsub.f32 %v3030, %v3172
  %v3174 = vsub.f32 %v3031, %v3172
  %v3175 = vsub.f32 %v3032, %v3172
  %v3176 = vsub.f32 %v3033, %v3172
  %v3177 = vsub.f32 %v3034, %v3172
  %v3178 = vsub.f32 %v3035, %v3172
  %v3179 = vsub.f32 %v3036, %v3172
  %v3180 = vsub.f32 %v3037, %v3172
  %v3181 = vsub.f32 %v3038, %v3172
  %v3182 = vsub.f32 %v3039, %v3172
  %v3183 = vsub.f32 %v3040, %v3172
  %v3184 = vsub.f32 %v3041, %v3172
  %v3185 = vsub.f32 %v3042, %v3172
  %v3186 = vsub.f32 %v3043, %v3172
  %v3187 = vsub.f32 %v3044, %v3172
  %v3188 = vsub.f32 %v3045, %v3172
  %v3189 = vsub.f32 %v3046, %v3172
  %v3190 = vsub.f32 %v3047, %v3172
  %v3191 = vsub.f32 %v3048, %v3172
  %v3192 = vsub.f32 %v3049, %v3172
  %v3193 = vsub.f32 %v3050, %v3172
  %v3194 = vsub.f32 %v3051, %v3172
  %v3195 = vsub.f32 %v3052, %v3172
  %v3196 = vsub.f32 %v3053, %v3172
  %v3197 = vsub.f32 %v3054, %v3172
  %v3198 = vsub.f32 %v3055, %v3172
  %v3199 = vsub.f32 %v3056, %v3172
  %v3200 = vsub.f32 %v3057, %v3172
  %v3201 = vsub.f32 %v3058, %v3172
  %v3202 = vsub.f32 %v3059, %v3172
  %v3203 = vsub.f32 %v3060, %v3172
  %v3204 = vsub.f32 %v3061, %v3172
  %v3205 = vsub.f32 %v3062, %v3172
  %v3206 = vsub.f32 %v3063, %v3172
  %v3207 = vsub.f32 %v3064, %v3172
  %v3208 = vsub.f32 %v3065, %v3172
  %v3209 = vsub.f32 %v3066, %v3172
  %v3210 = vsub.f32 %v3067, %v3172
  %v3211 = vsub.f32 %v3068, %v3172
  %v3212 = vsub.f32 %v3069, %v3172
  %v3213 = vsub.f32 %v3070, %v3172
  %v3214 = vsub.f32 %v3071, %v3172
  %v3215 = vsub.f32 %v3072, %v3172
  %v3216 = vsub.f32 %v3073, %v3172
  %v3217 = vsub.f32 %v3074, %v3172
  %v3218 = vsub.f32 %v3075, %v3172
  %v3219 = vsub.f32 %v3076, %v3172
  %v3220 = vsub.f32 %v3077, %v3172
  %v3221 = vsub.f32 %v3078, %v3172
  %v3222 = vsub.f32 %v3079, %v3172
  %v3223 = vsub.f32 %v3080, %v3172
  %v3224 = vsub.f32 %v3081, %v3172
  %v3225 = vsub.f32 %v3082, %v3172
  %v3226 = vsub.f32 %v3083, %v3172
  %v3227 = vsub.f32 %v3084, %v3172
  %v3228 = vsub.f32 %v3085, %v3172
  %v3229 = vsub.f32 %v3086, %v3172
  %v3230 = vsub.f32 %v3087, %v3172
  %v3231 = vsub.f32 %v3088, %v3172
  %v3232 = vsub.f32 %v3089, %v3172
  %v3233 = vsub.f32 %v3090, %v3172
  %v3234 = vsub.f32 %v3091, %v3172
  %v3235 = vsub.f32 %v3092, %v3172
  %v3236 = vsub.f32 %v3093, %v3172
  %v3237 = vmul.f32 %v3173, %v3173
  %v3238 = vmul.f32 %v3174, %v3174
  %v3239 = vmul.f32 %v3175, %v3175
  %v3240 = vmul.f32 %v3176, %v3176
  %v3241 = vmul.f32 %v3177, %v3177
  %v3242 = vmul.f32 %v3178, %v3178
  %v3243 = vmul.f32 %v3179, %v3179
  %v3244 = vmul.f32 %v3180, %v3180
  %v3245 = vmul.f32 %v3181, %v3181
  %v3246 = vmul.f32 %v3182, %v3182
  %v3247 = vmul.f32 %v3183, %v3183
  %v3248 = vmul.f32 %v3184, %v3184
  %v3249 = vmul.f32 %v3185, %v3185
  %v3250 = vmul.f32 %v3186, %v3186
  %v3251 = vmul.f32 %v3187, %v3187
  %v3252 = vmul.f32 %v3188, %v3188
  %v3253 = vmul.f32 %v3189, %v3189
  %v3254 = vmul.f32 %v3190, %v3190
  %v3255 = vmul.f32 %v3191, %v3191
  %v3256 = vmul.f32 %v3192, %v3192
  %v3257 = vmul.f32 %v3193, %v3193
  %v3258 = vmul.f32 %v3194, %v3194
  %v3259 = vmul.f32 %v3195, %v3195
  %v3260 = vmul.f32 %v3196, %v3196
  %v3261 = vmul.f32 %v3197, %v3197
  %v3262 = vmul.f32 %v3198, %v3198
  %v3263 = vmul.f32 %v3199, %v3199
  %v3264 = vmul.f32 %v3200, %v3200
  %v3265 = vmul.f32 %v3201, %v3201
  %v3266 = vmul.f32 %v3202, %v3202
  %v3267 = vmul.f32 %v3203, %v3203
  %v3268 = vmul.f32 %v3204, %v3204
  %v3269 = vmul.f32 %v3205, %v3205
  %v3270 = vmul.f32 %v3206, %v3206
  %v3271 = vmul.f32 %v3207, %v3207
  %v3272 = vmul.f32 %v3208, %v3208
  %v3273 = vmul.f32 %v3209, %v3209
  %v3274 = vmul.f32 %v3210, %v3210
  %v3275 = vmul.f32 %v3211, %v3211
  %v3276 = vmul.f32 %v3212, %v3212
  %v3277 = vmul.f32 %v3213, %v3213
  %v3278 = vmul.f32 %v3214, %v3214
  %v3279 = vmul.f32 %v3215, %v3215
  %v3280 = vmul.f32 %v3216, %v3216
  %v3281 = vmul.f32 %v3217, %v3217
  %v3282 = vmul.f32 %v3218, %v3218
  %v3283 = vmul.f32 %v3219, %v3219
  %v3284 = vmul.f32 %v3220, %v3220
  %v3285 = vmul.f32 %v3221, %v3221
  %v3286 = vmul.f32 %v3222, %v3222
  %v3287 = vmul.f32 %v3223, %v3223
  %v3288 = vmul.f32 %v3224, %v3224
  %v3289 = vmul.f32 %v3225, %v3225
  %v3290 = vmul.f32 %v3226, %v3226
  %v3291 = vmul.f32 %v3227, %v3227
  %v3292 = vmul.f32 %v3228, %v3228
  %v3293 = vmul.f32 %v3229, %v3229
  %v3294 = vmul.f32 %v3230, %v3230
  %v3295 = vmul.f32 %v3231, %v3231
  %v3296 = vmul.f32 %v3232, %v3232
  %v3297 = vmul.f32 %v3233, %v3233
  %v3298 = vmul.f32 %v3234, %v3234
  %v3299 = vmul.f32 %v3235, %v3235
  %v3300 = vmul.f32 %v3236, %v3236
  %v3301 = vadd.f32 %v3237, %v3238
  %v3302 = vadd.f32 %v3301, %v3239
  %v3303 = vadd.f32 %v3302, %v3240
  %v3304 = vadd.f32 %v3303, %v3241
  %v3305 = vadd.f32 %v3304, %v3242
  %v3306 = vadd.f32 %v3305, %v3243
  %v3307 = vadd.f32 %v3306, %v3244
  %v3308 = vadd.f32 %v3307, %v3245
  %v3309 = vadd.f32 %v3308, %v3246
  %v3310 = vadd.f32 %v3309, %v3247
  %v3311 = vadd.f32 %v3310, %v3248
  %v3312 = vadd.f32 %v3311, %v3249
  %v3313 = vadd.f32 %v3312, %v3250
  %v3314 = vadd.f32 %v3313, %v3251
  %v3315 = vadd.f32 %v3314, %v3252
  %v3316 = vadd.f32 %v3315, %v3253
  %v3317 = vadd.f32 %v3316, %v3254
  %v3318 = vadd.f32 %v3317, %v3255
  %v3319 = vadd.f32 %v3318, %v3256
  %v3320 = vadd.f32 %v3319, %v3257
  %v3321 = vadd.f32 %v3320, %v3258
  %v3322 = vadd.f32 %v3321, %v3259
  %v3323 = vadd.f32 %v3322, %v3260
  %v3324 = vadd.f32 %v3323, %v3261
  %v3325 = vadd.f32 %v3324, %v3262
  %v3326 = vadd.f32 %v3325, %v3263
  %v3327 = vadd.f32 %v3326, %v3264
  %v3328 = vadd.f32 %v3327, %v3265
  %v3329 = vadd.f32 %v3328, %v3266
  %v3330 = vadd.f32 %v3329, %v3267
  %v3331 = vadd.f32 %v3330, %v3268
  %v3332 = vadd.f32 %v3331, %v3269
  %v3333 = vadd.f32 %v3332, %v3270
  %v3334 = vadd.f32 %v3333, %v3271
  %v3335 = vadd.f32 %v3334, %v3272
  %v3336 = vadd.f32 %v3335, %v3273
  %v3337 = vadd.f32 %v3336, %v3274
  %v3338 = vadd.f32 %v3337, %v3275
  %v3339 = vadd.f32 %v3338, %v3276
  %v3340 = vadd.f32 %v3339, %v3277
  %v3341 = vadd.f32 %v3340, %v3278
  %v3342 = vadd.f32 %v3341, %v3279
  %v3343 = vadd.f32 %v3342, %v3280
  %v3344 = vadd.f32 %v3343, %v3281
  %v3345 = vadd.f32 %v3344, %v3282
  %v3346 = vadd.f32 %v3345, %v3283
  %v3347 = vadd.f32 %v3346, %v3284
  %v3348 = vadd.f32 %v3347, %v3285
  %v3349 = vadd.f32 %v3348, %v3286
  %v3350 = vadd.f32 %v3349, %v3287
  %v3351 = vadd.f32 %v3350, %v3288
  %v3352 = vadd.f32 %v3351, %v3289
  %v3353 = vadd.f32 %v3352, %v3290
  %v3354 = vadd.f32 %v3353, %v3291
  %v3355 = vadd.f32 %v3354, %v3292
  %v3356 = vadd.f32 %v3355, %v3293
  %v3357 = vadd.f32 %v3356, %v3294
  %v3358 = vadd.f32 %v3357, %v3295
  %v3359 = vadd.f32 %v3358, %v3296
  %v3360 = vadd.f32 %v3359, %v3297
  %v3361 = vadd.f32 %v3360, %v3298
  %v3362 = vadd.f32 %v3361, %v3299
  %v3363 = vadd.f32 %v3362, %v3300
  %v3364 = vrot.slane %v3363, 4
  %v3365 = vadd.f32 %v3363, %v3364
  %v3366 = vrot.slane %v3365, 2
  %v3367 = vadd.f32 %v3365, %v3366
  %v3368 = vrot.slane %v3367, 1
  %v3369 = vadd.f32 %v3367, %v3368
  %v3370 = vmul.f32 %v3369, %v3171
  %v3371 = vadd.f32 %v3370, 1e-05
  %v3372 = vrsqrt.pop %v3371
  %v3373 = vmul.f32 %v3372, %v3371
  %v3374 = vmul.f32 %v3373, %v3372
  %v3375 = vmul.f32 0.5, %v3374
  %v3376 = vsub.f32 1.5, %v3375
  %v3377 = vmul.f32 %v3372, %v3376
  %vm3378 = vweird.f32 %v3371
  %vm3379 = vweird.f32 %v3372
  %vm3380 = vmor %vm3378, %vm3379
  %v3381 = vsel %vm3380, %v3372, %v3377
  %v3382 = vmul.f32 %v3173, %v3381
  %v3383 = vmul.f32 %v3174, %v3381
  %v3384 = vmul.f32 %v3175, %v3381
  %v3385 = vmul.f32 %v3176, %v3381
  %v3386 = vmul.f32 %v3177, %v3381
  %v3387 = vmul.f32 %v3178, %v3381
  %v3388 = vmul.f32 %v3179, %v3381
  %v3389 = vmul.f32 %v3180, %v3381
  %v3390 = vmul.f32 %v3181, %v3381
  %v3391 = vmul.f32 %v3182, %v3381
  %v3392 = vmul.f32 %v3183, %v3381
  %v3393 = vmul.f32 %v3184, %v3381
  %v3394 = vmul.f32 %v3185, %v3381
  %v3395 = vmul.f32 %v3186, %v3381
  %v3396 = vmul.f32 %v3187, %v3381
  %v3397 = vmul.f32 %v3188, %v3381
  %v3398 = vmul.f32 %v3189, %v3381
  %v3399 = vmul.f32 %v3190, %v3381
  %v3400 = vmul.f32 %v3191, %v3381
  %v3401 = vmul.f32 %v3192, %v3381
  %v3402 = vmul.f32 %v3193, %v3381
  %v3403 = vmul.f32 %v3194, %v3381
  %v3404 = vmul.f32 %v3195, %v3381
  %v3405 = vmul.f32 %v3196, %v3381
  %v3406 = vmul.f32 %v3197, %v3381
  %v3407 = vmul.f32 %v3198, %v3381
  %v3408 = vmul.f32 %v3199, %v3381
  %v3409 = vmul.f32 %v3200, %v3381
  %v3410 = vmul.f32 %v3201, %v3381
  %v3411 = vmul.f32 %v3202, %v3381
  %v3412 = vmul.f32 %v3203, %v3381
  %v3413 = vmul.f32 %v3204, %v3381
  %v3414 = vmul.f32 %v3205, %v3381
  %v3415 = vmul.f32 %v3206, %v3381
  %v3416 = vmul.f32 %v3207, %v3381
  %v3417 = vmul.f32 %v3208, %v3381
  %v3418 = vmul.f32 %v3209, %v3381
  %v3419 = vmul.f32 %v3210, %v3381
  %v3420 = vmul.f32 %v3211, %v3381
  %v3421 = vmul.f32 %v3212, %v3381
  %v3422 = vmul.f32 %v3213, %v3381
  %v3423 = vmul.f32 %v3214, %v3381
  %v3424 = vmul.f32 %v3215, %v3381
  %v3425 = vmul.f32 %v3216, %v3381
  %v3426 = vmul.f32 %v3217, %v3381
  %v3427 = vmul.f32 %v3218, %v3381
  %v3428 = vmul.f32 %v3219, %v3381
  %v3429 = vmul.f32 %v3220, %v3381
  %v3430 = vmul.f32 %v3221, %v3381
  %v3431 = vmul.f32 %v3222, %v3381
  %v3432 = vmul.f32 %v3223, %v3381
  %v3433 = vmul.f32 %v3224, %v3381
  %v3434 = vmul.f32 %v3225, %v3381
  %v3435 = vmul.f32 %v3226, %v3381
  %v3436 = vmul.f32 %v3227, %v3381
  %v3437 = vmul.f32 %v3228, %v3381
  %v3438 = vmul.f32 %v3229, %v3381
  %v3439 = vmul.f32 %v3230, %v3381
  %v3440 = vmul.f32 %v3231, %v3381
  %v3441 = vmul.f32 %v3232, %v3381
  %v3442 = vmul.f32 %v3233, %v3381
  %v3443 = vmul.f32 %v3234, %v3381
  %v3444 = vmul.f32 %v3235, %v3381
  %v3445 = vmul.f32 %v3236, %v3381
  %v3447 = vperm.slane %v3094, 0
  %v3449 = vmul.f32 %v3382, %v3447
  %v3450 = vmul.f32 %v3383, %v3447
  %v3451 = vmul.f32 %v3384, %v3447
  %v3452 = vmul.f32 %v3385, %v3447
  %v3453 = vmul.f32 %v3386, %v3447
  %v3454 = vmul.f32 %v3387, %v3447
  %v3455 = vmul.f32 %v3388, %v3447
  %v3456 = vmul.f32 %v3389, %v3447
  %v3457 = vmul.f32 %v3390, %v3447
  %v3458 = vmul.f32 %v3391, %v3447
  %v3459 = vmul.f32 %v3392, %v3447
  %v3460 = vmul.f32 %v3393, %v3447
  %v3461 = vmul.f32 %v3394, %v3447
  %v3462 = vmul.f32 %v3395, %v3447
  %v3463 = vmul.f32 %v3396, %v3447
  %v3464 = vmul.f32 %v3397, %v3447
  %v3465 = vmul.f32 %v3398, %v3447
  %v3466 = vmul.f32 %v3399, %v3447
  %v3467 = vmul.f32 %v3400, %v3447
  %v3468 = vmul.f32 %v3401, %v3447
  %v3469 = vmul.f32 %v3402, %v3447
  %v3470 = vmul.f32 %v3403, %v3447
  %v3471 = vmul.f32 %v3404, %v3447
  %v3472 = vmul.f32 %v3405, %v3447
  %v3473 = vmul.f32 %v3406, %v3447
  %v3474 = vmul.f32 %v3407, %v3447
  %v3475 = vmul.f32 %v3408, %v3447
  %v3476 = vmul.f32 %v3409, %v3447
  %v3477 = vmul.f32 %v3410, %v3447
  %v3478 = vmul.f32 %v3411, %v3447
  %v3479 = vmul.f32 %v3412, %v3447
  %v3480 = vmul.f32 %v3413, %v3447
  %v3481 = vmul.f32 %v3414, %v3447
  %v3482 = vmul.f32 %v3415, %v3447
  %v3483 = vmul.f32 %v3416, %v3447
  %v3484 = vmul.f32 %v3417, %v3447
  %v3485 = vmul.f32 %v3418, %v3447
  %v3486 = vmul.f32 %v3419, %v3447
  %v3487 = vmul.f32 %v3420, %v3447
  %v3488 = vmul.f32 %v3421, %v3447
  %v3489 = vmul.f32 %v3422, %v3447
  %v3490 = vmul.f32 %v3423, %v3447
  %v3491 = vmul.f32 %v3424, %v3447
  %v3492 = vmul.f32 %v3425, %v3447
  %v3493 = vmul.f32 %v3426, %v3447
  %v3494 = vmul.f32 %v3427, %v3447
  %v3495 = vmul.f32 %v3428, %v3447
  %v3496 = vmul.f32 %v3429, %v3447
  %v3497 = vmul.f32 %v3430, %v3447
  %v3498 = vmul.f32 %v3431, %v3447
  %v3499 = vmul.f32 %v3432, %v3447
  %v3500 = vmul.f32 %v3433, %v3447
  %v3501 = vmul.f32 %v3434, %v3447
  %v3502 = vmul.f32 %v3435, %v3447
  %v3503 = vmul.f32 %v3436, %v3447
  %v3504 = vmul.f32 %v3437, %v3447
  %v3505 = vmul.f32 %v3438, %v3447
  %v3506 = vmul.f32 %v3439, %v3447
  %v3507 = vmul.f32 %v3440, %v3447
  %v3508 = vmul.f32 %v3441, %v3447
  %v3509 = vmul.f32 %v3442, %v3447
  %v3510 = vmul.f32 %v3443, %v3447
  %v3511 = vmul.f32 %v3444, %v3447
  %v3512 = vmul.f32 %v3445, %v3447
  %v3514 = vperm.slane %v3095, 0
  %v3516 = vadd.f32 %v3449, %v3514
  %v3517 = vadd.f32 %v3450, %v3514
  %v3518 = vadd.f32 %v3451, %v3514
  %v3519 = vadd.f32 %v3452, %v3514
  %v3520 = vadd.f32 %v3453, %v3514
  %v3521 = vadd.f32 %v3454, %v3514
  %v3522 = vadd.f32 %v3455, %v3514
  %v3523 = vadd.f32 %v3456, %v3514
  %v3524 = vadd.f32 %v3457, %v3514
  %v3525 = vadd.f32 %v3458, %v3514
  %v3526 = vadd.f32 %v3459, %v3514
  %v3527 = vadd.f32 %v3460, %v3514
  %v3528 = vadd.f32 %v3461, %v3514
  %v3529 = vadd.f32 %v3462, %v3514
  %v3530 = vadd.f32 %v3463, %v3514
  %v3531 = vadd.f32 %v3464, %v3514
  %v3532 = vadd.f32 %v3465, %v3514
  %v3533 = vadd.f32 %v3466, %v3514
  %v3534 = vadd.f32 %v3467, %v3514
  %v3535 = vadd.f32 %v3468, %v3514
  %v3536 = vadd.f32 %v3469, %v3514
  %v3537 = vadd.f32 %v3470, %v3514
  %v3538 = vadd.f32 %v3471, %v3514
  %v3539 = vadd.f32 %v3472, %v3514
  %v3540 = vadd.f32 %v3473, %v3514
  %v3541 = vadd.f32 %v3474, %v3514
  %v3542 = vadd.f32 %v3475, %v3514
  %v3543 = vadd.f32 %v3476, %v3514
  %v3544 = vadd.f32 %v3477, %v3514
  %v3545 = vadd.f32 %v3478, %v3514
  %v3546 = vadd.f32 %v3479, %v3514
  %v3547 = vadd.f32 %v3480, %v3514
  %v3548 = vadd.f32 %v3481, %v3514
  %v3549 = vadd.f32 %v3482, %v3514
  %v3550 = vadd.f32 %v3483, %v3514
  %v3551 = vadd.f32 %v3484, %v3514
  %v3552 = vadd.f32 %v3485, %v3514
  %v3553 = vadd.f32 %v3486, %v3514
  %v3554 = vadd.f32 %v3487, %v3514
  %v3555 = vadd.f32 %v3488, %v3514
  %v3556 = vadd.f32 %v3489, %v3514
  %v3557 = vadd.f32 %v3490, %v3514
  %v3558 = vadd.f32 %v3491, %v3514
  %v3559 = vadd.f32 %v3492, %v3514
  %v3560 = vadd.f32 %v3493, %v3514
  %v3561 = vadd.f32 %v3494, %v3514
  %v3562 = vadd.f32 %v3495, %v3514
  %v3563 = vadd.f32 %v3496, %v3514
  %v3564 = vadd.f32 %v3497, %v3514
  %v3565 = vadd.f32 %v3498, %v3514
  %v3566 = vadd.f32 %v3499, %v3514
  %v3567 = vadd.f32 %v3500, %v3514
  %v3568 = vadd.f32 %v3501, %v3514
  %v3569 = vadd.f32 %v3502, %v3514
  %v3570 = vadd.f32 %v3503, %v3514
  %v3571 = vadd.f32 %v3504, %v3514
  %v3572 = vadd.f32 %v3505, %v3514
  %v3573 = vadd.f32 %v3506, %v3514
  %v3574 = vadd.f32 %v3507, %v3514
  %v3575 = vadd.f32 %v3508, %v3514
  %v3576 = vadd.f32 %v3509, %v3514
  %v3577 = vadd.f32 %v3510, %v3514
  %v3578 = vadd.f32 %v3511, %v3514
  %v3579 = vadd.f32 %v3512, %v3514
  %v3580 = vmax.f32 %v3516, 0.0
  %v3581 = vmax.f32 %v3517, 0.0
  %v3582 = vmax.f32 %v3518, 0.0
  %v3583 = vmax.f32 %v3519, 0.0
  %v3584 = vmax.f32 %v3520, 0.0
  %v3585 = vmax.f32 %v3521, 0.0
  %v3586 = vmax.f32 %v3522, 0.0
  %v3587 = vmax.f32 %v3523, 0.0
  %v3588 = vmax.f32 %v3524, 0.0
  %v3589 = vmax.f32 %v3525, 0.0
  %v3590 = vmax.f32 %v3526, 0.0
  %v3591 = vmax.f32 %v3527, 0.0
  %v3592 = vmax.f32 %v3528, 0.0
  %v3593 = vmax.f32 %v3529, 0.0
  %v3594 = vmax.f32 %v3530, 0.0
  %v3595 = vmax.f32 %v3531, 0.0
  %v3596 = vmax.f32 %v3532, 0.0
  %v3597 = vmax.f32 %v3533, 0.0
  %v3598 = vmax.f32 %v3534, 0.0
  %v3599 = vmax.f32 %v3535, 0.0
  %v3600 = vmax.f32 %v3536, 0.0
  %v3601 = vmax.f32 %v3537, 0.0
  %v3602 = vmax.f32 %v3538, 0.0
  %v3603 = vmax.f32 %v3539, 0.0
  %v3604 = vmax.f32 %v3540, 0.0
  %v3605 = vmax.f32 %v3541, 0.0
  %v3606 = vmax.f32 %v3542, 0.0
  %v3607 = vmax.f32 %v3543, 0.0
  %v3608 = vmax.f32 %v3544, 0.0
  %v3609 = vmax.f32 %v3545, 0.0
  %v3610 = vmax.f32 %v3546, 0.0
  %v3611 = vmax.f32 %v3547, 0.0
  %v3612 = vmax.f32 %v3548, 0.0
  %v3613 = vmax.f32 %v3549, 0.0
  %v3614 = vmax.f32 %v3550, 0.0
  %v3615 = vmax.f32 %v3551, 0.0
  %v3616 = vmax.f32 %v3552, 0.0
  %v3617 = vmax.f32 %v3553, 0.0
  %v3618 = vmax.f32 %v3554, 0.0
  %v3619 = vmax.f32 %v3555, 0.0
  %v3620 = vmax.f32 %v3556, 0.0
  %v3621 = vmax.f32 %v3557, 0.0
  %v3622 = vmax.f32 %v3558, 0.0
  %v3623 = vmax.f32 %v3559, 0.0
  %v3624 = vmax.f32 %v3560, 0.0
  %v3625 = vmax.f32 %v3561, 0.0
  %v3626 = vmax.f32 %v3562, 0.0
  %v3627 = vmax.f32 %v3563, 0.0
  %v3628 = vmax.f32 %v3564, 0.0
  %v3629 = vmax.f32 %v3565, 0.0
  %v3630 = vmax.f32 %v3566, 0.0
  %v3631 = vmax.f32 %v3567, 0.0
  %v3632 = vmax.f32 %v3568, 0.0
  %v3633 = vmax.f32 %v3569, 0.0
  %v3634 = vmax.f32 %v3570, 0.0
  %v3635 = vmax.f32 %v3571, 0.0
  %v3636 = vmax.f32 %v3572, 0.0
  %v3637 = vmax.f32 %v3573, 0.0
  %v3638 = vmax.f32 %v3574, 0.0
  %v3639 = vmax.f32 %v3575, 0.0
  %v3640 = vmax.f32 %v3576, 0.0
  %v3641 = vmax.f32 %v3577, 0.0
  %v3642 = vmax.f32 %v3578, 0.0
  %v3643 = vmax.f32 %v3579, 0.0
  %3644 = vst [vmem:[#allocation2] sm:$0xff] 0.0
  %3645 = vst [vmem:[#allocation2 + $0x8] sm:$0xff] 0.0
  %3646 = vst [vmem:[#allocation2 + $0x10] sm:$0xff] 0.0
  %3647 = vst [vmem:[#allocation2 + $0x18] sm:$0xff] 0.0
  %3648 = vst [vmem:[#allocation2 + $0x240] sm:$0xff] 0.0
  %3649 = vst [vmem:[#allocation2 + $0x248] sm:$0xff] 0.0
  %3650 = vst [vmem:[#allocation2 + $0x250] sm:$0xff] 0.0
  %3651 = vst [vmem:[#allocation2 + $0x258] sm:$0xff] 0.0
  %s3652 = scalar_lea.vmem [#allocation2], 544
  %3653 = vst [vmem:[%s3652] sm:$0xff] 0.0
  %3654 = vst [vmem:[%s3652 + $0x8] sm:$0xff] 0.0
  %3655 = vst [vmem:[%s3652 + $0x10] sm:$0xff] 0.0
  %3656 = vst [vmem:[%s3652 + $0x18] sm:$0xff] 0.0
  %3657 = vst [vmem:[%s3652 + $0x240] sm:$0xff] 0.0
  %3658 = vst [vmem:[%s3652 + $0x248] sm:$0xff] 0.0
  %3659 = vst [vmem:[%s3652 + $0x250] sm:$0xff] 0.0
  %3660 = vst [vmem:[%s3652 + $0x258] sm:$0xff] 0.0
  %s3661 = scalar_lea.vmem [#allocation2], 32
  %3662 = vst [vmem:[%s3661] sm:$0xff] 0.0
  %3663 = vst [vmem:[%s3661 + $0x20] sm:$0xff] 0.0
  %3664 = vst [vmem:[%s3661 + $0x40] sm:$0xff] 0.0
  %3665 = vst [vmem:[%s3661 + $0x60] sm:$0xff] 0.0
  %3666 = vst [vmem:[%s3661 + $0x80] sm:$0xff] 0.0
  %3667 = vst [vmem:[%s3661 + $0xa0] sm:$0xff] 0.0
  %3668 = vst [vmem:[%s3661 + $0xc0] sm:$0xff] 0.0
  %3669 = vst [vmem:[%s3661 + $0xe0] sm:$0xff] 0.0
  %3670 = vst [vmem:[%s3661 + $0x100] sm:$0xff] 0.0
  %3671 = vst [vmem:[%s3661 + $0x120] sm:$0xff] 0.0
  %3672 = vst [vmem:[%s3661 + $0x140] sm:$0xff] 0.0
  %3673 = vst [vmem:[%s3661 + $0x160] sm:$0xff] 0.0
  %3674 = vst [vmem:[%s3661 + $0x180] sm:$0xff] 0.0
  %3675 = vst [vmem:[%s3661 + $0x1a0] sm:$0xff] 0.0
  %3676 = vst [vmem:[%s3661 + $0x1c0] sm:$0xff] 0.0
  %3677 = vst [vmem:[%s3661 + $0x1e0] sm:$0xff] 0.0
  %3678 = vst [vmem:[%s3661 + $0x240] sm:$0xff] 0.0
  %3679 = vst [vmem:[%s3661 + $0x260] sm:$0xff] 0.0
  %3680 = vst [vmem:[%s3661 + $0x280] sm:$0xff] 0.0
  %3681 = vst [vmem:[%s3661 + $0x2a0] sm:$0xff] 0.0
  %3682 = vst [vmem:[%s3661 + $0x2c0] sm:$0xff] 0.0
  %3683 = vst [vmem:[%s3661 + $0x2e0] sm:$0xff] 0.0
  %3684 = vst [vmem:[%s3661 + $0x300] sm:$0xff] 0.0
  %3685 = vst [vmem:[%s3661 + $0x320] sm:$0xff] 0.0
  %3686 = vst [vmem:[%s3661 + $0x340] sm:$0xff] 0.0
  %3687 = vst [vmem:[%s3661 + $0x360] sm:$0xff] 0.0
  %3688 = vst [vmem:[%s3661 + $0x380] sm:$0xff] 0.0
  %3689 = vst [vmem:[%s3661 + $0x3a0] sm:$0xff] 0.0
  %3690 = vst [vmem:[%s3661 + $0x3c0] sm:$0xff] 0.0
  %3691 = vst [vmem:[%s3661 + $0x3e0] sm:$0xff] 0.0
  %3692 = vst [vmem:[%s3661 + $0x400] sm:$0xff] 0.0
  %3693 = vst [vmem:[%s3661 + $0x420] sm:$0xff] 0.0
  %3694 = vst [vmem:[%s3661 + $0x18] sm:$0xff] 0.0
  %3695 = vst [vmem:[%s3661 + $0x38] sm:$0xff] 0.0
  %3696 = vst [vmem:[%s3661 + $0x58] sm:$0xff] 0.0
  %3697 = vst [vmem:[%s3661 + $0x78] sm:$0xff] 0.0
  %3698 = vst [vmem:[%s3661 + $0x98] sm:$0xff] 0.0
  %3699 = vst [vmem:[%s3661 + $0xb8] sm:$0xff] 0.0
  %3700 = vst [vmem:[%s3661 + $0xd8] sm:$0xff] 0.0
  %3701 = vst [vmem:[%s3661 + $0xf8] sm:$0xff] 0.0
  %3702 = vst [vmem:[%s3661 + $0x118] sm:$0xff] 0.0
  %3703 = vst [vmem:[%s3661 + $0x138] sm:$0xff] 0.0
  %3704 = vst [vmem:[%s3661 + $0x158] sm:$0xff] 0.0
  %3705 = vst [vmem:[%s3661 + $0x178] sm:$0xff] 0.0
  %3706 = vst [vmem:[%s3661 + $0x198] sm:$0xff] 0.0
  %3707 = vst [vmem:[%s3661 + $0x1b8] sm:$0xff] 0.0
  %3708 = vst [vmem:[%s3661 + $0x1d8] sm:$0xff] 0.0
  %3709 = vst [vmem:[%s3661 + $0x1f8] sm:$0xff] 0.0
  %3710 = vst [vmem:[%s3661 + $0x258] sm:$0xff] 0.0
  %3711 = vst [vmem:[%s3661 + $0x278] sm:$0xff] 0.0
  %3712 = vst [vmem:[%s3661 + $0x298] sm:$0xff] 0.0
  %3713 = vst [vmem:[%s3661 + $0x2b8] sm:$0xff] 0.0
  %3714 = vst [vmem:[%s3661 + $0x2d8] sm:$0xff] 0.0
  %3715 = vst [vmem:[%s3661 + $0x2f8] sm:$0xff] 0.0
  %3716 = vst [vmem:[%s3661 + $0x318] sm:$0xff] 0.0
  %3717 = vst [vmem:[%s3661 + $0x338] sm:$0xff] 0.0
  %3718 = vst [vmem:[%s3661 + $0x358] sm:$0xff] 0.0
  %3719 = vst [vmem:[%s3661 + $0x378] sm:$0xff] 0.0
  %3720 = vst [vmem:[%s3661 + $0x398] sm:$0xff] 0.0
  %3721 = vst [vmem:[%s3661 + $0x3b8] sm:$0xff] 0.0
  %3722 = vst [vmem:[%s3661 + $0x3d8] sm:$0xff] 0.0
  %3723 = vst [vmem:[%s3661 + $0x3f8] sm:$0xff] 0.0
  %3724 = vst [vmem:[%s3661 + $0x418] sm:$0xff] 0.0
  %3725 = vst [vmem:[%s3661 + $0x438] sm:$0xff] 0.0
  %3726 = vst [vmem:[%s3661 + $0x8] sm:$0xff] %v3580
  %3727 = vst [vmem:[%s3661 + $0x10] sm:$0xff] %v3581
  %3728 = vst [vmem:[%s3661 + $0x28] sm:$0xff] %v3582
  %3729 = vst [vmem:[%s3661 + $0x30] sm:$0xff] %v3583
  %3730 = vst [vmem:[%s3661 + $0x48] sm:$0xff] %v3584
  %3731 = vst [vmem:[%s3661 + $0x50] sm:$0xff] %v3585
  %3732 = vst [vmem:[%s3661 + $0x68] sm:$0xff] %v3586
  %3733 = vst [vmem:[%s3661 + $0x70] sm:$0xff] %v3587
  %3734 = vst [vmem:[%s3661 + $0x88] sm:$0xff] %v3588
  %3735 = vst [vmem:[%s3661 + $0x90] sm:$0xff] %v3589
  %3736 = vst [vmem:[%s3661 + $0xa8] sm:$0xff] %v3590
  %3737 = vst [vmem:[%s3661 + $0xb0] sm:$0xff] %v3591
  %3738 = vst [vmem:[%s3661 + $0xc8] sm:$0xff] %v3592
  %3739 = vst [vmem:[%s3661 + $0xd0] sm:$0xff] %v3593
  %3740 = vst [vmem:[%s3661 + $0xe8] sm:$0xff] %v3594
  %3741 = vst [vmem:[%s3661 + $0xf0] sm:$0xff] %v3595
  %3742 = vst [vmem:[%s3661 + $0x108] sm:$0xff] %v3596
  %3743 = vst [vmem:[%s3661 + $0x110] sm:$0xff] %v3597
  %3744 = vst [vmem:[%s3661 + $0x128] sm:$0xff] %v3598
  %3745 = vst [vmem:[%s3661 + $0x130] sm:$0xff] %v3599
  %3746 = vst [vmem:[%s3661 + $0x148] sm:$0xff] %v3600
  %3747 = vst [vmem:[%s3661 + $0x150] sm:$0xff] %v3601
  %3748 = vst [vmem:[%s3661 + $0x168] sm:$0xff] %v3602
  %3749 = vst [vmem:[%s3661 + $0x170] sm:$0xff] %v3603
  %3750 = vst [vmem:[%s3661 + $0x188] sm:$0xff] %v3604
  %3751 = vst [vmem:[%s3661 + $0x190] sm:$0xff] %v3605
  %3752 = vst [vmem:[%s3661 + $0x1a8] sm:$0xff] %v3606
  %3753 = vst [vmem:[%s3661 + $0x1b0] sm:$0xff] %v3607
  %3754 = vst [vmem:[%s3661 + $0x1c8] sm:$0xff] %v3608
  %3755 = vst [vmem:[%s3661 + $0x1d0] sm:$0xff] %v3609
  %3756 = vst [vmem:[%s3661 + $0x1e8] sm:$0xff] %v3610
  %3757 = vst [vmem:[%s3661 + $0x1f0] sm:$0xff] %v3611
  %3758 = vst [vmem:[%s3661 + $0x248] sm:$0xff] %v3612
  %3759 = vst [vmem:[%s3661 + $0x250] sm:$0xff] %v3613
  %3760 = vst [vmem:[%s3661 + $0x268] sm:$0xff] %v3614
  %3761 = vst [vmem:[%s3661 + $0x270] sm:$0xff] %v3615
  %3762 = vst [vmem:[%s3661 + $0x288] sm:$0xff] %v3616
  %3763 = vst [vmem:[%s3661 + $0x290] sm:$0xff] %v3617
  %3764 = vst [vmem:[%s3661 + $0x2a8] sm:$0xff] %v3618
  %3765 = vst [vmem:[%s3661 + $0x2b0] sm:$0xff] %v3619
  %3766 = vst [vmem:[%s3661 + $0x2c8] sm:$0xff] %v3620
  %3767 = vst [vmem:[%s3661 + $0x2d0] sm:$0xff] %v3621
  %3768 = vst [vmem:[%s3661 + $0x2e8] sm:$0xff] %v3622
  %3769 = vst [vmem:[%s3661 + $0x2f0] sm:$0xff] %v3623
  %3770 = vst [vmem:[%s3661 + $0x308] sm:$0xff] %v3624
  %3771 = vst [vmem:[%s3661 + $0x310] sm:$0xff] %v3625
  %3772 = vst [vmem:[%s3661 + $0x328] sm:$0xff] %v3626
  %3773 = vst [vmem:[%s3661 + $0x330] sm:$0xff] %v3627
  %3774 = vst [vmem:[%s3661 + $0x348] sm:$0xff] %v3628
  %3775 = vst [vmem:[%s3661 + $0x350] sm:$0xff] %v3629
  %3776 = vst [vmem:[%s3661 + $0x368] sm:$0xff] %v3630
  %3777 = vst [vmem:[%s3661 + $0x370] sm:$0xff] %v3631
  %3778 = vst [vmem:[%s3661 + $0x388] sm:$0xff] %v3632
  %3779 = vst [vmem:[%s3661 + $0x390] sm:$0xff] %v3633
  %3780 = vst [vmem:[%s3661 + $0x3a8] sm:$0xff] %v3634
  %3781 = vst [vmem:[%s3661 + $0x3b0] sm:$0xff] %v3635
  %3782 = vst [vmem:[%s3661 + $0x3c8] sm:$0xff] %v3636
  %3783 = vst [vmem:[%s3661 + $0x3d0] sm:$0xff] %v3637
  %3784 = vst [vmem:[%s3661 + $0x3e8] sm:$0xff] %v3638
  %3785 = vst [vmem:[%s3661 + $0x3f0] sm:$0xff] %v3639
  %3786 = vst [vmem:[%s3661 + $0x408] sm:$0xff] %v3640
  %3787 = vst [vmem:[%s3661 + $0x410] sm:$0xff] %v3641
  %3788 = vst [vmem:[%s3661 + $0x428] sm:$0xff] %v3642
  %3789 = vst [vmem:[%s3661 + $0x430] sm:$0xff] %v3643
  %v3790 = vld [vmem:[#allocation2 + $0x7] sm:$0xff]
  %v3791 = vld [vmem:[#allocation2 + $0xf] sm:$0xff]
  %v3792 = vld [vmem:[#allocation2 + $0x27] sm:$0xff]
  %v3793 = vld [vmem:[#allocation2 + $0x2f] sm:$0xff]
  %v3794 = vld [vmem:[#allocation2 + $0x47] sm:$0xff]
  %v3795 = vld [vmem:[#allocation2 + $0x4f] sm:$0xff]
  %v3796 = vld [vmem:[#allocation2 + $0x67] sm:$0xff]
  %v3797 = vld [vmem:[#allocation2 + $0x6f] sm:$0xff]
  %v3798 = vld [vmem:[#allocation2 + $0x87] sm:$0xff]
  %v3799 = vld [vmem:[#allocation2 + $0x8f] sm:$0xff]
  %v3800 = vld [vmem:[#allocation2 + $0xa7] sm:$0xff]
  %v3801 = vld [vmem:[#allocation2 + $0xaf] sm:$0xff]
  %v3802 = vld [vmem:[#allocation2 + $0xc7] sm:$0xff]
  %v3803 = vld [vmem:[#allocation2 + $0xcf] sm:$0xff]
  %v3804 = vld [vmem:[#allocation2 + $0xe7] sm:$0xff]
  %v3805 = vld [vmem:[#allocation2 + $0xef] sm:$0xff]
  %v3806 = vld [vmem:[#allocation2 + $0x107] sm:$0xff]
  %v3807 = vld [vmem:[#allocation2 + $0x10f] sm:$0xff]
  %v3808 = vld [vmem:[#allocation2 + $0x127] sm:$0xff]
  %v3809 = vld [vmem:[#allocation2 + $0x12f] sm:$0xff]
  %v3810 = vld [vmem:[#allocation2 + $0x147] sm:$0xff]
  %v3811 = vld [vmem:[#allocation2 + $0x14f] sm:$0xff]
  %v3812 = vld [vmem:[#allocation2 + $0x167] sm:$0xff]
  %v3813 = vld [vmem:[#allocation2 + $0x16f] sm:$0xff]
  %v3814 = vld [vmem:[#allocation2 + $0x187] sm:$0xff]
  %v3815 = vld [vmem:[#allocation2 + $0x18f] sm:$0xff]
  %v3816 = vld [vmem:[#allocation2 + $0x1a7] sm:$0xff]
  %v3817 = vld [vmem:[#allocation2 + $0x1af] sm:$0xff]
  %v3818 = vld [vmem:[#allocation2 + $0x1c7] sm:$0xff]
  %v3819 = vld [vmem:[#allocation2 + $0x1cf] sm:$0xff]
  %v3820 = vld [vmem:[#allocation2 + $0x1e7] sm:$0xff]
  %v3821 = vld [vmem:[#allocation2 + $0x1ef] sm:$0xff]
  %v3822 = vld [vmem:[#allocation2 + $0x247] sm:$0xff]
  %v3823 = vld [vmem:[#allocation2 + $0x24f] sm:$0xff]
  %v3824 = vld [vmem:[#allocation2 + $0x267] sm:$0xff]
  %v3825 = vld [vmem:[#allocation2 + $0x26f] sm:$0xff]
  %v3826 = vld [vmem:[#allocation2 + $0x287] sm:$0xff]
  %v3827 = vld [vmem:[#allocation2 + $0x28f] sm:$0xff]
  %v3828 = vld [vmem:[#allocation2 + $0x2a7] sm:$0xff]
  %v3829 = vld [vmem:[#allocation2 + $0x2af] sm:$0xff]
  %v3830 = vld [vmem:[#allocation2 + $0x2c7] sm:$0xff]
  %v3831 = vld [vmem:[#allocation2 + $0x2cf] sm:$0xff]
  %v3832 = vld [vmem:[#allocation2 + $0x2e7] sm:$0xff]
  %v3833 = vld [vmem:[#allocation2 + $0x2ef] sm:$0xff]
  %v3834 = vld [vmem:[#allocation2 + $0x307] sm:$0xff]
  %v3835 = vld [vmem:[#allocation2 + $0x30f] sm:$0xff]
  %v3836 = vld [vmem:[#allocation2 + $0x327] sm:$0xff]
  %v3837 = vld [vmem:[#allocation2 + $0x32f] sm:$0xff]
  %v3838 = vld [vmem:[#allocation2 + $0x347] sm:$0xff]
  %v3839 = vld [vmem:[#allocation2 + $0x34f] sm:$0xff]
  %v3840 = vld [vmem:[#allocation2 + $0x367] sm:$0xff]
  %v3841 = vld [vmem:[#allocation2 + $0x36f] sm:$0xff]
  %v3842 = vld [vmem:[#allocation2 + $0x387] sm:$0xff]
  %v3843 = vld [vmem:[#allocation2 + $0x38f] sm:$0xff]
  %v3844 = vld [vmem:[#allocation2 + $0x3a7] sm:$0xff]
  %v3845 = vld [vmem:[#allocation2 + $0x3af] sm:$0xff]
  %v3846 = vld [vmem:[#allocation2 + $0x3c7] sm:$0xff]
  %v3847 = vld [vmem:[#allocation2 + $0x3cf] sm:$0xff]
  %v3848 = vld [vmem:[#allocation2 + $0x3e7] sm:$0xff]
  %v3849 = vld [vmem:[#allocation2 + $0x3ef] sm:$0xff]
  %v3850 = vld [vmem:[#allocation2 + $0x407] sm:$0xff]
  %v3851 = vld [vmem:[#allocation2 + $0x40f] sm:$0xff]
  %v3852 = vld [vmem:[#allocation2 + $0x427] sm:$0xff]
  %v3853 = vld [vmem:[#allocation2 + $0x42f] sm:$0xff]
  %v3854 = vld [vmem:[%s5] sm:$0xff]
  %v3855 = vld [vmem:[%s5 + $0x8] sm:$0xff]
  %v3856 = vld [vmem:[%s5 + $0x10] sm:$0xff]
  %v3857 = vld [vmem:[%s5 + $0x18] sm:$0xff]
  %v3858 = vld [vmem:[%s5 + $0x20] sm:$0xff]
  %v3859 = vld [vmem:[%s5 + $0x28] sm:$0xff]
  %v3860 = vld [vmem:[%s5 + $0x30] sm:$0xff]
  %v3861 = vld [vmem:[%s5 + $0x38] sm:$0xff]
  %v3862 = vld [vmem:[%s5 + $0x40] sm:$0xff]
  %v3863 = vld [vmem:[%s5 + $0x48] sm:$0xff]
  %v3864 = vld [vmem:[%s5 + $0x50] sm:$0xff]
  %v3865 = vld [vmem:[%s5 + $0x58] sm:$0xff]
  %v3866 = vld [vmem:[%s5 + $0x60] sm:$0xff]
  %v3867 = vld [vmem:[%s5 + $0x68] sm:$0xff]
  %v3868 = vld [vmem:[%s5 + $0x70] sm:$0xff]
  %v3869 = vld [vmem:[%s5 + $0x78] sm:$0xff]
  %v3870 = vld [vmem:[#allocation2 + $0x8] sm:$0xff]
  %v3871 = vld [vmem:[#allocation2 + $0x10] sm:$0xff]
  %v3872 = vld [vmem:[#allocation2 + $0x28] sm:$0xff]
  %v3873 = vld [vmem:[#allocation2 + $0x30] sm:$0xff]
  %v3874 = vld [vmem:[#allocation2 + $0x48] sm:$0xff]
  %v3875 = vld [vmem:[#allocation2 + $0x50] sm:$0xff]
  %v3876 = vld [vmem:[#allocation2 + $0x68] sm:$0xff]
  %v3877 = vld [vmem:[#allocation2 + $0x70] sm:$0xff]
  %v3878 = vld [vmem:[#allocation2 + $0x88] sm:$0xff]
  %v3879 = vld [vmem:[#allocation2 + $0x90] sm:$0xff]
  %v3880 = vld [vmem:[#allocation2 + $0xa8] sm:$0xff]
  %v3881 = vld [vmem:[#allocation2 + $0xb0] sm:$0xff]
  %v3882 = vld [vmem:[#allocation2 + $0xc8] sm:$0xff]
  %v3883 = vld [vmem:[#allocation2 + $0xd0] sm:$0xff]
  %v3884 = vld [vmem:[#allocation2 + $0xe8] sm:$0xff]
  %v3885 = vld [vmem:[#allocation2 + $0xf0] sm:$0xff]
  %v3886 = vld [vmem:[#allocation2 + $0x108] sm:$0xff]
  %v3887 = vld [vmem:[#allocation2 + $0x110] sm:$0xff]
  %v3888 = vld [vmem:[#allocation2 + $0x128] sm:$0xff]
  %v3889 = vld [vmem:[#allocation2 + $0x130] sm:$0xff]
  %v3890 = vld [vmem:[#allocation2 + $0x148] sm:$0xff]
  %v3891 = vld [vmem:[#allocation2 + $0x150] sm:$0xff]
  %v3892 = vld [vmem:[#allocation2 + $0x168] sm:$0xff]
  %v3893 = vld [vmem:[#allocation2 + $0x170] sm:$0xff]
  %v3894 = vld [vmem:[#allocation2 + $0x188] sm:$0xff]
  %v3895 = vld [vmem:[#allocation2 + $0x190] sm:$0xff]
  %v3896 = vld [vmem:[#allocation2 + $0x1a8] sm:$0xff]
  %v3897 = vld [vmem:[#allocation2 + $0x1b0] sm:$0xff]
  %v3898 = vld [vmem:[#allocation2 + $0x1c8] sm:$0xff]
  %v3899 = vld [vmem:[#allocation2 + $0x1d0] sm:$0xff]
  %v3900 = vld [vmem:[#allocation2 + $0x1e8] sm:$0xff]
  %v3901 = vld [vmem:[#allocation2 + $0x1f0] sm:$0xff]
  %v3902 = vld [vmem:[#allocation2 + $0x248] sm:$0xff]
  %v3903 = vld [vmem:[#allocation2 + $0x250] sm:$0xff]
  %v3904 = vld [vmem:[#allocation2 + $0x268] sm:$0xff]
  %v3905 = vld [vmem:[#allocation2 + $0x270] sm:$0xff]
  %v3906 = vld [vmem:[#allocation2 + $0x288] sm:$0xff]
  %v3907 = vld [vmem:[#allocation2 + $0x290] sm:$0xff]
  %v3908 = vld [vmem:[#allocation2 + $0x2a8] sm:$0xff]
  %v3909 = vld [vmem:[#allocation2 + $0x2b0] sm:$0xff]
  %v3910 = vld [vmem:[#allocation2 + $0x2c8] sm:$0xff]
  %v3911 = vld [vmem:[#allocation2 + $0x2d0] sm:$0xff]
  %v3912 = vld [vmem:[#allocation2 + $0x2e8] sm:$0xff]
  %v3913 = vld [vmem:[#allocation2 + $0x2f0] sm:$0xff]
  %v3914 = vld [vmem:[#allocation2 + $0x308] sm:$0xff]
  %v3915 = vld [vmem:[#allocation2 + $0x310] sm:$0xff]
  %v3916 = vld [vmem:[#allocation2 + $0x328] sm:$0xff]
  %v3917 = vld [vmem:[#allocation2 + $0x330] sm:$0xff]
  %v3918 = vld [vmem:[#allocation2 + $0x348] sm:$0xff]
  %v3919 = vld [vmem:[#allocation2 + $0x350] sm:$0xff]
  %v3920 = vld [vmem:[#allocation2 + $0x368] sm:$0xff]
  %v3921 = vld [vmem:[#allocation2 + $0x370] sm:$0xff]
  %v3922 = vld [vmem:[#allocation2 + $0x388] sm:$0xff]
  %v3923 = vld [vmem:[#allocation2 + $0x390] sm:$0xff]
  %v3924 = vld [vmem:[#allocation2 + $0x3a8] sm:$0xff]
  %v3925 = vld [vmem:[#allocation2 + $0x3b0] sm:$0xff]
  %v3926 = vld [vmem:[#allocation2 + $0x3c8] sm:$0xff]
  %v3927 = vld [vmem:[#allocation2 + $0x3d0] sm:$0xff]
  %v3928 = vld [vmem:[#allocation2 + $0x3e8] sm:$0xff]
  %v3929 = vld [vmem:[#allocation2 + $0x3f0] sm:$0xff]
  %v3930 = vld [vmem:[#allocation2 + $0x408] sm:$0xff]
  %v3931 = vld [vmem:[#allocation2 + $0x410] sm:$0xff]
  %v3932 = vld [vmem:[#allocation2 + $0x428] sm:$0xff]
  %v3933 = vld [vmem:[#allocation2 + $0x430] sm:$0xff]
  %s3934 = scalar_lea.vmem %s5, 128
  %v3935 = vld [vmem:[%s3934] sm:$0xff]
  %v3936 = vld [vmem:[%s3934 + $0x8] sm:$0xff]
  %v3937 = vld [vmem:[%s3934 + $0x10] sm:$0xff]
  %v3938 = vld [vmem:[%s3934 + $0x18] sm:$0xff]
  %v3939 = vld [vmem:[%s3934 + $0x20] sm:$0xff]
  %v3940 = vld [vmem:[%s3934 + $0x28] sm:$0xff]
  %v3941 = vld [vmem:[%s3934 + $0x30] sm:$0xff]
  %v3942 = vld [vmem:[%s3934 + $0x38] sm:$0xff]
  %v3943 = vld [vmem:[%s3934 + $0x40] sm:$0xff]
  %v3944 = vld [vmem:[%s3934 + $0x48] sm:$0xff]
  %v3945 = vld [vmem:[%s3934 + $0x50] sm:$0xff]
  %v3946 = vld [vmem:[%s3934 + $0x58] sm:$0xff]
  %v3947 = vld [vmem:[%s3934 + $0x60] sm:$0xff]
  %v3948 = vld [vmem:[%s3934 + $0x68] sm:$0xff]
  %v3949 = vld [vmem:[%s3934 + $0x70] sm:$0xff]
  %v3950 = vld [vmem:[%s3934 + $0x78] sm:$0xff]
  %3951 = vmatpush.msra.mxu0 %v3950
  %3952 = vmatpush.msra.mxu0 %v3949
  %3953 = vmatpush.msra.mxu0 %v3948
  %3954 = vmatpush.msra.mxu0 %v3947
  %3955 = vmatpush.msra.mxu0 %v3946
  %3956 = vmatpush.msra.mxu0 %v3945
  %3957 = vmatpush.msra.mxu0 %v3944
  %3958 = vmatpush.msra.mxu0 %v3943
  %3959 = vmatpush.msra.mxu0 %v3942
  %3960 = vmatpush.msra.mxu0 %v3941
  %3961 = vmatpush.msra.mxu0 %v3940
  %3962 = vmatpush.msra.mxu0 %v3939
  %3963 = vmatpush.msra.mxu0 %v3938
  %3964 = vmatpush.msra.mxu0 %v3937
  %3965 = vmatpush.msra.mxu0 %v3936
  %3966 = vmatpush.msra.mxu0 %v3935
  %3967 = vmatmul.f32.gmra.mxu0 %v3870
  %v3968 = vpop.f32.mrf.mxu0
  %v3969 = vadd.f32 0.0, %v3968
  %3970 = vmatmul.f32.gmra.mxu0 %v3871
  %v3971 = vpop.f32.mrf.mxu0
  %v3972 = vadd.f32 0.0, %v3971
  %3973 = vmatmul.f32.gmra.mxu0 %v3872
  %v3974 = vpop.f32.mrf.mxu0
  %v3975 = vadd.f32 0.0, %v3974
  %3976 = vmatmul.f32.gmra.mxu0 %v3873
  %v3977 = vpop.f32.mrf.mxu0
  %v3978 = vadd.f32 0.0, %v3977
  %3979 = vmatmul.f32.gmra.mxu0 %v3874
  %v3980 = vpop.f32.mrf.mxu0
  %v3981 = vadd.f32 0.0, %v3980
  %3982 = vmatmul.f32.gmra.mxu0 %v3875
  %v3983 = vpop.f32.mrf.mxu0
  %v3984 = vadd.f32 0.0, %v3983
  %3985 = vmatmul.f32.gmra.mxu0 %v3876
  %v3986 = vpop.f32.mrf.mxu0
  %v3987 = vadd.f32 0.0, %v3986
  %3988 = vmatmul.f32.gmra.mxu0 %v3877
  %v3989 = vpop.f32.mrf.mxu0
  %v3990 = vadd.f32 0.0, %v3989
  %3991 = vmatmul.f32.gmra.mxu0 %v3878
  %v3992 = vpop.f32.mrf.mxu0
  %v3993 = vadd.f32 0.0, %v3992
  %3994 = vmatmul.f32.gmra.mxu0 %v3879
  %v3995 = vpop.f32.mrf.mxu0
  %v3996 = vadd.f32 0.0, %v3995
  %3997 = vmatmul.f32.gmra.mxu0 %v3880
  %v3998 = vpop.f32.mrf.mxu0
  %v3999 = vadd.f32 0.0, %v3998
  %4000 = vmatmul.f32.gmra.mxu0 %v3881
  %v4001 = vpop.f32.mrf.mxu0
  %v4002 = vadd.f32 0.0, %v4001
  %4003 = vmatmul.f32.gmra.mxu0 %v3882
  %v4004 = vpop.f32.mrf.mxu0
  %v4005 = vadd.f32 0.0, %v4004
  %4006 = vmatmul.f32.gmra.mxu0 %v3883
  %v4007 = vpop.f32.mrf.mxu0
  %v4008 = vadd.f32 0.0, %v4007
  %4009 = vmatmul.f32.gmra.mxu0 %v3884
  %v4010 = vpop.f32.mrf.mxu0
  %v4011 = vadd.f32 0.0, %v4010
  %4012 = vmatmul.f32.gmra.mxu0 %v3885
  %v4013 = vpop.f32.mrf.mxu0
  %v4014 = vadd.f32 0.0, %v4013
  %4015 = vmatmul.f32.gmra.mxu0 %v3886
  %v4016 = vpop.f32.mrf.mxu0
  %v4017 = vadd.f32 0.0, %v4016
  %4018 = vmatmul.f32.gmra.mxu0 %v3887
  %v4019 = vpop.f32.mrf.mxu0
  %v4020 = vadd.f32 0.0, %v4019
  %4021 = vmatmul.f32.gmra.mxu0 %v3888
  %v4022 = vpop.f32.mrf.mxu0
  %v4023 = vadd.f32 0.0, %v4022
  %4024 = vmatmul.f32.gmra.mxu0 %v3889
  %v4025 = vpop.f32.mrf.mxu0
  %v4026 = vadd.f32 0.0, %v4025
  %4027 = vmatmul.f32.gmra.mxu0 %v3890
  %v4028 = vpop.f32.mrf.mxu0
  %v4029 = vadd.f32 0.0, %v4028
  %4030 = vmatmul.f32.gmra.mxu0 %v3891
  %v4031 = vpop.f32.mrf.mxu0
  %v4032 = vadd.f32 0.0, %v4031
  %4033 = vmatmul.f32.gmra.mxu0 %v3892
  %v4034 = vpop.f32.mrf.mxu0
  %v4035 = vadd.f32 0.0, %v4034
  %4036 = vmatmul.f32.gmra.mxu0 %v3893
  %v4037 = vpop.f32.mrf.mxu0
  %v4038 = vadd.f32 0.0, %v4037
  %4039 = vmatmul.f32.gmra.mxu0 %v3894
  %v4040 = vpop.f32.mrf.mxu0
  %v4041 = vadd.f32 0.0, %v4040
  %4042 = vmatmul.f32.gmra.mxu0 %v3895
  %v4043 = vpop.f32.mrf.mxu0
  %v4044 = vadd.f32 0.0, %v4043
  %4045 = vmatmul.f32.gmra.mxu0 %v3896
  %v4046 = vpop.f32.mrf.mxu0
  %v4047 = vadd.f32 0.0, %v4046
  %4048 = vmatmul.f32.gmra.mxu0 %v3897
  %v4049 = vpop.f32.mrf.mxu0
  %v4050 = vadd.f32 0.0, %v4049
  %4051 = vmatmul.f32.gmra.mxu0 %v3898
  %v4052 = vpop.f32.mrf.mxu0
  %v4053 = vadd.f32 0.0, %v4052
  %4054 = vmatmul.f32.gmra.mxu0 %v3899
  %v4055 = vpop.f32.mrf.mxu0
  %v4056 = vadd.f32 0.0, %v4055
  %4057 = vmatmul.f32.gmra.mxu0 %v3900
  %v4058 = vpop.f32.mrf.mxu0
  %v4059 = vadd.f32 0.0, %v4058
  %4060 = vmatmul.f32.gmra.mxu0 %v3901
  %v4061 = vpop.f32.mrf.mxu0
  %v4062 = vadd.f32 0.0, %v4061
  %4063 = vmatmul.f32.gmra.mxu0 %v3902
  %v4064 = vpop.f32.mrf.mxu0
  %v4065 = vadd.f32 0.0, %v4064
  %4066 = vmatmul.f32.gmra.mxu0 %v3903
  %v4067 = vpop.f32.mrf.mxu0
  %v4068 = vadd.f32 0.0, %v4067
  %4069 = vmatmul.f32.gmra.mxu0 %v3904
  %v4070 = vpop.f32.mrf.mxu0
  %v4071 = vadd.f32 0.0, %v4070
  %4072 = vmatmul.f32.gmra.mxu0 %v3905
  %v4073 = vpop.f32.mrf.mxu0
  %v4074 = vadd.f32 0.0, %v4073
  %4075 = vmatmul.f32.gmra.mxu0 %v3906
  %v4076 = vpop.f32.mrf.mxu0
  %v4077 = vadd.f32 0.0, %v4076
  %4078 = vmatmul.f32.gmra.mxu0 %v3907
  %v4079 = vpop.f32.mrf.mxu0
  %v4080 = vadd.f32 0.0, %v4079
  %4081 = vmatmul.f32.gmra.mxu0 %v3908
  %v4082 = vpop.f32.mrf.mxu0
  %v4083 = vadd.f32 0.0, %v4082
  %4084 = vmatmul.f32.gmra.mxu0 %v3909
  %v4085 = vpop.f32.mrf.mxu0
  %v4086 = vadd.f32 0.0, %v4085
  %4087 = vmatmul.f32.gmra.mxu0 %v3910
  %v4088 = vpop.f32.mrf.mxu0
  %v4089 = vadd.f32 0.0, %v4088
  %4090 = vmatmul.f32.gmra.mxu0 %v3911
  %v4091 = vpop.f32.mrf.mxu0
  %v4092 = vadd.f32 0.0, %v4091
  %4093 = vmatmul.f32.gmra.mxu0 %v3912
  %v4094 = vpop.f32.mrf.mxu0
  %v4095 = vadd.f32 0.0, %v4094
  %4096 = vmatmul.f32.gmra.mxu0 %v3913
  %v4097 = vpop.f32.mrf.mxu0
  %v4098 = vadd.f32 0.0, %v4097
  %4099 = vmatmul.f32.gmra.mxu0 %v3914
  %v4100 = vpop.f32.mrf.mxu0
  %v4101 = vadd.f32 0.0, %v4100
  %4102 = vmatmul.f32.gmra.mxu0 %v3915
  %v4103 = vpop.f32.mrf.mxu0
  %v4104 = vadd.f32 0.0, %v4103
  %4105 = vmatmul.f32.gmra.mxu0 %v3916
  %v4106 = vpop.f32.mrf.mxu0
  %v4107 = vadd.f32 0.0, %v4106
  %4108 = vmatmul.f32.gmra.mxu0 %v3917
  %v4109 = vpop.f32.mrf.mxu0
  %v4110 = vadd.f32 0.0, %v4109
  %4111 = vmatmul.f32.gmra.mxu0 %v3918
  %v4112 = vpop.f32.mrf.mxu0
  %v4113 = vadd.f32 0.0, %v4112
  %4114 = vmatmul.f32.gmra.mxu0 %v3919
  %v4115 = vpop.f32.mrf.mxu0
  %v4116 = vadd.f32 0.0, %v4115
  %4117 = vmatmul.f32.gmra.mxu0 %v3920
  %v4118 = vpop.f32.mrf.mxu0
  %v4119 = vadd.f32 0.0, %v4118
  %4120 = vmatmul.f32.gmra.mxu0 %v3921
  %v4121 = vpop.f32.mrf.mxu0
  %v4122 = vadd.f32 0.0, %v4121
  %4123 = vmatmul.f32.gmra.mxu0 %v3922
  %v4124 = vpop.f32.mrf.mxu0
  %v4125 = vadd.f32 0.0, %v4124
  %4126 = vmatmul.f32.gmra.mxu0 %v3923
  %v4127 = vpop.f32.mrf.mxu0
  %v4128 = vadd.f32 0.0, %v4127
  %4129 = vmatmul.f32.gmra.mxu0 %v3924
  %v4130 = vpop.f32.mrf.mxu0
  %v4131 = vadd.f32 0.0, %v4130
  %4132 = vmatmul.f32.gmra.mxu0 %v3925
  %v4133 = vpop.f32.mrf.mxu0
  %v4134 = vadd.f32 0.0, %v4133
  %4135 = vmatmul.f32.gmra.mxu0 %v3926
  %v4136 = vpop.f32.mrf.mxu0
  %v4137 = vadd.f32 0.0, %v4136
  %4138 = vmatmul.f32.gmra.mxu0 %v3927
  %v4139 = vpop.f32.mrf.mxu0
  %v4140 = vadd.f32 0.0, %v4139
  %4141 = vmatmul.f32.gmra.mxu0 %v3928
  %v4142 = vpop.f32.mrf.mxu0
  %v4143 = vadd.f32 0.0, %v4142
  %4144 = vmatmul.f32.gmra.mxu0 %v3929
  %v4145 = vpop.f32.mrf.mxu0
  %v4146 = vadd.f32 0.0, %v4145
  %4147 = vmatmul.f32.gmra.mxu0 %v3930
  %v4148 = vpop.f32.mrf.mxu0
  %v4149 = vadd.f32 0.0, %v4148
  %4150 = vmatmul.f32.gmra.mxu0 %v3931
  %v4151 = vpop.f32.mrf.mxu0
  %v4152 = vadd.f32 0.0, %v4151
  %4153 = vmatmul.f32.gmra.mxu0 %v3932
  %v4154 = vpop.f32.mrf.mxu0
  %v4155 = vadd.f32 0.0, %v4154
  %4156 = vmatmul.f32.gmra.mxu0 %v3933
  %v4157 = vpop.f32.mrf.mxu0
  %v4158 = vadd.f32 0.0, %v4157
  %4159 = vdwg.mxu0
  %4160 = vmatpush.msra.mxu0 %v3869
  %4161 = vmatpush.msra.mxu0 %v3868
  %4162 = vmatpush.msra.mxu0 %v3867
  %4163 = vmatpush.msra.mxu0 %v3866
  %4164 = vmatpush.msra.mxu0 %v3865
  %4165 = vmatpush.msra.mxu0 %v3864
  %4166 = vmatpush.msra.mxu0 %v3863
  %4167 = vmatpush.msra.mxu0 %v3862
  %4168 = vmatpush.msra.mxu0 %v3861
  %4169 = vmatpush.msra.mxu0 %v3860
  %4170 = vmatpush.msra.mxu0 %v3859
  %4171 = vmatpush.msra.mxu0 %v3858
  %4172 = vmatpush.msra.mxu0 %v3857
  %4173 = vmatpush.msra.mxu0 %v3856
  %4174 = vmatpush.msra.mxu0 %v3855
  %4175 = vmatpush.msra.mxu0 %v3854
  %4176 = vmatmul.f32.gmra.mxu0 %v3790
  %v4177 = vpop.f32.mrf.mxu0
  %v4178 = vadd.f32 %v3969, %v4177
  %4179 = vmatmul.f32.gmra.mxu0 %v3791
  %v4180 = vpop.f32.mrf.mxu0
  %v4181 = vadd.f32 %v3972, %v4180
  %4182 = vmatmul.f32.gmra.mxu0 %v3792
  %v4183 = vpop.f32.mrf.mxu0
  %v4184 = vadd.f32 %v3975, %v4183
  %4185 = vmatmul.f32.gmra.mxu0 %v3793
  %v4186 = vpop.f32.mrf.mxu0
  %v4187 = vadd.f32 %v3978, %v4186
  %4188 = vmatmul.f32.gmra.mxu0 %v3794
  %v4189 = vpop.f32.mrf.mxu0
  %v4190 = vadd.f32 %v3981, %v4189
  %4191 = vmatmul.f32.gmra.mxu0 %v3795
  %v4192 = vpop.f32.mrf.mxu0
  %v4193 = vadd.f32 %v3984, %v4192
  %4194 = vmatmul.f32.gmra.mxu0 %v3796
  %v4195 = vpop.f32.mrf.mxu0
  %v4196 = vadd.f32 %v3987, %v4195
  %4197 = vmatmul.f32.gmra.mxu0 %v3797
  %v4198 = vpop.f32.mrf.mxu0
  %v4199 = vadd.f32 %v3990, %v4198
  %4200 = vmatmul.f32.gmra.mxu0 %v3798
  %v4201 = vpop.f32.mrf.mxu0
  %v4202 = vadd.f32 %v3993, %v4201
  %4203 = vmatmul.f32.gmra.mxu0 %v3799
  %v4204 = vpop.f32.mrf.mxu0
  %v4205 = vadd.f32 %v3996, %v4204
  %4206 = vmatmul.f32.gmra.mxu0 %v3800
  %v4207 = vpop.f32.mrf.mxu0
  %v4208 = vadd.f32 %v3999, %v4207
  %4209 = vmatmul.f32.gmra.mxu0 %v3801
  %v4210 = vpop.f32.mrf.mxu0
  %v4211 = vadd.f32 %v4002, %v4210
  %4212 = vmatmul.f32.gmra.mxu0 %v3802
  %v4213 = vpop.f32.mrf.mxu0
  %v4214 = vadd.f32 %v4005, %v4213
  %4215 = vmatmul.f32.gmra.mxu0 %v3803
  %v4216 = vpop.f32.mrf.mxu0
  %v4217 = vadd.f32 %v4008, %v4216
  %4218 = vmatmul.f32.gmra.mxu0 %v3804
  %v4219 = vpop.f32.mrf.mxu0
  %v4220 = vadd.f32 %v4011, %v4219
  %4221 = vmatmul.f32.gmra.mxu0 %v3805
  %v4222 = vpop.f32.mrf.mxu0
  %v4223 = vadd.f32 %v4014, %v4222
  %4224 = vmatmul.f32.gmra.mxu0 %v3806
  %v4225 = vpop.f32.mrf.mxu0
  %v4226 = vadd.f32 %v4017, %v4225
  %4227 = vmatmul.f32.gmra.mxu0 %v3807
  %v4228 = vpop.f32.mrf.mxu0
  %v4229 = vadd.f32 %v4020, %v4228
  %4230 = vmatmul.f32.gmra.mxu0 %v3808
  %v4231 = vpop.f32.mrf.mxu0
  %v4232 = vadd.f32 %v4023, %v4231
  %4233 = vmatmul.f32.gmra.mxu0 %v3809
  %v4234 = vpop.f32.mrf.mxu0
  %v4235 = vadd.f32 %v4026, %v4234
  %4236 = vmatmul.f32.gmra.mxu0 %v3810
  %v4237 = vpop.f32.mrf.mxu0
  %v4238 = vadd.f32 %v4029, %v4237
  %4239 = vmatmul.f32.gmra.mxu0 %v3811
  %v4240 = vpop.f32.mrf.mxu0
  %v4241 = vadd.f32 %v4032, %v4240
  %4242 = vmatmul.f32.gmra.mxu0 %v3812
  %v4243 = vpop.f32.mrf.mxu0
  %v4244 = vadd.f32 %v4035, %v4243
  %4245 = vmatmul.f32.gmra.mxu0 %v3813
  %v4246 = vpop.f32.mrf.mxu0
  %v4247 = vadd.f32 %v4038, %v4246
  %4248 = vmatmul.f32.gmra.mxu0 %v3814
  %v4249 = vpop.f32.mrf.mxu0
  %v4250 = vadd.f32 %v4041, %v4249
  %4251 = vmatmul.f32.gmra.mxu0 %v3815
  %v4252 = vpop.f32.mrf.mxu0
  %v4253 = vadd.f32 %v4044, %v4252
  %4254 = vmatmul.f32.gmra.mxu0 %v3816
  %v4255 = vpop.f32.mrf.mxu0
  %v4256 = vadd.f32 %v4047, %v4255
  %4257 = vmatmul.f32.gmra.mxu0 %v3817
  %v4258 = vpop.f32.mrf.mxu0
  %v4259 = vadd.f32 %v4050, %v4258
  %4260 = vmatmul.f32.gmra.mxu0 %v3818
  %v4261 = vpop.f32.mrf.mxu0
  %v4262 = vadd.f32 %v4053, %v4261
  %4263 = vmatmul.f32.gmra.mxu0 %v3819
  %v4264 = vpop.f32.mrf.mxu0
  %v4265 = vadd.f32 %v4056, %v4264
  %4266 = vmatmul.f32.gmra.mxu0 %v3820
  %v4267 = vpop.f32.mrf.mxu0
  %v4268 = vadd.f32 %v4059, %v4267
  %4269 = vmatmul.f32.gmra.mxu0 %v3821
  %v4270 = vpop.f32.mrf.mxu0
  %v4271 = vadd.f32 %v4062, %v4270
  %4272 = vmatmul.f32.gmra.mxu0 %v3822
  %v4273 = vpop.f32.mrf.mxu0
  %v4274 = vadd.f32 %v4065, %v4273
  %4275 = vmatmul.f32.gmra.mxu0 %v3823
  %v4276 = vpop.f32.mrf.mxu0
  %v4277 = vadd.f32 %v4068, %v4276
  %4278 = vmatmul.f32.gmra.mxu0 %v3824
  %v4279 = vpop.f32.mrf.mxu0
  %v4280 = vadd.f32 %v4071, %v4279
  %4281 = vmatmul.f32.gmra.mxu0 %v3825
  %v4282 = vpop.f32.mrf.mxu0
  %v4283 = vadd.f32 %v4074, %v4282
  %4284 = vmatmul.f32.gmra.mxu0 %v3826
  %v4285 = vpop.f32.mrf.mxu0
  %v4286 = vadd.f32 %v4077, %v4285
  %4287 = vmatmul.f32.gmra.mxu0 %v3827
  %v4288 = vpop.f32.mrf.mxu0
  %v4289 = vadd.f32 %v4080, %v4288
  %4290 = vmatmul.f32.gmra.mxu0 %v3828
  %v4291 = vpop.f32.mrf.mxu0
  %v4292 = vadd.f32 %v4083, %v4291
  %4293 = vmatmul.f32.gmra.mxu0 %v3829
  %v4294 = vpop.f32.mrf.mxu0
  %v4295 = vadd.f32 %v4086, %v4294
  %4296 = vmatmul.f32.gmra.mxu0 %v3830
  %v4297 = vpop.f32.mrf.mxu0
  %v4298 = vadd.f32 %v4089, %v4297
  %4299 = vmatmul.f32.gmra.mxu0 %v3831
  %v4300 = vpop.f32.mrf.mxu0
  %v4301 = vadd.f32 %v4092, %v4300
  %4302 = vmatmul.f32.gmra.mxu0 %v3832
  %v4303 = vpop.f32.mrf.mxu0
  %v4304 = vadd.f32 %v4095, %v4303
  %4305 = vmatmul.f32.gmra.mxu0 %v3833
  %v4306 = vpop.f32.mrf.mxu0
  %v4307 = vadd.f32 %v4098, %v4306
  %4308 = vmatmul.f32.gmra.mxu0 %v3834
  %v4309 = vpop.f32.mrf.mxu0
  %v4310 = vadd.f32 %v4101, %v4309
  %4311 = vmatmul.f32.gmra.mxu0 %v3835
  %v4312 = vpop.f32.mrf.mxu0
  %v4313 = vadd.f32 %v4104, %v4312
  %4314 = vmatmul.f32.gmra.mxu0 %v3836
  %v4315 = vpop.f32.mrf.mxu0
  %v4316 = vadd.f32 %v4107, %v4315
  %4317 = vmatmul.f32.gmra.mxu0 %v3837
  %v4318 = vpop.f32.mrf.mxu0
  %v4319 = vadd.f32 %v4110, %v4318
  %4320 = vmatmul.f32.gmra.mxu0 %v3838
  %v4321 = vpop.f32.mrf.mxu0
  %v4322 = vadd.f32 %v4113, %v4321
  %4323 = vmatmul.f32.gmra.mxu0 %v3839
  %v4324 = vpop.f32.mrf.mxu0
  %v4325 = vadd.f32 %v4116, %v4324
  %4326 = vmatmul.f32.gmra.mxu0 %v3840
  %v4327 = vpop.f32.mrf.mxu0
  %v4328 = vadd.f32 %v4119, %v4327
  %4329 = vmatmul.f32.gmra.mxu0 %v3841
  %v4330 = vpop.f32.mrf.mxu0
  %v4331 = vadd.f32 %v4122, %v4330
  %4332 = vmatmul.f32.gmra.mxu0 %v3842
  %v4333 = vpop.f32.mrf.mxu0
  %v4334 = vadd.f32 %v4125, %v4333
  %4335 = vmatmul.f32.gmra.mxu0 %v3843
  %v4336 = vpop.f32.mrf.mxu0
  %v4337 = vadd.f32 %v4128, %v4336
  %4338 = vmatmul.f32.gmra.mxu0 %v3844
  %v4339 = vpop.f32.mrf.mxu0
  %v4340 = vadd.f32 %v4131, %v4339
  %4341 = vmatmul.f32.gmra.mxu0 %v3845
  %v4342 = vpop.f32.mrf.mxu0
  %v4343 = vadd.f32 %v4134, %v4342
  %4344 = vmatmul.f32.gmra.mxu0 %v3846
  %v4345 = vpop.f32.mrf.mxu0
  %v4346 = vadd.f32 %v4137, %v4345
  %4347 = vmatmul.f32.gmra.mxu0 %v3847
  %v4348 = vpop.f32.mrf.mxu0
  %v4349 = vadd.f32 %v4140, %v4348
  %4350 = vmatmul.f32.gmra.mxu0 %v3848
  %v4351 = vpop.f32.mrf.mxu0
  %v4352 = vadd.f32 %v4143, %v4351
  %4353 = vmatmul.f32.gmra.mxu0 %v3849
  %v4354 = vpop.f32.mrf.mxu0
  %v4355 = vadd.f32 %v4146, %v4354
  %4356 = vmatmul.f32.gmra.mxu0 %v3850
  %v4357 = vpop.f32.mrf.mxu0
  %v4358 = vadd.f32 %v4149, %v4357
  %4359 = vmatmul.f32.gmra.mxu0 %v3851
  %v4360 = vpop.f32.mrf.mxu0
  %v4361 = vadd.f32 %v4152, %v4360
  %4362 = vmatmul.f32.gmra.mxu0 %v3852
  %v4363 = vpop.f32.mrf.mxu0
  %v4364 = vadd.f32 %v4155, %v4363
  %4365 = vmatmul.f32.gmra.mxu0 %v3853
  %v4366 = vpop.f32.mrf.mxu0
  %v4367 = vadd.f32 %v4158, %v4366
  %4368 = vdwg.mxu0
  %v4369 = vld [vmem:[#allocation2 + $0x9] sm:$0xff]
  %v4370 = vld [vmem:[#allocation2 + $0x11] sm:$0xff]
  %v4371 = vld [vmem:[#allocation2 + $0x29] sm:$0xff]
  %v4372 = vld [vmem:[#allocation2 + $0x31] sm:$0xff]
  %v4373 = vld [vmem:[#allocation2 + $0x49] sm:$0xff]
  %v4374 = vld [vmem:[#allocation2 + $0x51] sm:$0xff]
  %v4375 = vld [vmem:[#allocation2 + $0x69] sm:$0xff]
  %v4376 = vld [vmem:[#allocation2 + $0x71] sm:$0xff]
  %v4377 = vld [vmem:[#allocation2 + $0x89] sm:$0xff]
  %v4378 = vld [vmem:[#allocation2 + $0x91] sm:$0xff]
  %v4379 = vld [vmem:[#allocation2 + $0xa9] sm:$0xff]
  %v4380 = vld [vmem:[#allocation2 + $0xb1] sm:$0xff]
  %v4381 = vld [vmem:[#allocation2 + $0xc9] sm:$0xff]
  %v4382 = vld [vmem:[#allocation2 + $0xd1] sm:$0xff]
  %v4383 = vld [vmem:[#allocation2 + $0xe9] sm:$0xff]
  %v4384 = vld [vmem:[#allocation2 + $0xf1] sm:$0xff]
  %v4385 = vld [vmem:[#allocation2 + $0x109] sm:$0xff]
  %v4386 = vld [vmem:[#allocation2 + $0x111] sm:$0xff]
  %v4387 = vld [vmem:[#allocation2 + $0x129] sm:$0xff]
  %v4388 = vld [vmem:[#allocation2 + $0x131] sm:$0xff]
  %v4389 = vld [vmem:[#allocation2 + $0x149] sm:$0xff]
  %v4390 = vld [vmem:[#allocation2 + $0x151] sm:$0xff]
  %v4391 = vld [vmem:[#allocation2 + $0x169] sm:$0xff]
  %v4392 = vld [vmem:[#allocation2 + $0x171] sm:$0xff]
  %v4393 = vld [vmem:[#allocation2 + $0x189] sm:$0xff]
  %v4394 = vld [vmem:[#allocation2 + $0x191] sm:$0xff]
  %v4395 = vld [vmem:[#allocation2 + $0x1a9] sm:$0xff]
  %v4396 = vld [vmem:[#allocation2 + $0x1b1] sm:$0xff]
  %v4397 = vld [vmem:[#allocation2 + $0x1c9] sm:$0xff]
  %v4398 = vld [vmem:[#allocation2 + $0x1d1] sm:$0xff]
  %v4399 = vld [vmem:[#allocation2 + $0x1e9] sm:$0xff]
  %v4400 = vld [vmem:[#allocation2 + $0x1f1] sm:$0xff]
  %v4401 = vld [vmem:[#allocation2 + $0x249] sm:$0xff]
  %v4402 = vld [vmem:[#allocation2 + $0x251] sm:$0xff]
  %v4403 = vld [vmem:[#allocation2 + $0x269] sm:$0xff]
  %v4404 = vld [vmem:[#allocation2 + $0x271] sm:$0xff]
  %v4405 = vld [vmem:[#allocation2 + $0x289] sm:$0xff]
  %v4406 = vld [vmem:[#allocation2 + $0x291] sm:$0xff]
  %v4407 = vld [vmem:[#allocation2 + $0x2a9] sm:$0xff]
  %v4408 = vld [vmem:[#allocation2 + $0x2b1] sm:$0xff]
  %v4409 = vld [vmem:[#allocation2 + $0x2c9] sm:$0xff]
  %v4410 = vld [vmem:[#allocation2 + $0x2d1] sm:$0xff]
  %v4411 = vld [vmem:[#allocation2 + $0x2e9] sm:$0xff]
  %v4412 = vld [vmem:[#allocation2 + $0x2f1] sm:$0xff]
  %v4413 = vld [vmem:[#allocation2 + $0x309] sm:$0xff]
  %v4414 = vld [vmem:[#allocation2 + $0x311] sm:$0xff]
  %v4415 = vld [vmem:[#allocation2 + $0x329] sm:$0xff]
  %v4416 = vld [vmem:[#allocation2 + $0x331] sm:$0xff]
  %v4417 = vld [vmem:[#allocation2 + $0x349] sm:$0xff]
  %v4418 = vld [vmem:[#allocation2 + $0x351] sm:$0xff]
  %v4419 = vld [vmem:[#allocation2 + $0x369] sm:$0xff]
  %v4420 = vld [vmem:[#allocation2 + $0x371] sm:$0xff]
  %v4421 = vld [vmem:[#allocation2 + $0x389] sm:$0xff]
  %v4422 = vld [vmem:[#allocation2 + $0x391] sm:$0xff]
  %v4423 = vld [vmem:[#allocation2 + $0x3a9] sm:$0xff]
  %v4424 = vld [vmem:[#allocation2 + $0x3b1] sm:$0xff]
  %v4425 = vld [vmem:[#allocation2 + $0x3c9] sm:$0xff]
  %v4426 = vld [vmem:[#allocation2 + $0x3d1] sm:$0xff]
  %v4427 = vld [vmem:[#allocation2 + $0x3e9] sm:$0xff]
  %v4428 = vld [vmem:[#allocation2 + $0x3f1] sm:$0xff]
  %v4429 = vld [vmem:[#allocation2 + $0x409] sm:$0xff]
  %v4430 = vld [vmem:[#allocation2 + $0x411] sm:$0xff]
  %v4431 = vld [vmem:[#allocation2 + $0x429] sm:$0xff]
  %v4432 = vld [vmem:[#allocation2 + $0x431] sm:$0xff]
  %s4433 = scalar_lea.vmem %s5, 256
  %v4434 = vld [vmem:[%s4433] sm:$0xff]
  %v4435 = vld [vmem:[%s4433 + $0x8] sm:$0xff]
  %v4436 = vld [vmem:[%s4433 + $0x10] sm:$0xff]
  %v4437 = vld [vmem:[%s4433 + $0x18] sm:$0xff]
  %v4438 = vld [vmem:[%s4433 + $0x20] sm:$0xff]
  %v4439 = vld [vmem:[%s4433 + $0x28] sm:$0xff]
  %v4440 = vld [vmem:[%s4433 + $0x30] sm:$0xff]
  %v4441 = vld [vmem:[%s4433 + $0x38] sm:$0xff]
  %v4442 = vld [vmem:[%s4433 + $0x40] sm:$0xff]
  %v4443 = vld [vmem:[%s4433 + $0x48] sm:$0xff]
  %v4444 = vld [vmem:[%s4433 + $0x50] sm:$0xff]
  %v4445 = vld [vmem:[%s4433 + $0x58] sm:$0xff]
  %v4446 = vld [vmem:[%s4433 + $0x60] sm:$0xff]
  %v4447 = vld [vmem:[%s4433 + $0x68] sm:$0xff]
  %v4448 = vld [vmem:[%s4433 + $0x70] sm:$0xff]
  %v4449 = vld [vmem:[%s4433 + $0x78] sm:$0xff]
  %4450 = vmatpush.msra.mxu0 %v4449
  %4451 = vmatpush.msra.mxu0 %v4448
  %4452 = vmatpush.msra.mxu0 %v4447
  %4453 = vmatpush.msra.mxu0 %v4446
  %4454 = vmatpush.msra.mxu0 %v4445
  %4455 = vmatpush.msra.mxu0 %v4444
  %4456 = vmatpush.msra.mxu0 %v4443
  %4457 = vmatpush.msra.mxu0 %v4442
  %4458 = vmatpush.msra.mxu0 %v4441
  %4459 = vmatpush.msra.mxu0 %v4440
  %4460 = vmatpush.msra.mxu0 %v4439
  %4461 = vmatpush.msra.mxu0 %v4438
  %4462 = vmatpush.msra.mxu0 %v4437
  %4463 = vmatpush.msra.mxu0 %v4436
  %4464 = vmatpush.msra.mxu0 %v4435
  %4465 = vmatpush.msra.mxu0 %v4434
  %4466 = vmatmul.f32.gmra.mxu0 %v4369
  %v4467 = vpop.f32.mrf.mxu0
  %v4468 = vadd.f32 0.0, %v4467
  %4469 = vmatmul.f32.gmra.mxu0 %v4370
  %v4470 = vpop.f32.mrf.mxu0
  %v4471 = vadd.f32 0.0, %v4470
  %4472 = vmatmul.f32.gmra.mxu0 %v4371
  %v4473 = vpop.f32.mrf.mxu0
  %v4474 = vadd.f32 0.0, %v4473
  %4475 = vmatmul.f32.gmra.mxu0 %v4372
  %v4476 = vpop.f32.mrf.mxu0
  %v4477 = vadd.f32 0.0, %v4476
  %4478 = vmatmul.f32.gmra.mxu0 %v4373
  %v4479 = vpop.f32.mrf.mxu0
  %v4480 = vadd.f32 0.0, %v4479
  %4481 = vmatmul.f32.gmra.mxu0 %v4374
  %v4482 = vpop.f32.mrf.mxu0
  %v4483 = vadd.f32 0.0, %v4482
  %4484 = vmatmul.f32.gmra.mxu0 %v4375
  %v4485 = vpop.f32.mrf.mxu0
  %v4486 = vadd.f32 0.0, %v4485
  %4487 = vmatmul.f32.gmra.mxu0 %v4376
  %v4488 = vpop.f32.mrf.mxu0
  %v4489 = vadd.f32 0.0, %v4488
  %4490 = vmatmul.f32.gmra.mxu0 %v4377
  %v4491 = vpop.f32.mrf.mxu0
  %v4492 = vadd.f32 0.0, %v4491
  %4493 = vmatmul.f32.gmra.mxu0 %v4378
  %v4494 = vpop.f32.mrf.mxu0
  %v4495 = vadd.f32 0.0, %v4494
  %4496 = vmatmul.f32.gmra.mxu0 %v4379
  %v4497 = vpop.f32.mrf.mxu0
  %v4498 = vadd.f32 0.0, %v4497
  %4499 = vmatmul.f32.gmra.mxu0 %v4380
  %v4500 = vpop.f32.mrf.mxu0
  %v4501 = vadd.f32 0.0, %v4500
  %4502 = vmatmul.f32.gmra.mxu0 %v4381
  %v4503 = vpop.f32.mrf.mxu0
  %v4504 = vadd.f32 0.0, %v4503
  %4505 = vmatmul.f32.gmra.mxu0 %v4382
  %v4506 = vpop.f32.mrf.mxu0
  %v4507 = vadd.f32 0.0, %v4506
  %4508 = vmatmul.f32.gmra.mxu0 %v4383
  %v4509 = vpop.f32.mrf.mxu0
  %v4510 = vadd.f32 0.0, %v4509
  %4511 = vmatmul.f32.gmra.mxu0 %v4384
  %v4512 = vpop.f32.mrf.mxu0
  %v4513 = vadd.f32 0.0, %v4512
  %4514 = vmatmul.f32.gmra.mxu0 %v4385
  %v4515 = vpop.f32.mrf.mxu0
  %v4516 = vadd.f32 0.0, %v4515
  %4517 = vmatmul.f32.gmra.mxu0 %v4386
  %v4518 = vpop.f32.mrf.mxu0
  %v4519 = vadd.f32 0.0, %v4518
  %4520 = vmatmul.f32.gmra.mxu0 %v4387
  %v4521 = vpop.f32.mrf.mxu0
  %v4522 = vadd.f32 0.0, %v4521
  %4523 = vmatmul.f32.gmra.mxu0 %v4388
  %v4524 = vpop.f32.mrf.mxu0
  %v4525 = vadd.f32 0.0, %v4524
  %4526 = vmatmul.f32.gmra.mxu0 %v4389
  %v4527 = vpop.f32.mrf.mxu0
  %v4528 = vadd.f32 0.0, %v4527
  %4529 = vmatmul.f32.gmra.mxu0 %v4390
  %v4530 = vpop.f32.mrf.mxu0
  %v4531 = vadd.f32 0.0, %v4530
  %4532 = vmatmul.f32.gmra.mxu0 %v4391
  %v4533 = vpop.f32.mrf.mxu0
  %v4534 = vadd.f32 0.0, %v4533
  %4535 = vmatmul.f32.gmra.mxu0 %v4392
  %v4536 = vpop.f32.mrf.mxu0
  %v4537 = vadd.f32 0.0, %v4536
  %4538 = vmatmul.f32.gmra.mxu0 %v4393
  %v4539 = vpop.f32.mrf.mxu0
  %v4540 = vadd.f32 0.0, %v4539
  %4541 = vmatmul.f32.gmra.mxu0 %v4394
  %v4542 = vpop.f32.mrf.mxu0
  %v4543 = vadd.f32 0.0, %v4542
  %4544 = vmatmul.f32.gmra.mxu0 %v4395
  %v4545 = vpop.f32.mrf.mxu0
  %v4546 = vadd.f32 0.0, %v4545
  %4547 = vmatmul.f32.gmra.mxu0 %v4396
  %v4548 = vpop.f32.mrf.mxu0
  %v4549 = vadd.f32 0.0, %v4548
  %4550 = vmatmul.f32.gmra.mxu0 %v4397
  %v4551 = vpop.f32.mrf.mxu0
  %v4552 = vadd.f32 0.0, %v4551
  %4553 = vmatmul.f32.gmra.mxu0 %v4398
  %v4554 = vpop.f32.mrf.mxu0
  %v4555 = vadd.f32 0.0, %v4554
  %4556 = vmatmul.f32.gmra.mxu0 %v4399
  %v4557 = vpop.f32.mrf.mxu0
  %v4558 = vadd.f32 0.0, %v4557
  %4559 = vmatmul.f32.gmra.mxu0 %v4400
  %v4560 = vpop.f32.mrf.mxu0
  %v4561 = vadd.f32 0.0, %v4560
  %4562 = vmatmul.f32.gmra.mxu0 %v4401
  %v4563 = vpop.f32.mrf.mxu0
  %v4564 = vadd.f32 0.0, %v4563
  %4565 = vmatmul.f32.gmra.mxu0 %v4402
  %v4566 = vpop.f32.mrf.mxu0
  %v4567 = vadd.f32 0.0, %v4566
  %4568 = vmatmul.f32.gmra.mxu0 %v4403
  %v4569 = vpop.f32.mrf.mxu0
  %v4570 = vadd.f32 0.0, %v4569
  %4571 = vmatmul.f32.gmra.mxu0 %v4404
  %v4572 = vpop.f32.mrf.mxu0
  %v4573 = vadd.f32 0.0, %v4572
  %4574 = vmatmul.f32.gmra.mxu0 %v4405
  %v4575 = vpop.f32.mrf.mxu0
  %v4576 = vadd.f32 0.0, %v4575
  %4577 = vmatmul.f32.gmra.mxu0 %v4406
  %v4578 = vpop.f32.mrf.mxu0
  %v4579 = vadd.f32 0.0, %v4578
  %4580 = vmatmul.f32.gmra.mxu0 %v4407
  %v4581 = vpop.f32.mrf.mxu0
  %v4582 = vadd.f32 0.0, %v4581
  %4583 = vmatmul.f32.gmra.mxu0 %v4408
  %v4584 = vpop.f32.mrf.mxu0
  %v4585 = vadd.f32 0.0, %v4584
  %4586 = vmatmul.f32.gmra.mxu0 %v4409
  %v4587 = vpop.f32.mrf.mxu0
  %v4588 = vadd.f32 0.0, %v4587
  %4589 = vmatmul.f32.gmra.mxu0 %v4410
  %v4590 = vpop.f32.mrf.mxu0
  %v4591 = vadd.f32 0.0, %v4590
  %4592 = vmatmul.f32.gmra.mxu0 %v4411
  %v4593 = vpop.f32.mrf.mxu0
  %v4594 = vadd.f32 0.0, %v4593
  %4595 = vmatmul.f32.gmra.mxu0 %v4412
  %v4596 = vpop.f32.mrf.mxu0
  %v4597 = vadd.f32 0.0, %v4596
  %4598 = vmatmul.f32.gmra.mxu0 %v4413
  %v4599 = vpop.f32.mrf.mxu0
  %v4600 = vadd.f32 0.0, %v4599
  %4601 = vmatmul.f32.gmra.mxu0 %v4414
  %v4602 = vpop.f32.mrf.mxu0
  %v4603 = vadd.f32 0.0, %v4602
  %4604 = vmatmul.f32.gmra.mxu0 %v4415
  %v4605 = vpop.f32.mrf.mxu0
  %v4606 = vadd.f32 0.0, %v4605
  %4607 = vmatmul.f32.gmra.mxu0 %v4416
  %v4608 = vpop.f32.mrf.mxu0
  %v4609 = vadd.f32 0.0, %v4608
  %4610 = vmatmul.f32.gmra.mxu0 %v4417
  %v4611 = vpop.f32.mrf.mxu0
  %v4612 = vadd.f32 0.0, %v4611
  %4613 = vmatmul.f32.gmra.mxu0 %v4418
  %v4614 = vpop.f32.mrf.mxu0
  %v4615 = vadd.f32 0.0, %v4614
  %4616 = vmatmul.f32.gmra.mxu0 %v4419
  %v4617 = vpop.f32.mrf.mxu0
  %v4618 = vadd.f32 0.0, %v4617
  %4619 = vmatmul.f32.gmra.mxu0 %v4420
  %v4620 = vpop.f32.mrf.mxu0
  %v4621 = vadd.f32 0.0, %v4620
  %4622 = vmatmul.f32.gmra.mxu0 %v4421
  %v4623 = vpop.f32.mrf.mxu0
  %v4624 = vadd.f32 0.0, %v4623
  %4625 = vmatmul.f32.gmra.mxu0 %v4422
  %v4626 = vpop.f32.mrf.mxu0
  %v4627 = vadd.f32 0.0, %v4626
  %4628 = vmatmul.f32.gmra.mxu0 %v4423
  %v4629 = vpop.f32.mrf.mxu0
  %v4630 = vadd.f32 0.0, %v4629
  %4631 = vmatmul.f32.gmra.mxu0 %v4424
  %v4632 = vpop.f32.mrf.mxu0
  %v4633 = vadd.f32 0.0, %v4632
  %4634 = vmatmul.f32.gmra.mxu0 %v4425
  %v4635 = vpop.f32.mrf.mxu0
  %v4636 = vadd.f32 0.0, %v4635
  %4637 = vmatmul.f32.gmra.mxu0 %v4426
  %v4638 = vpop.f32.mrf.mxu0
  %v4639 = vadd.f32 0.0, %v4638
  %4640 = vmatmul.f32.gmra.mxu0 %v4427
  %v4641 = vpop.f32.mrf.mxu0
  %v4642 = vadd.f32 0.0, %v4641
  %4643 = vmatmul.f32.gmra.mxu0 %v4428
  %v4644 = vpop.f32.mrf.mxu0
  %v4645 = vadd.f32 0.0, %v4644
  %4646 = vmatmul.f32.gmra.mxu0 %v4429
  %v4647 = vpop.f32.mrf.mxu0
  %v4648 = vadd.f32 0.0, %v4647
  %4649 = vmatmul.f32.gmra.mxu0 %v4430
  %v4650 = vpop.f32.mrf.mxu0
  %v4651 = vadd.f32 0.0, %v4650
  %4652 = vmatmul.f32.gmra.mxu0 %v4431
  %v4653 = vpop.f32.mrf.mxu0
  %v4654 = vadd.f32 0.0, %v4653
  %4655 = vmatmul.f32.gmra.mxu0 %v4432
  %v4656 = vpop.f32.mrf.mxu0
  %v4657 = vadd.f32 0.0, %v4656
  %4658 = vdwg.mxu0
  %v4659 = vadd.f32 %v4178, %v4468
  %v4660 = vadd.f32 %v4181, %v4471
  %v4661 = vadd.f32 %v4184, %v4474
  %v4662 = vadd.f32 %v4187, %v4477
  %v4663 = vadd.f32 %v4190, %v4480
  %v4664 = vadd.f32 %v4193, %v4483
  %v4665 = vadd.f32 %v4196, %v4486
  %v4666 = vadd.f32 %v4199, %v4489
  %v4667 = vadd.f32 %v4202, %v4492
  %v4668 = vadd.f32 %v4205, %v4495
  %v4669 = vadd.f32 %v4208, %v4498
  %v4670 = vadd.f32 %v4211, %v4501
  %v4671 = vadd.f32 %v4214, %v4504
  %v4672 = vadd.f32 %v4217, %v4507
  %v4673 = vadd.f32 %v4220, %v4510
  %v4674 = vadd.f32 %v4223, %v4513
  %v4675 = vadd.f32 %v4226, %v4516
  %v4676 = vadd.f32 %v4229, %v4519
  %v4677 = vadd.f32 %v4232, %v4522
  %v4678 = vadd.f32 %v4235, %v4525
  %v4679 = vadd.f32 %v4238, %v4528
  %v4680 = vadd.f32 %v4241, %v4531
  %v4681 = vadd.f32 %v4244, %v4534
  %v4682 = vadd.f32 %v4247, %v4537
  %v4683 = vadd.f32 %v4250, %v4540
  %v4684 = vadd.f32 %v4253, %v4543
  %v4685 = vadd.f32 %v4256, %v4546
  %v4686 = vadd.f32 %v4259, %v4549
  %v4687 = vadd.f32 %v4262, %v4552
  %v4688 = vadd.f32 %v4265, %v4555
  %v4689 = vadd.f32 %v4268, %v4558
  %v4690 = vadd.f32 %v4271, %v4561
  %v4691 = vadd.f32 %v4274, %v4564
  %v4692 = vadd.f32 %v4277, %v4567
  %v4693 = vadd.f32 %v4280, %v4570
  %v4694 = vadd.f32 %v4283, %v4573
  %v4695 = vadd.f32 %v4286, %v4576
  %v4696 = vadd.f32 %v4289, %v4579
  %v4697 = vadd.f32 %v4292, %v4582
  %v4698 = vadd.f32 %v4295, %v4585
  %v4699 = vadd.f32 %v4298, %v4588
  %v4700 = vadd.f32 %v4301, %v4591
  %v4701 = vadd.f32 %v4304, %v4594
  %v4702 = vadd.f32 %v4307, %v4597
  %v4703 = vadd.f32 %v4310, %v4600
  %v4704 = vadd.f32 %v4313, %v4603
  %v4705 = vadd.f32 %v4316, %v4606
  %v4706 = vadd.f32 %v4319, %v4609
  %v4707 = vadd.f32 %v4322, %v4612
  %v4708 = vadd.f32 %v4325, %v4615
  %v4709 = vadd.f32 %v4328, %v4618
  %v4710 = vadd.f32 %v4331, %v4621
  %v4711 = vadd.f32 %v4334, %v4624
  %v4712 = vadd.f32 %v4337, %v4627
  %v4713 = vadd.f32 %v4340, %v4630
  %v4714 = vadd.f32 %v4343, %v4633
  %v4715 = vadd.f32 %v4346, %v4636
  %v4716 = vadd.f32 %v4349, %v4639
  %v4717 = vadd.f32 %v4352, %v4642
  %v4718 = vadd.f32 %v4355, %v4645
  %v4719 = vadd.f32 %v4358, %v4648
  %v4720 = vadd.f32 %v4361, %v4651
  %v4721 = vadd.f32 %v4364, %v4654
  %v4722 = vadd.f32 %v4367, %v4657
  %v4723 = vld [vmem:[%s3661 + $0x7] sm:$0xff]
  %v4724 = vld [vmem:[%s3661 + $0xf] sm:$0xff]
  %v4725 = vld [vmem:[%s3661 + $0x27] sm:$0xff]
  %v4726 = vld [vmem:[%s3661 + $0x2f] sm:$0xff]
  %v4727 = vld [vmem:[%s3661 + $0x47] sm:$0xff]
  %v4728 = vld [vmem:[%s3661 + $0x4f] sm:$0xff]
  %v4729 = vld [vmem:[%s3661 + $0x67] sm:$0xff]
  %v4730 = vld [vmem:[%s3661 + $0x6f] sm:$0xff]
  %v4731 = vld [vmem:[%s3661 + $0x87] sm:$0xff]
  %v4732 = vld [vmem:[%s3661 + $0x8f] sm:$0xff]
  %v4733 = vld [vmem:[%s3661 + $0xa7] sm:$0xff]
  %v4734 = vld [vmem:[%s3661 + $0xaf] sm:$0xff]
  %v4735 = vld [vmem:[%s3661 + $0xc7] sm:$0xff]
  %v4736 = vld [vmem:[%s3661 + $0xcf] sm:$0xff]
  %v4737 = vld [vmem:[%s3661 + $0xe7] sm:$0xff]
  %v4738 = vld [vmem:[%s3661 + $0xef] sm:$0xff]
  %v4739 = vld [vmem:[%s3661 + $0x107] sm:$0xff]
  %v4740 = vld [vmem:[%s3661 + $0x10f] sm:$0xff]
  %v4741 = vld [vmem:[%s3661 + $0x127] sm:$0xff]
  %v4742 = vld [vmem:[%s3661 + $0x12f] sm:$0xff]
  %v4743 = vld [vmem:[%s3661 + $0x147] sm:$0xff]
  %v4744 = vld [vmem:[%s3661 + $0x14f] sm:$0xff]
  %v4745 = vld [vmem:[%s3661 + $0x167] sm:$0xff]
  %v4746 = vld [vmem:[%s3661 + $0x16f] sm:$0xff]
  %v4747 = vld [vmem:[%s3661 + $0x187] sm:$0xff]
  %v4748 = vld [vmem:[%s3661 + $0x18f] sm:$0xff]
  %v4749 = vld [vmem:[%s3661 + $0x1a7] sm:$0xff]
  %v4750 = vld [vmem:[%s3661 + $0x1af] sm:$0xff]
  %v4751 = vld [vmem:[%s3661 + $0x1c7] sm:$0xff]
  %v4752 = vld [vmem:[%s3661 + $0x1cf] sm:$0xff]
  %v4753 = vld [vmem:[%s3661 + $0x1e7] sm:$0xff]
  %v4754 = vld [vmem:[%s3661 + $0x1ef] sm:$0xff]
  %v4755 = vld [vmem:[%s3661 + $0x247] sm:$0xff]
  %v4756 = vld [vmem:[%s3661 + $0x24f] sm:$0xff]
  %v4757 = vld [vmem:[%s3661 + $0x267] sm:$0xff]
  %v4758 = vld [vmem:[%s3661 + $0x26f] sm:$0xff]
  %v4759 = vld [vmem:[%s3661 + $0x287] sm:$0xff]
  %v4760 = vld [vmem:[%s3661 + $0x28f] sm:$0xff]
  %v4761 = vld [vmem:[%s3661 + $0x2a7] sm:$0xff]
  %v4762 = vld [vmem:[%s3661 + $0x2af] sm:$0xff]
  %v4763 = vld [vmem:[%s3661 + $0x2c7] sm:$0xff]
  %v4764 = vld [vmem:[%s3661 + $0x2cf] sm:$0xff]
  %v4765 = vld [vmem:[%s3661 + $0x2e7] sm:$0xff]
  %v4766 = vld [vmem:[%s3661 + $0x2ef] sm:$0xff]
  %v4767 = vld [vmem:[%s3661 + $0x307] sm:$0xff]
  %v4768 = vld [vmem:[%s3661 + $0x30f] sm:$0xff]
  %v4769 = vld [vmem:[%s3661 + $0x327] sm:$0xff]
  %v4770 = vld [vmem:[%s3661 + $0x32f] sm:$0xff]
  %v4771 = vld [vmem:[%s3661 + $0x347] sm:$0xff]
  %v4772 = vld [vmem:[%s3661 + $0x34f] sm:$0xff]
  %v4773 = vld [vmem:[%s3661 + $0x367] sm:$0xff]
  %v4774 = vld [vmem:[%s3661 + $0x36f] sm:$0xff]
  %v4775 = vld [vmem:[%s3661 + $0x387] sm:$0xff]
  %v4776 = vld [vmem:[%s3661 + $0x38f] sm:$0xff]
  %v4777 = vld [vmem:[%s3661 + $0x3a7] sm:$0xff]
  %v4778 = vld [vmem:[%s3661 + $0x3af] sm:$0xff]
  %v4779 = vld [vmem:[%s3661 + $0x3c7] sm:$0xff]
  %v4780 = vld [vmem:[%s3661 + $0x3cf] sm:$0xff]
  %v4781 = vld [vmem:[%s3661 + $0x3e7] sm:$0xff]
  %v4782 = vld [vmem:[%s3661 + $0x3ef] sm:$0xff]
  %v4783 = vld [vmem:[%s3661 + $0x407] sm:$0xff]
  %v4784 = vld [vmem:[%s3661 + $0x40f] sm:$0xff]
  %v4785 = vld [vmem:[%s3661 + $0x427] sm:$0xff]
  %v4786 = vld [vmem:[%s3661 + $0x42f] sm:$0xff]
  %s4787 = scalar_lea.vmem %s5, 384
  %v4788 = vld [vmem:[%s4787] sm:$0xff]
  %v4789 = vld [vmem:[%s4787 + $0x8] sm:$0xff]
  %v4790 = vld [vmem:[%s4787 + $0x10] sm:$0xff]
  %v4791 = vld [vmem:[%s4787 + $0x18] sm:$0xff]
  %v4792 = vld [vmem:[%s4787 + $0x20] sm:$0xff]
  %v4793 = vld [vmem:[%s4787 + $0x28] sm:$0xff]
  %v4794 = vld [vmem:[%s4787 + $0x30] sm:$0xff]
  %v4795 = vld [vmem:[%s4787 + $0x38] sm:$0xff]
  %v4796 = vld [vmem:[%s4787 + $0x40] sm:$0xff]
  %v4797 = vld [vmem:[%s4787 + $0x48] sm:$0xff]
  %v4798 = vld [vmem:[%s4787 + $0x50] sm:$0xff]
  %v4799 = vld [vmem:[%s4787 + $0x58] sm:$0xff]
  %v4800 = vld [vmem:[%s4787 + $0x60] sm:$0xff]
  %v4801 = vld [vmem:[%s4787 + $0x68] sm:$0xff]
  %v4802 = vld [vmem:[%s4787 + $0x70] sm:$0xff]
  %v4803 = vld [vmem:[%s4787 + $0x78] sm:$0xff]
  %4804 = vmatpush.msra.mxu0 %v4803
  %4805 = vmatpush.msra.mxu0 %v4802
  %4806 = vmatpush.msra.mxu0 %v4801
  %4807 = vmatpush.msra.mxu0 %v4800
  %4808 = vmatpush.msra.mxu0 %v4799
  %4809 = vmatpush.msra.mxu0 %v4798
  %4810 = vmatpush.msra.mxu0 %v4797
  %4811 = vmatpush.msra.mxu0 %v4796
  %4812 = vmatpush.msra.mxu0 %v4795
  %4813 = vmatpush.msra.mxu0 %v4794
  %4814 = vmatpush.msra.mxu0 %v4793
  %4815 = vmatpush.msra.mxu0 %v4792
  %4816 = vmatpush.msra.mxu0 %v4791
  %4817 = vmatpush.msra.mxu0 %v4790
  %4818 = vmatpush.msra.mxu0 %v4789
  %4819 = vmatpush.msra.mxu0 %v4788
  %4820 = vmatmul.f32.gmra.mxu0 %v4723
  %v4821 = vpop.f32.mrf.mxu0
  %v4822 = vadd.f32 0.0, %v4821
  %4823 = vmatmul.f32.gmra.mxu0 %v4724
  %v4824 = vpop.f32.mrf.mxu0
  %v4825 = vadd.f32 0.0, %v4824
  %4826 = vmatmul.f32.gmra.mxu0 %v4725
  %v4827 = vpop.f32.mrf.mxu0
  %v4828 = vadd.f32 0.0, %v4827
  %4829 = vmatmul.f32.gmra.mxu0 %v4726
  %v4830 = vpop.f32.mrf.mxu0
  %v4831 = vadd.f32 0.0, %v4830
  %4832 = vmatmul.f32.gmra.mxu0 %v4727
  %v4833 = vpop.f32.mrf.mxu0
  %v4834 = vadd.f32 0.0, %v4833
  %4835 = vmatmul.f32.gmra.mxu0 %v4728
  %v4836 = vpop.f32.mrf.mxu0
  %v4837 = vadd.f32 0.0, %v4836
  %4838 = vmatmul.f32.gmra.mxu0 %v4729
  %v4839 = vpop.f32.mrf.mxu0
  %v4840 = vadd.f32 0.0, %v4839
  %4841 = vmatmul.f32.gmra.mxu0 %v4730
  %v4842 = vpop.f32.mrf.mxu0
  %v4843 = vadd.f32 0.0, %v4842
  %4844 = vmatmul.f32.gmra.mxu0 %v4731
  %v4845 = vpop.f32.mrf.mxu0
  %v4846 = vadd.f32 0.0, %v4845
  %4847 = vmatmul.f32.gmra.mxu0 %v4732
  %v4848 = vpop.f32.mrf.mxu0
  %v4849 = vadd.f32 0.0, %v4848
  %4850 = vmatmul.f32.gmra.mxu0 %v4733
  %v4851 = vpop.f32.mrf.mxu0
  %v4852 = vadd.f32 0.0, %v4851
  %4853 = vmatmul.f32.gmra.mxu0 %v4734
  %v4854 = vpop.f32.mrf.mxu0
  %v4855 = vadd.f32 0.0, %v4854
  %4856 = vmatmul.f32.gmra.mxu0 %v4735
  %v4857 = vpop.f32.mrf.mxu0
  %v4858 = vadd.f32 0.0, %v4857
  %4859 = vmatmul.f32.gmra.mxu0 %v4736
  %v4860 = vpop.f32.mrf.mxu0
  %v4861 = vadd.f32 0.0, %v4860
  %4862 = vmatmul.f32.gmra.mxu0 %v4737
  %v4863 = vpop.f32.mrf.mxu0
  %v4864 = vadd.f32 0.0, %v4863
  %4865 = vmatmul.f32.gmra.mxu0 %v4738
  %v4866 = vpop.f32.mrf.mxu0
  %v4867 = vadd.f32 0.0, %v4866
  %4868 = vmatmul.f32.gmra.mxu0 %v4739
  %v4869 = vpop.f32.mrf.mxu0
  %v4870 = vadd.f32 0.0, %v4869
  %4871 = vmatmul.f32.gmra.mxu0 %v4740
  %v4872 = vpop.f32.mrf.mxu0
  %v4873 = vadd.f32 0.0, %v4872
  %4874 = vmatmul.f32.gmra.mxu0 %v4741
  %v4875 = vpop.f32.mrf.mxu0
  %v4876 = vadd.f32 0.0, %v4875
  %4877 = vmatmul.f32.gmra.mxu0 %v4742
  %v4878 = vpop.f32.mrf.mxu0
  %v4879 = vadd.f32 0.0, %v4878
  %4880 = vmatmul.f32.gmra.mxu0 %v4743
  %v4881 = vpop.f32.mrf.mxu0
  %v4882 = vadd.f32 0.0, %v4881
  %4883 = vmatmul.f32.gmra.mxu0 %v4744
  %v4884 = vpop.f32.mrf.mxu0
  %v4885 = vadd.f32 0.0, %v4884
  %4886 = vmatmul.f32.gmra.mxu0 %v4745
  %v4887 = vpop.f32.mrf.mxu0
  %v4888 = vadd.f32 0.0, %v4887
  %4889 = vmatmul.f32.gmra.mxu0 %v4746
  %v4890 = vpop.f32.mrf.mxu0
  %v4891 = vadd.f32 0.0, %v4890
  %4892 = vmatmul.f32.gmra.mxu0 %v4747
  %v4893 = vpop.f32.mrf.mxu0
  %v4894 = vadd.f32 0.0, %v4893
  %4895 = vmatmul.f32.gmra.mxu0 %v4748
  %v4896 = vpop.f32.mrf.mxu0
  %v4897 = vadd.f32 0.0, %v4896
  %4898 = vmatmul.f32.gmra.mxu0 %v4749
  %v4899 = vpop.f32.mrf.mxu0
  %v4900 = vadd.f32 0.0, %v4899
  %4901 = vmatmul.f32.gmra.mxu0 %v4750
  %v4902 = vpop.f32.mrf.mxu0
  %v4903 = vadd.f32 0.0, %v4902
  %4904 = vmatmul.f32.gmra.mxu0 %v4751
  %v4905 = vpop.f32.mrf.mxu0
  %v4906 = vadd.f32 0.0, %v4905
  %4907 = vmatmul.f32.gmra.mxu0 %v4752
  %v4908 = vpop.f32.mrf.mxu0
  %v4909 = vadd.f32 0.0, %v4908
  %4910 = vmatmul.f32.gmra.mxu0 %v4753
  %v4911 = vpop.f32.mrf.mxu0
  %v4912 = vadd.f32 0.0, %v4911
  %4913 = vmatmul.f32.gmra.mxu0 %v4754
  %v4914 = vpop.f32.mrf.mxu0
  %v4915 = vadd.f32 0.0, %v4914
  %4916 = vmatmul.f32.gmra.mxu0 %v4755
  %v4917 = vpop.f32.mrf.mxu0
  %v4918 = vadd.f32 0.0, %v4917
  %4919 = vmatmul.f32.gmra.mxu0 %v4756
  %v4920 = vpop.f32.mrf.mxu0
  %v4921 = vadd.f32 0.0, %v4920
  %4922 = vmatmul.f32.gmra.mxu0 %v4757
  %v4923 = vpop.f32.mrf.mxu0
  %v4924 = vadd.f32 0.0, %v4923
  %4925 = vmatmul.f32.gmra.mxu0 %v4758
  %v4926 = vpop.f32.mrf.mxu0
  %v4927 = vadd.f32 0.0, %v4926
  %4928 = vmatmul.f32.gmra.mxu0 %v4759
  %v4929 = vpop.f32.mrf.mxu0
  %v4930 = vadd.f32 0.0, %v4929
  %4931 = vmatmul.f32.gmra.mxu0 %v4760
  %v4932 = vpop.f32.mrf.mxu0
  %v4933 = vadd.f32 0.0, %v4932
  %4934 = vmatmul.f32.gmra.mxu0 %v4761
  %v4935 = vpop.f32.mrf.mxu0
  %v4936 = vadd.f32 0.0, %v4935
  %4937 = vmatmul.f32.gmra.mxu0 %v4762
  %v4938 = vpop.f32.mrf.mxu0
  %v4939 = vadd.f32 0.0, %v4938
  %4940 = vmatmul.f32.gmra.mxu0 %v4763
  %v4941 = vpop.f32.mrf.mxu0
  %v4942 = vadd.f32 0.0, %v4941
  %4943 = vmatmul.f32.gmra.mxu0 %v4764
  %v4944 = vpop.f32.mrf.mxu0
  %v4945 = vadd.f32 0.0, %v4944
  %4946 = vmatmul.f32.gmra.mxu0 %v4765
  %v4947 = vpop.f32.mrf.mxu0
  %v4948 = vadd.f32 0.0, %v4947
  %4949 = vmatmul.f32.gmra.mxu0 %v4766
  %v4950 = vpop.f32.mrf.mxu0
  %v4951 = vadd.f32 0.0, %v4950
  %4952 = vmatmul.f32.gmra.mxu0 %v4767
  %v4953 = vpop.f32.mrf.mxu0
  %v4954 = vadd.f32 0.0, %v4953
  %4955 = vmatmul.f32.gmra.mxu0 %v4768
  %v4956 = vpop.f32.mrf.mxu0
  %v4957 = vadd.f32 0.0, %v4956
  %4958 = vmatmul.f32.gmra.mxu0 %v4769
  %v4959 = vpop.f32.mrf.mxu0
  %v4960 = vadd.f32 0.0, %v4959
  %4961 = vmatmul.f32.gmra.mxu0 %v4770
  %v4962 = vpop.f32.mrf.mxu0
  %v4963 = vadd.f32 0.0, %v4962
  %4964 = vmatmul.f32.gmra.mxu0 %v4771
  %v4965 = vpop.f32.mrf.mxu0
  %v4966 = vadd.f32 0.0, %v4965
  %4967 = vmatmul.f32.gmra.mxu0 %v4772
  %v4968 = vpop.f32.mrf.mxu0
  %v4969 = vadd.f32 0.0, %v4968
  %4970 = vmatmul.f32.gmra.mxu0 %v4773
  %v4971 = vpop.f32.mrf.mxu0
  %v4972 = vadd.f32 0.0, %v4971
  %4973 = vmatmul.f32.gmra.mxu0 %v4774
  %v4974 = vpop.f32.mrf.mxu0
  %v4975 = vadd.f32 0.0, %v4974
  %4976 = vmatmul.f32.gmra.mxu0 %v4775
  %v4977 = vpop.f32.mrf.mxu0
  %v4978 = vadd.f32 0.0, %v4977
  %4979 = vmatmul.f32.gmra.mxu0 %v4776
  %v4980 = vpop.f32.mrf.mxu0
  %v4981 = vadd.f32 0.0, %v4980
  %4982 = vmatmul.f32.gmra.mxu0 %v4777
  %v4983 = vpop.f32.mrf.mxu0
  %v4984 = vadd.f32 0.0, %v4983
  %4985 = vmatmul.f32.gmra.mxu0 %v4778
  %v4986 = vpop.f32.mrf.mxu0
  %v4987 = vadd.f32 0.0, %v4986
  %4988 = vmatmul.f32.gmra.mxu0 %v4779
  %v4989 = vpop.f32.mrf.mxu0
  %v4990 = vadd.f32 0.0, %v4989
  %4991 = vmatmul.f32.gmra.mxu0 %v4780
  %v4992 = vpop.f32.mrf.mxu0
  %v4993 = vadd.f32 0.0, %v4992
  %4994 = vmatmul.f32.gmra.mxu0 %v4781
  %v4995 = vpop.f32.mrf.mxu0
  %v4996 = vadd.f32 0.0, %v4995
  %4997 = vmatmul.f32.gmra.mxu0 %v4782
  %v4998 = vpop.f32.mrf.mxu0
  %v4999 = vadd.f32 0.0, %v4998
  %5000 = vmatmul.f32.gmra.mxu0 %v4783
  %v5001 = vpop.f32.mrf.mxu0
  %v5002 = vadd.f32 0.0, %v5001
  %5003 = vmatmul.f32.gmra.mxu0 %v4784
  %v5004 = vpop.f32.mrf.mxu0
  %v5005 = vadd.f32 0.0, %v5004
  %5006 = vmatmul.f32.gmra.mxu0 %v4785
  %v5007 = vpop.f32.mrf.mxu0
  %v5008 = vadd.f32 0.0, %v5007
  %5009 = vmatmul.f32.gmra.mxu0 %v4786
  %v5010 = vpop.f32.mrf.mxu0
  %v5011 = vadd.f32 0.0, %v5010
  %5012 = vdwg.mxu0
  %v5013 = vadd.f32 %v4659, %v4822
  %v5014 = vadd.f32 %v4660, %v4825
  %v5015 = vadd.f32 %v4661, %v4828
  %v5016 = vadd.f32 %v4662, %v4831
  %v5017 = vadd.f32 %v4663, %v4834
  %v5018 = vadd.f32 %v4664, %v4837
  %v5019 = vadd.f32 %v4665, %v4840
  %v5020 = vadd.f32 %v4666, %v4843
  %v5021 = vadd.f32 %v4667, %v4846
  %v5022 = vadd.f32 %v4668, %v4849
  %v5023 = vadd.f32 %v4669, %v4852
  %v5024 = vadd.f32 %v4670, %v4855
  %v5025 = vadd.f32 %v4671, %v4858
  %v5026 = vadd.f32 %v4672, %v4861
  %v5027 = vadd.f32 %v4673, %v4864
  %v5028 = vadd.f32 %v4674, %v4867
  %v5029 = vadd.f32 %v4675, %v4870
  %v5030 = vadd.f32 %v4676, %v4873
  %v5031 = vadd.f32 %v4677, %v4876
  %v5032 = vadd.f32 %v4678, %v4879
  %v5033 = vadd.f32 %v4679, %v4882
  %v5034 = vadd.f32 %v4680, %v4885
  %v5035 = vadd.f32 %v4681, %v4888
  %v5036 = vadd.f32 %v4682, %v4891
  %v5037 = vadd.f32 %v4683, %v4894
  %v5038 = vadd.f32 %v4684, %v4897
  %v5039 = vadd.f32 %v4685, %v4900
  %v5040 = vadd.f32 %v4686, %v4903
  %v5041 = vadd.f32 %v4687, %v4906
  %v5042 = vadd.f32 %v4688, %v4909
  %v5043 = vadd.f32 %v4689, %v4912
  %v5044 = vadd.f32 %v4690, %v4915
  %v5045 = vadd.f32 %v4691, %v4918
  %v5046 = vadd.f32 %v4692, %v4921
  %v5047 = vadd.f32 %v4693, %v4924
  %v5048 = vadd.f32 %v4694, %v4927
  %v5049 = vadd.f32 %v4695, %v4930
  %v5050 = vadd.f32 %v4696, %v4933
  %v5051 = vadd.f32 %v4697, %v4936
  %v5052 = vadd.f32 %v4698, %v4939
  %v5053 = vadd.f32 %v4699, %v4942
  %v5054 = vadd.f32 %v4700, %v4945
  %v5055 = vadd.f32 %v4701, %v4948
  %v5056 = vadd.f32 %v4702, %v4951
  %v5057 = vadd.f32 %v4703, %v4954
  %v5058 = vadd.f32 %v4704, %v4957
  %v5059 = vadd.f32 %v4705, %v4960
  %v5060 = vadd.f32 %v4706, %v4963
  %v5061 = vadd.f32 %v4707, %v4966
  %v5062 = vadd.f32 %v4708, %v4969
  %v5063 = vadd.f32 %v4709, %v4972
  %v5064 = vadd.f32 %v4710, %v4975
  %v5065 = vadd.f32 %v4711, %v4978
  %v5066 = vadd.f32 %v4712, %v4981
  %v5067 = vadd.f32 %v4713, %v4984
  %v5068 = vadd.f32 %v4714, %v4987
  %v5069 = vadd.f32 %v4715, %v4990
  %v5070 = vadd.f32 %v4716, %v4993
  %v5071 = vadd.f32 %v4717, %v4996
  %v5072 = vadd.f32 %v4718, %v4999
  %v5073 = vadd.f32 %v4719, %v5002
  %v5074 = vadd.f32 %v4720, %v5005
  %v5075 = vadd.f32 %v4721, %v5008
  %v5076 = vadd.f32 %v4722, %v5011
  %v5077 = vld [vmem:[%s3661 + $0x8] sm:$0xff]
  %v5078 = vld [vmem:[%s3661 + $0x10] sm:$0xff]
  %v5079 = vld [vmem:[%s3661 + $0x28] sm:$0xff]
  %v5080 = vld [vmem:[%s3661 + $0x30] sm:$0xff]
  %v5081 = vld [vmem:[%s3661 + $0x48] sm:$0xff]
  %v5082 = vld [vmem:[%s3661 + $0x50] sm:$0xff]
  %v5083 = vld [vmem:[%s3661 + $0x68] sm:$0xff]
  %v5084 = vld [vmem:[%s3661 + $0x70] sm:$0xff]
  %v5085 = vld [vmem:[%s3661 + $0x88] sm:$0xff]
  %v5086 = vld [vmem:[%s3661 + $0x90] sm:$0xff]
  %v5087 = vld [vmem:[%s3661 + $0xa8] sm:$0xff]
  %v5088 = vld [vmem:[%s3661 + $0xb0] sm:$0xff]
  %v5089 = vld [vmem:[%s3661 + $0xc8] sm:$0xff]
  %v5090 = vld [vmem:[%s3661 + $0xd0] sm:$0xff]
  %v5091 = vld [vmem:[%s3661 + $0xe8] sm:$0xff]
  %v5092 = vld [vmem:[%s3661 + $0xf0] sm:$0xff]
  %v5093 = vld [vmem:[%s3661 + $0x108] sm:$0xff]
  %v5094 = vld [vmem:[%s3661 + $0x110] sm:$0xff]
  %v5095 = vld [vmem:[%s3661 + $0x128] sm:$0xff]
  %v5096 = vld [vmem:[%s3661 + $0x130] sm:$0xff]
  %v5097 = vld [vmem:[%s3661 + $0x148] sm:$0xff]
  %v5098 = vld [vmem:[%s3661 + $0x150] sm:$0xff]
  %v5099 = vld [vmem:[%s3661 + $0x168] sm:$0xff]
  %v5100 = vld [vmem:[%s3661 + $0x170] sm:$0xff]
  %v5101 = vld [vmem:[%s3661 + $0x188] sm:$0xff]
  %v5102 = vld [vmem:[%s3661 + $0x190] sm:$0xff]
  %v5103 = vld [vmem:[%s3661 + $0x1a8] sm:$0xff]
  %v5104 = vld [vmem:[%s3661 + $0x1b0] sm:$0xff]
  %v5105 = vld [vmem:[%s3661 + $0x1c8] sm:$0xff]
  %v5106 = vld [vmem:[%s3661 + $0x1d0] sm:$0xff]
  %v5107 = vld [vmem:[%s3661 + $0x1e8] sm:$0xff]
  %v5108 = vld [vmem:[%s3661 + $0x1f0] sm:$0xff]
  %v5109 = vld [vmem:[%s3661 + $0x248] sm:$0xff]
  %v5110 = vld [vmem:[%s3661 + $0x250] sm:$0xff]
  %v5111 = vld [vmem:[%s3661 + $0x268] sm:$0xff]
  %v5112 = vld [vmem:[%s3661 + $0x270] sm:$0xff]
  %v5113 = vld [vmem:[%s3661 + $0x288] sm:$0xff]
  %v5114 = vld [vmem:[%s3661 + $0x290] sm:$0xff]
  %v5115 = vld [vmem:[%s3661 + $0x2a8] sm:$0xff]
  %v5116 = vld [vmem:[%s3661 + $0x2b0] sm:$0xff]
  %v5117 = vld [vmem:[%s3661 + $0x2c8] sm:$0xff]
  %v5118 = vld [vmem:[%s3661 + $0x2d0] sm:$0xff]
  %v5119 = vld [vmem:[%s3661 + $0x2e8] sm:$0xff]
  %v5120 = vld [vmem:[%s3661 + $0x2f0] sm:$0xff]
  %v5121 = vld [vmem:[%s3661 + $0x308] sm:$0xff]
  %v5122 = vld [vmem:[%s3661 + $0x310] sm:$0xff]
  %v5123 = vld [vmem:[%s3661 + $0x328] sm:$0xff]
  %v5124 = vld [vmem:[%s3661 + $0x330] sm:$0xff]
  %v5125 = vld [vmem:[%s3661 + $0x348] sm:$0xff]
  %v5126 = vld [vmem:[%s3661 + $0x350] sm:$0xff]
  %v5127 = vld [vmem:[%s3661 + $0x368] sm:$0xff]
  %v5128 = vld [vmem:[%s3661 + $0x370] sm:$0xff]
  %v5129 = vld [vmem:[%s3661 + $0x388] sm:$0xff]
  %v5130 = vld [vmem:[%s3661 + $0x390] sm:$0xff]
  %v5131 = vld [vmem:[%s3661 + $0x3a8] sm:$0xff]
  %v5132 = vld [vmem:[%s3661 + $0x3b0] sm:$0xff]
  %v5133 = vld [vmem:[%s3661 + $0x3c8] sm:$0xff]
  %v5134 = vld [vmem:[%s3661 + $0x3d0] sm:$0xff]
  %v5135 = vld [vmem:[%s3661 + $0x3e8] sm:$0xff]
  %v5136 = vld [vmem:[%s3661 + $0x3f0] sm:$0xff]
  %v5137 = vld [vmem:[%s3661 + $0x408] sm:$0xff]
  %v5138 = vld [vmem:[%s3661 + $0x410] sm:$0xff]
  %v5139 = vld [vmem:[%s3661 + $0x428] sm:$0xff]
  %v5140 = vld [vmem:[%s3661 + $0x430] sm:$0xff]
  %s5141 = scalar_lea.vmem %s5, 512
  %v5142 = vld [vmem:[%s5141] sm:$0xff]
  %v5143 = vld [vmem:[%s5141 + $0x8] sm:$0xff]
  %v5144 = vld [vmem:[%s5141 + $0x10] sm:$0xff]
  %v5145 = vld [vmem:[%s5141 + $0x18] sm:$0xff]
  %v5146 = vld [vmem:[%s5141 + $0x20] sm:$0xff]
  %v5147 = vld [vmem:[%s5141 + $0x28] sm:$0xff]
  %v5148 = vld [vmem:[%s5141 + $0x30] sm:$0xff]
  %v5149 = vld [vmem:[%s5141 + $0x38] sm:$0xff]
  %v5150 = vld [vmem:[%s5141 + $0x40] sm:$0xff]
  %v5151 = vld [vmem:[%s5141 + $0x48] sm:$0xff]
  %v5152 = vld [vmem:[%s5141 + $0x50] sm:$0xff]
  %v5153 = vld [vmem:[%s5141 + $0x58] sm:$0xff]
  %v5154 = vld [vmem:[%s5141 + $0x60] sm:$0xff]
  %v5155 = vld [vmem:[%s5141 + $0x68] sm:$0xff]
  %v5156 = vld [vmem:[%s5141 + $0x70] sm:$0xff]
  %v5157 = vld [vmem:[%s5141 + $0x78] sm:$0xff]
  %5158 = vmatpush.msra.mxu0 %v5157
  %5159 = vmatpush.msra.mxu0 %v5156
  %5160 = vmatpush.msra.mxu0 %v5155
  %5161 = vmatpush.msra.mxu0 %v5154
  %5162 = vmatpush.msra.mxu0 %v5153
  %5163 = vmatpush.msra.mxu0 %v5152
  %5164 = vmatpush.msra.mxu0 %v5151
  %5165 = vmatpush.msra.mxu0 %v5150
  %5166 = vmatpush.msra.mxu0 %v5149
  %5167 = vmatpush.msra.mxu0 %v5148
  %5168 = vmatpush.msra.mxu0 %v5147
  %5169 = vmatpush.msra.mxu0 %v5146
  %5170 = vmatpush.msra.mxu0 %v5145
  %5171 = vmatpush.msra.mxu0 %v5144
  %5172 = vmatpush.msra.mxu0 %v5143
  %5173 = vmatpush.msra.mxu0 %v5142
  %5174 = vmatmul.f32.gmra.mxu0 %v5077
  %v5175 = vpop.f32.mrf.mxu0
  %v5176 = vadd.f32 0.0, %v5175
  %5177 = vmatmul.f32.gmra.mxu0 %v5078
  %v5178 = vpop.f32.mrf.mxu0
  %v5179 = vadd.f32 0.0, %v5178
  %5180 = vmatmul.f32.gmra.mxu0 %v5079
  %v5181 = vpop.f32.mrf.mxu0
  %v5182 = vadd.f32 0.0, %v5181
  %5183 = vmatmul.f32.gmra.mxu0 %v5080
  %v5184 = vpop.f32.mrf.mxu0
  %v5185 = vadd.f32 0.0, %v5184
  %5186 = vmatmul.f32.gmra.mxu0 %v5081
  %v5187 = vpop.f32.mrf.mxu0
  %v5188 = vadd.f32 0.0, %v5187
  %5189 = vmatmul.f32.gmra.mxu0 %v5082
  %v5190 = vpop.f32.mrf.mxu0
  %v5191 = vadd.f32 0.0, %v5190
  %5192 = vmatmul.f32.gmra.mxu0 %v5083
  %v5193 = vpop.f32.mrf.mxu0
  %v5194 = vadd.f32 0.0, %v5193
  %5195 = vmatmul.f32.gmra.mxu0 %v5084
  %v5196 = vpop.f32.mrf.mxu0
  %v5197 = vadd.f32 0.0, %v5196
  %5198 = vmatmul.f32.gmra.mxu0 %v5085
  %v5199 = vpop.f32.mrf.mxu0
  %v5200 = vadd.f32 0.0, %v5199
  %5201 = vmatmul.f32.gmra.mxu0 %v5086
  %v5202 = vpop.f32.mrf.mxu0
  %v5203 = vadd.f32 0.0, %v5202
  %5204 = vmatmul.f32.gmra.mxu0 %v5087
  %v5205 = vpop.f32.mrf.mxu0
  %v5206 = vadd.f32 0.0, %v5205
  %5207 = vmatmul.f32.gmra.mxu0 %v5088
  %v5208 = vpop.f32.mrf.mxu0
  %v5209 = vadd.f32 0.0, %v5208
  %5210 = vmatmul.f32.gmra.mxu0 %v5089
  %v5211 = vpop.f32.mrf.mxu0
  %v5212 = vadd.f32 0.0, %v5211
  %5213 = vmatmul.f32.gmra.mxu0 %v5090
  %v5214 = vpop.f32.mrf.mxu0
  %v5215 = vadd.f32 0.0, %v5214
  %5216 = vmatmul.f32.gmra.mxu0 %v5091
  %v5217 = vpop.f32.mrf.mxu0
  %v5218 = vadd.f32 0.0, %v5217
  %5219 = vmatmul.f32.gmra.mxu0 %v5092
  %v5220 = vpop.f32.mrf.mxu0
  %v5221 = vadd.f32 0.0, %v5220
  %5222 = vmatmul.f32.gmra.mxu0 %v5093
  %v5223 = vpop.f32.mrf.mxu0
  %v5224 = vadd.f32 0.0, %v5223
  %5225 = vmatmul.f32.gmra.mxu0 %v5094
  %v5226 = vpop.f32.mrf.mxu0
  %v5227 = vadd.f32 0.0, %v5226
  %5228 = vmatmul.f32.gmra.mxu0 %v5095
  %v5229 = vpop.f32.mrf.mxu0
  %v5230 = vadd.f32 0.0, %v5229
  %5231 = vmatmul.f32.gmra.mxu0 %v5096
  %v5232 = vpop.f32.mrf.mxu0
  %v5233 = vadd.f32 0.0, %v5232
  %5234 = vmatmul.f32.gmra.mxu0 %v5097
  %v5235 = vpop.f32.mrf.mxu0
  %v5236 = vadd.f32 0.0, %v5235
  %5237 = vmatmul.f32.gmra.mxu0 %v5098
  %v5238 = vpop.f32.mrf.mxu0
  %v5239 = vadd.f32 0.0, %v5238
  %5240 = vmatmul.f32.gmra.mxu0 %v5099
  %v5241 = vpop.f32.mrf.mxu0
  %v5242 = vadd.f32 0.0, %v5241
  %5243 = vmatmul.f32.gmra.mxu0 %v5100
  %v5244 = vpop.f32.mrf.mxu0
  %v5245 = vadd.f32 0.0, %v5244
  %5246 = vmatmul.f32.gmra.mxu0 %v5101
  %v5247 = vpop.f32.mrf.mxu0
  %v5248 = vadd.f32 0.0, %v5247
  %5249 = vmatmul.f32.gmra.mxu0 %v5102
  %v5250 = vpop.f32.mrf.mxu0
  %v5251 = vadd.f32 0.0, %v5250
  %5252 = vmatmul.f32.gmra.mxu0 %v5103
  %v5253 = vpop.f32.mrf.mxu0
  %v5254 = vadd.f32 0.0, %v5253
  %5255 = vmatmul.f32.gmra.mxu0 %v5104
  %v5256 = vpop.f32.mrf.mxu0
  %v5257 = vadd.f32 0.0, %v5256
  %5258 = vmatmul.f32.gmra.mxu0 %v5105
  %v5259 = vpop.f32.mrf.mxu0
  %v5260 = vadd.f32 0.0, %v5259
  %5261 = vmatmul.f32.gmra.mxu0 %v5106
  %v5262 = vpop.f32.mrf.mxu0
  %v5263 = vadd.f32 0.0, %v5262
  %5264 = vmatmul.f32.gmra.mxu0 %v5107
  %v5265 = vpop.f32.mrf.mxu0
  %v5266 = vadd.f32 0.0, %v5265
  %5267 = vmatmul.f32.gmra.mxu0 %v5108
  %v5268 = vpop.f32.mrf.mxu0
  %v5269 = vadd.f32 0.0, %v5268
  %5270 = vmatmul.f32.gmra.mxu0 %v5109
  %v5271 = vpop.f32.mrf.mxu0
  %v5272 = vadd.f32 0.0, %v5271
  %5273 = vmatmul.f32.gmra.mxu0 %v5110
  %v5274 = vpop.f32.mrf.mxu0
  %v5275 = vadd.f32 0.0, %v5274
  %5276 = vmatmul.f32.gmra.mxu0 %v5111
  %v5277 = vpop.f32.mrf.mxu0
  %v5278 = vadd.f32 0.0, %v5277
  %5279 = vmatmul.f32.gmra.mxu0 %v5112
  %v5280 = vpop.f32.mrf.mxu0
  %v5281 = vadd.f32 0.0, %v5280
  %5282 = vmatmul.f32.gmra.mxu0 %v5113
  %v5283 = vpop.f32.mrf.mxu0
  %v5284 = vadd.f32 0.0, %v5283
  %5285 = vmatmul.f32.gmra.mxu0 %v5114
  %v5286 = vpop.f32.mrf.mxu0
  %v5287 = vadd.f32 0.0, %v5286
  %5288 = vmatmul.f32.gmra.mxu0 %v5115
  %v5289 = vpop.f32.mrf.mxu0
  %v5290 = vadd.f32 0.0, %v5289
  %5291 = vmatmul.f32.gmra.mxu0 %v5116
  %v5292 = vpop.f32.mrf.mxu0
  %v5293 = vadd.f32 0.0, %v5292
  %5294 = vmatmul.f32.gmra.mxu0 %v5117
  %v5295 = vpop.f32.mrf.mxu0
  %v5296 = vadd.f32 0.0, %v5295
  %5297 = vmatmul.f32.gmra.mxu0 %v5118
  %v5298 = vpop.f32.mrf.mxu0
  %v5299 = vadd.f32 0.0, %v5298
  %5300 = vmatmul.f32.gmra.mxu0 %v5119
  %v5301 = vpop.f32.mrf.mxu0
  %v5302 = vadd.f32 0.0, %v5301
  %5303 = vmatmul.f32.gmra.mxu0 %v5120
  %v5304 = vpop.f32.mrf.mxu0
  %v5305 = vadd.f32 0.0, %v5304
  %5306 = vmatmul.f32.gmra.mxu0 %v5121
  %v5307 = vpop.f32.mrf.mxu0
  %v5308 = vadd.f32 0.0, %v5307
  %5309 = vmatmul.f32.gmra.mxu0 %v5122
  %v5310 = vpop.f32.mrf.mxu0
  %v5311 = vadd.f32 0.0, %v5310
  %5312 = vmatmul.f32.gmra.mxu0 %v5123
  %v5313 = vpop.f32.mrf.mxu0
  %v5314 = vadd.f32 0.0, %v5313
  %5315 = vmatmul.f32.gmra.mxu0 %v5124
  %v5316 = vpop.f32.mrf.mxu0
  %v5317 = vadd.f32 0.0, %v5316
  %5318 = vmatmul.f32.gmra.mxu0 %v5125
  %v5319 = vpop.f32.mrf.mxu0
  %v5320 = vadd.f32 0.0, %v5319
  %5321 = vmatmul.f32.gmra.mxu0 %v5126
  %v5322 = vpop.f32.mrf.mxu0
  %v5323 = vadd.f32 0.0, %v5322
  %5324 = vmatmul.f32.gmra.mxu0 %v5127
  %v5325 = vpop.f32.mrf.mxu0
  %v5326 = vadd.f32 0.0, %v5325
  %5327 = vmatmul.f32.gmra.mxu0 %v5128
  %v5328 = vpop.f32.mrf.mxu0
  %v5329 = vadd.f32 0.0, %v5328
  %5330 = vmatmul.f32.gmra.mxu0 %v5129
  %v5331 = vpop.f32.mrf.mxu0
  %v5332 = vadd.f32 0.0, %v5331
  %5333 = vmatmul.f32.gmra.mxu0 %v5130
  %v5334 = vpop.f32.mrf.mxu0
  %v5335 = vadd.f32 0.0, %v5334
  %5336 = vmatmul.f32.gmra.mxu0 %v5131
  %v5337 = vpop.f32.mrf.mxu0
  %v5338 = vadd.f32 0.0, %v5337
  %5339 = vmatmul.f32.gmra.mxu0 %v5132
  %v5340 = vpop.f32.mrf.mxu0
  %v5341 = vadd.f32 0.0, %v5340
  %5342 = vmatmul.f32.gmra.mxu0 %v5133
  %v5343 = vpop.f32.mrf.mxu0
  %v5344 = vadd.f32 0.0, %v5343
  %5345 = vmatmul.f32.gmra.mxu0 %v5134
  %v5346 = vpop.f32.mrf.mxu0
  %v5347 = vadd.f32 0.0, %v5346
  %5348 = vmatmul.f32.gmra.mxu0 %v5135
  %v5349 = vpop.f32.mrf.mxu0
  %v5350 = vadd.f32 0.0, %v5349
  %5351 = vmatmul.f32.gmra.mxu0 %v5136
  %v5352 = vpop.f32.mrf.mxu0
  %v5353 = vadd.f32 0.0, %v5352
  %5354 = vmatmul.f32.gmra.mxu0 %v5137
  %v5355 = vpop.f32.mrf.mxu0
  %v5356 = vadd.f32 0.0, %v5355
  %5357 = vmatmul.f32.gmra.mxu0 %v5138
  %v5358 = vpop.f32.mrf.mxu0
  %v5359 = vadd.f32 0.0, %v5358
  %5360 = vmatmul.f32.gmra.mxu0 %v5139
  %v5361 = vpop.f32.mrf.mxu0
  %v5362 = vadd.f32 0.0, %v5361
  %5363 = vmatmul.f32.gmra.mxu0 %v5140
  %v5364 = vpop.f32.mrf.mxu0
  %v5365 = vadd.f32 0.0, %v5364
  %5366 = vdwg.mxu0
  %v5367 = vadd.f32 %v5013, %v5176
  %v5368 = vadd.f32 %v5014, %v5179
  %v5369 = vadd.f32 %v5015, %v5182
  %v5370 = vadd.f32 %v5016, %v5185
  %v5371 = vadd.f32 %v5017, %v5188
  %v5372 = vadd.f32 %v5018, %v5191
  %v5373 = vadd.f32 %v5019, %v5194
  %v5374 = vadd.f32 %v5020, %v5197
  %v5375 = vadd.f32 %v5021, %v5200
  %v5376 = vadd.f32 %v5022, %v5203
  %v5377 = vadd.f32 %v5023, %v5206
  %v5378 = vadd.f32 %v5024, %v5209
  %v5379 = vadd.f32 %v5025, %v5212
  %v5380 = vadd.f32 %v5026, %v5215
  %v5381 = vadd.f32 %v5027, %v5218
  %v5382 = vadd.f32 %v5028, %v5221
  %v5383 = vadd.f32 %v5029, %v5224
  %v5384 = vadd.f32 %v5030, %v5227
  %v5385 = vadd.f32 %v5031, %v5230
  %v5386 = vadd.f32 %v5032, %v5233
  %v5387 = vadd.f32 %v5033, %v5236
  %v5388 = vadd.f32 %v5034, %v5239
  %v5389 = vadd.f32 %v5035, %v5242
  %v5390 = vadd.f32 %v5036, %v5245
  %v5391 = vadd.f32 %v5037, %v5248
  %v5392 = vadd.f32 %v5038, %v5251
  %v5393 = vadd.f32 %v5039, %v5254
  %v5394 = vadd.f32 %v5040, %v5257
  %v5395 = vadd.f32 %v5041, %v5260
  %v5396 = vadd.f32 %v5042, %v5263
  %v5397 = vadd.f32 %v5043, %v5266
  %v5398 = vadd.f32 %v5044, %v5269
  %v5399 = vadd.f32 %v5045, %v5272
  %v5400 = vadd.f32 %v5046, %v5275
  %v5401 = vadd.f32 %v5047, %v5278
  %v5402 = vadd.f32 %v5048, %v5281
  %v5403 = vadd.f32 %v5049, %v5284
  %v5404 = vadd.f32 %v5050, %v5287
  %v5405 = vadd.f32 %v5051, %v5290
  %v5406 = vadd.f32 %v5052, %v5293
  %v5407 = vadd.f32 %v5053, %v5296
  %v5408 = vadd.f32 %v5054, %v5299
  %v5409 = vadd.f32 %v5055, %v5302
  %v5410 = vadd.f32 %v5056, %v5305
  %v5411 = vadd.f32 %v5057, %v5308
  %v5412 = vadd.f32 %v5058, %v5311
  %v5413 = vadd.f32 %v5059, %v5314
  %v5414 = vadd.f32 %v5060, %v5317
  %v5415 = vadd.f32 %v5061, %v5320
  %v5416 = vadd.f32 %v5062, %v5323
  %v5417 = vadd.f32 %v5063, %v5326
  %v5418 = vadd.f32 %v5064, %v5329
  %v5419 = vadd.f32 %v5065, %v5332
  %v5420 = vadd.f32 %v5066, %v5335
  %v5421 = vadd.f32 %v5067, %v5338
  %v5422 = vadd.f32 %v5068, %v5341
  %v5423 = vadd.f32 %v5069, %v5344
  %v5424 = vadd.f32 %v5070, %v5347
  %v5425 = vadd.f32 %v5071, %v5350
  %v5426 = vadd.f32 %v5072, %v5353
  %v5427 = vadd.f32 %v5073, %v5356
  %v5428 = vadd.f32 %v5074, %v5359
  %v5429 = vadd.f32 %v5075, %v5362
  %v5430 = vadd.f32 %v5076, %v5365
  %v5431 = vld [vmem:[%s3661 + $0x9] sm:$0xff]
  %v5432 = vld [vmem:[%s3661 + $0x11] sm:$0xff]
  %v5433 = vld [vmem:[%s3661 + $0x29] sm:$0xff]
  %v5434 = vld [vmem:[%s3661 + $0x31] sm:$0xff]
  %v5435 = vld [vmem:[%s3661 + $0x49] sm:$0xff]
  %v5436 = vld [vmem:[%s3661 + $0x51] sm:$0xff]
  %v5437 = vld [vmem:[%s3661 + $0x69] sm:$0xff]
  %v5438 = vld [vmem:[%s3661 + $0x71] sm:$0xff]
  %v5439 = vld [vmem:[%s3661 + $0x89] sm:$0xff]
  %v5440 = vld [vmem:[%s3661 + $0x91] sm:$0xff]
  %v5441 = vld [vmem:[%s3661 + $0xa9] sm:$0xff]
  %v5442 = vld [vmem:[%s3661 + $0xb1] sm:$0xff]
  %v5443 = vld [vmem:[%s3661 + $0xc9] sm:$0xff]
  %v5444 = vld [vmem:[%s3661 + $0xd1] sm:$0xff]
  %v5445 = vld [vmem:[%s3661 + $0xe9] sm:$0xff]
  %v5446 = vld [vmem:[%s3661 + $0xf1] sm:$0xff]
  %v5447 = vld [vmem:[%s3661 + $0x109] sm:$0xff]
  %v5448 = vld [vmem:[%s3661 + $0x111] sm:$0xff]
  %v5449 = vld [vmem:[%s3661 + $0x129] sm:$0xff]
  %v5450 = vld [vmem:[%s3661 + $0x131] sm:$0xff]
  %v5451 = vld [vmem:[%s3661 + $0x149] sm:$0xff]
  %v5452 = vld [vmem:[%s3661 + $0x151] sm:$0xff]
  %v5453 = vld [vmem:[%s3661 + $0x169] sm:$0xff]
  %v5454 = vld [vmem:[%s3661 + $0x171] sm:$0xff]
  %v5455 = vld [vmem:[%s3661 + $0x189] sm:$0xff]
  %v5456 = vld [vmem:[%s3661 + $0x191] sm:$0xff]
  %v5457 = vld [vmem:[%s3661 + $0x1a9] sm:$0xff]
  %v5458 = vld [vmem:[%s3661 + $0x1b1] sm:$0xff]
  %v5459 = vld [vmem:[%s3661 + $0x1c9] sm:$0xff]
  %v5460 = vld [vmem:[%s3661 + $0x1d1] sm:$0xff]
  %v5461 = vld [vmem:[%s3661 + $0x1e9] sm:$0xff]
  %v5462 = vld [vmem:[%s3661 + $0x1f1] sm:$0xff]
  %v5463 = vld [vmem:[%s3661 + $0x249] sm:$0xff]
  %v5464 = vld [vmem:[%s3661 + $0x251] sm:$0xff]
  %v5465 = vld [vmem:[%s3661 + $0x269] sm:$0xff]
  %v5466 = vld [vmem:[%s3661 + $0x271] sm:$0xff]
  %v5467 = vld [vmem:[%s3661 + $0x289] sm:$0xff]
  %v5468 = vld [vmem:[%s3661 + $0x291] sm:$0xff]
  %v5469 = vld [vmem:[%s3661 + $0x2a9] sm:$0xff]
  %v5470 = vld [vmem:[%s3661 + $0x2b1] sm:$0xff]
  %v5471 = vld [vmem:[%s3661 + $0x2c9] sm:$0xff]
  %v5472 = vld [vmem:[%s3661 + $0x2d1] sm:$0xff]
  %v5473 = vld [vmem:[%s3661 + $0x2e9] sm:$0xff]
  %v5474 = vld [vmem:[%s3661 + $0x2f1] sm:$0xff]
  %v5475 = vld [vmem:[%s3661 + $0x309] sm:$0xff]
  %v5476 = vld [vmem:[%s3661 + $0x311] sm:$0xff]
  %v5477 = vld [vmem:[%s3661 + $0x329] sm:$0xff]
  %v5478 = vld [vmem:[%s3661 + $0x331] sm:$0xff]
  %v5479 = vld [vmem:[%s3661 + $0x349] sm:$0xff]
  %v5480 = vld [vmem:[%s3661 + $0x351] sm:$0xff]
  %v5481 = vld [vmem:[%s3661 + $0x369] sm:$0xff]
  %v5482 = vld [vmem:[%s3661 + $0x371] sm:$0xff]
  %v5483 = vld [vmem:[%s3661 + $0x389] sm:$0xff]
  %v5484 = vld [vmem:[%s3661 + $0x391] sm:$0xff]
  %v5485 = vld [vmem:[%s3661 + $0x3a9] sm:$0xff]
  %v5486 = vld [vmem:[%s3661 + $0x3b1] sm:$0xff]
  %v5487 = vld [vmem:[%s3661 + $0x3c9] sm:$0xff]
  %v5488 = vld [vmem:[%s3661 + $0x3d1] sm:$0xff]
  %v5489 = vld [vmem:[%s3661 + $0x3e9] sm:$0xff]
  %v5490 = vld [vmem:[%s3661 + $0x3f1] sm:$0xff]
  %v5491 = vld [vmem:[%s3661 + $0x409] sm:$0xff]
  %v5492 = vld [vmem:[%s3661 + $0x411] sm:$0xff]
  %v5493 = vld [vmem:[%s3661 + $0x429] sm:$0xff]
  %v5494 = vld [vmem:[%s3661 + $0x431] sm:$0xff]
  %s5495 = scalar_lea.vmem %s5, 640
  %v5496 = vld [vmem:[%s5495] sm:$0xff]
  %v5497 = vld [vmem:[%s5495 + $0x8] sm:$0xff]
  %v5498 = vld [vmem:[%s5495 + $0x10] sm:$0xff]
  %v5499 = vld [vmem:[%s5495 + $0x18] sm:$0xff]
  %v5500 = vld [vmem:[%s5495 + $0x20] sm:$0xff]
  %v5501 = vld [vmem:[%s5495 + $0x28] sm:$0xff]
  %v5502 = vld [vmem:[%s5495 + $0x30] sm:$0xff]
  %v5503 = vld [vmem:[%s5495 + $0x38] sm:$0xff]
  %v5504 = vld [vmem:[%s5495 + $0x40] sm:$0xff]
  %v5505 = vld [vmem:[%s5495 + $0x48] sm:$0xff]
  %v5506 = vld [vmem:[%s5495 + $0x50] sm:$0xff]
  %v5507 = vld [vmem:[%s5495 + $0x58] sm:$0xff]
  %v5508 = vld [vmem:[%s5495 + $0x60] sm:$0xff]
  %v5509 = vld [vmem:[%s5495 + $0x68] sm:$0xff]
  %v5510 = vld [vmem:[%s5495 + $0x70] sm:$0xff]
  %v5511 = vld [vmem:[%s5495 + $0x78] sm:$0xff]
  %5512 = vmatpush.msra.mxu0 %v5511
  %5513 = vmatpush.msra.mxu0 %v5510
  %5514 = vmatpush.msra.mxu0 %v5509
  %5515 = vmatpush.msra.mxu0 %v5508
  %5516 = vmatpush.msra.mxu0 %v5507
  %5517 = vmatpush.msra.mxu0 %v5506
  %5518 = vmatpush.msra.mxu0 %v5505
  %5519 = vmatpush.msra.mxu0 %v5504
  %5520 = vmatpush.msra.mxu0 %v5503
  %5521 = vmatpush.msra.mxu0 %v5502
  %5522 = vmatpush.msra.mxu0 %v5501
  %5523 = vmatpush.msra.mxu0 %v5500
  %5524 = vmatpush.msra.mxu0 %v5499
  %5525 = vmatpush.msra.mxu0 %v5498
  %5526 = vmatpush.msra.mxu0 %v5497
  %5527 = vmatpush.msra.mxu0 %v5496
  %5528 = vmatmul.f32.gmra.mxu0 %v5431
  %v5529 = vpop.f32.mrf.mxu0
  %v5530 = vadd.f32 0.0, %v5529
  %5531 = vmatmul.f32.gmra.mxu0 %v5432
  %v5532 = vpop.f32.mrf.mxu0
  %v5533 = vadd.f32 0.0, %v5532
  %5534 = vmatmul.f32.gmra.mxu0 %v5433
  %v5535 = vpop.f32.mrf.mxu0
  %v5536 = vadd.f32 0.0, %v5535
  %5537 = vmatmul.f32.gmra.mxu0 %v5434
  %v5538 = vpop.f32.mrf.mxu0
  %v5539 = vadd.f32 0.0, %v5538
  %5540 = vmatmul.f32.gmra.mxu0 %v5435
  %v5541 = vpop.f32.mrf.mxu0
  %v5542 = vadd.f32 0.0, %v5541
  %5543 = vmatmul.f32.gmra.mxu0 %v5436
  %v5544 = vpop.f32.mrf.mxu0
  %v5545 = vadd.f32 0.0, %v5544
  %5546 = vmatmul.f32.gmra.mxu0 %v5437
  %v5547 = vpop.f32.mrf.mxu0
  %v5548 = vadd.f32 0.0, %v5547
  %5549 = vmatmul.f32.gmra.mxu0 %v5438
  %v5550 = vpop.f32.mrf.mxu0
  %v5551 = vadd.f32 0.0, %v5550
  %5552 = vmatmul.f32.gmra.mxu0 %v5439
  %v5553 = vpop.f32.mrf.mxu0
  %v5554 = vadd.f32 0.0, %v5553
  %5555 = vmatmul.f32.gmra.mxu0 %v5440
  %v5556 = vpop.f32.mrf.mxu0
  %v5557 = vadd.f32 0.0, %v5556
  %5558 = vmatmul.f32.gmra.mxu0 %v5441
  %v5559 = vpop.f32.mrf.mxu0
  %v5560 = vadd.f32 0.0, %v5559
  %5561 = vmatmul.f32.gmra.mxu0 %v5442
  %v5562 = vpop.f32.mrf.mxu0
  %v5563 = vadd.f32 0.0, %v5562
  %5564 = vmatmul.f32.gmra.mxu0 %v5443
  %v5565 = vpop.f32.mrf.mxu0
  %v5566 = vadd.f32 0.0, %v5565
  %5567 = vmatmul.f32.gmra.mxu0 %v5444
  %v5568 = vpop.f32.mrf.mxu0
  %v5569 = vadd.f32 0.0, %v5568
  %5570 = vmatmul.f32.gmra.mxu0 %v5445
  %v5571 = vpop.f32.mrf.mxu0
  %v5572 = vadd.f32 0.0, %v5571
  %5573 = vmatmul.f32.gmra.mxu0 %v5446
  %v5574 = vpop.f32.mrf.mxu0
  %v5575 = vadd.f32 0.0, %v5574
  %5576 = vmatmul.f32.gmra.mxu0 %v5447
  %v5577 = vpop.f32.mrf.mxu0
  %v5578 = vadd.f32 0.0, %v5577
  %5579 = vmatmul.f32.gmra.mxu0 %v5448
  %v5580 = vpop.f32.mrf.mxu0
  %v5581 = vadd.f32 0.0, %v5580
  %5582 = vmatmul.f32.gmra.mxu0 %v5449
  %v5583 = vpop.f32.mrf.mxu0
  %v5584 = vadd.f32 0.0, %v5583
  %5585 = vmatmul.f32.gmra.mxu0 %v5450
  %v5586 = vpop.f32.mrf.mxu0
  %v5587 = vadd.f32 0.0, %v5586
  %5588 = vmatmul.f32.gmra.mxu0 %v5451
  %v5589 = vpop.f32.mrf.mxu0
  %v5590 = vadd.f32 0.0, %v5589
  %5591 = vmatmul.f32.gmra.mxu0 %v5452
  %v5592 = vpop.f32.mrf.mxu0
  %v5593 = vadd.f32 0.0, %v5592
  %5594 = vmatmul.f32.gmra.mxu0 %v5453
  %v5595 = vpop.f32.mrf.mxu0
  %v5596 = vadd.f32 0.0, %v5595
  %5597 = vmatmul.f32.gmra.mxu0 %v5454
  %v5598 = vpop.f32.mrf.mxu0
  %v5599 = vadd.f32 0.0, %v5598
  %5600 = vmatmul.f32.gmra.mxu0 %v5455
  %v5601 = vpop.f32.mrf.mxu0
  %v5602 = vadd.f32 0.0, %v5601
  %5603 = vmatmul.f32.gmra.mxu0 %v5456
  %v5604 = vpop.f32.mrf.mxu0
  %v5605 = vadd.f32 0.0, %v5604
  %5606 = vmatmul.f32.gmra.mxu0 %v5457
  %v5607 = vpop.f32.mrf.mxu0
  %v5608 = vadd.f32 0.0, %v5607
  %5609 = vmatmul.f32.gmra.mxu0 %v5458
  %v5610 = vpop.f32.mrf.mxu0
  %v5611 = vadd.f32 0.0, %v5610
  %5612 = vmatmul.f32.gmra.mxu0 %v5459
  %v5613 = vpop.f32.mrf.mxu0
  %v5614 = vadd.f32 0.0, %v5613
  %5615 = vmatmul.f32.gmra.mxu0 %v5460
  %v5616 = vpop.f32.mrf.mxu0
  %v5617 = vadd.f32 0.0, %v5616
  %5618 = vmatmul.f32.gmra.mxu0 %v5461
  %v5619 = vpop.f32.mrf.mxu0
  %v5620 = vadd.f32 0.0, %v5619
  %5621 = vmatmul.f32.gmra.mxu0 %v5462
  %v5622 = vpop.f32.mrf.mxu0
  %v5623 = vadd.f32 0.0, %v5622
  %5624 = vmatmul.f32.gmra.mxu0 %v5463
  %v5625 = vpop.f32.mrf.mxu0
  %v5626 = vadd.f32 0.0, %v5625
  %5627 = vmatmul.f32.gmra.mxu0 %v5464
  %v5628 = vpop.f32.mrf.mxu0
  %v5629 = vadd.f32 0.0, %v5628
  %5630 = vmatmul.f32.gmra.mxu0 %v5465
  %v5631 = vpop.f32.mrf.mxu0
  %v5632 = vadd.f32 0.0, %v5631
  %5633 = vmatmul.f32.gmra.mxu0 %v5466
  %v5634 = vpop.f32.mrf.mxu0
  %v5635 = vadd.f32 0.0, %v5634
  %5636 = vmatmul.f32.gmra.mxu0 %v5467
  %v5637 = vpop.f32.mrf.mxu0
  %v5638 = vadd.f32 0.0, %v5637
  %5639 = vmatmul.f32.gmra.mxu0 %v5468
  %v5640 = vpop.f32.mrf.mxu0
  %v5641 = vadd.f32 0.0, %v5640
  %5642 = vmatmul.f32.gmra.mxu0 %v5469
  %v5643 = vpop.f32.mrf.mxu0
  %v5644 = vadd.f32 0.0, %v5643
  %5645 = vmatmul.f32.gmra.mxu0 %v5470
  %v5646 = vpop.f32.mrf.mxu0
  %v5647 = vadd.f32 0.0, %v5646
  %5648 = vmatmul.f32.gmra.mxu0 %v5471
  %v5649 = vpop.f32.mrf.mxu0
  %v5650 = vadd.f32 0.0, %v5649
  %5651 = vmatmul.f32.gmra.mxu0 %v5472
  %v5652 = vpop.f32.mrf.mxu0
  %v5653 = vadd.f32 0.0, %v5652
  %5654 = vmatmul.f32.gmra.mxu0 %v5473
  %v5655 = vpop.f32.mrf.mxu0
  %v5656 = vadd.f32 0.0, %v5655
  %5657 = vmatmul.f32.gmra.mxu0 %v5474
  %v5658 = vpop.f32.mrf.mxu0
  %v5659 = vadd.f32 0.0, %v5658
  %5660 = vmatmul.f32.gmra.mxu0 %v5475
  %v5661 = vpop.f32.mrf.mxu0
  %v5662 = vadd.f32 0.0, %v5661
  %5663 = vmatmul.f32.gmra.mxu0 %v5476
  %v5664 = vpop.f32.mrf.mxu0
  %v5665 = vadd.f32 0.0, %v5664
  %5666 = vmatmul.f32.gmra.mxu0 %v5477
  %v5667 = vpop.f32.mrf.mxu0
  %v5668 = vadd.f32 0.0, %v5667
  %5669 = vmatmul.f32.gmra.mxu0 %v5478
  %v5670 = vpop.f32.mrf.mxu0
  %v5671 = vadd.f32 0.0, %v5670
  %5672 = vmatmul.f32.gmra.mxu0 %v5479
  %v5673 = vpop.f32.mrf.mxu0
  %v5674 = vadd.f32 0.0, %v5673
  %5675 = vmatmul.f32.gmra.mxu0 %v5480
  %v5676 = vpop.f32.mrf.mxu0
  %v5677 = vadd.f32 0.0, %v5676
  %5678 = vmatmul.f32.gmra.mxu0 %v5481
  %v5679 = vpop.f32.mrf.mxu0
  %v5680 = vadd.f32 0.0, %v5679
  %5681 = vmatmul.f32.gmra.mxu0 %v5482
  %v5682 = vpop.f32.mrf.mxu0
  %v5683 = vadd.f32 0.0, %v5682
  %5684 = vmatmul.f32.gmra.mxu0 %v5483
  %v5685 = vpop.f32.mrf.mxu0
  %v5686 = vadd.f32 0.0, %v5685
  %5687 = vmatmul.f32.gmra.mxu0 %v5484
  %v5688 = vpop.f32.mrf.mxu0
  %v5689 = vadd.f32 0.0, %v5688
  %5690 = vmatmul.f32.gmra.mxu0 %v5485
  %v5691 = vpop.f32.mrf.mxu0
  %v5692 = vadd.f32 0.0, %v5691
  %5693 = vmatmul.f32.gmra.mxu0 %v5486
  %v5694 = vpop.f32.mrf.mxu0
  %v5695 = vadd.f32 0.0, %v5694
  %5696 = vmatmul.f32.gmra.mxu0 %v5487
  %v5697 = vpop.f32.mrf.mxu0
  %v5698 = vadd.f32 0.0, %v5697
  %5699 = vmatmul.f32.gmra.mxu0 %v5488
  %v5700 = vpop.f32.mrf.mxu0
  %v5701 = vadd.f32 0.0, %v5700
  %5702 = vmatmul.f32.gmra.mxu0 %v5489
  %v5703 = vpop.f32.mrf.mxu0
  %v5704 = vadd.f32 0.0, %v5703
  %5705 = vmatmul.f32.gmra.mxu0 %v5490
  %v5706 = vpop.f32.mrf.mxu0
  %v5707 = vadd.f32 0.0, %v5706
  %5708 = vmatmul.f32.gmra.mxu0 %v5491
  %v5709 = vpop.f32.mrf.mxu0
  %v5710 = vadd.f32 0.0, %v5709
  %5711 = vmatmul.f32.gmra.mxu0 %v5492
  %v5712 = vpop.f32.mrf.mxu0
  %v5713 = vadd.f32 0.0, %v5712
  %5714 = vmatmul.f32.gmra.mxu0 %v5493
  %v5715 = vpop.f32.mrf.mxu0
  %v5716 = vadd.f32 0.0, %v5715
  %5717 = vmatmul.f32.gmra.mxu0 %v5494
  %v5718 = vpop.f32.mrf.mxu0
  %v5719 = vadd.f32 0.0, %v5718
  %5720 = vdwg.mxu0
  %v5721 = vadd.f32 %v5367, %v5530
  %v5722 = vadd.f32 %v5368, %v5533
  %v5723 = vadd.f32 %v5369, %v5536
  %v5724 = vadd.f32 %v5370, %v5539
  %v5725 = vadd.f32 %v5371, %v5542
  %v5726 = vadd.f32 %v5372, %v5545
  %v5727 = vadd.f32 %v5373, %v5548
  %v5728 = vadd.f32 %v5374, %v5551
  %v5729 = vadd.f32 %v5375, %v5554
  %v5730 = vadd.f32 %v5376, %v5557
  %v5731 = vadd.f32 %v5377, %v5560
  %v5732 = vadd.f32 %v5378, %v5563
  %v5733 = vadd.f32 %v5379, %v5566
  %v5734 = vadd.f32 %v5380, %v5569
  %v5735 = vadd.f32 %v5381, %v5572
  %v5736 = vadd.f32 %v5382, %v5575
  %v5737 = vadd.f32 %v5383, %v5578
  %v5738 = vadd.f32 %v5384, %v5581
  %v5739 = vadd.f32 %v5385, %v5584
  %v5740 = vadd.f32 %v5386, %v5587
  %v5741 = vadd.f32 %v5387, %v5590
  %v5742 = vadd.f32 %v5388, %v5593
  %v5743 = vadd.f32 %v5389, %v5596
  %v5744 = vadd.f32 %v5390, %v5599
  %v5745 = vadd.f32 %v5391, %v5602
  %v5746 = vadd.f32 %v5392, %v5605
  %v5747 = vadd.f32 %v5393, %v5608
  %v5748 = vadd.f32 %v5394, %v5611
  %v5749 = vadd.f32 %v5395, %v5614
  %v5750 = vadd.f32 %v5396, %v5617
  %v5751 = vadd.f32 %v5397, %v5620
  %v5752 = vadd.f32 %v5398, %v5623
  %v5753 = vadd.f32 %v5399, %v5626
  %v5754 = vadd.f32 %v5400, %v5629
  %v5755 = vadd.f32 %v5401, %v5632
  %v5756 = vadd.f32 %v5402, %v5635
  %v5757 = vadd.f32 %v5403, %v5638
  %v5758 = vadd.f32 %v5404, %v5641
  %v5759 = vadd.f32 %v5405, %v5644
  %v5760 = vadd.f32 %v5406, %v5647
  %v5761 = vadd.f32 %v5407, %v5650
  %v5762 = vadd.f32 %v5408, %v5653
  %v5763 = vadd.f32 %v5409, %v5656
  %v5764 = vadd.f32 %v5410, %v5659
  %v5765 = vadd.f32 %v5411, %v5662
  %v5766 = vadd.f32 %v5412, %v5665
  %v5767 = vadd.f32 %v5413, %v5668
  %v5768 = vadd.f32 %v5414, %v5671
  %v5769 = vadd.f32 %v5415, %v5674
  %v5770 = vadd.f32 %v5416, %v5677
  %v5771 = vadd.f32 %v5417, %v5680
  %v5772 = vadd.f32 %v5418, %v5683
  %v5773 = vadd.f32 %v5419, %v5686
  %v5774 = vadd.f32 %v5420, %v5689
  %v5775 = vadd.f32 %v5421, %v5692
  %v5776 = vadd.f32 %v5422, %v5695
  %v5777 = vadd.f32 %v5423, %v5698
  %v5778 = vadd.f32 %v5424, %v5701
  %v5779 = vadd.f32 %v5425, %v5704
  %v5780 = vadd.f32 %v5426, %v5707
  %v5781 = vadd.f32 %v5427, %v5710
  %v5782 = vadd.f32 %v5428, %v5713
  %v5783 = vadd.f32 %v5429, %v5716
  %v5784 = vadd.f32 %v5430, %v5719
  %s5785 = scalar_lea.vmem [#allocation2], 64
  %v5786 = vld [vmem:[%s5785 + $0x7] sm:$0xff]
  %v5787 = vld [vmem:[%s5785 + $0xf] sm:$0xff]
  %v5788 = vld [vmem:[%s5785 + $0x27] sm:$0xff]
  %v5789 = vld [vmem:[%s5785 + $0x2f] sm:$0xff]
  %v5790 = vld [vmem:[%s5785 + $0x47] sm:$0xff]
  %v5791 = vld [vmem:[%s5785 + $0x4f] sm:$0xff]
  %v5792 = vld [vmem:[%s5785 + $0x67] sm:$0xff]
  %v5793 = vld [vmem:[%s5785 + $0x6f] sm:$0xff]
  %v5794 = vld [vmem:[%s5785 + $0x87] sm:$0xff]
  %v5795 = vld [vmem:[%s5785 + $0x8f] sm:$0xff]
  %v5796 = vld [vmem:[%s5785 + $0xa7] sm:$0xff]
  %v5797 = vld [vmem:[%s5785 + $0xaf] sm:$0xff]
  %v5798 = vld [vmem:[%s5785 + $0xc7] sm:$0xff]
  %v5799 = vld [vmem:[%s5785 + $0xcf] sm:$0xff]
  %v5800 = vld [vmem:[%s5785 + $0xe7] sm:$0xff]
  %v5801 = vld [vmem:[%s5785 + $0xef] sm:$0xff]
  %v5802 = vld [vmem:[%s5785 + $0x107] sm:$0xff]
  %v5803 = vld [vmem:[%s5785 + $0x10f] sm:$0xff]
  %v5804 = vld [vmem:[%s5785 + $0x127] sm:$0xff]
  %v5805 = vld [vmem:[%s5785 + $0x12f] sm:$0xff]
  %v5806 = vld [vmem:[%s5785 + $0x147] sm:$0xff]
  %v5807 = vld [vmem:[%s5785 + $0x14f] sm:$0xff]
  %v5808 = vld [vmem:[%s5785 + $0x167] sm:$0xff]
  %v5809 = vld [vmem:[%s5785 + $0x16f] sm:$0xff]
  %v5810 = vld [vmem:[%s5785 + $0x187] sm:$0xff]
  %v5811 = vld [vmem:[%s5785 + $0x18f] sm:$0xff]
  %v5812 = vld [vmem:[%s5785 + $0x1a7] sm:$0xff]
  %v5813 = vld [vmem:[%s5785 + $0x1af] sm:$0xff]
  %v5814 = vld [vmem:[%s5785 + $0x1c7] sm:$0xff]
  %v5815 = vld [vmem:[%s5785 + $0x1cf] sm:$0xff]
  %v5816 = vld [vmem:[%s5785 + $0x1e7] sm:$0xff]
  %v5817 = vld [vmem:[%s5785 + $0x1ef] sm:$0xff]
  %v5818 = vld [vmem:[%s5785 + $0x247] sm:$0xff]
  %v5819 = vld [vmem:[%s5785 + $0x24f] sm:$0xff]
  %v5820 = vld [vmem:[%s5785 + $0x267] sm:$0xff]
  %v5821 = vld [vmem:[%s5785 + $0x26f] sm:$0xff]
  %v5822 = vld [vmem:[%s5785 + $0x287] sm:$0xff]
  %v5823 = vld [vmem:[%s5785 + $0x28f] sm:$0xff]
  %v5824 = vld [vmem:[%s5785 + $0x2a7] sm:$0xff]
  %v5825 = vld [vmem:[%s5785 + $0x2af] sm:$0xff]
  %v5826 = vld [vmem:[%s5785 + $0x2c7] sm:$0xff]
  %v5827 = vld [vmem:[%s5785 + $0x2cf] sm:$0xff]
  %v5828 = vld [vmem:[%s5785 + $0x2e7] sm:$0xff]
  %v5829 = vld [vmem:[%s5785 + $0x2ef] sm:$0xff]
  %v5830 = vld [vmem:[%s5785 + $0x307] sm:$0xff]
  %v5831 = vld [vmem:[%s5785 + $0x30f] sm:$0xff]
  %v5832 = vld [vmem:[%s5785 + $0x327] sm:$0xff]
  %v5833 = vld [vmem:[%s5785 + $0x32f] sm:$0xff]
  %v5834 = vld [vmem:[%s5785 + $0x347] sm:$0xff]
  %v5835 = vld [vmem:[%s5785 + $0x34f] sm:$0xff]
  %v5836 = vld [vmem:[%s5785 + $0x367] sm:$0xff]
  %v5837 = vld [vmem:[%s5785 + $0x36f] sm:$0xff]
  %v5838 = vld [vmem:[%s5785 + $0x387] sm:$0xff]
  %v5839 = vld [vmem:[%s5785 + $0x38f] sm:$0xff]
  %v5840 = vld [vmem:[%s5785 + $0x3a7] sm:$0xff]
  %v5841 = vld [vmem:[%s5785 + $0x3af] sm:$0xff]
  %v5842 = vld [vmem:[%s5785 + $0x3c7] sm:$0xff]
  %v5843 = vld [vmem:[%s5785 + $0x3cf] sm:$0xff]
  %v5844 = vld [vmem:[%s5785 + $0x3e7] sm:$0xff]
  %v5845 = vld [vmem:[%s5785 + $0x3ef] sm:$0xff]
  %v5846 = vld [vmem:[%s5785 + $0x407] sm:$0xff]
  %v5847 = vld [vmem:[%s5785 + $0x40f] sm:$0xff]
  %v5848 = vld [vmem:[%s5785 + $0x427] sm:$0xff]
  %v5849 = vld [vmem:[%s5785 + $0x42f] sm:$0xff]
  %s5850 = scalar_lea.vmem %s5, 768
  %v5851 = vld [vmem:[%s5850] sm:$0xff]
  %v5852 = vld [vmem:[%s5850 + $0x8] sm:$0xff]
  %v5853 = vld [vmem:[%s5850 + $0x10] sm:$0xff]
  %v5854 = vld [vmem:[%s5850 + $0x18] sm:$0xff]
  %v5855 = vld [vmem:[%s5850 + $0x20] sm:$0xff]
  %v5856 = vld [vmem:[%s5850 + $0x28] sm:$0xff]
  %v5857 = vld [vmem:[%s5850 + $0x30] sm:$0xff]
  %v5858 = vld [vmem:[%s5850 + $0x38] sm:$0xff]
  %v5859 = vld [vmem:[%s5850 + $0x40] sm:$0xff]
  %v5860 = vld [vmem:[%s5850 + $0x48] sm:$0xff]
  %v5861 = vld [vmem:[%s5850 + $0x50] sm:$0xff]
  %v5862 = vld [vmem:[%s5850 + $0x58] sm:$0xff]
  %v5863 = vld [vmem:[%s5850 + $0x60] sm:$0xff]
  %v5864 = vld [vmem:[%s5850 + $0x68] sm:$0xff]
  %v5865 = vld [vmem:[%s5850 + $0x70] sm:$0xff]
  %v5866 = vld [vmem:[%s5850 + $0x78] sm:$0xff]
  %5867 = vmatpush.msra.mxu0 %v5866
  %5868 = vmatpush.msra.mxu0 %v5865
  %5869 = vmatpush.msra.mxu0 %v5864
  %5870 = vmatpush.msra.mxu0 %v5863
  %5871 = vmatpush.msra.mxu0 %v5862
  %5872 = vmatpush.msra.mxu0 %v5861
  %5873 = vmatpush.msra.mxu0 %v5860
  %5874 = vmatpush.msra.mxu0 %v5859
  %5875 = vmatpush.msra.mxu0 %v5858
  %5876 = vmatpush.msra.mxu0 %v5857
  %5877 = vmatpush.msra.mxu0 %v5856
  %5878 = vmatpush.msra.mxu0 %v5855
  %5879 = vmatpush.msra.mxu0 %v5854
  %5880 = vmatpush.msra.mxu0 %v5853
  %5881 = vmatpush.msra.mxu0 %v5852
  %5882 = vmatpush.msra.mxu0 %v5851
  %5883 = vmatmul.f32.gmra.mxu0 %v5786
  %v5884 = vpop.f32.mrf.mxu0
  %v5885 = vadd.f32 0.0, %v5884
  %5886 = vmatmul.f32.gmra.mxu0 %v5787
  %v5887 = vpop.f32.mrf.mxu0
  %v5888 = vadd.f32 0.0, %v5887
  %5889 = vmatmul.f32.gmra.mxu0 %v5788
  %v5890 = vpop.f32.mrf.mxu0
  %v5891 = vadd.f32 0.0, %v5890
  %5892 = vmatmul.f32.gmra.mxu0 %v5789
  %v5893 = vpop.f32.mrf.mxu0
  %v5894 = vadd.f32 0.0, %v5893
  %5895 = vmatmul.f32.gmra.mxu0 %v5790
  %v5896 = vpop.f32.mrf.mxu0
  %v5897 = vadd.f32 0.0, %v5896
  %5898 = vmatmul.f32.gmra.mxu0 %v5791
  %v5899 = vpop.f32.mrf.mxu0
  %v5900 = vadd.f32 0.0, %v5899
  %5901 = vmatmul.f32.gmra.mxu0 %v5792
  %v5902 = vpop.f32.mrf.mxu0
  %v5903 = vadd.f32 0.0, %v5902
  %5904 = vmatmul.f32.gmra.mxu0 %v5793
  %v5905 = vpop.f32.mrf.mxu0
  %v5906 = vadd.f32 0.0, %v5905
  %5907 = vmatmul.f32.gmra.mxu0 %v5794
  %v5908 = vpop.f32.mrf.mxu0
  %v5909 = vadd.f32 0.0, %v5908
  %5910 = vmatmul.f32.gmra.mxu0 %v5795
  %v5911 = vpop.f32.mrf.mxu0
  %v5912 = vadd.f32 0.0, %v5911
  %5913 = vmatmul.f32.gmra.mxu0 %v5796
  %v5914 = vpop.f32.mrf.mxu0
  %v5915 = vadd.f32 0.0, %v5914
  %5916 = vmatmul.f32.gmra.mxu0 %v5797
  %v5917 = vpop.f32.mrf.mxu0
  %v5918 = vadd.f32 0.0, %v5917
  %5919 = vmatmul.f32.gmra.mxu0 %v5798
  %v5920 = vpop.f32.mrf.mxu0
  %v5921 = vadd.f32 0.0, %v5920
  %5922 = vmatmul.f32.gmra.mxu0 %v5799
  %v5923 = vpop.f32.mrf.mxu0
  %v5924 = vadd.f32 0.0, %v5923
  %5925 = vmatmul.f32.gmra.mxu0 %v5800
  %v5926 = vpop.f32.mrf.mxu0
  %v5927 = vadd.f32 0.0, %v5926
  %5928 = vmatmul.f32.gmra.mxu0 %v5801
  %v5929 = vpop.f32.mrf.mxu0
  %v5930 = vadd.f32 0.0, %v5929
  %5931 = vmatmul.f32.gmra.mxu0 %v5802
  %v5932 = vpop.f32.mrf.mxu0
  %v5933 = vadd.f32 0.0, %v5932
  %5934 = vmatmul.f32.gmra.mxu0 %v5803
  %v5935 = vpop.f32.mrf.mxu0
  %v5936 = vadd.f32 0.0, %v5935
  %5937 = vmatmul.f32.gmra.mxu0 %v5804
  %v5938 = vpop.f32.mrf.mxu0
  %v5939 = vadd.f32 0.0, %v5938
  %5940 = vmatmul.f32.gmra.mxu0 %v5805
  %v5941 = vpop.f32.mrf.mxu0
  %v5942 = vadd.f32 0.0, %v5941
  %5943 = vmatmul.f32.gmra.mxu0 %v5806
  %v5944 = vpop.f32.mrf.mxu0
  %v5945 = vadd.f32 0.0, %v5944
  %5946 = vmatmul.f32.gmra.mxu0 %v5807
  %v5947 = vpop.f32.mrf.mxu0
  %v5948 = vadd.f32 0.0, %v5947
  %5949 = vmatmul.f32.gmra.mxu0 %v5808
  %v5950 = vpop.f32.mrf.mxu0
  %v5951 = vadd.f32 0.0, %v5950
  %5952 = vmatmul.f32.gmra.mxu0 %v5809
  %v5953 = vpop.f32.mrf.mxu0
  %v5954 = vadd.f32 0.0, %v5953
  %5955 = vmatmul.f32.gmra.mxu0 %v5810
  %v5956 = vpop.f32.mrf.mxu0
  %v5957 = vadd.f32 0.0, %v5956
  %5958 = vmatmul.f32.gmra.mxu0 %v5811
  %v5959 = vpop.f32.mrf.mxu0
  %v5960 = vadd.f32 0.0, %v5959
  %5961 = vmatmul.f32.gmra.mxu0 %v5812
  %v5962 = vpop.f32.mrf.mxu0
  %v5963 = vadd.f32 0.0, %v5962
  %5964 = vmatmul.f32.gmra.mxu0 %v5813
  %v5965 = vpop.f32.mrf.mxu0
  %v5966 = vadd.f32 0.0, %v5965
  %5967 = vmatmul.f32.gmra.mxu0 %v5814
  %v5968 = vpop.f32.mrf.mxu0
  %v5969 = vadd.f32 0.0, %v5968
  %5970 = vmatmul.f32.gmra.mxu0 %v5815
  %v5971 = vpop.f32.mrf.mxu0
  %v5972 = vadd.f32 0.0, %v5971
  %5973 = vmatmul.f32.gmra.mxu0 %v5816
  %v5974 = vpop.f32.mrf.mxu0
  %v5975 = vadd.f32 0.0, %v5974
  %5976 = vmatmul.f32.gmra.mxu0 %v5817
  %v5977 = vpop.f32.mrf.mxu0
  %v5978 = vadd.f32 0.0, %v5977
  %5979 = vmatmul.f32.gmra.mxu0 %v5818
  %v5980 = vpop.f32.mrf.mxu0
  %v5981 = vadd.f32 0.0, %v5980
  %5982 = vmatmul.f32.gmra.mxu0 %v5819
  %v5983 = vpop.f32.mrf.mxu0
  %v5984 = vadd.f32 0.0, %v5983
  %5985 = vmatmul.f32.gmra.mxu0 %v5820
  %v5986 = vpop.f32.mrf.mxu0
  %v5987 = vadd.f32 0.0, %v5986
  %5988 = vmatmul.f32.gmra.mxu0 %v5821
  %v5989 = vpop.f32.mrf.mxu0
  %v5990 = vadd.f32 0.0, %v5989
  %5991 = vmatmul.f32.gmra.mxu0 %v5822
  %v5992 = vpop.f32.mrf.mxu0
  %v5993 = vadd.f32 0.0, %v5992
  %5994 = vmatmul.f32.gmra.mxu0 %v5823
  %v5995 = vpop.f32.mrf.mxu0
  %v5996 = vadd.f32 0.0, %v5995
  %5997 = vmatmul.f32.gmra.mxu0 %v5824
  %v5998 = vpop.f32.mrf.mxu0
  %v5999 = vadd.f32 0.0, %v5998
  %6000 = vmatmul.f32.gmra.mxu0 %v5825
  %v6001 = vpop.f32.mrf.mxu0
  %v6002 = vadd.f32 0.0, %v6001
  %6003 = vmatmul.f32.gmra.mxu0 %v5826
  %v6004 = vpop.f32.mrf.mxu0
  %v6005 = vadd.f32 0.0, %v6004
  %6006 = vmatmul.f32.gmra.mxu0 %v5827
  %v6007 = vpop.f32.mrf.mxu0
  %v6008 = vadd.f32 0.0, %v6007
  %6009 = vmatmul.f32.gmra.mxu0 %v5828
  %v6010 = vpop.f32.mrf.mxu0
  %v6011 = vadd.f32 0.0, %v6010
  %6012 = vmatmul.f32.gmra.mxu0 %v5829
  %v6013 = vpop.f32.mrf.mxu0
  %v6014 = vadd.f32 0.0, %v6013
  %6015 = vmatmul.f32.gmra.mxu0 %v5830
  %v6016 = vpop.f32.mrf.mxu0
  %v6017 = vadd.f32 0.0, %v6016
  %6018 = vmatmul.f32.gmra.mxu0 %v5831
  %v6019 = vpop.f32.mrf.mxu0
  %v6020 = vadd.f32 0.0, %v6019
  %6021 = vmatmul.f32.gmra.mxu0 %v5832
  %v6022 = vpop.f32.mrf.mxu0
  %v6023 = vadd.f32 0.0, %v6022
  %6024 = vmatmul.f32.gmra.mxu0 %v5833
  %v6025 = vpop.f32.mrf.mxu0
  %v6026 = vadd.f32 0.0, %v6025
  %6027 = vmatmul.f32.gmra.mxu0 %v5834
  %v6028 = vpop.f32.mrf.mxu0
  %v6029 = vadd.f32 0.0, %v6028
  %6030 = vmatmul.f32.gmra.mxu0 %v5835
  %v6031 = vpop.f32.mrf.mxu0
  %v6032 = vadd.f32 0.0, %v6031
  %6033 = vmatmul.f32.gmra.mxu0 %v5836
  %v6034 = vpop.f32.mrf.mxu0
  %v6035 = vadd.f32 0.0, %v6034
  %6036 = vmatmul.f32.gmra.mxu0 %v5837
  %v6037 = vpop.f32.mrf.mxu0
  %v6038 = vadd.f32 0.0, %v6037
  %6039 = vmatmul.f32.gmra.mxu0 %v5838
  %v6040 = vpop.f32.mrf.mxu0
  %v6041 = vadd.f32 0.0, %v6040
  %6042 = vmatmul.f32.gmra.mxu0 %v5839
  %v6043 = vpop.f32.mrf.mxu0
  %v6044 = vadd.f32 0.0, %v6043
  %6045 = vmatmul.f32.gmra.mxu0 %v5840
  %v6046 = vpop.f32.mrf.mxu0
  %v6047 = vadd.f32 0.0, %v6046
  %6048 = vmatmul.f32.gmra.mxu0 %v5841
  %v6049 = vpop.f32.mrf.mxu0
  %v6050 = vadd.f32 0.0, %v6049
  %6051 = vmatmul.f32.gmra.mxu0 %v5842
  %v6052 = vpop.f32.mrf.mxu0
  %v6053 = vadd.f32 0.0, %v6052
  %6054 = vmatmul.f32.gmra.mxu0 %v5843
  %v6055 = vpop.f32.mrf.mxu0
  %v6056 = vadd.f32 0.0, %v6055
  %6057 = vmatmul.f32.gmra.mxu0 %v5844
  %v6058 = vpop.f32.mrf.mxu0
  %v6059 = vadd.f32 0.0, %v6058
  %6060 = vmatmul.f32.gmra.mxu0 %v5845
  %v6061 = vpop.f32.mrf.mxu0
  %v6062 = vadd.f32 0.0, %v6061
  %6063 = vmatmul.f32.gmra.mxu0 %v5846
  %v6064 = vpop.f32.mrf.mxu0
  %v6065 = vadd.f32 0.0, %v6064
  %6066 = vmatmul.f32.gmra.mxu0 %v5847
  %v6067 = vpop.f32.mrf.mxu0
  %v6068 = vadd.f32 0.0, %v6067
  %6069 = vmatmul.f32.gmra.mxu0 %v5848
  %v6070 = vpop.f32.mrf.mxu0
  %v6071 = vadd.f32 0.0, %v6070
  %6072 = vmatmul.f32.gmra.mxu0 %v5849
  %v6073 = vpop.f32.mrf.mxu0
  %v6074 = vadd.f32 0.0, %v6073
  %6075 = vdwg.mxu0
  %v6076 = vadd.f32 %v5721, %v5885
  %v6077 = vadd.f32 %v5722, %v5888
  %v6078 = vadd.f32 %v5723, %v5891
  %v6079 = vadd.f32 %v5724, %v5894
  %v6080 = vadd.f32 %v5725, %v5897
  %v6081 = vadd.f32 %v5726, %v5900
  %v6082 = vadd.f32 %v5727, %v5903
  %v6083 = vadd.f32 %v5728, %v5906
  %v6084 = vadd.f32 %v5729, %v5909
  %v6085 = vadd.f32 %v5730, %v5912
  %v6086 = vadd.f32 %v5731, %v5915
  %v6087 = vadd.f32 %v5732, %v5918
  %v6088 = vadd.f32 %v5733, %v5921
  %v6089 = vadd.f32 %v5734, %v5924
  %v6090 = vadd.f32 %v5735, %v5927
  %v6091 = vadd.f32 %v5736, %v5930
  %v6092 = vadd.f32 %v5737, %v5933
  %v6093 = vadd.f32 %v5738, %v5936
  %v6094 = vadd.f32 %v5739, %v5939
  %v6095 = vadd.f32 %v5740, %v5942
  %v6096 = vadd.f32 %v5741, %v5945
  %v6097 = vadd.f32 %v5742, %v5948
  %v6098 = vadd.f32 %v5743, %v5951
  %v6099 = vadd.f32 %v5744, %v5954
  %v6100 = vadd.f32 %v5745, %v5957
  %v6101 = vadd.f32 %v5746, %v5960
  %v6102 = vadd.f32 %v5747, %v5963
  %v6103 = vadd.f32 %v5748, %v5966
  %v6104 = vadd.f32 %v5749, %v5969
  %v6105 = vadd.f32 %v5750, %v5972
  %v6106 = vadd.f32 %v5751, %v5975
  %v6107 = vadd.f32 %v5752, %v5978
  %v6108 = vadd.f32 %v5753, %v5981
  %v6109 = vadd.f32 %v5754, %v5984
  %v6110 = vadd.f32 %v5755, %v5987
  %v6111 = vadd.f32 %v5756, %v5990
  %v6112 = vadd.f32 %v5757, %v5993
  %v6113 = vadd.f32 %v5758, %v5996
  %v6114 = vadd.f32 %v5759, %v5999
  %v6115 = vadd.f32 %v5760, %v6002
  %v6116 = vadd.f32 %v5761, %v6005
  %v6117 = vadd.f32 %v5762, %v6008
  %v6118 = vadd.f32 %v5763, %v6011
  %v6119 = vadd.f32 %v5764, %v6014
  %v6120 = vadd.f32 %v5765, %v6017
  %v6121 = vadd.f32 %v5766, %v6020
  %v6122 = vadd.f32 %v5767, %v6023
  %v6123 = vadd.f32 %v5768, %v6026
  %v6124 = vadd.f32 %v5769, %v6029
  %v6125 = vadd.f32 %v5770, %v6032
  %v6126 = vadd.f32 %v5771, %v6035
  %v6127 = vadd.f32 %v5772, %v6038
  %v6128 = vadd.f32 %v5773, %v6041
  %v6129 = vadd.f32 %v5774, %v6044
  %v6130 = vadd.f32 %v5775, %v6047
  %v6131 = vadd.f32 %v5776, %v6050
  %v6132 = vadd.f32 %v5777, %v6053
  %v6133 = vadd.f32 %v5778, %v6056
  %v6134 = vadd.f32 %v5779, %v6059
  %v6135 = vadd.f32 %v5780, %v6062
  %v6136 = vadd.f32 %v5781, %v6065
  %v6137 = vadd.f32 %v5782, %v6068
  %v6138 = vadd.f32 %v5783, %v6071
  %v6139 = vadd.f32 %v5784, %v6074
  %v6140 = vld [vmem:[%s5785 + $0x8] sm:$0xff]
  %v6141 = vld [vmem:[%s5785 + $0x10] sm:$0xff]
  %v6142 = vld [vmem:[%s5785 + $0x28] sm:$0xff]
  %v6143 = vld [vmem:[%s5785 + $0x30] sm:$0xff]
  %v6144 = vld [vmem:[%s5785 + $0x48] sm:$0xff]
  %v6145 = vld [vmem:[%s5785 + $0x50] sm:$0xff]
  %v6146 = vld [vmem:[%s5785 + $0x68] sm:$0xff]
  %v6147 = vld [vmem:[%s5785 + $0x70] sm:$0xff]
  %v6148 = vld [vmem:[%s5785 + $0x88] sm:$0xff]
  %v6149 = vld [vmem:[%s5785 + $0x90] sm:$0xff]
  %v6150 = vld [vmem:[%s5785 + $0xa8] sm:$0xff]
  %v6151 = vld [vmem:[%s5785 + $0xb0] sm:$0xff]
  %v6152 = vld [vmem:[%s5785 + $0xc8] sm:$0xff]
  %v6153 = vld [vmem:[%s5785 + $0xd0] sm:$0xff]
  %v6154 = vld [vmem:[%s5785 + $0xe8] sm:$0xff]
  %v6155 = vld [vmem:[%s5785 + $0xf0] sm:$0xff]
  %v6156 = vld [vmem:[%s5785 + $0x108] sm:$0xff]
  %v6157 = vld [vmem:[%s5785 + $0x110] sm:$0xff]
  %v6158 = vld [vmem:[%s5785 + $0x128] sm:$0xff]
  %v6159 = vld [vmem:[%s5785 + $0x130] sm:$0xff]
  %v6160 = vld [vmem:[%s5785 + $0x148] sm:$0xff]
  %v6161 = vld [vmem:[%s5785 + $0x150] sm:$0xff]
  %v6162 = vld [vmem:[%s5785 + $0x168] sm:$0xff]
  %v6163 = vld [vmem:[%s5785 + $0x170] sm:$0xff]
  %v6164 = vld [vmem:[%s5785 + $0x188] sm:$0xff]
  %v6165 = vld [vmem:[%s5785 + $0x190] sm:$0xff]
  %v6166 = vld [vmem:[%s5785 + $0x1a8] sm:$0xff]
  %v6167 = vld [vmem:[%s5785 + $0x1b0] sm:$0xff]
  %v6168 = vld [vmem:[%s5785 + $0x1c8] sm:$0xff]
  %v6169 = vld [vmem:[%s5785 + $0x1d0] sm:$0xff]
  %v6170 = vld [vmem:[%s5785 + $0x1e8] sm:$0xff]
  %v6171 = vld [vmem:[%s5785 + $0x1f0] sm:$0xff]
  %v6172 = vld [vmem:[%s5785 + $0x248] sm:$0xff]
  %v6173 = vld [vmem:[%s5785 + $0x250] sm:$0xff]
  %v6174 = vld [vmem:[%s5785 + $0x268] sm:$0xff]
  %v6175 = vld [vmem:[%s5785 + $0x270] sm:$0xff]
  %v6176 = vld [vmem:[%s5785 + $0x288] sm:$0xff]
  %v6177 = vld [vmem:[%s5785 + $0x290] sm:$0xff]
  %v6178 = vld [vmem:[%s5785 + $0x2a8] sm:$0xff]
  %v6179 = vld [vmem:[%s5785 + $0x2b0] sm:$0xff]
  %v6180 = vld [vmem:[%s5785 + $0x2c8] sm:$0xff]
  %v6181 = vld [vmem:[%s5785 + $0x2d0] sm:$0xff]
  %v6182 = vld [vmem:[%s5785 + $0x2e8] sm:$0xff]
  %v6183 = vld [vmem:[%s5785 + $0x2f0] sm:$0xff]
  %v6184 = vld [vmem:[%s5785 + $0x308] sm:$0xff]
  %v6185 = vld [vmem:[%s5785 + $0x310] sm:$0xff]
  %v6186 = vld [vmem:[%s5785 + $0x328] sm:$0xff]
  %v6187 = vld [vmem:[%s5785 + $0x330] sm:$0xff]
  %v6188 = vld [vmem:[%s5785 + $0x348] sm:$0xff]
  %v6189 = vld [vmem:[%s5785 + $0x350] sm:$0xff]
  %v6190 = vld [vmem:[%s5785 + $0x368] sm:$0xff]
  %v6191 = vld [vmem:[%s5785 + $0x370] sm:$0xff]
  %v6192 = vld [vmem:[%s5785 + $0x388] sm:$0xff]
  %v6193 = vld [vmem:[%s5785 + $0x390] sm:$0xff]
  %v6194 = vld [vmem:[%s5785 + $0x3a8] sm:$0xff]
  %v6195 = vld [vmem:[%s5785 + $0x3b0] sm:$0xff]
  %v6196 = vld [vmem:[%s5785 + $0x3c8] sm:$0xff]
  %v6197 = vld [vmem:[%s5785 + $0x3d0] sm:$0xff]
  %v6198 = vld [vmem:[%s5785 + $0x3e8] sm:$0xff]
  %v6199 = vld [vmem:[%s5785 + $0x3f0] sm:$0xff]
  %v6200 = vld [vmem:[%s5785 + $0x408] sm:$0xff]
  %v6201 = vld [vmem:[%s5785 + $0x410] sm:$0xff]
  %v6202 = vld [vmem:[%s5785 + $0x428] sm:$0xff]
  %v6203 = vld [vmem:[%s5785 + $0x430] sm:$0xff]
  %s6204 = scalar_lea.vmem %s5, 896
  %v6205 = vld [vmem:[%s6204] sm:$0xff]
  %v6206 = vld [vmem:[%s6204 + $0x8] sm:$0xff]
  %v6207 = vld [vmem:[%s6204 + $0x10] sm:$0xff]
  %v6208 = vld [vmem:[%s6204 + $0x18] sm:$0xff]
  %v6209 = vld [vmem:[%s6204 + $0x20] sm:$0xff]
  %v6210 = vld [vmem:[%s6204 + $0x28] sm:$0xff]
  %v6211 = vld [vmem:[%s6204 + $0x30] sm:$0xff]
  %v6212 = vld [vmem:[%s6204 + $0x38] sm:$0xff]
  %v6213 = vld [vmem:[%s6204 + $0x40] sm:$0xff]
  %v6214 = vld [vmem:[%s6204 + $0x48] sm:$0xff]
  %v6215 = vld [vmem:[%s6204 + $0x50] sm:$0xff]
  %v6216 = vld [vmem:[%s6204 + $0x58] sm:$0xff]
  %v6217 = vld [vmem:[%s6204 + $0x60] sm:$0xff]
  %v6218 = vld [vmem:[%s6204 + $0x68] sm:$0xff]
  %v6219 = vld [vmem:[%s6204 + $0x70] sm:$0xff]
  %v6220 = vld [vmem:[%s6204 + $0x78] sm:$0xff]
  %6221 = vmatpush.msra.mxu0 %v6220
  %6222 = vmatpush.msra.mxu0 %v6219
  %6223 = vmatpush.msra.mxu0 %v6218
  %6224 = vmatpush.msra.mxu0 %v6217
  %6225 = vmatpush.msra.mxu0 %v6216
  %6226 = vmatpush.msra.mxu0 %v6215
  %6227 = vmatpush.msra.mxu0 %v6214
  %6228 = vmatpush.msra.mxu0 %v6213
  %6229 = vmatpush.msra.mxu0 %v6212
  %6230 = vmatpush.msra.mxu0 %v6211
  %6231 = vmatpush.msra.mxu0 %v6210
  %6232 = vmatpush.msra.mxu0 %v6209
  %6233 = vmatpush.msra.mxu0 %v6208
  %6234 = vmatpush.msra.mxu0 %v6207
  %6235 = vmatpush.msra.mxu0 %v6206
  %6236 = vmatpush.msra.mxu0 %v6205
  %6237 = vmatmul.f32.gmra.mxu0 %v6140
  %v6238 = vpop.f32.mrf.mxu0
  %v6239 = vadd.f32 0.0, %v6238
  %6240 = vmatmul.f32.gmra.mxu0 %v6141
  %v6241 = vpop.f32.mrf.mxu0
  %v6242 = vadd.f32 0.0, %v6241
  %6243 = vmatmul.f32.gmra.mxu0 %v6142
  %v6244 = vpop.f32.mrf.mxu0
  %v6245 = vadd.f32 0.0, %v6244
  %6246 = vmatmul.f32.gmra.mxu0 %v6143
  %v6247 = vpop.f32.mrf.mxu0
  %v6248 = vadd.f32 0.0, %v6247
  %6249 = vmatmul.f32.gmra.mxu0 %v6144
  %v6250 = vpop.f32.mrf.mxu0
  %v6251 = vadd.f32 0.0, %v6250
  %6252 = vmatmul.f32.gmra.mxu0 %v6145
  %v6253 = vpop.f32.mrf.mxu0
  %v6254 = vadd.f32 0.0, %v6253
  %6255 = vmatmul.f32.gmra.mxu0 %v6146
  %v6256 = vpop.f32.mrf.mxu0
  %v6257 = vadd.f32 0.0, %v6256
  %6258 = vmatmul.f32.gmra.mxu0 %v6147
  %v6259 = vpop.f32.mrf.mxu0
  %v6260 = vadd.f32 0.0, %v6259
  %6261 = vmatmul.f32.gmra.mxu0 %v6148
  %v6262 = vpop.f32.mrf.mxu0
  %v6263 = vadd.f32 0.0, %v6262
  %6264 = vmatmul.f32.gmra.mxu0 %v6149
  %v6265 = vpop.f32.mrf.mxu0
  %v6266 = vadd.f32 0.0, %v6265
  %6267 = vmatmul.f32.gmra.mxu0 %v6150
  %v6268 = vpop.f32.mrf.mxu0
  %v6269 = vadd.f32 0.0, %v6268
  %6270 = vmatmul.f32.gmra.mxu0 %v6151
  %v6271 = vpop.f32.mrf.mxu0
  %v6272 = vadd.f32 0.0, %v6271
  %6273 = vmatmul.f32.gmra.mxu0 %v6152
  %v6274 = vpop.f32.mrf.mxu0
  %v6275 = vadd.f32 0.0, %v6274
  %6276 = vmatmul.f32.gmra.mxu0 %v6153
  %v6277 = vpop.f32.mrf.mxu0
  %v6278 = vadd.f32 0.0, %v6277
  %6279 = vmatmul.f32.gmra.mxu0 %v6154
  %v6280 = vpop.f32.mrf.mxu0
  %v6281 = vadd.f32 0.0, %v6280
  %6282 = vmatmul.f32.gmra.mxu0 %v6155
  %v6283 = vpop.f32.mrf.mxu0
  %v6284 = vadd.f32 0.0, %v6283
  %6285 = vmatmul.f32.gmra.mxu0 %v6156
  %v6286 = vpop.f32.mrf.mxu0
  %v6287 = vadd.f32 0.0, %v6286
  %6288 = vmatmul.f32.gmra.mxu0 %v6157
  %v6289 = vpop.f32.mrf.mxu0
  %v6290 = vadd.f32 0.0, %v6289
  %6291 = vmatmul.f32.gmra.mxu0 %v6158
  %v6292 = vpop.f32.mrf.mxu0
  %v6293 = vadd.f32 0.0, %v6292
  %6294 = vmatmul.f32.gmra.mxu0 %v6159
  %v6295 = vpop.f32.mrf.mxu0
  %v6296 = vadd.f32 0.0, %v6295
  %6297 = vmatmul.f32.gmra.mxu0 %v6160
  %v6298 = vpop.f32.mrf.mxu0
  %v6299 = vadd.f32 0.0, %v6298
  %6300 = vmatmul.f32.gmra.mxu0 %v6161
  %v6301 = vpop.f32.mrf.mxu0
  %v6302 = vadd.f32 0.0, %v6301
  %6303 = vmatmul.f32.gmra.mxu0 %v6162
  %v6304 = vpop.f32.mrf.mxu0
  %v6305 = vadd.f32 0.0, %v6304
  %6306 = vmatmul.f32.gmra.mxu0 %v6163
  %v6307 = vpop.f32.mrf.mxu0
  %v6308 = vadd.f32 0.0, %v6307
  %6309 = vmatmul.f32.gmra.mxu0 %v6164
  %v6310 = vpop.f32.mrf.mxu0
  %v6311 = vadd.f32 0.0, %v6310
  %6312 = vmatmul.f32.gmra.mxu0 %v6165
  %v6313 = vpop.f32.mrf.mxu0
  %v6314 = vadd.f32 0.0, %v6313
  %6315 = vmatmul.f32.gmra.mxu0 %v6166
  %v6316 = vpop.f32.mrf.mxu0
  %v6317 = vadd.f32 0.0, %v6316
  %6318 = vmatmul.f32.gmra.mxu0 %v6167
  %v6319 = vpop.f32.mrf.mxu0
  %v6320 = vadd.f32 0.0, %v6319
  %6321 = vmatmul.f32.gmra.mxu0 %v6168
  %v6322 = vpop.f32.mrf.mxu0
  %v6323 = vadd.f32 0.0, %v6322
  %6324 = vmatmul.f32.gmra.mxu0 %v6169
  %v6325 = vpop.f32.mrf.mxu0
  %v6326 = vadd.f32 0.0, %v6325
  %6327 = vmatmul.f32.gmra.mxu0 %v6170
  %v6328 = vpop.f32.mrf.mxu0
  %v6329 = vadd.f32 0.0, %v6328
  %6330 = vmatmul.f32.gmra.mxu0 %v6171
  %v6331 = vpop.f32.mrf.mxu0
  %v6332 = vadd.f32 0.0, %v6331
  %6333 = vmatmul.f32.gmra.mxu0 %v6172
  %v6334 = vpop.f32.mrf.mxu0
  %v6335 = vadd.f32 0.0, %v6334
  %6336 = vmatmul.f32.gmra.mxu0 %v6173
  %v6337 = vpop.f32.mrf.mxu0
  %v6338 = vadd.f32 0.0, %v6337
  %6339 = vmatmul.f32.gmra.mxu0 %v6174
  %v6340 = vpop.f32.mrf.mxu0
  %v6341 = vadd.f32 0.0, %v6340
  %6342 = vmatmul.f32.gmra.mxu0 %v6175
  %v6343 = vpop.f32.mrf.mxu0
  %v6344 = vadd.f32 0.0, %v6343
  %6345 = vmatmul.f32.gmra.mxu0 %v6176
  %v6346 = vpop.f32.mrf.mxu0
  %v6347 = vadd.f32 0.0, %v6346
  %6348 = vmatmul.f32.gmra.mxu0 %v6177
  %v6349 = vpop.f32.mrf.mxu0
  %v6350 = vadd.f32 0.0, %v6349
  %6351 = vmatmul.f32.gmra.mxu0 %v6178
  %v6352 = vpop.f32.mrf.mxu0
  %v6353 = vadd.f32 0.0, %v6352
  %6354 = vmatmul.f32.gmra.mxu0 %v6179
  %v6355 = vpop.f32.mrf.mxu0
  %v6356 = vadd.f32 0.0, %v6355
  %6357 = vmatmul.f32.gmra.mxu0 %v6180
  %v6358 = vpop.f32.mrf.mxu0
  %v6359 = vadd.f32 0.0, %v6358
  %6360 = vmatmul.f32.gmra.mxu0 %v6181
  %v6361 = vpop.f32.mrf.mxu0
  %v6362 = vadd.f32 0.0, %v6361
  %6363 = vmatmul.f32.gmra.mxu0 %v6182
  %v6364 = vpop.f32.mrf.mxu0
  %v6365 = vadd.f32 0.0, %v6364
  %6366 = vmatmul.f32.gmra.mxu0 %v6183
  %v6367 = vpop.f32.mrf.mxu0
  %v6368 = vadd.f32 0.0, %v6367
  %6369 = vmatmul.f32.gmra.mxu0 %v6184
  %v6370 = vpop.f32.mrf.mxu0
  %v6371 = vadd.f32 0.0, %v6370
  %6372 = vmatmul.f32.gmra.mxu0 %v6185
  %v6373 = vpop.f32.mrf.mxu0
  %v6374 = vadd.f32 0.0, %v6373
  %6375 = vmatmul.f32.gmra.mxu0 %v6186
  %v6376 = vpop.f32.mrf.mxu0
  %v6377 = vadd.f32 0.0, %v6376
  %6378 = vmatmul.f32.gmra.mxu0 %v6187
  %v6379 = vpop.f32.mrf.mxu0
  %v6380 = vadd.f32 0.0, %v6379
  %6381 = vmatmul.f32.gmra.mxu0 %v6188
  %v6382 = vpop.f32.mrf.mxu0
  %v6383 = vadd.f32 0.0, %v6382
  %6384 = vmatmul.f32.gmra.mxu0 %v6189
  %v6385 = vpop.f32.mrf.mxu0
  %v6386 = vadd.f32 0.0, %v6385
  %6387 = vmatmul.f32.gmra.mxu0 %v6190
  %v6388 = vpop.f32.mrf.mxu0
  %v6389 = vadd.f32 0.0, %v6388
  %6390 = vmatmul.f32.gmra.mxu0 %v6191
  %v6391 = vpop.f32.mrf.mxu0
  %v6392 = vadd.f32 0.0, %v6391
  %6393 = vmatmul.f32.gmra.mxu0 %v6192
  %v6394 = vpop.f32.mrf.mxu0
  %v6395 = vadd.f32 0.0, %v6394
  %6396 = vmatmul.f32.gmra.mxu0 %v6193
  %v6397 = vpop.f32.mrf.mxu0
  %v6398 = vadd.f32 0.0, %v6397
  %6399 = vmatmul.f32.gmra.mxu0 %v6194
  %v6400 = vpop.f32.mrf.mxu0
  %v6401 = vadd.f32 0.0, %v6400
  %6402 = vmatmul.f32.gmra.mxu0 %v6195
  %v6403 = vpop.f32.mrf.mxu0
  %v6404 = vadd.f32 0.0, %v6403
  %6405 = vmatmul.f32.gmra.mxu0 %v6196
  %v6406 = vpop.f32.mrf.mxu0
  %v6407 = vadd.f32 0.0, %v6406
  %6408 = vmatmul.f32.gmra.mxu0 %v6197
  %v6409 = vpop.f32.mrf.mxu0
  %v6410 = vadd.f32 0.0, %v6409
  %6411 = vmatmul.f32.gmra.mxu0 %v6198
  %v6412 = vpop.f32.mrf.mxu0
  %v6413 = vadd.f32 0.0, %v6412
  %6414 = vmatmul.f32.gmra.mxu0 %v6199
  %v6415 = vpop.f32.mrf.mxu0
  %v6416 = vadd.f32 0.0, %v6415
  %6417 = vmatmul.f32.gmra.mxu0 %v6200
  %v6418 = vpop.f32.mrf.mxu0
  %v6419 = vadd.f32 0.0, %v6418
  %6420 = vmatmul.f32.gmra.mxu0 %v6201
  %v6421 = vpop.f32.mrf.mxu0
  %v6422 = vadd.f32 0.0, %v6421
  %6423 = vmatmul.f32.gmra.mxu0 %v6202
  %v6424 = vpop.f32.mrf.mxu0
  %v6425 = vadd.f32 0.0, %v6424
  %6426 = vmatmul.f32.gmra.mxu0 %v6203
  %v6427 = vpop.f32.mrf.mxu0
  %v6428 = vadd.f32 0.0, %v6427
  %6429 = vdwg.mxu0
  %v6430 = vadd.f32 %v6076, %v6239
  %v6431 = vadd.f32 %v6077, %v6242
  %v6432 = vadd.f32 %v6078, %v6245
  %v6433 = vadd.f32 %v6079, %v6248
  %v6434 = vadd.f32 %v6080, %v6251
  %v6435 = vadd.f32 %v6081, %v6254
  %v6436 = vadd.f32 %v6082, %v6257
  %v6437 = vadd.f32 %v6083, %v6260
  %v6438 = vadd.f32 %v6084, %v6263
  %v6439 = vadd.f32 %v6085, %v6266
  %v6440 = vadd.f32 %v6086, %v6269
  %v6441 = vadd.f32 %v6087, %v6272
  %v6442 = vadd.f32 %v6088, %v6275
  %v6443 = vadd.f32 %v6089, %v6278
  %v6444 = vadd.f32 %v6090, %v6281
  %v6445 = vadd.f32 %v6091, %v6284
  %v6446 = vadd.f32 %v6092, %v6287
  %v6447 = vadd.f32 %v6093, %v6290
  %v6448 = vadd.f32 %v6094, %v6293
  %v6449 = vadd.f32 %v6095, %v6296
  %v6450 = vadd.f32 %v6096, %v6299
  %v6451 = vadd.f32 %v6097, %v6302
  %v6452 = vadd.f32 %v6098, %v6305
  %v6453 = vadd.f32 %v6099, %v6308
  %v6454 = vadd.f32 %v6100, %v6311
  %v6455 = vadd.f32 %v6101, %v6314
  %v6456 = vadd.f32 %v6102, %v6317
  %v6457 = vadd.f32 %v6103, %v6320
  %v6458 = vadd.f32 %v6104, %v6323
  %v6459 = vadd.f32 %v6105, %v6326
  %v6460 = vadd.f32 %v6106, %v6329
  %v6461 = vadd.f32 %v6107, %v6332
  %v6462 = vadd.f32 %v6108, %v6335
  %v6463 = vadd.f32 %v6109, %v6338
  %v6464 = vadd.f32 %v6110, %v6341
  %v6465 = vadd.f32 %v6111, %v6344
  %v6466 = vadd.f32 %v6112, %v6347
  %v6467 = vadd.f32 %v6113, %v6350
  %v6468 = vadd.f32 %v6114, %v6353
  %v6469 = vadd.f32 %v6115, %v6356
  %v6470 = vadd.f32 %v6116, %v6359
  %v6471 = vadd.f32 %v6117, %v6362
  %v6472 = vadd.f32 %v6118, %v6365
  %v6473 = vadd.f32 %v6119, %v6368
  %v6474 = vadd.f32 %v6120, %v6371
  %v6475 = vadd.f32 %v6121, %v6374
  %v6476 = vadd.f32 %v6122, %v6377
  %v6477 = vadd.f32 %v6123, %v6380
  %v6478 = vadd.f32 %v6124, %v6383
  %v6479 = vadd.f32 %v6125, %v6386
  %v6480 = vadd.f32 %v6126, %v6389
  %v6481 = vadd.f32 %v6127, %v6392
  %v6482 = vadd.f32 %v6128, %v6395
  %v6483 = vadd.f32 %v6129, %v6398
  %v6484 = vadd.f32 %v6130, %v6401
  %v6485 = vadd.f32 %v6131, %v6404
  %v6486 = vadd.f32 %v6132, %v6407
  %v6487 = vadd.f32 %v6133, %v6410
  %v6488 = vadd.f32 %v6134, %v6413
  %v6489 = vadd.f32 %v6135, %v6416
  %v6490 = vadd.f32 %v6136, %v6419
  %v6491 = vadd.f32 %v6137, %v6422
  %v6492 = vadd.f32 %v6138, %v6425
  %v6493 = vadd.f32 %v6139, %v6428
  %v6494 = vld [vmem:[%s5785 + $0x9] sm:$0xff]
  %v6495 = vld [vmem:[%s5785 + $0x11] sm:$0xff]
  %v6496 = vld [vmem:[%s5785 + $0x29] sm:$0xff]
  %v6497 = vld [vmem:[%s5785 + $0x31] sm:$0xff]
  %v6498 = vld [vmem:[%s5785 + $0x49] sm:$0xff]
  %v6499 = vld [vmem:[%s5785 + $0x51] sm:$0xff]
  %v6500 = vld [vmem:[%s5785 + $0x69] sm:$0xff]
  %v6501 = vld [vmem:[%s5785 + $0x71] sm:$0xff]
  %v6502 = vld [vmem:[%s5785 + $0x89] sm:$0xff]
  %v6503 = vld [vmem:[%s5785 + $0x91] sm:$0xff]
  %v6504 = vld [vmem:[%s5785 + $0xa9] sm:$0xff]
  %v6505 = vld [vmem:[%s5785 + $0xb1] sm:$0xff]
  %v6506 = vld [vmem:[%s5785 + $0xc9] sm:$0xff]
  %v6507 = vld [vmem:[%s5785 + $0xd1] sm:$0xff]
  %v6508 = vld [vmem:[%s5785 + $0xe9] sm:$0xff]
  %v6509 = vld [vmem:[%s5785 + $0xf1] sm:$0xff]
  %v6510 = vld [vmem:[%s5785 + $0x109] sm:$0xff]
  %v6511 = vld [vmem:[%s5785 + $0x111] sm:$0xff]
  %v6512 = vld [vmem:[%s5785 + $0x129] sm:$0xff]
  %v6513 = vld [vmem:[%s5785 + $0x131] sm:$0xff]
  %v6514 = vld [vmem:[%s5785 + $0x149] sm:$0xff]
  %v6515 = vld [vmem:[%s5785 + $0x151] sm:$0xff]
  %v6516 = vld [vmem:[%s5785 + $0x169] sm:$0xff]
  %v6517 = vld [vmem:[%s5785 + $0x171] sm:$0xff]
  %v6518 = vld [vmem:[%s5785 + $0x189] sm:$0xff]
  %v6519 = vld [vmem:[%s5785 + $0x191] sm:$0xff]
  %v6520 = vld [vmem:[%s5785 + $0x1a9] sm:$0xff]
  %v6521 = vld [vmem:[%s5785 + $0x1b1] sm:$0xff]
  %v6522 = vld [vmem:[%s5785 + $0x1c9] sm:$0xff]
  %v6523 = vld [vmem:[%s5785 + $0x1d1] sm:$0xff]
  %v6524 = vld [vmem:[%s5785 + $0x1e9] sm:$0xff]
  %v6525 = vld [vmem:[%s5785 + $0x1f1] sm:$0xff]
  %v6526 = vld [vmem:[%s5785 + $0x249] sm:$0xff]
  %v6527 = vld [vmem:[%s5785 + $0x251] sm:$0xff]
  %v6528 = vld [vmem:[%s5785 + $0x269] sm:$0xff]
  %v6529 = vld [vmem:[%s5785 + $0x271] sm:$0xff]
  %v6530 = vld [vmem:[%s5785 + $0x289] sm:$0xff]
  %v6531 = vld [vmem:[%s5785 + $0x291] sm:$0xff]
  %v6532 = vld [vmem:[%s5785 + $0x2a9] sm:$0xff]
  %v6533 = vld [vmem:[%s5785 + $0x2b1] sm:$0xff]
  %v6534 = vld [vmem:[%s5785 + $0x2c9] sm:$0xff]
  %v6535 = vld [vmem:[%s5785 + $0x2d1] sm:$0xff]
  %v6536 = vld [vmem:[%s5785 + $0x2e9] sm:$0xff]
  %v6537 = vld [vmem:[%s5785 + $0x2f1] sm:$0xff]
  %v6538 = vld [vmem:[%s5785 + $0x309] sm:$0xff]
  %v6539 = vld [vmem:[%s5785 + $0x311] sm:$0xff]
  %v6540 = vld [vmem:[%s5785 + $0x329] sm:$0xff]
  %v6541 = vld [vmem:[%s5785 + $0x331] sm:$0xff]
  %v6542 = vld [vmem:[%s5785 + $0x349] sm:$0xff]
  %v6543 = vld [vmem:[%s5785 + $0x351] sm:$0xff]
  %v6544 = vld [vmem:[%s5785 + $0x369] sm:$0xff]
  %v6545 = vld [vmem:[%s5785 + $0x371] sm:$0xff]
  %v6546 = vld [vmem:[%s5785 + $0x389] sm:$0xff]
  %v6547 = vld [vmem:[%s5785 + $0x391] sm:$0xff]
  %v6548 = vld [vmem:[%s5785 + $0x3a9] sm:$0xff]
  %v6549 = vld [vmem:[%s5785 + $0x3b1] sm:$0xff]
  %v6550 = vld [vmem:[%s5785 + $0x3c9] sm:$0xff]
  %v6551 = vld [vmem:[%s5785 + $0x3d1] sm:$0xff]
  %v6552 = vld [vmem:[%s5785 + $0x3e9] sm:$0xff]
  %v6553 = vld [vmem:[%s5785 + $0x3f1] sm:$0xff]
  %v6554 = vld [vmem:[%s5785 + $0x409] sm:$0xff]
  %v6555 = vld [vmem:[%s5785 + $0x411] sm:$0xff]
  %v6556 = vld [vmem:[%s5785 + $0x429] sm:$0xff]
  %v6557 = vld [vmem:[%s5785 + $0x431] sm:$0xff]
  %s6558 = scalar_lea.vmem %s5, 1024
  %v6559 = vld [vmem:[%s6558] sm:$0xff]
  %v6560 = vld [vmem:[%s6558 + $0x8] sm:$0xff]
  %v6561 = vld [vmem:[%s6558 + $0x10] sm:$0xff]
  %v6562 = vld [vmem:[%s6558 + $0x18] sm:$0xff]
  %v6563 = vld [vmem:[%s6558 + $0x20] sm:$0xff]
  %v6564 = vld [vmem:[%s6558 + $0x28] sm:$0xff]
  %v6565 = vld [vmem:[%s6558 + $0x30] sm:$0xff]
  %v6566 = vld [vmem:[%s6558 + $0x38] sm:$0xff]
  %v6567 = vld [vmem:[%s6558 + $0x40] sm:$0xff]
  %v6568 = vld [vmem:[%s6558 + $0x48] sm:$0xff]
  %v6569 = vld [vmem:[%s6558 + $0x50] sm:$0xff]
  %v6570 = vld [vmem:[%s6558 + $0x58] sm:$0xff]
  %v6571 = vld [vmem:[%s6558 + $0x60] sm:$0xff]
  %v6572 = vld [vmem:[%s6558 + $0x68] sm:$0xff]
  %v6573 = vld [vmem:[%s6558 + $0x70] sm:$0xff]
  %v6574 = vld [vmem:[%s6558 + $0x78] sm:$0xff]
  %6575 = vmatpush.msra.mxu0 %v6574
  %6576 = vmatpush.msra.mxu0 %v6573
  %6577 = vmatpush.msra.mxu0 %v6572
  %6578 = vmatpush.msra.mxu0 %v6571
  %6579 = vmatpush.msra.mxu0 %v6570
  %6580 = vmatpush.msra.mxu0 %v6569
  %6581 = vmatpush.msra.mxu0 %v6568
  %6582 = vmatpush.msra.mxu0 %v6567
  %6583 = vmatpush.msra.mxu0 %v6566
  %6584 = vmatpush.msra.mxu0 %v6565
  %6585 = vmatpush.msra.mxu0 %v6564
  %6586 = vmatpush.msra.mxu0 %v6563
  %6587 = vmatpush.msra.mxu0 %v6562
  %6588 = vmatpush.msra.mxu0 %v6561
  %6589 = vmatpush.msra.mxu0 %v6560
  %6590 = vmatpush.msra.mxu0 %v6559
  %6591 = vmatmul.f32.gmra.mxu0 %v6494
  %v6592 = vpop.f32.mrf.mxu0
  %v6593 = vadd.f32 0.0, %v6592
  %6594 = vmatmul.f32.gmra.mxu0 %v6495
  %v6595 = vpop.f32.mrf.mxu0
  %v6596 = vadd.f32 0.0, %v6595
  %6597 = vmatmul.f32.gmra.mxu0 %v6496
  %v6598 = vpop.f32.mrf.mxu0
  %v6599 = vadd.f32 0.0, %v6598
  %6600 = vmatmul.f32.gmra.mxu0 %v6497
  %v6601 = vpop.f32.mrf.mxu0
  %v6602 = vadd.f32 0.0, %v6601
  %6603 = vmatmul.f32.gmra.mxu0 %v6498
  %v6604 = vpop.f32.mrf.mxu0
  %v6605 = vadd.f32 0.0, %v6604
  %6606 = vmatmul.f32.gmra.mxu0 %v6499
  %v6607 = vpop.f32.mrf.mxu0
  %v6608 = vadd.f32 0.0, %v6607
  %6609 = vmatmul.f32.gmra.mxu0 %v6500
  %v6610 = vpop.f32.mrf.mxu0
  %v6611 = vadd.f32 0.0, %v6610
  %6612 = vmatmul.f32.gmra.mxu0 %v6501
  %v6613 = vpop.f32.mrf.mxu0
  %v6614 = vadd.f32 0.0, %v6613
  %6615 = vmatmul.f32.gmra.mxu0 %v6502
  %v6616 = vpop.f32.mrf.mxu0
  %v6617 = vadd.f32 0.0, %v6616
  %6618 = vmatmul.f32.gmra.mxu0 %v6503
  %v6619 = vpop.f32.mrf.mxu0
  %v6620 = vadd.f32 0.0, %v6619
  %6621 = vmatmul.f32.gmra.mxu0 %v6504
  %v6622 = vpop.f32.mrf.mxu0
  %v6623 = vadd.f32 0.0, %v6622
  %6624 = vmatmul.f32.gmra.mxu0 %v6505
  %v6625 = vpop.f32.mrf.mxu0
  %v6626 = vadd.f32 0.0, %v6625
  %6627 = vmatmul.f32.gmra.mxu0 %v6506
  %v6628 = vpop.f32.mrf.mxu0
  %v6629 = vadd.f32 0.0, %v6628
  %6630 = vmatmul.f32.gmra.mxu0 %v6507
  %v6631 = vpop.f32.mrf.mxu0
  %v6632 = vadd.f32 0.0, %v6631
  %6633 = vmatmul.f32.gmra.mxu0 %v6508
  %v6634 = vpop.f32.mrf.mxu0
  %v6635 = vadd.f32 0.0, %v6634
  %6636 = vmatmul.f32.gmra.mxu0 %v6509
  %v6637 = vpop.f32.mrf.mxu0
  %v6638 = vadd.f32 0.0, %v6637
  %6639 = vmatmul.f32.gmra.mxu0 %v6510
  %v6640 = vpop.f32.mrf.mxu0
  %v6641 = vadd.f32 0.0, %v6640
  %6642 = vmatmul.f32.gmra.mxu0 %v6511
  %v6643 = vpop.f32.mrf.mxu0
  %v6644 = vadd.f32 0.0, %v6643
  %6645 = vmatmul.f32.gmra.mxu0 %v6512
  %v6646 = vpop.f32.mrf.mxu0
  %v6647 = vadd.f32 0.0, %v6646
  %6648 = vmatmul.f32.gmra.mxu0 %v6513
  %v6649 = vpop.f32.mrf.mxu0
  %v6650 = vadd.f32 0.0, %v6649
  %6651 = vmatmul.f32.gmra.mxu0 %v6514
  %v6652 = vpop.f32.mrf.mxu0
  %v6653 = vadd.f32 0.0, %v6652
  %6654 = vmatmul.f32.gmra.mxu0 %v6515
  %v6655 = vpop.f32.mrf.mxu0
  %v6656 = vadd.f32 0.0, %v6655
  %6657 = vmatmul.f32.gmra.mxu0 %v6516
  %v6658 = vpop.f32.mrf.mxu0
  %v6659 = vadd.f32 0.0, %v6658
  %6660 = vmatmul.f32.gmra.mxu0 %v6517
  %v6661 = vpop.f32.mrf.mxu0
  %v6662 = vadd.f32 0.0, %v6661
  %6663 = vmatmul.f32.gmra.mxu0 %v6518
  %v6664 = vpop.f32.mrf.mxu0
  %v6665 = vadd.f32 0.0, %v6664
  %6666 = vmatmul.f32.gmra.mxu0 %v6519
  %v6667 = vpop.f32.mrf.mxu0
  %v6668 = vadd.f32 0.0, %v6667
  %6669 = vmatmul.f32.gmra.mxu0 %v6520
  %v6670 = vpop.f32.mrf.mxu0
  %v6671 = vadd.f32 0.0, %v6670
  %6672 = vmatmul.f32.gmra.mxu0 %v6521
  %v6673 = vpop.f32.mrf.mxu0
  %v6674 = vadd.f32 0.0, %v6673
  %6675 = vmatmul.f32.gmra.mxu0 %v6522
  %v6676 = vpop.f32.mrf.mxu0
  %v6677 = vadd.f32 0.0, %v6676
  %6678 = vmatmul.f32.gmra.mxu0 %v6523
  %v6679 = vpop.f32.mrf.mxu0
  %v6680 = vadd.f32 0.0, %v6679
  %6681 = vmatmul.f32.gmra.mxu0 %v6524
  %v6682 = vpop.f32.mrf.mxu0
  %v6683 = vadd.f32 0.0, %v6682
  %6684 = vmatmul.f32.gmra.mxu0 %v6525
  %v6685 = vpop.f32.mrf.mxu0
  %v6686 = vadd.f32 0.0, %v6685
  %6687 = vmatmul.f32.gmra.mxu0 %v6526
  %v6688 = vpop.f32.mrf.mxu0
  %v6689 = vadd.f32 0.0, %v6688
  %6690 = vmatmul.f32.gmra.mxu0 %v6527
  %v6691 = vpop.f32.mrf.mxu0
  %v6692 = vadd.f32 0.0, %v6691
  %6693 = vmatmul.f32.gmra.mxu0 %v6528
  %v6694 = vpop.f32.mrf.mxu0
  %v6695 = vadd.f32 0.0, %v6694
  %6696 = vmatmul.f32.gmra.mxu0 %v6529
  %v6697 = vpop.f32.mrf.mxu0
  %v6698 = vadd.f32 0.0, %v6697
  %6699 = vmatmul.f32.gmra.mxu0 %v6530
  %v6700 = vpop.f32.mrf.mxu0
  %v6701 = vadd.f32 0.0, %v6700
  %6702 = vmatmul.f32.gmra.mxu0 %v6531
  %v6703 = vpop.f32.mrf.mxu0
  %v6704 = vadd.f32 0.0, %v6703
  %6705 = vmatmul.f32.gmra.mxu0 %v6532
  %v6706 = vpop.f32.mrf.mxu0
  %v6707 = vadd.f32 0.0, %v6706
  %6708 = vmatmul.f32.gmra.mxu0 %v6533
  %v6709 = vpop.f32.mrf.mxu0
  %v6710 = vadd.f32 0.0, %v6709
  %6711 = vmatmul.f32.gmra.mxu0 %v6534
  %v6712 = vpop.f32.mrf.mxu0
  %v6713 = vadd.f32 0.0, %v6712
  %6714 = vmatmul.f32.gmra.mxu0 %v6535
  %v6715 = vpop.f32.mrf.mxu0
  %v6716 = vadd.f32 0.0, %v6715
  %6717 = vmatmul.f32.gmra.mxu0 %v6536
  %v6718 = vpop.f32.mrf.mxu0
  %v6719 = vadd.f32 0.0, %v6718
  %6720 = vmatmul.f32.gmra.mxu0 %v6537
  %v6721 = vpop.f32.mrf.mxu0
  %v6722 = vadd.f32 0.0, %v6721
  %6723 = vmatmul.f32.gmra.mxu0 %v6538
  %v6724 = vpop.f32.mrf.mxu0
  %v6725 = vadd.f32 0.0, %v6724
  %6726 = vmatmul.f32.gmra.mxu0 %v6539
  %v6727 = vpop.f32.mrf.mxu0
  %v6728 = vadd.f32 0.0, %v6727
  %6729 = vmatmul.f32.gmra.mxu0 %v6540
  %v6730 = vpop.f32.mrf.mxu0
  %v6731 = vadd.f32 0.0, %v6730
  %6732 = vmatmul.f32.gmra.mxu0 %v6541
  %v6733 = vpop.f32.mrf.mxu0
  %v6734 = vadd.f32 0.0, %v6733
  %6735 = vmatmul.f32.gmra.mxu0 %v6542
  %v6736 = vpop.f32.mrf.mxu0
  %v6737 = vadd.f32 0.0, %v6736
  %6738 = vmatmul.f32.gmra.mxu0 %v6543
  %v6739 = vpop.f32.mrf.mxu0
  %v6740 = vadd.f32 0.0, %v6739
  %6741 = vmatmul.f32.gmra.mxu0 %v6544
  %v6742 = vpop.f32.mrf.mxu0
  %v6743 = vadd.f32 0.0, %v6742
  %6744 = vmatmul.f32.gmra.mxu0 %v6545
  %v6745 = vpop.f32.mrf.mxu0
  %v6746 = vadd.f32 0.0, %v6745
  %6747 = vmatmul.f32.gmra.mxu0 %v6546
  %v6748 = vpop.f32.mrf.mxu0
  %v6749 = vadd.f32 0.0, %v6748
  %6750 = vmatmul.f32.gmra.mxu0 %v6547
  %v6751 = vpop.f32.mrf.mxu0
  %v6752 = vadd.f32 0.0, %v6751
  %6753 = vmatmul.f32.gmra.mxu0 %v6548
  %v6754 = vpop.f32.mrf.mxu0
  %v6755 = vadd.f32 0.0, %v6754
  %6756 = vmatmul.f32.gmra.mxu0 %v6549
  %v6757 = vpop.f32.mrf.mxu0
  %v6758 = vadd.f32 0.0, %v6757
  %6759 = vmatmul.f32.gmra.mxu0 %v6550
  %v6760 = vpop.f32.mrf.mxu0
  %v6761 = vadd.f32 0.0, %v6760
  %6762 = vmatmul.f32.gmra.mxu0 %v6551
  %v6763 = vpop.f32.mrf.mxu0
  %v6764 = vadd.f32 0.0, %v6763
  %6765 = vmatmul.f32.gmra.mxu0 %v6552
  %v6766 = vpop.f32.mrf.mxu0
  %v6767 = vadd.f32 0.0, %v6766
  %6768 = vmatmul.f32.gmra.mxu0 %v6553
  %v6769 = vpop.f32.mrf.mxu0
  %v6770 = vadd.f32 0.0, %v6769
  %6771 = vmatmul.f32.gmra.mxu0 %v6554
  %v6772 = vpop.f32.mrf.mxu0
  %v6773 = vadd.f32 0.0, %v6772
  %6774 = vmatmul.f32.gmra.mxu0 %v6555
  %v6775 = vpop.f32.mrf.mxu0
  %v6776 = vadd.f32 0.0, %v6775
  %6777 = vmatmul.f32.gmra.mxu0 %v6556
  %v6778 = vpop.f32.mrf.mxu0
  %v6779 = vadd.f32 0.0, %v6778
  %6780 = vmatmul.f32.gmra.mxu0 %v6557
  %v6781 = vpop.f32.mrf.mxu0
  %v6782 = vadd.f32 0.0, %v6781
  %6783 = vdwg.mxu0
  %v6784 = vadd.f32 %v6430, %v6593
  %v6785 = vadd.f32 %v6431, %v6596
  %v6786 = vadd.f32 %v6432, %v6599
  %v6787 = vadd.f32 %v6433, %v6602
  %v6788 = vadd.f32 %v6434, %v6605
  %v6789 = vadd.f32 %v6435, %v6608
  %v6790 = vadd.f32 %v6436, %v6611
  %v6791 = vadd.f32 %v6437, %v6614
  %v6792 = vadd.f32 %v6438, %v6617
  %v6793 = vadd.f32 %v6439, %v6620
  %v6794 = vadd.f32 %v6440, %v6623
  %v6795 = vadd.f32 %v6441, %v6626
  %v6796 = vadd.f32 %v6442, %v6629
  %v6797 = vadd.f32 %v6443, %v6632
  %v6798 = vadd.f32 %v6444, %v6635
  %v6799 = vadd.f32 %v6445, %v6638
  %v6800 = vadd.f32 %v6446, %v6641
  %v6801 = vadd.f32 %v6447, %v6644
  %v6802 = vadd.f32 %v6448, %v6647
  %v6803 = vadd.f32 %v6449, %v6650
  %v6804 = vadd.f32 %v6450, %v6653
  %v6805 = vadd.f32 %v6451, %v6656
  %v6806 = vadd.f32 %v6452, %v6659
  %v6807 = vadd.f32 %v6453, %v6662
  %v6808 = vadd.f32 %v6454, %v6665
  %v6809 = vadd.f32 %v6455, %v6668
  %v6810 = vadd.f32 %v6456, %v6671
  %v6811 = vadd.f32 %v6457, %v6674
  %v6812 = vadd.f32 %v6458, %v6677
  %v6813 = vadd.f32 %v6459, %v6680
  %v6814 = vadd.f32 %v6460, %v6683
  %v6815 = vadd.f32 %v6461, %v6686
  %v6816 = vadd.f32 %v6462, %v6689
  %v6817 = vadd.f32 %v6463, %v6692
  %v6818 = vadd.f32 %v6464, %v6695
  %v6819 = vadd.f32 %v6465, %v6698
  %v6820 = vadd.f32 %v6466, %v6701
  %v6821 = vadd.f32 %v6467, %v6704
  %v6822 = vadd.f32 %v6468, %v6707
  %v6823 = vadd.f32 %v6469, %v6710
  %v6824 = vadd.f32 %v6470, %v6713
  %v6825 = vadd.f32 %v6471, %v6716
  %v6826 = vadd.f32 %v6472, %v6719
  %v6827 = vadd.f32 %v6473, %v6722
  %v6828 = vadd.f32 %v6474, %v6725
  %v6829 = vadd.f32 %v6475, %v6728
  %v6830 = vadd.f32 %v6476, %v6731
  %v6831 = vadd.f32 %v6477, %v6734
  %v6832 = vadd.f32 %v6478, %v6737
  %v6833 = vadd.f32 %v6479, %v6740
  %v6834 = vadd.f32 %v6480, %v6743
  %v6835 = vadd.f32 %v6481, %v6746
  %v6836 = vadd.f32 %v6482, %v6749
  %v6837 = vadd.f32 %v6483, %v6752
  %v6838 = vadd.f32 %v6484, %v6755
  %v6839 = vadd.f32 %v6485, %v6758
  %v6840 = vadd.f32 %v6486, %v6761
  %v6841 = vadd.f32 %v6487, %v6764
  %v6842 = vadd.f32 %v6488, %v6767
  %v6843 = vadd.f32 %v6489, %v6770
  %v6844 = vadd.f32 %v6490, %v6773
  %v6845 = vadd.f32 %v6491, %v6776
  %v6846 = vadd.f32 %v6492, %v6779
  %v6847 = vadd.f32 %v6493, %v6782
  %v6848 = vld [vmem:[%s6] sm:$0x1]
  %v6849 = vld [vmem:[%s7] sm:$0x1]
  %v6850 = vadd.f32 %v6784, %v6785
  %v6851 = vadd.f32 %v6850, %v6786
  %v6852 = vadd.f32 %v6851, %v6787
  %v6853 = vadd.f32 %v6852, %v6788
  %v6854 = vadd.f32 %v6853, %v6789
  %v6855 = vadd.f32 %v6854, %v6790
  %v6856 = vadd.f32 %v6855, %v6791
  %v6857 = vadd.f32 %v6856, %v6792
  %v6858 = vadd.f32 %v6857, %v6793
  %v6859 = vadd.f32 %v6858, %v6794
  %v6860 = vadd.f32 %v6859, %v6795
  %v6861 = vadd.f32 %v6860, %v6796
  %v6862 = vadd.f32 %v6861, %v6797
  %v6863 = vadd.f32 %v6862, %v6798
  %v6864 = vadd.f32 %v6863, %v6799
  %v6865 = vadd.f32 %v6864, %v6800
  %v6866 = vadd.f32 %v6865, %v6801
  %v6867 = vadd.f32 %v6866, %v6802
  %v6868 = vadd.f32 %v6867, %v6803
  %v6869 = vadd.f32 %v6868, %v6804
  %v6870 = vadd.f32 %v6869, %v6805
  %v6871 = vadd.f32 %v6870, %v6806
  %v6872 = vadd.f32 %v6871, %v6807
  %v6873 = vadd.f32 %v6872, %v6808
  %v6874 = vadd.f32 %v6873, %v6809
  %v6875 = vadd.f32 %v6874, %v6810
  %v6876 = vadd.f32 %v6875, %v6811
  %v6877 = vadd.f32 %v6876, %v6812
  %v6878 = vadd.f32 %v6877, %v6813
  %v6879 = vadd.f32 %v6878, %v6814
  %v6880 = vadd.f32 %v6879, %v6815
  %v6881 = vadd.f32 %v6880, %v6816
  %v6882 = vadd.f32 %v6881, %v6817
  %v6883 = vadd.f32 %v6882, %v6818
  %v6884 = vadd.f32 %v6883, %v6819
  %v6885 = vadd.f32 %v6884, %v6820
  %v6886 = vadd.f32 %v6885, %v6821
  %v6887 = vadd.f32 %v6886, %v6822
  %v6888 = vadd.f32 %v6887, %v6823
  %v6889 = vadd.f32 %v6888, %v6824
  %v6890 = vadd.f32 %v6889, %v6825
  %v6891 = vadd.f32 %v6890, %v6826
  %v6892 = vadd.f32 %v6891, %v6827
  %v6893 = vadd.f32 %v6892, %v6828
  %v6894 = vadd.f32 %v6893, %v6829
  %v6895 = vadd.f32 %v6894, %v6830
  %v6896 = vadd.f32 %v6895, %v6831
  %v6897 = vadd.f32 %v6896, %v6832
  %v6898 = vadd.f32 %v6897, %v6833
  %v6899 = vadd.f32 %v6898, %v6834
  %v6900 = vadd.f32 %v6899, %v6835
  %v6901 = vadd.f32 %v6900, %v6836
  %v6902 = vadd.f32 %v6901, %v6837
  %v6903 = vadd.f32 %v6902, %v6838
  %v6904 = vadd.f32 %v6903, %v6839
  %v6905 = vadd.f32 %v6904, %v6840
  %v6906 = vadd.f32 %v6905, %v6841
  %v6907 = vadd.f32 %v6906, %v6842
  %v6908 = vadd.f32 %v6907, %v6843
  %v6909 = vadd.f32 %v6908, %v6844
  %v6910 = vadd.f32 %v6909, %v6845
  %v6911 = vadd.f32 %v6910, %v6846
  %v6912 = vadd.f32 %v6911, %v6847
  %v6913 = vrot.slane %v6912, 4
  %v6914 = vadd.f32 %v6912, %v6913
  %v6915 = vrot.slane %v6914, 2
  %v6916 = vadd.f32 %v6914, %v6915
  %v6917 = vrot.slane %v6916, 1
  %v6918 = vadd.f32 %v6916, %v6917
  %v6919 = vmul.f32 %v6918, %v3171
  %v6920 = vsub.f32 %v6784, %v6919
  %v6921 = vsub.f32 %v6785, %v6919
  %v6922 = vsub.f32 %v6786, %v6919
  %v6923 = vsub.f32 %v6787, %v6919
  %v6924 = vsub.f32 %v6788, %v6919
  %v6925 = vsub.f32 %v6789, %v6919
  %v6926 = vsub.f32 %v6790, %v6919
  %v6927 = vsub.f32 %v6791, %v6919
  %v6928 = vsub.f32 %v6792, %v6919
  %v6929 = vsub.f32 %v6793, %v6919
  %v6930 = vsub.f32 %v6794, %v6919
  %v6931 = vsub.f32 %v6795, %v6919
  %v6932 = vsub.f32 %v6796, %v6919
  %v6933 = vsub.f32 %v6797, %v6919
  %v6934 = vsub.f32 %v6798, %v6919
  %v6935 = vsub.f32 %v6799, %v6919
  %v6936 = vsub.f32 %v6800, %v6919
  %v6937 = vsub.f32 %v6801, %v6919
  %v6938 = vsub.f32 %v6802, %v6919
  %v6939 = vsub.f32 %v6803, %v6919
  %v6940 = vsub.f32 %v6804, %v6919
  %v6941 = vsub.f32 %v6805, %v6919
  %v6942 = vsub.f32 %v6806, %v6919
  %v6943 = vsub.f32 %v6807, %v6919
  %v6944 = vsub.f32 %v6808, %v6919
  %v6945 = vsub.f32 %v6809, %v6919
  %v6946 = vsub.f32 %v6810, %v6919
  %v6947 = vsub.f32 %v6811, %v6919
  %v6948 = vsub.f32 %v6812, %v6919
  %v6949 = vsub.f32 %v6813, %v6919
  %v6950 = vsub.f32 %v6814, %v6919
  %v6951 = vsub.f32 %v6815, %v6919
  %v6952 = vsub.f32 %v6816, %v6919
  %v6953 = vsub.f32 %v6817, %v6919
  %v6954 = vsub.f32 %v6818, %v6919
  %v6955 = vsub.f32 %v6819, %v6919
  %v6956 = vsub.f32 %v6820, %v6919
  %v6957 = vsub.f32 %v6821, %v6919
  %v6958 = vsub.f32 %v6822, %v6919
  %v6959 = vsub.f32 %v6823, %v6919
  %v6960 = vsub.f32 %v6824, %v6919
  %v6961 = vsub.f32 %v6825, %v6919
  %v6962 = vsub.f32 %v6826, %v6919
  %v6963 = vsub.f32 %v6827, %v6919
  %v6964 = vsub.f32 %v6828, %v6919
  %v6965 = vsub.f32 %v6829, %v6919
  %v6966 = vsub.f32 %v6830, %v6919
  %v6967 = vsub.f32 %v6831, %v6919
  %v6968 = vsub.f32 %v6832, %v6919
  %v6969 = vsub.f32 %v6833, %v6919
  %v6970 = vsub.f32 %v6834, %v6919
  %v6971 = vsub.f32 %v6835, %v6919
  %v6972 = vsub.f32 %v6836, %v6919
  %v6973 = vsub.f32 %v6837, %v6919
  %v6974 = vsub.f32 %v6838, %v6919
  %v6975 = vsub.f32 %v6839, %v6919
  %v6976 = vsub.f32 %v6840, %v6919
  %v6977 = vsub.f32 %v6841, %v6919
  %v6978 = vsub.f32 %v6842, %v6919
  %v6979 = vsub.f32 %v6843, %v6919
  %v6980 = vsub.f32 %v6844, %v6919
  %v6981 = vsub.f32 %v6845, %v6919
  %v6982 = vsub.f32 %v6846, %v6919
  %v6983 = vsub.f32 %v6847, %v6919
  %v6984 = vmul.f32 %v6920, %v6920
  %v6985 = vmul.f32 %v6921, %v6921
  %v6986 = vmul.f32 %v6922, %v6922
  %v6987 = vmul.f32 %v6923, %v6923
  %v6988 = vmul.f32 %v6924, %v6924
  %v6989 = vmul.f32 %v6925, %v6925
  %v6990 = vmul.f32 %v6926, %v6926
  %v6991 = vmul.f32 %v6927, %v6927
  %v6992 = vmul.f32 %v6928, %v6928
  %v6993 = vmul.f32 %v6929, %v6929
  %v6994 = vmul.f32 %v6930, %v6930
  %v6995 = vmul.f32 %v6931, %v6931
  %v6996 = vmul.f32 %v6932, %v6932
  %v6997 = vmul.f32 %v6933, %v6933
  %v6998 = vmul.f32 %v6934, %v6934
  %v6999 = vmul.f32 %v6935, %v6935
  %v7000 = vmul.f32 %v6936, %v6936
  %v7001 = vmul.f32 %v6937, %v6937
  %v7002 = vmul.f32 %v6938, %v6938
  %v7003 = vmul.f32 %v6939, %v6939
  %v7004 = vmul.f32 %v6940, %v6940
  %v7005 = vmul.f32 %v6941, %v6941
  %v7006 = vmul.f32 %v6942, %v6942
  %v7007 = vmul.f32 %v6943, %v6943
  %v7008 = vmul.f32 %v6944, %v6944
  %v7009 = vmul.f32 %v6945, %v6945
  %v7010 = vmul.f32 %v6946, %v6946
  %v7011 = vmul.f32 %v6947, %v6947
  %v7012 = vmul.f32 %v6948, %v6948
  %v7013 = vmul.f32 %v6949, %v6949
  %v7014 = vmul.f32 %v6950, %v6950
  %v7015 = vmul.f32 %v6951, %v6951
  %v7016 = vmul.f32 %v6952, %v6952
  %v7017 = vmul.f32 %v6953, %v6953
  %v7018 = vmul.f32 %v6954, %v6954
  %v7019 = vmul.f32 %v6955, %v6955
  %v7020 = vmul.f32 %v6956, %v6956
  %v7021 = vmul.f32 %v6957, %v6957
  %v7022 = vmul.f32 %v6958, %v6958
  %v7023 = vmul.f32 %v6959, %v6959
  %v7024 = vmul.f32 %v6960, %v6960
  %v7025 = vmul.f32 %v6961, %v6961
  %v7026 = vmul.f32 %v6962, %v6962
  %v7027 = vmul.f32 %v6963, %v6963
  %v7028 = vmul.f32 %v6964, %v6964
  %v7029 = vmul.f32 %v6965, %v6965
  %v7030 = vmul.f32 %v6966, %v6966
  %v7031 = vmul.f32 %v6967, %v6967
  %v7032 = vmul.f32 %v6968, %v6968
  %v7033 = vmul.f32 %v6969, %v6969
  %v7034 = vmul.f32 %v6970, %v6970
  %v7035 = vmul.f32 %v6971, %v6971
  %v7036 = vmul.f32 %v6972, %v6972
  %v7037 = vmul.f32 %v6973, %v6973
  %v7038 = vmul.f32 %v6974, %v6974
  %v7039 = vmul.f32 %v6975, %v6975
  %v7040 = vmul.f32 %v6976, %v6976
  %v7041 = vmul.f32 %v6977, %v6977
  %v7042 = vmul.f32 %v6978, %v6978
  %v7043 = vmul.f32 %v6979, %v6979
  %v7044 = vmul.f32 %v6980, %v6980
  %v7045 = vmul.f32 %v6981, %v6981
  %v7046 = vmul.f32 %v6982, %v6982
  %v7047 = vmul.f32 %v6983, %v6983
  %v7048 = vadd.f32 %v6984, %v6985
  %v7049 = vadd.f32 %v7048, %v6986
  %v7050 = vadd.f32 %v7049, %v6987
  %v7051 = vadd.f32 %v7050, %v6988
  %v7052 = vadd.f32 %v7051, %v6989
  %v7053 = vadd.f32 %v7052, %v6990
  %v7054 = vadd.f32 %v7053, %v6991
  %v7055 = vadd.f32 %v7054, %v6992
  %v7056 = vadd.f32 %v7055, %v6993
  %v7057 = vadd.f32 %v7056, %v6994
  %v7058 = vadd.f32 %v7057, %v6995
  %v7059 = vadd.f32 %v7058, %v6996
  %v7060 = vadd.f32 %v7059, %v6997
  %v7061 = vadd.f32 %v7060, %v6998
  %v7062 = vadd.f32 %v7061, %v6999
  %v7063 = vadd.f32 %v7062, %v7000
  %v7064 = vadd.f32 %v7063, %v7001
  %v7065 = vadd.f32 %v7064, %v7002
  %v7066 = vadd.f32 %v7065, %v7003
  %v7067 = vadd.f32 %v7066, %v7004
  %v7068 = vadd.f32 %v7067, %v7005
  %v7069 = vadd.f32 %v7068, %v7006
  %v7070 = vadd.f32 %v7069, %v7007
  %v7071 = vadd.f32 %v7070, %v7008
  %v7072 = vadd.f32 %v7071, %v7009
  %v7073 = vadd.f32 %v7072, %v7010
  %v7074 = vadd.f32 %v7073, %v7011
  %v7075 = vadd.f32 %v7074, %v7012
  %v7076 = vadd.f32 %v7075, %v7013
  %v7077 = vadd.f32 %v7076, %v7014
  %v7078 = vadd.f32 %v7077, %v7015
  %v7079 = vadd.f32 %v7078, %v7016
  %v7080 = vadd.f32 %v7079, %v7017
  %v7081 = vadd.f32 %v7080, %v7018
  %v7082 = vadd.f32 %v7081, %v7019
  %v7083 = vadd.f32 %v7082, %v7020
  %v7084 = vadd.f32 %v7083, %v7021
  %v7085 = vadd.f32 %v7084, %v7022
  %v7086 = vadd.f32 %v7085, %v7023
  %v7087 = vadd.f32 %v7086, %v7024
  %v7088 = vadd.f32 %v7087, %v7025
  %v7089 = vadd.f32 %v7088, %v7026
  %v7090 = vadd.f32 %v7089, %v7027
  %v7091 = vadd.f32 %v7090, %v7028
  %v7092 = vadd.f32 %v7091, %v7029
  %v7093 = vadd.f32 %v7092, %v7030
  %v7094 = vadd.f32 %v7093, %v7031
  %v7095 = vadd.f32 %v7094, %v7032
  %v7096 = vadd.f32 %v7095, %v7033
  %v7097 = vadd.f32 %v7096, %v7034
  %v7098 = vadd.f32 %v7097, %v7035
  %v7099 = vadd.f32 %v7098, %v7036
  %v7100 = vadd.f32 %v7099, %v7037
  %v7101 = vadd.f32 %v7100, %v7038
  %v7102 = vadd.f32 %v7101, %v7039
  %v7103 = vadd.f32 %v7102, %v7040
  %v7104 = vadd.f32 %v7103, %v7041
  %v7105 = vadd.f32 %v7104, %v7042
  %v7106 = vadd.f32 %v7105, %v7043
  %v7107 = vadd.f32 %v7106, %v7044
  %v7108 = vadd.f32 %v7107, %v7045
  %v7109 = vadd.f32 %v7108, %v7046
  %v7110 = vadd.f32 %v7109, %v7047
  %v7111 = vrot.slane %v7110, 4
  %v7112 = vadd.f32 %v7110, %v7111
  %v7113 = vrot.slane %v7112, 2
  %v7114 = vadd.f32 %v7112, %v7113
  %v7115 = vrot.slane %v7114, 1
  %v7116 = vadd.f32 %v7114, %v7115
  %v7117 = vmul.f32 %v7116, %v3171
  %v7118 = vadd.f32 %v7117, 1e-05
  %v7119 = vrsqrt.pop %v7118
  %v7120 = vmul.f32 %v7119, %v7118
  %v7121 = vmul.f32 %v7120, %v7119
  %v7122 = vmul.f32 0.5, %v7121
  %v7123 = vsub.f32 1.5, %v7122
  %v7124 = vmul.f32 %v7119, %v7123
  %vm7125 = vweird.f32 %v7118
  %vm7126 = vweird.f32 %v7119
  %vm7127 = vmor %vm7125, %vm7126
  %v7128 = vsel %vm7127, %v7119, %v7124
  %v7129 = vmul.f32 %v6920, %v7128
  %v7130 = vmul.f32 %v6921, %v7128
  %v7131 = vmul.f32 %v6922, %v7128
  %v7132 = vmul.f32 %v6923, %v7128
  %v7133 = vmul.f32 %v6924, %v7128
  %v7134 = vmul.f32 %v6925, %v7128
  %v7135 = vmul.f32 %v6926, %v7128
  %v7136 = vmul.f32 %v6927, %v7128
  %v7137 = vmul.f32 %v6928, %v7128
  %v7138 = vmul.f32 %v6929, %v7128
  %v7139 = vmul.f32 %v6930, %v7128
  %v7140 = vmul.f32 %v6931, %v7128
  %v7141 = vmul.f32 %v6932, %v7128
  %v7142 = vmul.f32 %v6933, %v7128
  %v7143 = vmul.f32 %v6934, %v7128
  %v7144 = vmul.f32 %v6935, %v7128
  %v7145 = vmul.f32 %v6936, %v7128
  %v7146 = vmul.f32 %v6937, %v7128
  %v7147 = vmul.f32 %v6938, %v7128
  %v7148 = vmul.f32 %v6939, %v7128
  %v7149 = vmul.f32 %v6940, %v7128
  %v7150 = vmul.f32 %v6941, %v7128
  %v7151 = vmul.f32 %v6942, %v7128
  %v7152 = vmul.f32 %v6943, %v7128
  %v7153 = vmul.f32 %v6944, %v7128
  %v7154 = vmul.f32 %v6945, %v7128
  %v7155 = vmul.f32 %v6946, %v7128
  %v7156 = vmul.f32 %v6947, %v7128
  %v7157 = vmul.f32 %v6948, %v7128
  %v7158 = vmul.f32 %v6949, %v7128
  %v7159 = vmul.f32 %v6950, %v7128
  %v7160 = vmul.f32 %v6951, %v7128
  %v7161 = vmul.f32 %v6952, %v7128
  %v7162 = vmul.f32 %v6953, %v7128
  %v7163 = vmul.f32 %v6954, %v7128
  %v7164 = vmul.f32 %v6955, %v7128
  %v7165 = vmul.f32 %v6956, %v7128
  %v7166 = vmul.f32 %v6957, %v7128
  %v7167 = vmul.f32 %v6958, %v7128
  %v7168 = vmul.f32 %v6959, %v7128
  %v7169 = vmul.f32 %v6960, %v7128
  %v7170 = vmul.f32 %v6961, %v7128
  %v7171 = vmul.f32 %v6962, %v7128
  %v7172 = vmul.f32 %v6963, %v7128
  %v7173 = vmul.f32 %v6964, %v7128
  %v7174 = vmul.f32 %v6965, %v7128
  %v7175 = vmul.f32 %v6966, %v7128
  %v7176 = vmul.f32 %v6967, %v7128
  %v7177 = vmul.f32 %v6968, %v7128
  %v7178 = vmul.f32 %v6969, %v7128
  %v7179 = vmul.f32 %v6970, %v7128
  %v7180 = vmul.f32 %v6971, %v7128
  %v7181 = vmul.f32 %v6972, %v7128
  %v7182 = vmul.f32 %v6973, %v7128
  %v7183 = vmul.f32 %v6974, %v7128
  %v7184 = vmul.f32 %v6975, %v7128
  %v7185 = vmul.f32 %v6976, %v7128
  %v7186 = vmul.f32 %v6977, %v7128
  %v7187 = vmul.f32 %v6978, %v7128
  %v7188 = vmul.f32 %v6979, %v7128
  %v7189 = vmul.f32 %v6980, %v7128
  %v7190 = vmul.f32 %v6981, %v7128
  %v7191 = vmul.f32 %v6982, %v7128
  %v7192 = vmul.f32 %v6983, %v7128
  %v7194 = vperm.slane %v6848, 0
  %v7196 = vmul.f32 %v7129, %v7194
  %v7197 = vmul.f32 %v7130, %v7194
  %v7198 = vmul.f32 %v7131, %v7194
  %v7199 = vmul.f32 %v7132, %v7194
  %v7200 = vmul.f32 %v7133, %v7194
  %v7201 = vmul.f32 %v7134, %v7194
  %v7202 = vmul.f32 %v7135, %v7194
  %v7203 = vmul.f32 %v7136, %v7194
  %v7204 = vmul.f32 %v7137, %v7194
  %v7205 = vmul.f32 %v7138, %v7194
  %v7206 = vmul.f32 %v7139, %v7194
  %v7207 = vmul.f32 %v7140, %v7194
  %v7208 = vmul.f32 %v7141, %v7194
  %v7209 = vmul.f32 %v7142, %v7194
  %v7210 = vmul.f32 %v7143, %v7194
  %v7211 = vmul.f32 %v7144, %v7194
  %v7212 = vmul.f32 %v7145, %v7194
  %v7213 = vmul.f32 %v7146, %v7194
  %v7214 = vmul.f32 %v7147, %v7194
  %v7215 = vmul.f32 %v7148, %v7194
  %v7216 = vmul.f32 %v7149, %v7194
  %v7217 = vmul.f32 %v7150, %v7194
  %v7218 = vmul.f32 %v7151, %v7194
  %v7219 = vmul.f32 %v7152, %v7194
  %v7220 = vmul.f32 %v7153, %v7194
  %v7221 = vmul.f32 %v7154, %v7194
  %v7222 = vmul.f32 %v7155, %v7194
  %v7223 = vmul.f32 %v7156, %v7194
  %v7224 = vmul.f32 %v7157, %v7194
  %v7225 = vmul.f32 %v7158, %v7194
  %v7226 = vmul.f32 %v7159, %v7194
  %v7227 = vmul.f32 %v7160, %v7194
  %v7228 = vmul.f32 %v7161, %v7194
  %v7229 = vmul.f32 %v7162, %v7194
  %v7230 = vmul.f32 %v7163, %v7194
  %v7231 = vmul.f32 %v7164, %v7194
  %v7232 = vmul.f32 %v7165, %v7194
  %v7233 = vmul.f32 %v7166, %v7194
  %v7234 = vmul.f32 %v7167, %v7194
  %v7235 = vmul.f32 %v7168, %v7194
  %v7236 = vmul.f32 %v7169, %v7194
  %v7237 = vmul.f32 %v7170, %v7194
  %v7238 = vmul.f32 %v7171, %v7194
  %v7239 = vmul.f32 %v7172, %v7194
  %v7240 = vmul.f32 %v7173, %v7194
  %v7241 = vmul.f32 %v7174, %v7194
  %v7242 = vmul.f32 %v7175, %v7194
  %v7243 = vmul.f32 %v7176, %v7194
  %v7244 = vmul.f32 %v7177, %v7194
  %v7245 = vmul.f32 %v7178, %v7194
  %v7246 = vmul.f32 %v7179, %v7194
  %v7247 = vmul.f32 %v7180, %v7194
  %v7248 = vmul.f32 %v7181, %v7194
  %v7249 = vmul.f32 %v7182, %v7194
  %v7250 = vmul.f32 %v7183, %v7194
  %v7251 = vmul.f32 %v7184, %v7194
  %v7252 = vmul.f32 %v7185, %v7194
  %v7253 = vmul.f32 %v7186, %v7194
  %v7254 = vmul.f32 %v7187, %v7194
  %v7255 = vmul.f32 %v7188, %v7194
  %v7256 = vmul.f32 %v7189, %v7194
  %v7257 = vmul.f32 %v7190, %v7194
  %v7258 = vmul.f32 %v7191, %v7194
  %v7259 = vmul.f32 %v7192, %v7194
  %v7261 = vperm.slane %v6849, 0
  %v7263 = vadd.f32 %v7196, %v7261
  %v7264 = vadd.f32 %v7197, %v7261
  %v7265 = vadd.f32 %v7198, %v7261
  %v7266 = vadd.f32 %v7199, %v7261
  %v7267 = vadd.f32 %v7200, %v7261
  %v7268 = vadd.f32 %v7201, %v7261
  %v7269 = vadd.f32 %v7202, %v7261
  %v7270 = vadd.f32 %v7203, %v7261
  %v7271 = vadd.f32 %v7204, %v7261
  %v7272 = vadd.f32 %v7205, %v7261
  %v7273 = vadd.f32 %v7206, %v7261
  %v7274 = vadd.f32 %v7207, %v7261
  %v7275 = vadd.f32 %v7208, %v7261
  %v7276 = vadd.f32 %v7209, %v7261
  %v7277 = vadd.f32 %v7210, %v7261
  %v7278 = vadd.f32 %v7211, %v7261
  %v7279 = vadd.f32 %v7212, %v7261
  %v7280 = vadd.f32 %v7213, %v7261
  %v7281 = vadd.f32 %v7214, %v7261
  %v7282 = vadd.f32 %v7215, %v7261
  %v7283 = vadd.f32 %v7216, %v7261
  %v7284 = vadd.f32 %v7217, %v7261
  %v7285 = vadd.f32 %v7218, %v7261
  %v7286 = vadd.f32 %v7219, %v7261
  %v7287 = vadd.f32 %v7220, %v7261
  %v7288 = vadd.f32 %v7221, %v7261
  %v7289 = vadd.f32 %v7222, %v7261
  %v7290 = vadd.f32 %v7223, %v7261
  %v7291 = vadd.f32 %v7224, %v7261
  %v7292 = vadd.f32 %v7225, %v7261
  %v7293 = vadd.f32 %v7226, %v7261
  %v7294 = vadd.f32 %v7227, %v7261
  %v7295 = vadd.f32 %v7228, %v7261
  %v7296 = vadd.f32 %v7229, %v7261
  %v7297 = vadd.f32 %v7230, %v7261
  %v7298 = vadd.f32 %v7231, %v7261
  %v7299 = vadd.f32 %v7232, %v7261
  %v7300 = vadd.f32 %v7233, %v7261
  %v7301 = vadd.f32 %v7234, %v7261
  %v7302 = vadd.f32 %v7235, %v7261
  %v7303 = vadd.f32 %v7236, %v7261
  %v7304 = vadd.f32 %v7237, %v7261
  %v7305 = vadd.f32 %v7238, %v7261
  %v7306 = vadd.f32 %v7239, %v7261
  %v7307 = vadd.f32 %v7240, %v7261
  %v7308 = vadd.f32 %v7241, %v7261
  %v7309 = vadd.f32 %v7242, %v7261
  %v7310 = vadd.f32 %v7243, %v7261
  %v7311 = vadd.f32 %v7244, %v7261
  %v7312 = vadd.f32 %v7245, %v7261
  %v7313 = vadd.f32 %v7246, %v7261
  %v7314 = vadd.f32 %v7247, %v7261
  %v7315 = vadd.f32 %v7248, %v7261
  %v7316 = vadd.f32 %v7249, %v7261
  %v7317 = vadd.f32 %v7250, %v7261
  %v7318 = vadd.f32 %v7251, %v7261
  %v7319 = vadd.f32 %v7252, %v7261
  %v7320 = vadd.f32 %v7253, %v7261
  %v7321 = vadd.f32 %v7254, %v7261
  %v7322 = vadd.f32 %v7255, %v7261
  %v7323 = vadd.f32 %v7256, %v7261
  %v7324 = vadd.f32 %v7257, %v7261
  %v7325 = vadd.f32 %v7258, %v7261
  %v7326 = vadd.f32 %v7259, %v7261
  %v7327 = vld [vmem:[%s1] sm:$0xff]
  %v7328 = vld [vmem:[%s1 + $0x8] sm:$0xff]
  %v7329 = vld [vmem:[%s1 + $0x10] sm:$0xff]
  %v7330 = vld [vmem:[%s1 + $0x18] sm:$0xff]
  %v7331 = vld [vmem:[%s1 + $0x20] sm:$0xff]
  %v7332 = vld [vmem:[%s1 + $0x28] sm:$0xff]
  %v7333 = vld [vmem:[%s1 + $0x30] sm:$0xff]
  %v7334 = vld [vmem:[%s1 + $0x38] sm:$0xff]
  %v7335 = vld [vmem:[%s1 + $0x40] sm:$0xff]
  %v7336 = vld [vmem:[%s1 + $0x48] sm:$0xff]
  %v7337 = vld [vmem:[%s1 + $0x50] sm:$0xff]
  %v7338 = vld [vmem:[%s1 + $0x58] sm:$0xff]
  %v7339 = vld [vmem:[%s1 + $0x60] sm:$0xff]
  %v7340 = vld [vmem:[%s1 + $0x68] sm:$0xff]
  %v7341 = vld [vmem:[%s1 + $0x70] sm:$0xff]
  %v7342 = vld [vmem:[%s1 + $0x78] sm:$0xff]
  %v7343 = vld [vmem:[%s1 + $0x80] sm:$0xff]
  %v7344 = vld [vmem:[%s1 + $0x88] sm:$0xff]
  %v7345 = vld [vmem:[%s1 + $0x90] sm:$0xff]
  %v7346 = vld [vmem:[%s1 + $0x98] sm:$0xff]
  %v7347 = vld [vmem:[%s1 + $0xa0] sm:$0xff]
  %v7348 = vld [vmem:[%s1 + $0xa8] sm:$0xff]
  %v7349 = vld [vmem:[%s1 + $0xb0] sm:$0xff]
  %v7350 = vld [vmem:[%s1 + $0xb8] sm:$0xff]
  %v7351 = vld [vmem:[%s1 + $0xc0] sm:$0xff]
  %v7352 = vld [vmem:[%s1 + $0xc8] sm:$0xff]
  %v7353 = vld [vmem:[%s1 + $0xd0] sm:$0xff]
  %v7354 = vld [vmem:[%s1 + $0xd8] sm:$0xff]
  %v7355 = vld [vmem:[%s1 + $0xe0] sm:$0xff]
  %v7356 = vld [vmem:[%s1 + $0xe8] sm:$0xff]
  %v7357 = vld [vmem:[%s1 + $0xf0] sm:$0xff]
  %v7358 = vld [vmem:[%s1 + $0xf8] sm:$0xff]
  %v7359 = vld [vmem:[%s1 + $0x100] sm:$0xff]
  %v7360 = vld [vmem:[%s1 + $0x108] sm:$0xff]
  %v7361 = vld [vmem:[%s1 + $0x110] sm:$0xff]
  %v7362 = vld [vmem:[%s1 + $0x118] sm:$0xff]
  %v7363 = vld [vmem:[%s1 + $0x120] sm:$0xff]
  %v7364 = vld [vmem:[%s1 + $0x128] sm:$0xff]
  %v7365 = vld [vmem:[%s1 + $0x130] sm:$0xff]
  %v7366 = vld [vmem:[%s1 + $0x138] sm:$0xff]
  %v7367 = vld [vmem:[%s1 + $0x140] sm:$0xff]
  %v7368 = vld [vmem:[%s1 + $0x148] sm:$0xff]
  %v7369 = vld [vmem:[%s1 + $0x150] sm:$0xff]
  %v7370 = vld [vmem:[%s1 + $0x158] sm:$0xff]
  %v7371 = vld [vmem:[%s1 + $0x160] sm:$0xff]
  %v7372 = vld [vmem:[%s1 + $0x168] sm:$0xff]
  %v7373 = vld [vmem:[%s1 + $0x170] sm:$0xff]
  %v7374 = vld [vmem:[%s1 + $0x178] sm:$0xff]
  %v7375 = vld [vmem:[%s1 + $0x180] sm:$0xff]
  %v7376 = vld [vmem:[%s1 + $0x188] sm:$0xff]
  %v7377 = vld [vmem:[%s1 + $0x190] sm:$0xff]
  %v7378 = vld [vmem:[%s1 + $0x198] sm:$0xff]
  %v7379 = vld [vmem:[%s1 + $0x1a0] sm:$0xff]
  %v7380 = vld [vmem:[%s1 + $0x1a8] sm:$0xff]
  %v7381 = vld [vmem:[%s1 + $0x1b0] sm:$0xff]
  %v7382 = vld [vmem:[%s1 + $0x1b8] sm:$0xff]
  %v7383 = vld [vmem:[%s1 + $0x1c0] sm:$0xff]
  %v7384 = vld [vmem:[%s1 + $0x1c8] sm:$0xff]
  %v7385 = vld [vmem:[%s1 + $0x1d0] sm:$0xff]
  %v7386 = vld [vmem:[%s1 + $0x1d8] sm:$0xff]
  %v7387 = vld [vmem:[%s1 + $0x1e0] sm:$0xff]
  %v7388 = vld [vmem:[%s1 + $0x1e8] sm:$0xff]
  %v7389 = vld [vmem:[%s1 + $0x1f0] sm:$0xff]
  %v7390 = vld [vmem:[%s1 + $0x1f8] sm:$0xff]
  %v7391 = vld [vmem:[%s8] sm:$0xff]
  %v7392 = vld [vmem:[%s8 + $0x8] sm:$0xff]
  %v7393 = vld [vmem:[%s8 + $0x10] sm:$0xff]
  %v7394 = vld [vmem:[%s8 + $0x18] sm:$0xff]
  %v7395 = vld [vmem:[%s8 + $0x20] sm:$0xff]
  %v7396 = vld [vmem:[%s8 + $0x28] sm:$0xff]
  %v7397 = vld [vmem:[%s8 + $0x30] sm:$0xff]
  %v7398 = vld [vmem:[%s8 + $0x38] sm:$0xff]
  %v7399 = vld [vmem:[%s8 + $0x40] sm:$0xff]
  %v7400 = vld [vmem:[%s8 + $0x48] sm:$0xff]
  %v7401 = vld [vmem:[%s8 + $0x50] sm:$0xff]
  %v7402 = vld [vmem:[%s8 + $0x58] sm:$0xff]
  %v7403 = vld [vmem:[%s8 + $0x60] sm:$0xff]
  %v7404 = vld [vmem:[%s8 + $0x68] sm:$0xff]
  %v7405 = vld [vmem:[%s8 + $0x70] sm:$0xff]
  %v7406 = vld [vmem:[%s8 + $0x78] sm:$0xff]
  %v7407 = vld [vmem:[%s9] sm:$0x1]
  %v7409 = vperm.slane %v7407, 0
  %7411 = vmatpush.msra.mxu0 %v7406
  %7412 = vmatpush.msra.mxu0 %v7405
  %7413 = vmatpush.msra.mxu0 %v7404
  %7414 = vmatpush.msra.mxu0 %v7403
  %7415 = vmatpush.msra.mxu0 %v7402
  %7416 = vmatpush.msra.mxu0 %v7401
  %7417 = vmatpush.msra.mxu0 %v7400
  %7418 = vmatpush.msra.mxu0 %v7399
  %7419 = vmatpush.msra.mxu0 %v7398
  %7420 = vmatpush.msra.mxu0 %v7397
  %7421 = vmatpush.msra.mxu0 %v7396
  %7422 = vmatpush.msra.mxu0 %v7395
  %7423 = vmatpush.msra.mxu0 %v7394
  %7424 = vmatpush.msra.mxu0 %v7393
  %7425 = vmatpush.msra.mxu0 %v7392
  %7426 = vmatpush.msra.mxu0 %v7391
  %7427 = vmatmul.f32.gmra.mxu0 %v7327
  %v7428 = vpop.f32.mrf.mxu0
  %v7429 = vadd.f32 %v7409, %v7428
  %7430 = vmatmul.f32.gmra.mxu0 %v7328
  %v7431 = vpop.f32.mrf.mxu0
  %v7432 = vadd.f32 %v7409, %v7431
  %7433 = vmatmul.f32.gmra.mxu0 %v7329
  %v7434 = vpop.f32.mrf.mxu0
  %v7435 = vadd.f32 %v7409, %v7434
  %7436 = vmatmul.f32.gmra.mxu0 %v7330
  %v7437 = vpop.f32.mrf.mxu0
  %v7438 = vadd.f32 %v7409, %v7437
  %7439 = vmatmul.f32.gmra.mxu0 %v7331
  %v7440 = vpop.f32.mrf.mxu0
  %v7441 = vadd.f32 %v7409, %v7440
  %7442 = vmatmul.f32.gmra.mxu0 %v7332
  %v7443 = vpop.f32.mrf.mxu0
  %v7444 = vadd.f32 %v7409, %v7443
  %7445 = vmatmul.f32.gmra.mxu0 %v7333
  %v7446 = vpop.f32.mrf.mxu0
  %v7447 = vadd.f32 %v7409, %v7446
  %7448 = vmatmul.f32.gmra.mxu0 %v7334
  %v7449 = vpop.f32.mrf.mxu0
  %v7450 = vadd.f32 %v7409, %v7449
  %7451 = vmatmul.f32.gmra.mxu0 %v7335
  %v7452 = vpop.f32.mrf.mxu0
  %v7453 = vadd.f32 %v7409, %v7452
  %7454 = vmatmul.f32.gmra.mxu0 %v7336
  %v7455 = vpop.f32.mrf.mxu0
  %v7456 = vadd.f32 %v7409, %v7455
  %7457 = vmatmul.f32.gmra.mxu0 %v7337
  %v7458 = vpop.f32.mrf.mxu0
  %v7459 = vadd.f32 %v7409, %v7458
  %7460 = vmatmul.f32.gmra.mxu0 %v7338
  %v7461 = vpop.f32.mrf.mxu0
  %v7462 = vadd.f32 %v7409, %v7461
  %7463 = vmatmul.f32.gmra.mxu0 %v7339
  %v7464 = vpop.f32.mrf.mxu0
  %v7465 = vadd.f32 %v7409, %v7464
  %7466 = vmatmul.f32.gmra.mxu0 %v7340
  %v7467 = vpop.f32.mrf.mxu0
  %v7468 = vadd.f32 %v7409, %v7467
  %7469 = vmatmul.f32.gmra.mxu0 %v7341
  %v7470 = vpop.f32.mrf.mxu0
  %v7471 = vadd.f32 %v7409, %v7470
  %7472 = vmatmul.f32.gmra.mxu0 %v7342
  %v7473 = vpop.f32.mrf.mxu0
  %v7474 = vadd.f32 %v7409, %v7473
  %7475 = vmatmul.f32.gmra.mxu0 %v7343
  %v7476 = vpop.f32.mrf.mxu0
  %v7477 = vadd.f32 %v7409, %v7476
  %7478 = vmatmul.f32.gmra.mxu0 %v7344
  %v7479 = vpop.f32.mrf.mxu0
  %v7480 = vadd.f32 %v7409, %v7479
  %7481 = vmatmul.f32.gmra.mxu0 %v7345
  %v7482 = vpop.f32.mrf.mxu0
  %v7483 = vadd.f32 %v7409, %v7482
  %7484 = vmatmul.f32.gmra.mxu0 %v7346
  %v7485 = vpop.f32.mrf.mxu0
  %v7486 = vadd.f32 %v7409, %v7485
  %7487 = vmatmul.f32.gmra.mxu0 %v7347
  %v7488 = vpop.f32.mrf.mxu0
  %v7489 = vadd.f32 %v7409, %v7488
  %7490 = vmatmul.f32.gmra.mxu0 %v7348
  %v7491 = vpop.f32.mrf.mxu0
  %v7492 = vadd.f32 %v7409, %v7491
  %7493 = vmatmul.f32.gmra.mxu0 %v7349
  %v7494 = vpop.f32.mrf.mxu0
  %v7495 = vadd.f32 %v7409, %v7494
  %7496 = vmatmul.f32.gmra.mxu0 %v7350
  %v7497 = vpop.f32.mrf.mxu0
  %v7498 = vadd.f32 %v7409, %v7497
  %7499 = vmatmul.f32.gmra.mxu0 %v7351
  %v7500 = vpop.f32.mrf.mxu0
  %v7501 = vadd.f32 %v7409, %v7500
  %7502 = vmatmul.f32.gmra.mxu0 %v7352
  %v7503 = vpop.f32.mrf.mxu0
  %v7504 = vadd.f32 %v7409, %v7503
  %7505 = vmatmul.f32.gmra.mxu0 %v7353
  %v7506 = vpop.f32.mrf.mxu0
  %v7507 = vadd.f32 %v7409, %v7506
  %7508 = vmatmul.f32.gmra.mxu0 %v7354
  %v7509 = vpop.f32.mrf.mxu0
  %v7510 = vadd.f32 %v7409, %v7509
  %7511 = vmatmul.f32.gmra.mxu0 %v7355
  %v7512 = vpop.f32.mrf.mxu0
  %v7513 = vadd.f32 %v7409, %v7512
  %7514 = vmatmul.f32.gmra.mxu0 %v7356
  %v7515 = vpop.f32.mrf.mxu0
  %v7516 = vadd.f32 %v7409, %v7515
  %7517 = vmatmul.f32.gmra.mxu0 %v7357
  %v7518 = vpop.f32.mrf.mxu0
  %v7519 = vadd.f32 %v7409, %v7518
  %7520 = vmatmul.f32.gmra.mxu0 %v7358
  %v7521 = vpop.f32.mrf.mxu0
  %v7522 = vadd.f32 %v7409, %v7521
  %7523 = vmatmul.f32.gmra.mxu0 %v7359
  %v7524 = vpop.f32.mrf.mxu0
  %v7525 = vadd.f32 %v7409, %v7524
  %7526 = vmatmul.f32.gmra.mxu0 %v7360
  %v7527 = vpop.f32.mrf.mxu0
  %v7528 = vadd.f32 %v7409, %v7527
  %7529 = vmatmul.f32.gmra.mxu0 %v7361
  %v7530 = vpop.f32.mrf.mxu0
  %v7531 = vadd.f32 %v7409, %v7530
  %7532 = vmatmul.f32.gmra.mxu0 %v7362
  %v7533 = vpop.f32.mrf.mxu0
  %v7534 = vadd.f32 %v7409, %v7533
  %7535 = vmatmul.f32.gmra.mxu0 %v7363
  %v7536 = vpop.f32.mrf.mxu0
  %v7537 = vadd.f32 %v7409, %v7536
  %7538 = vmatmul.f32.gmra.mxu0 %v7364
  %v7539 = vpop.f32.mrf.mxu0
  %v7540 = vadd.f32 %v7409, %v7539
  %7541 = vmatmul.f32.gmra.mxu0 %v7365
  %v7542 = vpop.f32.mrf.mxu0
  %v7543 = vadd.f32 %v7409, %v7542
  %7544 = vmatmul.f32.gmra.mxu0 %v7366
  %v7545 = vpop.f32.mrf.mxu0
  %v7546 = vadd.f32 %v7409, %v7545
  %7547 = vmatmul.f32.gmra.mxu0 %v7367
  %v7548 = vpop.f32.mrf.mxu0
  %v7549 = vadd.f32 %v7409, %v7548
  %7550 = vmatmul.f32.gmra.mxu0 %v7368
  %v7551 = vpop.f32.mrf.mxu0
  %v7552 = vadd.f32 %v7409, %v7551
  %7553 = vmatmul.f32.gmra.mxu0 %v7369
  %v7554 = vpop.f32.mrf.mxu0
  %v7555 = vadd.f32 %v7409, %v7554
  %7556 = vmatmul.f32.gmra.mxu0 %v7370
  %v7557 = vpop.f32.mrf.mxu0
  %v7558 = vadd.f32 %v7409, %v7557
  %7559 = vmatmul.f32.gmra.mxu0 %v7371
  %v7560 = vpop.f32.mrf.mxu0
  %v7561 = vadd.f32 %v7409, %v7560
  %7562 = vmatmul.f32.gmra.mxu0 %v7372
  %v7563 = vpop.f32.mrf.mxu0
  %v7564 = vadd.f32 %v7409, %v7563
  %7565 = vmatmul.f32.gmra.mxu0 %v7373
  %v7566 = vpop.f32.mrf.mxu0
  %v7567 = vadd.f32 %v7409, %v7566
  %7568 = vmatmul.f32.gmra.mxu0 %v7374
  %v7569 = vpop.f32.mrf.mxu0
  %v7570 = vadd.f32 %v7409, %v7569
  %7571 = vmatmul.f32.gmra.mxu0 %v7375
  %v7572 = vpop.f32.mrf.mxu0
  %v7573 = vadd.f32 %v7409, %v7572
  %7574 = vmatmul.f32.gmra.mxu0 %v7376
  %v7575 = vpop.f32.mrf.mxu0
  %v7576 = vadd.f32 %v7409, %v7575
  %7577 = vmatmul.f32.gmra.mxu0 %v7377
  %v7578 = vpop.f32.mrf.mxu0
  %v7579 = vadd.f32 %v7409, %v7578
  %7580 = vmatmul.f32.gmra.mxu0 %v7378
  %v7581 = vpop.f32.mrf.mxu0
  %v7582 = vadd.f32 %v7409, %v7581
  %7583 = vmatmul.f32.gmra.mxu0 %v7379
  %v7584 = vpop.f32.mrf.mxu0
  %v7585 = vadd.f32 %v7409, %v7584
  %7586 = vmatmul.f32.gmra.mxu0 %v7380
  %v7587 = vpop.f32.mrf.mxu0
  %v7588 = vadd.f32 %v7409, %v7587
  %7589 = vmatmul.f32.gmra.mxu0 %v7381
  %v7590 = vpop.f32.mrf.mxu0
  %v7591 = vadd.f32 %v7409, %v7590
  %7592 = vmatmul.f32.gmra.mxu0 %v7382
  %v7593 = vpop.f32.mrf.mxu0
  %v7594 = vadd.f32 %v7409, %v7593
  %7595 = vmatmul.f32.gmra.mxu0 %v7383
  %v7596 = vpop.f32.mrf.mxu0
  %v7597 = vadd.f32 %v7409, %v7596
  %7598 = vmatmul.f32.gmra.mxu0 %v7384
  %v7599 = vpop.f32.mrf.mxu0
  %v7600 = vadd.f32 %v7409, %v7599
  %7601 = vmatmul.f32.gmra.mxu0 %v7385
  %v7602 = vpop.f32.mrf.mxu0
  %v7603 = vadd.f32 %v7409, %v7602
  %7604 = vmatmul.f32.gmra.mxu0 %v7386
  %v7605 = vpop.f32.mrf.mxu0
  %v7606 = vadd.f32 %v7409, %v7605
  %7607 = vmatmul.f32.gmra.mxu0 %v7387
  %v7608 = vpop.f32.mrf.mxu0
  %v7609 = vadd.f32 %v7409, %v7608
  %7610 = vmatmul.f32.gmra.mxu0 %v7388
  %v7611 = vpop.f32.mrf.mxu0
  %v7612 = vadd.f32 %v7409, %v7611
  %7613 = vmatmul.f32.gmra.mxu0 %v7389
  %v7614 = vpop.f32.mrf.mxu0
  %v7615 = vadd.f32 %v7409, %v7614
  %7616 = vmatmul.f32.gmra.mxu0 %v7390
  %v7617 = vpop.f32.mrf.mxu0
  %v7618 = vadd.f32 %v7409, %v7617
  %7619 = vdwg.mxu0
  %v7620 = vadd.f32 %v7263, %v7429
  %v7621 = vadd.f32 %v7264, %v7432
  %v7622 = vadd.f32 %v7265, %v7435
  %v7623 = vadd.f32 %v7266, %v7438
  %v7624 = vadd.f32 %v7267, %v7441
  %v7625 = vadd.f32 %v7268, %v7444
  %v7626 = vadd.f32 %v7269, %v7447
  %v7627 = vadd.f32 %v7270, %v7450
  %v7628 = vadd.f32 %v7271, %v7453
  %v7629 = vadd.f32 %v7272, %v7456
  %v7630 = vadd.f32 %v7273, %v7459
  %v7631 = vadd.f32 %v7274, %v7462
  %v7632 = vadd.f32 %v7275, %v7465
  %v7633 = vadd.f32 %v7276, %v7468
  %v7634 = vadd.f32 %v7277, %v7471
  %v7635 = vadd.f32 %v7278, %v7474
  %v7636 = vadd.f32 %v7279, %v7477
  %v7637 = vadd.f32 %v7280, %v7480
  %v7638 = vadd.f32 %v7281, %v7483
  %v7639 = vadd.f32 %v7282, %v7486
  %v7640 = vadd.f32 %v7283, %v7489
  %v7641 = vadd.f32 %v7284, %v7492
  %v7642 = vadd.f32 %v7285, %v7495
  %v7643 = vadd.f32 %v7286, %v7498
  %v7644 = vadd.f32 %v7287, %v7501
  %v7645 = vadd.f32 %v7288, %v7504
  %v7646 = vadd.f32 %v7289, %v7507
  %v7647 = vadd.f32 %v7290, %v7510
  %v7648 = vadd.f32 %v7291, %v7513
  %v7649 = vadd.f32 %v7292, %v7516
  %v7650 = vadd.f32 %v7293, %v7519
  %v7651 = vadd.f32 %v7294, %v7522
  %v7652 = vadd.f32 %v7295, %v7525
  %v7653 = vadd.f32 %v7296, %v7528
  %v7654 = vadd.f32 %v7297, %v7531
  %v7655 = vadd.f32 %v7298, %v7534
  %v7656 = vadd.f32 %v7299, %v7537
  %v7657 = vadd.f32 %v7300, %v7540
  %v7658 = vadd.f32 %v7301, %v7543
  %v7659 = vadd.f32 %v7302, %v7546
  %v7660 = vadd.f32 %v7303, %v7549
  %v7661 = vadd.f32 %v7304, %v7552
  %v7662 = vadd.f32 %v7305, %v7555
  %v7663 = vadd.f32 %v7306, %v7558
  %v7664 = vadd.f32 %v7307, %v7561
  %v7665 = vadd.f32 %v7308, %v7564
  %v7666 = vadd.f32 %v7309, %v7567
  %v7667 = vadd.f32 %v7310, %v7570
  %v7668 = vadd.f32 %v7311, %v7573
  %v7669 = vadd.f32 %v7312, %v7576
  %v7670 = vadd.f32 %v7313, %v7579
  %v7671 = vadd.f32 %v7314, %v7582
  %v7672 = vadd.f32 %v7315, %v7585
  %v7673 = vadd.f32 %v7316, %v7588
  %v7674 = vadd.f32 %v7317, %v7591
  %v7675 = vadd.f32 %v7318, %v7594
  %v7676 = vadd.f32 %v7319, %v7597
  %v7677 = vadd.f32 %v7320, %v7600
  %v7678 = vadd.f32 %v7321, %v7603
  %v7679 = vadd.f32 %v7322, %v7606
  %v7680 = vadd.f32 %v7323, %v7609
  %v7681 = vadd.f32 %v7324, %v7612
  %v7682 = vadd.f32 %v7325, %v7615
  %v7683 = vadd.f32 %v7326, %v7618
  %v7684 = vmax.f32 %v7620, 0.0
  %v7685 = vmax.f32 %v7621, 0.0
  %v7686 = vmax.f32 %v7622, 0.0
  %v7687 = vmax.f32 %v7623, 0.0
  %v7688 = vmax.f32 %v7624, 0.0
  %v7689 = vmax.f32 %v7625, 0.0
  %v7690 = vmax.f32 %v7626, 0.0
  %v7691 = vmax.f32 %v7627, 0.0
  %v7692 = vmax.f32 %v7628, 0.0
  %v7693 = vmax.f32 %v7629, 0.0
  %v7694 = vmax.f32 %v7630, 0.0
  %v7695 = vmax.f32 %v7631, 0.0
  %v7696 = vmax.f32 %v7632, 0.0
  %v7697 = vmax.f32 %v7633, 0.0
  %v7698 = vmax.f32 %v7634, 0.0
  %v7699 = vmax.f32 %v7635, 0.0
  %v7700 = vmax.f32 %v7636, 0.0
  %v7701 = vmax.f32 %v7637, 0.0
  %v7702 = vmax.f32 %v7638, 0.0
  %v7703 = vmax.f32 %v7639, 0.0
  %v7704 = vmax.f32 %v7640, 0.0
  %v7705 = vmax.f32 %v7641, 0.0
  %v7706 = vmax.f32 %v7642, 0.0
  %v7707 = vmax.f32 %v7643, 0.0
  %v7708 = vmax.f32 %v7644, 0.0
  %v7709 = vmax.f32 %v7645, 0.0
  %v7710 = vmax.f32 %v7646, 0.0
  %v7711 = vmax.f32 %v7647, 0.0
  %v7712 = vmax.f32 %v7648, 0.0
  %v7713 = vmax.f32 %v7649, 0.0
  %v7714 = vmax.f32 %v7650, 0.0
  %v7715 = vmax.f32 %v7651, 0.0
  %v7716 = vmax.f32 %v7652, 0.0
  %v7717 = vmax.f32 %v7653, 0.0
  %v7718 = vmax.f32 %v7654, 0.0
  %v7719 = vmax.f32 %v7655, 0.0
  %v7720 = vmax.f32 %v7656, 0.0
  %v7721 = vmax.f32 %v7657, 0.0
  %v7722 = vmax.f32 %v7658, 0.0
  %v7723 = vmax.f32 %v7659, 0.0
  %v7724 = vmax.f32 %v7660, 0.0
  %v7725 = vmax.f32 %v7661, 0.0
  %v7726 = vmax.f32 %v7662, 0.0
  %v7727 = vmax.f32 %v7663, 0.0
  %v7728 = vmax.f32 %v7664, 0.0
  %v7729 = vmax.f32 %v7665, 0.0
  %v7730 = vmax.f32 %v7666, 0.0
  %v7731 = vmax.f32 %v7667, 0.0
  %v7732 = vmax.f32 %v7668, 0.0
  %v7733 = vmax.f32 %v7669, 0.0
  %v7734 = vmax.f32 %v7670, 0.0
  %v7735 = vmax.f32 %v7671, 0.0
  %v7736 = vmax.f32 %v7672, 0.0
  %v7737 = vmax.f32 %v7673, 0.0
  %v7738 = vmax.f32 %v7674, 0.0
  %v7739 = vmax.f32 %v7675, 0.0
  %v7740 = vmax.f32 %v7676, 0.0
  %v7741 = vmax.f32 %v7677, 0.0
  %v7742 = vmax.f32 %v7678, 0.0
  %v7743 = vmax.f32 %v7679, 0.0
  %v7744 = vmax.f32 %v7680, 0.0
  %v7745 = vmax.f32 %v7681, 0.0
  %v7746 = vmax.f32 %v7682, 0.0
  %v7747 = vmax.f32 %v7683, 0.0
  %7748 = vst [vmem:[%s10] sm:$0xff] %v7684
  %7749 = vst [vmem:[%s10 + $0x8] sm:$0xff] %v7685
  %7750 = vst [vmem:[%s10 + $0x10] sm:$0xff] %v7686
  %7751 = vst [vmem:[%s10 + $0x18] sm:$0xff] %v7687
  %7752 = vst [vmem:[%s10 + $0x20] sm:$0xff] %v7688
  %7753 = vst [vmem:[%s10 + $0x28] sm:$0xff] %v7689
  %7754 = vst [vmem:[%s10 + $0x30] sm:$0xff] %v7690
  %7755 = vst [vmem:[%s10 + $0x38] sm:$0xff] %v7691
  %7756 = vst [vmem:[%s10 + $0x40] sm:$0xff] %v7692
  %7757 = vst [vmem:[%s10 + $0x48] sm:$0xff] %v7693
  %7758 = vst [vmem:[%s10 + $0x50] sm:$0xff] %v7694
  %7759 = vst [vmem:[%s10 + $0x58] sm:$0xff] %v7695
  %7760 = vst [vmem:[%s10 + $0x60] sm:$0xff] %v7696
  %7761 = vst [vmem:[%s10 + $0x68] sm:$0xff] %v7697
  %7762 = vst [vmem:[%s10 + $0x70] sm:$0xff] %v7698
  %7763 = vst [vmem:[%s10 + $0x78] sm:$0xff] %v7699
  %7764 = vst [vmem:[%s10 + $0x80] sm:$0xff] %v7700
  %7765 = vst [vmem:[%s10 + $0x88] sm:$0xff] %v7701
  %7766 = vst [vmem:[%s10 + $0x90] sm:$0xff] %v7702
  %7767 = vst [vmem:[%s10 + $0x98] sm:$0xff] %v7703
  %7768 = vst [vmem:[%s10 + $0xa0] sm:$0xff] %v7704
  %7769 = vst [vmem:[%s10 + $0xa8] sm:$0xff] %v7705
  %7770 = vst [vmem:[%s10 + $0xb0] sm:$0xff] %v7706
  %7771 = vst [vmem:[%s10 + $0xb8] sm:$0xff] %v7707
  %7772 = vst [vmem:[%s10 + $0xc0] sm:$0xff] %v7708
  %7773 = vst [vmem:[%s10 + $0xc8] sm:$0xff] %v7709
  %7774 = vst [vmem:[%s10 + $0xd0] sm:$0xff] %v7710
  %7775 = vst [vmem:[%s10 + $0xd8] sm:$0xff] %v7711
  %7776 = vst [vmem:[%s10 + $0xe0] sm:$0xff] %v7712
  %7777 = vst [vmem:[%s10 + $0xe8] sm:$0xff] %v7713
  %7778 = vst [vmem:[%s10 + $0xf0] sm:$0xff] %v7714
  %7779 = vst [vmem:[%s10 + $0xf8] sm:$0xff] %v7715
  %7780 = vst [vmem:[%s10 + $0x100] sm:$0xff] %v7716
  %7781 = vst [vmem:[%s10 + $0x108] sm:$0xff] %v7717
  %7782 = vst [vmem:[%s10 + $0x110] sm:$0xff] %v7718
  %7783 = vst [vmem:[%s10 + $0x118] sm:$0xff] %v7719
  %7784 = vst [vmem:[%s10 + $0x120] sm:$0xff] %v7720
  %7785 = vst [vmem:[%s10 + $0x128] sm:$0xff] %v7721
  %7786 = vst [vmem:[%s10 + $0x130] sm:$0xff] %v7722
  %7787 = vst [vmem:[%s10 + $0x138] sm:$0xff] %v7723
  %7788 = vst [vmem:[%s10 + $0x140] sm:$0xff] %v7724
  %7789 = vst [vmem:[%s10 + $0x148] sm:$0xff] %v7725
  %7790 = vst [vmem:[%s10 + $0x150] sm:$0xff] %v7726
  %7791 = vst [vmem:[%s10 + $0x158] sm:$0xff] %v7727
  %7792 = vst [vmem:[%s10 + $0x160] sm:$0xff] %v7728
  %7793 = vst [vmem:[%s10 + $0x168] sm:$0xff] %v7729
  %7794 = vst [vmem:[%s10 + $0x170] sm:$0xff] %v7730
  %7795 = vst [vmem:[%s10 + $0x178] sm:$0xff] %v7731
  %7796 = vst [vmem:[%s10 + $0x180] sm:$0xff] %v7732
  %7797 = vst [vmem:[%s10 + $0x188] sm:$0xff] %v7733
  %7798 = vst [vmem:[%s10 + $0x190] sm:$0xff] %v7734
  %7799 = vst [vmem:[%s10 + $0x198] sm:$0xff] %v7735
  %7800 = vst [vmem:[%s10 + $0x1a0] sm:$0xff] %v7736
  %7801 = vst [vmem:[%s10 + $0x1a8] sm:$0xff] %v7737
  %7802 = vst [vmem:[%s10 + $0x1b0] sm:$0xff] %v7738
  %7803 = vst [vmem:[%s10 + $0x1b8] sm:$0xff] %v7739
  %7804 = vst [vmem:[%s10 + $0x1c0] sm:$0xff] %v7740
  %7805 = vst [vmem:[%s10 + $0x1c8] sm:$0xff] %v7741
  %7806 = vst [vmem:[%s10 + $0x1d0] sm:$0xff] %v7742
  %7807 = vst [vmem:[%s10 + $0x1d8] sm:$0xff] %v7743
  %7808 = vst [vmem:[%s10 + $0x1e0] sm:$0xff] %v7744
  %7809 = vst [vmem:[%s10 + $0x1e8] sm:$0xff] %v7745
  %7810 = vst [vmem:[%s10 + $0x1f0] sm:$0xff] %v7746
  %7811 = vst [vmem:[%s10 + $0x1f8] sm:$0xff] %v7747
  // Predicated region
  $region42: #{residual_forward.1} parent=0 // pred_check
    _
  $region43: #{residual_forward.1} parent=0 // pred_check_branch
    %7813 = sbr.rel (0) target = $region45
  $region44: #{residual_forward.1} parent=0 // pred_region
    _
  $region45: #{residual_forward.1} parent=0 // pred_fallthru
    _
  // Predicated region
  $region46: #{residual_forward.1} parent=0 // pred_check
    _
  $region47: #{residual_forward.1} parent=0 // pred_check_branch
    %7815 = sbr.rel (0) target = $region49
  $region48: #{residual_forward.1} parent=0 // pred_region
    _
  $region49: #{residual_forward.1} parent=0 // pred_fallthru
    _

</llo_original>
